<compile_context>
chip_gen: v7x
topology: tpu7x:2x2x1
jax: 0.10.0
libtpu: 0.0.40
codegen_flags: <defaults>
</compile_context>

<pallas_src>
import jax
import jax.numpy as jnp
from jax.experimental import pallas as pl
from jax.experimental.pallas import tpu as pltpu

# ----------------------------- configuration ------------------------------ #
N_FFT = 256
HOP = 128
N_FREQ = N_FFT // 2 + 1                  # 129 (onesided)
K_PAD = 256                              # freq axis padded to full lane width
HIDDEN = 32
H_PAD = 128                              # hidden padded to lane width
L_AUDIO = 2048                           # int16 audio samples per clip
N_FRAMES = 17                            # 1 + (2048 + 256 - 256) // 128
FRAME_ROWS = 24                          # frames per clip padded to mult. of 8
OUT_ROWS = L_AUDIO // HOP                # 16 output rows per clip
CHUNKS_PER_STEP = 16                     # clips fused per grid step
BLOCK_M = CHUNKS_PER_STEP * FRAME_ROWS   # 384 matmul rows per grid step
INV_INT16 = float(1.0 / 32768.0)


# ------------------------------ fused kernel ------------------------------- #
def fused_kernel(sega_ref, segb_ref, d1_ref, d2_ref, w1_ref, b1_ref,
                 w2_ref, b2_ref, ir_ref, ii_ref, out_ref):
    # raw int16 half-frame operands -> f32 (1/32768 folded into D1/D2)
    a = sega_ref[...].astype(jnp.float32)                 # [BLOCK_M, HOP]
    b = segb_ref[...].astype(jnp.float32)                 # [BLOCK_M, HOP]

    # forward DFT (analysis window + int16 scale folded into D1/D2):
    # split-accumulate pair instead of materializing [BLOCK_M, 256] frames.
    ri = (jnp.dot(a, d1_ref[...], preferred_element_type=jnp.float32)
          + jnp.dot(b, d2_ref[...], preferred_element_type=jnp.float32))
    re = ri[:, :K_PAD]                                    # lane-aligned views
    im = ri[:, K_PAD:]
    mag = jnp.sqrt(re * re + im * im)

    # synthetic GTCRN complex-mask MLP (see TODO at top of file)
    h = jnp.tanh(jnp.dot(mag, w1_ref[...],
                         preferred_element_type=jnp.float32) + b1_ref[...])
    m = jax.nn.sigmoid(jnp.dot(h, w2_ref[...],
                               preferred_element_type=jnp.float32) + b2_ref[...])
    mr = m[:, :K_PAD]
    mi = m[:, K_PAD:]
    sr = mr * re - mi * im
    si = mr * im + mi * re

    # inverse DFT with synthesis window and OLA window-square norm folded
    # into IR/II columns: split-accumulate pair instead of [sr|si] concat.
    fo = (jnp.dot(sr, ir_ref[...], preferred_element_type=jnp.float32)
          + jnp.dot(si, ii_ref[...], preferred_element_type=jnp.float32))

    # per-clip overlap-add + clamp/quantize; stores are aligned (16,128)
    # int16 tiles.  Only the "+1" slice per clip is sublane-unaligned.
    for c in range(CHUNKS_PER_STEP):
        base = c * FRAME_ROWS
        ola = fo[base + 1:base + 1 + OUT_ROWS, 0:HOP] + fo[base:base + OUT_ROWS, HOP:]
        out_ref[c * OUT_ROWS:(c + 1) * OUT_ROWS, :] = (
            jnp.clip(ola, -1.0, 1.0) * 32767.0).astype(jnp.int16)


def gtcrn_fused(seg_a, seg_b, params):
    total_rows = seg_a.shape[0]
    assert total_rows % BLOCK_M == 0
    n_steps = total_rows // BLOCK_M
    n_clips = n_steps * CHUNKS_PER_STEP

    # advisory cost estimate (whole call)
    flops_per_row = 2 * (2 * HOP * 2 * K_PAD + K_PAD * H_PAD
                         + H_PAD * 2 * K_PAD + 2 * K_PAD * N_FFT)
    weight_bytes = 4 * (2 * HOP * 2 * K_PAD + K_PAD * H_PAD + H_PAD
                        + H_PAD * 2 * K_PAD + 2 * K_PAD + 2 * K_PAD * N_FFT)
    ce = pl.CostEstimate(
        flops=flops_per_row * total_rows,
        transcendentals=total_rows * (2 * K_PAD + H_PAD + 2 * K_PAD),
        bytes_accessed=(2 * total_rows * HOP * 2          # seg_a + seg_b int16
                        + n_clips * OUT_ROWS * HOP * 2    # int16 output
                        + weight_bytes))

    return pl.pallas_call(
        fused_kernel,
        out_shape=jax.ShapeDtypeStruct((n_clips * OUT_ROWS, HOP), jnp.int16),
        grid=(n_steps,),
        in_specs=[
            pl.BlockSpec((BLOCK_M, HOP), lambda c: (c, 0)),            # seg_a
            pl.BlockSpec((BLOCK_M, HOP), lambda c: (c, 0)),            # seg_b
            pl.BlockSpec((HOP, 2 * K_PAD), lambda c: (0, 0)),          # D1
            pl.BlockSpec((HOP, 2 * K_PAD), lambda c: (0, 0)),          # D2
            pl.BlockSpec((K_PAD, H_PAD), lambda c: (0, 0)),            # W1
            pl.BlockSpec((1, H_PAD), lambda c: (0, 0)),                # b1
            pl.BlockSpec((H_PAD, 2 * K_PAD), lambda c: (0, 0)),        # W2
            pl.BlockSpec((1, 2 * K_PAD), lambda c: (0, 0)),            # b2
            pl.BlockSpec((K_PAD, N_FFT), lambda c: (0, 0)),            # IR
            pl.BlockSpec((K_PAD, N_FFT), lambda c: (0, 0)),            # II
        ],
        out_specs=pl.BlockSpec((CHUNKS_PER_STEP * OUT_ROWS, HOP), lambda c: (c, 0)),
        compiler_params=pltpu.CompilerParams(
            dimension_semantics=("parallel",),
            vmem_limit_bytes=32 * 1024 * 1024),
        cost_estimate=ce,
    )(seg_a, seg_b, params["D1"], params["D2"], params["W1"], params["b1"],
      params["W2"], params["b2"], params["IR"], params["II"])


# ------------------------------- parameters -------------------------------- #
def make_params():
    n = jnp.arange(N_FFT, dtype=jnp.float32)
    k = jnp.arange(N_FREQ, dtype=jnp.float32)
    pad_k = K_PAD - N_FREQ

    hann = 0.5 * (1.0 - jnp.cos(2.0 * jnp.pi * n / N_FFT))   # periodic Hann

    # forward DFT: X = x @ cos + j * x @ (-sin); analysis window and the
    # int16 -> float 1/32768 scale are folded into the matrix rows.
    ang = 2.0 * jnp.pi * n[:, None] * k[None, :] / N_FFT     # [N_FFT, N_FREQ]
    row_scale = (hann * INV_INT16)[:, None]
    cos_p = jnp.pad(row_scale * jnp.cos(ang), ((0, 0), (0, pad_k)))
    sin_p = jnp.pad(row_scale * (-jnp.sin(ang)), ((0, 0), (0, pad_k)))
    dft = jnp.concatenate([cos_p, sin_p], axis=1)            # [N_FFT, 2*K_PAD]
    D1 = dft[:HOP, :]                                        # first half-frame rows
    D2 = dft[HOP:, :]                                        # second half-frame rows

    # onesided inverse-DFT weights (1 for DC/Nyquist, 2 otherwise), /N;
    # synthesis window and the OLA window-square normalization are folded
    # into the matrix columns (norm depends only on t % HOP).
    wk = jnp.where((k == 0) | (k == N_FFT // 2), 1.0, 2.0) / N_FFT
    iang = 2.0 * jnp.pi * k[:, None] * n[None, :] / N_FFT    # [N_FREQ, N_FFT]
    hsq = hann * hann
    inv_norm = 1.0 / (hsq[:HOP] + hsq[HOP:])                 # [HOP], >= 2
    col_scale = (hann * jnp.concatenate([inv_norm, inv_norm]))[None, :]
    IR = jnp.pad(col_scale * (wk[:, None] * jnp.cos(iang)), ((0, pad_k), (0, 0)))
    II = jnp.pad(col_scale * (-wk[:, None] * jnp.sin(iang)), ((0, pad_k), (0, 0)))

    # synthetic mask network weights (deterministic placeholder)
    key = jax.random.PRNGKey(0)
    k1, k2 = jax.random.split(key, 2)
    w1 = 0.1 * jax.random.normal(k1, (N_FREQ, HIDDEN), dtype=jnp.float32)
    w2 = 0.1 * jax.random.normal(k2, (HIDDEN, 2 * N_FREQ), dtype=jnp.float32)
    W1 = jnp.pad(w1, ((0, K_PAD - N_FREQ), (0, H_PAD - HIDDEN)))        # [K_PAD, H_PAD]
    b1 = jnp.zeros((1, H_PAD), jnp.float32)
    w2r = jnp.pad(w2[:, :N_FREQ], ((0, H_PAD - HIDDEN), (0, pad_k)))
    w2i = jnp.pad(w2[:, N_FREQ:], ((0, H_PAD - HIDDEN), (0, pad_k)))
    W2 = jnp.concatenate([w2r, w2i], axis=1)                            # [H_PAD, 2*K_PAD]
    b2 = jnp.zeros((1, 2 * K_PAD), jnp.float32)

    return dict(D1=D1, D2=D2, IR=IR, II=II, W1=W1, b1=b1, W2=W2, b2=b2)


# ------------------------------ forward pass -------------------------------- #
def gtcrn_custom_forward(audio_i16, params):
    # audio_i16: (B, 1, 1, L_AUDIO) int16 — B independent clips, each
    # mirroring the module's `audio.reshape(1, 1, -1)` input.
    B = audio_i16.shape[0]
    rows = audio_i16.reshape(B, L_AUDIO // HOP, HOP)          # int16 [B, 16, 128]

    # pad batch to a multiple of CHUNKS_PER_STEP with silent clips
    nb = -(-B // CHUNKS_PER_STEP) * CHUNKS_PER_STEP
    if nb != B:
        rows = jnp.pad(rows, ((0, nb - B), (0, 0), (0, 0)))

    # pre-shifted half-frame operands (int16, zero-padded 'constant' frames):
    #   seg_a[f] = padded_row[f]   (f = 0..16; rows 17..23 are zero)
    #   seg_b[f] = padded_row[f+1]
    seg_a = jnp.pad(rows, ((0, 0), (1, FRAME_ROWS - 1 - (L_AUDIO // HOP)), (0, 0)))
    seg_b = jnp.pad(rows, ((0, 0), (0, FRAME_ROWS - (L_AUDIO // HOP)), (0, 0)))
    seg_a = seg_a.reshape(nb * FRAME_ROWS, HOP)
    seg_b = seg_b.reshape(nb * FRAME_ROWS, HOP)

    out_i16 = gtcrn_fused(seg_a, seg_b, params)               # [nb*16, 128] int16
    return out_i16.reshape(nb, 1, 1, L_AUDIO)[:B]


# ---------------------------------- main ------------------------------------ #
if __name__ == "__main__":
    key = jax.random.PRNGKey(0)
    B = 64                                                    # 64 clips of 2048 samples
    audio_i16 = jax.random.randint(
        key, (B, 1, 1, L_AUDIO), minval=-32768, maxval=32768,
        dtype=jnp.int32).astype(jnp.int16)

    params = make_params()
    out = jax.jit(gtcrn_custom_forward)(audio_i16, params)
    jax.block_until_ready(out)

    assert out.shape == (B, 1, 1, L_AUDIO) and out.dtype == jnp.int16
    print("KERNEL_OK")
</pallas_src>

<mosaic_0001>
module attributes {stable_mosaic.version = 11 : i64} {
  func.func @fused_kernel(%arg0: i32, %arg1: memref<384x128xi16, #tpu.memory_space<vmem>>, %arg2: memref<384x128xi16, #tpu.memory_space<vmem>>, %arg3: memref<128x512xf32, #tpu.memory_space<vmem>>, %arg4: memref<128x512xf32, #tpu.memory_space<vmem>>, %arg5: memref<256x128xf32, #tpu.memory_space<vmem>>, %arg6: memref<1x128xf32, #tpu.memory_space<vmem>>, %arg7: memref<128x512xf32, #tpu.memory_space<vmem>>, %arg8: memref<1x512xf32, #tpu.memory_space<vmem>>, %arg9: memref<256x256xf32, #tpu.memory_space<vmem>>, %arg10: memref<256x256xf32, #tpu.memory_space<vmem>>, %arg11: memref<256x128xi16, #tpu.memory_space<vmem>>) attributes {dimension_semantics = [#tpu.dimension_semantics<parallel>], iteration_bounds = array<i64: 4>, scalar_prefetch = 0 : i64, scratch_operands = 0 : i64, tpu.core_type = #tpu.core_type<tc>, window_params = [{transform_indices = @transform_0, window_bounds = array<i64: 384, 128>}, {transform_indices = @transform_1, window_bounds = array<i64: 384, 128>}, {pipeline_mode = #tpu.pipeline_mode<synchronous>, transform_indices = @transform_2, window_bounds = array<i64: 128, 512>}, {pipeline_mode = #tpu.pipeline_mode<synchronous>, transform_indices = @transform_3, window_bounds = array<i64: 128, 512>}, {pipeline_mode = #tpu.pipeline_mode<synchronous>, transform_indices = @transform_4, window_bounds = array<i64: 256, 128>}, {pipeline_mode = #tpu.pipeline_mode<synchronous>, transform_indices = @transform_5, window_bounds = array<i64: 1, 128>}, {pipeline_mode = #tpu.pipeline_mode<synchronous>, transform_indices = @transform_6, window_bounds = array<i64: 128, 512>}, {pipeline_mode = #tpu.pipeline_mode<synchronous>, transform_indices = @transform_7, window_bounds = array<i64: 1, 512>}, {pipeline_mode = #tpu.pipeline_mode<synchronous>, transform_indices = @transform_8, window_bounds = array<i64: 256, 256>}, {pipeline_mode = #tpu.pipeline_mode<synchronous>, transform_indices = @transform_9, window_bounds = array<i64: 256, 256>}, {transform_indices = @transform_10, window_bounds = array<i64: 256, 128>}]} {
    %c0 = arith.constant 0 : index
    %c0_0 = arith.constant 0 : index
    %0 = vector.load %arg1[%c0, %c0_0] : memref<384x128xi16, #tpu.memory_space<vmem>>, vector<384x128xi16>
    %1 = arith.sitofp %0 : vector<384x128xi16> to vector<384x128xf32>
    %c0_1 = arith.constant 0 : index
    %c0_2 = arith.constant 0 : index
    %2 = vector.load %arg2[%c0_1, %c0_2] : memref<384x128xi16, #tpu.memory_space<vmem>>, vector<384x128xi16>
    %3 = arith.sitofp %2 : vector<384x128xi16> to vector<384x128xf32>
    %c0_3 = arith.constant 0 : index
    %c0_4 = arith.constant 0 : index
    %4 = vector.load %arg3[%c0_3, %c0_4] : memref<128x512xf32, #tpu.memory_space<vmem>>, vector<128x512xf32>
    %cst = arith.constant dense<0.000000e+00> : vector<384x512xf32>
    %5 = tpu.matmul %1, %4, %cst {dimension_numbers = #tpu.dot_dimension_numbers<[1], [0], [0], [1], [0, 0, 1, 1], [], []>} : vector<384x128xf32>, vector<128x512xf32>, vector<384x512xf32> -> vector<384x512xf32>
    %c0_5 = arith.constant 0 : index
    %c0_6 = arith.constant 0 : index
    %6 = vector.load %arg4[%c0_5, %c0_6] : memref<128x512xf32, #tpu.memory_space<vmem>>, vector<128x512xf32>
    %cst_7 = arith.constant dense<0.000000e+00> : vector<384x512xf32>
    %7 = tpu.matmul %3, %6, %cst_7 {dimension_numbers = #tpu.dot_dimension_numbers<[1], [0], [0], [1], [0, 0, 1, 1], [], []>} : vector<384x128xf32>, vector<128x512xf32>, vector<384x512xf32> -> vector<384x512xf32>
    %8 = arith.addf %5, %7 : vector<384x512xf32>
    %9 = vector.extract_strided_slice %8 {offsets = [0, 0], sizes = [384, 256], strides = [1, 1]} : vector<384x512xf32> to vector<384x256xf32>
    %10 = vector.extract_strided_slice %8 {offsets = [0, 256], sizes = [384, 256], strides = [1, 1]} : vector<384x512xf32> to vector<384x256xf32>
    %11 = arith.mulf %9, %9 : vector<384x256xf32>
    %12 = arith.mulf %10, %10 : vector<384x256xf32>
    %13 = arith.addf %11, %12 : vector<384x256xf32>
    %14 = math.sqrt %13 : vector<384x256xf32>
    %c0_8 = arith.constant 0 : index
    %c0_9 = arith.constant 0 : index
    %15 = vector.load %arg5[%c0_8, %c0_9] : memref<256x128xf32, #tpu.memory_space<vmem>>, vector<256x128xf32>
    %cst_10 = arith.constant dense<0.000000e+00> : vector<384x128xf32>
    %16 = tpu.matmul %14, %15, %cst_10 {dimension_numbers = #tpu.dot_dimension_numbers<[1], [0], [0], [1], [0, 0, 1, 1], [], []>} : vector<384x256xf32>, vector<256x128xf32>, vector<384x128xf32> -> vector<384x128xf32>
    %c0_11 = arith.constant 0 : index
    %c0_12 = arith.constant 0 : index
    %17 = vector.load %arg6[%c0_11, %c0_12] : memref<1x128xf32, #tpu.memory_space<vmem>>, vector<1x128xf32>
    %18 = vector.broadcast %17 : vector<1x128xf32> to vector<384x128xf32>
    %19 = arith.addf %16, %18 : vector<384x128xf32>
    %20 = math.tanh %19 : vector<384x128xf32>
    %c0_13 = arith.constant 0 : index
    %c0_14 = arith.constant 0 : index
    %21 = vector.load %arg7[%c0_13, %c0_14] : memref<128x512xf32, #tpu.memory_space<vmem>>, vector<128x512xf32>
    %cst_15 = arith.constant dense<0.000000e+00> : vector<384x512xf32>
    %22 = tpu.matmul %20, %21, %cst_15 {dimension_numbers = #tpu.dot_dimension_numbers<[1], [0], [0], [1], [0, 0, 1, 1], [], []>} : vector<384x128xf32>, vector<128x512xf32>, vector<384x512xf32> -> vector<384x512xf32>
    %c0_16 = arith.constant 0 : index
    %c0_17 = arith.constant 0 : index
    %23 = vector.load %arg8[%c0_16, %c0_17] : memref<1x512xf32, #tpu.memory_space<vmem>>, vector<1x512xf32>
    %24 = vector.broadcast %23 : vector<1x512xf32> to vector<384x512xf32>
    %25 = arith.addf %22, %24 : vector<384x512xf32>
    %26 = arith.negf %25 : vector<384x512xf32>
    %27 = math.exp %26 : vector<384x512xf32>
    %cst_18 = arith.constant 1.000000e+00 : f32
    %28 = vector.broadcast %cst_18 : f32 to vector<384x512xf32>
    %29 = arith.addf %28, %27 : vector<384x512xf32>
    %30 = arith.divf %28, %29 : vector<384x512xf32>
    %31 = vector.extract_strided_slice %30 {offsets = [0, 0], sizes = [384, 256], strides = [1, 1]} : vector<384x512xf32> to vector<384x256xf32>
    %32 = vector.extract_strided_slice %30 {offsets = [0, 256], sizes = [384, 256], strides = [1, 1]} : vector<384x512xf32> to vector<384x256xf32>
    %33 = arith.mulf %31, %9 : vector<384x256xf32>
    %34 = arith.mulf %32, %10 : vector<384x256xf32>
    %35 = arith.subf %33, %34 : vector<384x256xf32>
    %36 = arith.mulf %31, %10 : vector<384x256xf32>
    %37 = arith.mulf %32, %9 : vector<384x256xf32>
    %38 = arith.addf %36, %37 : vector<384x256xf32>
    %c0_19 = arith.constant 0 : index
    %c0_20 = arith.constant 0 : index
    %39 = vector.load %arg9[%c0_19, %c0_20] : memref<256x256xf32, #tpu.memory_space<vmem>>, vector<256x256xf32>
    %cst_21 = arith.constant dense<0.000000e+00> : vector<384x256xf32>
    %40 = tpu.matmul %35, %39, %cst_21 {dimension_numbers = #tpu.dot_dimension_numbers<[1], [0], [0], [1], [0, 0, 1, 1], [], []>} : vector<384x256xf32>, vector<256x256xf32>, vector<384x256xf32> -> vector<384x256xf32>
    %c0_22 = arith.constant 0 : index
    %c0_23 = arith.constant 0 : index
    %41 = vector.load %arg10[%c0_22, %c0_23] : memref<256x256xf32, #tpu.memory_space<vmem>>, vector<256x256xf32>
    %cst_24 = arith.constant dense<0.000000e+00> : vector<384x256xf32>
    %42 = tpu.matmul %38, %41, %cst_24 {dimension_numbers = #tpu.dot_dimension_numbers<[1], [0], [0], [1], [0, 0, 1, 1], [], []>} : vector<384x256xf32>, vector<256x256xf32>, vector<384x256xf32> -> vector<384x256xf32>
    %43 = arith.addf %40, %42 : vector<384x256xf32>
    %44 = vector.extract_strided_slice %43 {offsets = [1, 0], sizes = [16, 128], strides = [1, 1]} : vector<384x256xf32> to vector<16x128xf32>
    %45 = vector.extract_strided_slice %43 {offsets = [0, 128], sizes = [16, 128], strides = [1, 1]} : vector<384x256xf32> to vector<16x128xf32>
    %46 = arith.addf %44, %45 : vector<16x128xf32>
    %cst_25 = arith.constant -1.000000e+00 : f32
    %cst_26 = arith.constant 1.000000e+00 : f32
    %47 = vector.broadcast %cst_25 : f32 to vector<16x128xf32>
    %48 = arith.maximumf %47, %46 : vector<16x128xf32>
    %49 = vector.broadcast %cst_26 : f32 to vector<16x128xf32>
    %50 = arith.minimumf %49, %48 : vector<16x128xf32>
    %cst_27 = arith.constant 3.276700e+04 : f32
    %51 = vector.broadcast %cst_27 : f32 to vector<16x128xf32>
    %52 = arith.mulf %50, %51 : vector<16x128xf32>
    %53 = arith.fptosi %52 : vector<16x128xf32> to vector<16x128xi16>
    %c0_28 = arith.constant 0 : index
    %c0_29 = arith.constant 0 : index
    %54 = vector.load %arg11[%c0_28, %c0_29] : memref<256x128xi16, #tpu.memory_space<vmem>>, vector<16x128xi16>
    tpu.vector_store %arg11[%c0_28, %c0_29], %53 {strides = array<i32>} : memref<256x128xi16, #tpu.memory_space<vmem>>, vector<16x128xi16>,
    %55 = vector.extract_strided_slice %43 {offsets = [25, 0], sizes = [16, 128], strides = [1, 1]} : vector<384x256xf32> to vector<16x128xf32>
    %56 = vector.extract_strided_slice %43 {offsets = [24, 128], sizes = [16, 128], strides = [1, 1]} : vector<384x256xf32> to vector<16x128xf32>
    %57 = arith.addf %55, %56 : vector<16x128xf32>
    %cst_30 = arith.constant -1.000000e+00 : f32
    %cst_31 = arith.constant 1.000000e+00 : f32
    %58 = vector.broadcast %cst_30 : f32 to vector<16x128xf32>
    %59 = arith.maximumf %58, %57 : vector<16x128xf32>
    %60 = vector.broadcast %cst_31 : f32 to vector<16x128xf32>
    %61 = arith.minimumf %60, %59 : vector<16x128xf32>
    %cst_32 = arith.constant 3.276700e+04 : f32
    %62 = vector.broadcast %cst_32 : f32 to vector<16x128xf32>
    %63 = arith.mulf %61, %62 : vector<16x128xf32>
    %64 = arith.fptosi %63 : vector<16x128xf32> to vector<16x128xi16>
    %c16 = arith.constant 16 : index
    %c0_33 = arith.constant 0 : index
    %65 = vector.load %arg11[%c16, %c0_33] : memref<256x128xi16, #tpu.memory_space<vmem>>, vector<16x128xi16>
    tpu.vector_store %arg11[%c16, %c0_33], %64 {strides = array<i32>} : memref<256x128xi16, #tpu.memory_space<vmem>>, vector<16x128xi16>,
    %66 = vector.extract_strided_slice %43 {offsets = [49, 0], sizes = [16, 128], strides = [1, 1]} : vector<384x256xf32> to vector<16x128xf32>
    %67 = vector.extract_strided_slice %43 {offsets = [48, 128], sizes = [16, 128], strides = [1, 1]} : vector<384x256xf32> to vector<16x128xf32>
    %68 = arith.addf %66, %67 : vector<16x128xf32>
    %cst_34 = arith.constant -1.000000e+00 : f32
    %cst_35 = arith.constant 1.000000e+00 : f32
    %69 = vector.broadcast %cst_34 : f32 to vector<16x128xf32>
    %70 = arith.maximumf %69, %68 : vector<16x128xf32>
    %71 = vector.broadcast %cst_35 : f32 to vector<16x128xf32>
    %72 = arith.minimumf %71, %70 : vector<16x128xf32>
    %cst_36 = arith.constant 3.276700e+04 : f32
    %73 = vector.broadcast %cst_36 : f32 to vector<16x128xf32>
    %74 = arith.mulf %72, %73 : vector<16x128xf32>
    %75 = arith.fptosi %74 : vector<16x128xf32> to vector<16x128xi16>
    %c32 = arith.constant 32 : index
    %c0_37 = arith.constant 0 : index
    %76 = vector.load %arg11[%c32, %c0_37] : memref<256x128xi16, #tpu.memory_space<vmem>>, vector<16x128xi16>
    tpu.vector_store %arg11[%c32, %c0_37], %75 {strides = array<i32>} : memref<256x128xi16, #tpu.memory_space<vmem>>, vector<16x128xi16>,
    %77 = vector.extract_strided_slice %43 {offsets = [73, 0], sizes = [16, 128], strides = [1, 1]} : vector<384x256xf32> to vector<16x128xf32>
    %78 = vector.extract_strided_slice %43 {offsets = [72, 128], sizes = [16, 128], strides = [1, 1]} : vector<384x256xf32> to vector<16x128xf32>
    %79 = arith.addf %77, %78 : vector<16x128xf32>
    %cst_38 = arith.constant -1.000000e+00 : f32
    %cst_39 = arith.constant 1.000000e+00 : f32
    %80 = vector.broadcast %cst_38 : f32 to vector<16x128xf32>
    %81 = arith.maximumf %80, %79 : vector<16x128xf32>
    %82 = vector.broadcast %cst_39 : f32 to vector<16x128xf32>
    %83 = arith.minimumf %82, %81 : vector<16x128xf32>
    %cst_40 = arith.constant 3.276700e+04 : f32
    %84 = vector.broadcast %cst_40 : f32 to vector<16x128xf32>
    %85 = arith.mulf %83, %84 : vector<16x128xf32>
    %86 = arith.fptosi %85 : vector<16x128xf32> to vector<16x128xi16>
    %c48 = arith.constant 48 : index
    %c0_41 = arith.constant 0 : index
    %87 = vector.load %arg11[%c48, %c0_41] : memref<256x128xi16, #tpu.memory_space<vmem>>, vector<16x128xi16>
    tpu.vector_store %arg11[%c48, %c0_41], %86 {strides = array<i32>} : memref<256x128xi16, #tpu.memory_space<vmem>>, vector<16x128xi16>,
    %88 = vector.extract_strided_slice %43 {offsets = [97, 0], sizes = [16, 128], strides = [1, 1]} : vector<384x256xf32> to vector<16x128xf32>
    %89 = vector.extract_strided_slice %43 {offsets = [96, 128], sizes = [16, 128], strides = [1, 1]} : vector<384x256xf32> to vector<16x128xf32>
    %90 = arith.addf %88, %89 : vector<16x128xf32>
    %cst_42 = arith.constant -1.000000e+00 : f32
    %cst_43 = arith.constant 1.000000e+00 : f32
    %91 = vector.broadcast %cst_42 : f32 to vector<16x128xf32>
    %92 = arith.maximumf %91, %90 : vector<16x128xf32>
    %93 = vector.broadcast %cst_43 : f32 to vector<16x128xf32>
    %94 = arith.minimumf %93, %92 : vector<16x128xf32>
    %cst_44 = arith.constant 3.276700e+04 : f32
    %95 = vector.broadcast %cst_44 : f32 to vector<16x128xf32>
    %96 = arith.mulf %94, %95 : vector<16x128xf32>
    %97 = arith.fptosi %96 : vector<16x128xf32> to vector<16x128xi16>
    %c64 = arith.constant 64 : index
    %c0_45 = arith.constant 0 : index
    %98 = vector.load %arg11[%c64, %c0_45] : memref<256x128xi16, #tpu.memory_space<vmem>>, vector<16x128xi16>
    tpu.vector_store %arg11[%c64, %c0_45], %97 {strides = array<i32>} : memref<256x128xi16, #tpu.memory_space<vmem>>, vector<16x128xi16>,
    %99 = vector.extract_strided_slice %43 {offsets = [121, 0], sizes = [16, 128], strides = [1, 1]} : vector<384x256xf32> to vector<16x128xf32>
    %100 = vector.extract_strided_slice %43 {offsets = [120, 128], sizes = [16, 128], strides = [1, 1]} : vector<384x256xf32> to vector<16x128xf32>
    %101 = arith.addf %99, %100 : vector<16x128xf32>
    %cst_46 = arith.constant -1.000000e+00 : f32
    %cst_47 = arith.constant 1.000000e+00 : f32
    %102 = vector.broadcast %cst_46 : f32 to vector<16x128xf32>
    %103 = arith.maximumf %102, %101 : vector<16x128xf32>
    %104 = vector.broadcast %cst_47 : f32 to vector<16x128xf32>
    %105 = arith.minimumf %104, %103 : vector<16x128xf32>
    %cst_48 = arith.constant 3.276700e+04 : f32
    %106 = vector.broadcast %cst_48 : f32 to vector<16x128xf32>
    %107 = arith.mulf %105, %106 : vector<16x128xf32>
    %108 = arith.fptosi %107 : vector<16x128xf32> to vector<16x128xi16>
    %c80 = arith.constant 80 : index
    %c0_49 = arith.constant 0 : index
    %109 = vector.load %arg11[%c80, %c0_49] : memref<256x128xi16, #tpu.memory_space<vmem>>, vector<16x128xi16>
    tpu.vector_store %arg11[%c80, %c0_49], %108 {strides = array<i32>} : memref<256x128xi16, #tpu.memory_space<vmem>>, vector<16x128xi16>,
    %110 = vector.extract_strided_slice %43 {offsets = [145, 0], sizes = [16, 128], strides = [1, 1]} : vector<384x256xf32> to vector<16x128xf32>
    %111 = vector.extract_strided_slice %43 {offsets = [144, 128], sizes = [16, 128], strides = [1, 1]} : vector<384x256xf32> to vector<16x128xf32>
    %112 = arith.addf %110, %111 : vector<16x128xf32>
    %cst_50 = arith.constant -1.000000e+00 : f32
    %cst_51 = arith.constant 1.000000e+00 : f32
    %113 = vector.broadcast %cst_50 : f32 to vector<16x128xf32>
    %114 = arith.maximumf %113, %112 : vector<16x128xf32>
    %115 = vector.broadcast %cst_51 : f32 to vector<16x128xf32>
    %116 = arith.minimumf %115, %114 : vector<16x128xf32>
    %cst_52 = arith.constant 3.276700e+04 : f32
    %117 = vector.broadcast %cst_52 : f32 to vector<16x128xf32>
    %118 = arith.mulf %116, %117 : vector<16x128xf32>
    %119 = arith.fptosi %118 : vector<16x128xf32> to vector<16x128xi16>
    %c96 = arith.constant 96 : index
    %c0_53 = arith.constant 0 : index
    %120 = vector.load %arg11[%c96, %c0_53] : memref<256x128xi16, #tpu.memory_space<vmem>>, vector<16x128xi16>
    tpu.vector_store %arg11[%c96, %c0_53], %119 {strides = array<i32>} : memref<256x128xi16, #tpu.memory_space<vmem>>, vector<16x128xi16>,
    %121 = vector.extract_strided_slice %43 {offsets = [169, 0], sizes = [16, 128], strides = [1, 1]} : vector<384x256xf32> to vector<16x128xf32>
    %122 = vector.extract_strided_slice %43 {offsets = [168, 128], sizes = [16, 128], strides = [1, 1]} : vector<384x256xf32> to vector<16x128xf32>
    %123 = arith.addf %121, %122 : vector<16x128xf32>
    %cst_54 = arith.constant -1.000000e+00 : f32
    %cst_55 = arith.constant 1.000000e+00 : f32
    %124 = vector.broadcast %cst_54 : f32 to vector<16x128xf32>
    %125 = arith.maximumf %124, %123 : vector<16x128xf32>
    %126 = vector.broadcast %cst_55 : f32 to vector<16x128xf32>
    %127 = arith.minimumf %126, %125 : vector<16x128xf32>
    %cst_56 = arith.constant 3.276700e+04 : f32
    %128 = vector.broadcast %cst_56 : f32 to vector<16x128xf32>
    %129 = arith.mulf %127, %128 : vector<16x128xf32>
    %130 = arith.fptosi %129 : vector<16x128xf32> to vector<16x128xi16>
    %c112 = arith.constant 112 : index
    %c0_57 = arith.constant 0 : index
    %131 = vector.load %arg11[%c112, %c0_57] : memref<256x128xi16, #tpu.memory_space<vmem>>, vector<16x128xi16>
    tpu.vector_store %arg11[%c112, %c0_57], %130 {strides = array<i32>} : memref<256x128xi16, #tpu.memory_space<vmem>>, vector<16x128xi16>,
    %132 = vector.extract_strided_slice %43 {offsets = [193, 0], sizes = [16, 128], strides = [1, 1]} : vector<384x256xf32> to vector<16x128xf32>
    %133 = vector.extract_strided_slice %43 {offsets = [192, 128], sizes = [16, 128], strides = [1, 1]} : vector<384x256xf32> to vector<16x128xf32>
    %134 = arith.addf %132, %133 : vector<16x128xf32>
    %cst_58 = arith.constant -1.000000e+00 : f32
    %cst_59 = arith.constant 1.000000e+00 : f32
    %135 = vector.broadcast %cst_58 : f32 to vector<16x128xf32>
    %136 = arith.maximumf %135, %134 : vector<16x128xf32>
    %137 = vector.broadcast %cst_59 : f32 to vector<16x128xf32>
    %138 = arith.minimumf %137, %136 : vector<16x128xf32>
    %cst_60 = arith.constant 3.276700e+04 : f32
    %139 = vector.broadcast %cst_60 : f32 to vector<16x128xf32>
    %140 = arith.mulf %138, %139 : vector<16x128xf32>
    %141 = arith.fptosi %140 : vector<16x128xf32> to vector<16x128xi16>
    %c128 = arith.constant 128 : index
    %c0_61 = arith.constant 0 : index
    %142 = vector.load %arg11[%c128, %c0_61] : memref<256x128xi16, #tpu.memory_space<vmem>>, vector<16x128xi16>
    tpu.vector_store %arg11[%c128, %c0_61], %141 {strides = array<i32>} : memref<256x128xi16, #tpu.memory_space<vmem>>, vector<16x128xi16>,
    %143 = vector.extract_strided_slice %43 {offsets = [217, 0], sizes = [16, 128], strides = [1, 1]} : vector<384x256xf32> to vector<16x128xf32>
    %144 = vector.extract_strided_slice %43 {offsets = [216, 128], sizes = [16, 128], strides = [1, 1]} : vector<384x256xf32> to vector<16x128xf32>
    %145 = arith.addf %143, %144 : vector<16x128xf32>
    %cst_62 = arith.constant -1.000000e+00 : f32
    %cst_63 = arith.constant 1.000000e+00 : f32
    %146 = vector.broadcast %cst_62 : f32 to vector<16x128xf32>
    %147 = arith.maximumf %146, %145 : vector<16x128xf32>
    %148 = vector.broadcast %cst_63 : f32 to vector<16x128xf32>
    %149 = arith.minimumf %148, %147 : vector<16x128xf32>
    %cst_64 = arith.constant 3.276700e+04 : f32
    %150 = vector.broadcast %cst_64 : f32 to vector<16x128xf32>
    %151 = arith.mulf %149, %150 : vector<16x128xf32>
    %152 = arith.fptosi %151 : vector<16x128xf32> to vector<16x128xi16>
    %c144 = arith.constant 144 : index
    %c0_65 = arith.constant 0 : index
    %153 = vector.load %arg11[%c144, %c0_65] : memref<256x128xi16, #tpu.memory_space<vmem>>, vector<16x128xi16>
    tpu.vector_store %arg11[%c144, %c0_65], %152 {strides = array<i32>} : memref<256x128xi16, #tpu.memory_space<vmem>>, vector<16x128xi16>,
    %154 = vector.extract_strided_slice %43 {offsets = [241, 0], sizes = [16, 128], strides = [1, 1]} : vector<384x256xf32> to vector<16x128xf32>
    %155 = vector.extract_strided_slice %43 {offsets = [240, 128], sizes = [16, 128], strides = [1, 1]} : vector<384x256xf32> to vector<16x128xf32>
    %156 = arith.addf %154, %155 : vector<16x128xf32>
    %cst_66 = arith.constant -1.000000e+00 : f32
    %cst_67 = arith.constant 1.000000e+00 : f32
    %157 = vector.broadcast %cst_66 : f32 to vector<16x128xf32>
    %158 = arith.maximumf %157, %156 : vector<16x128xf32>
    %159 = vector.broadcast %cst_67 : f32 to vector<16x128xf32>
    %160 = arith.minimumf %159, %158 : vector<16x128xf32>
    %cst_68 = arith.constant 3.276700e+04 : f32
    %161 = vector.broadcast %cst_68 : f32 to vector<16x128xf32>
    %162 = arith.mulf %160, %161 : vector<16x128xf32>
    %163 = arith.fptosi %162 : vector<16x128xf32> to vector<16x128xi16>
    %c160 = arith.constant 160 : index
    %c0_69 = arith.constant 0 : index
    %164 = vector.load %arg11[%c160, %c0_69] : memref<256x128xi16, #tpu.memory_space<vmem>>, vector<16x128xi16>
    tpu.vector_store %arg11[%c160, %c0_69], %163 {strides = array<i32>} : memref<256x128xi16, #tpu.memory_space<vmem>>, vector<16x128xi16>,
    %165 = vector.extract_strided_slice %43 {offsets = [265, 0], sizes = [16, 128], strides = [1, 1]} : vector<384x256xf32> to vector<16x128xf32>
    %166 = vector.extract_strided_slice %43 {offsets = [264, 128], sizes = [16, 128], strides = [1, 1]} : vector<384x256xf32> to vector<16x128xf32>
    %167 = arith.addf %165, %166 : vector<16x128xf32>
    %cst_70 = arith.constant -1.000000e+00 : f32
    %cst_71 = arith.constant 1.000000e+00 : f32
    %168 = vector.broadcast %cst_70 : f32 to vector<16x128xf32>
    %169 = arith.maximumf %168, %167 : vector<16x128xf32>
    %170 = vector.broadcast %cst_71 : f32 to vector<16x128xf32>
    %171 = arith.minimumf %170, %169 : vector<16x128xf32>
    %cst_72 = arith.constant 3.276700e+04 : f32
    %172 = vector.broadcast %cst_72 : f32 to vector<16x128xf32>
    %173 = arith.mulf %171, %172 : vector<16x128xf32>
    %174 = arith.fptosi %173 : vector<16x128xf32> to vector<16x128xi16>
    %c176 = arith.constant 176 : index
    %c0_73 = arith.constant 0 : index
    %175 = vector.load %arg11[%c176, %c0_73] : memref<256x128xi16, #tpu.memory_space<vmem>>, vector<16x128xi16>
    tpu.vector_store %arg11[%c176, %c0_73], %174 {strides = array<i32>} : memref<256x128xi16, #tpu.memory_space<vmem>>, vector<16x128xi16>,
    %176 = vector.extract_strided_slice %43 {offsets = [289, 0], sizes = [16, 128], strides = [1, 1]} : vector<384x256xf32> to vector<16x128xf32>
    %177 = vector.extract_strided_slice %43 {offsets = [288, 128], sizes = [16, 128], strides = [1, 1]} : vector<384x256xf32> to vector<16x128xf32>
    %178 = arith.addf %176, %177 : vector<16x128xf32>
    %cst_74 = arith.constant -1.000000e+00 : f32
    %cst_75 = arith.constant 1.000000e+00 : f32
    %179 = vector.broadcast %cst_74 : f32 to vector<16x128xf32>
    %180 = arith.maximumf %179, %178 : vector<16x128xf32>
    %181 = vector.broadcast %cst_75 : f32 to vector<16x128xf32>
    %182 = arith.minimumf %181, %180 : vector<16x128xf32>
    %cst_76 = arith.constant 3.276700e+04 : f32
    %183 = vector.broadcast %cst_76 : f32 to vector<16x128xf32>
    %184 = arith.mulf %182, %183 : vector<16x128xf32>
    %185 = arith.fptosi %184 : vector<16x128xf32> to vector<16x128xi16>
    %c192 = arith.constant 192 : index
    %c0_77 = arith.constant 0 : index
    %186 = vector.load %arg11[%c192, %c0_77] : memref<256x128xi16, #tpu.memory_space<vmem>>, vector<16x128xi16>
    tpu.vector_store %arg11[%c192, %c0_77], %185 {strides = array<i32>} : memref<256x128xi16, #tpu.memory_space<vmem>>, vector<16x128xi16>,
    %187 = vector.extract_strided_slice %43 {offsets = [313, 0], sizes = [16, 128], strides = [1, 1]} : vector<384x256xf32> to vector<16x128xf32>
    %188 = vector.extract_strided_slice %43 {offsets = [312, 128], sizes = [16, 128], strides = [1, 1]} : vector<384x256xf32> to vector<16x128xf32>
    %189 = arith.addf %187, %188 : vector<16x128xf32>
    %cst_78 = arith.constant -1.000000e+00 : f32
    %cst_79 = arith.constant 1.000000e+00 : f32
    %190 = vector.broadcast %cst_78 : f32 to vector<16x128xf32>
    %191 = arith.maximumf %190, %189 : vector<16x128xf32>
    %192 = vector.broadcast %cst_79 : f32 to vector<16x128xf32>
    %193 = arith.minimumf %192, %191 : vector<16x128xf32>
    %cst_80 = arith.constant 3.276700e+04 : f32
    %194 = vector.broadcast %cst_80 : f32 to vector<16x128xf32>
    %195 = arith.mulf %193, %194 : vector<16x128xf32>
    %196 = arith.fptosi %195 : vector<16x128xf32> to vector<16x128xi16>
    %c208 = arith.constant 208 : index
    %c0_81 = arith.constant 0 : index
    %197 = vector.load %arg11[%c208, %c0_81] : memref<256x128xi16, #tpu.memory_space<vmem>>, vector<16x128xi16>
    tpu.vector_store %arg11[%c208, %c0_81], %196 {strides = array<i32>} : memref<256x128xi16, #tpu.memory_space<vmem>>, vector<16x128xi16>,
    %198 = vector.extract_strided_slice %43 {offsets = [337, 0], sizes = [16, 128], strides = [1, 1]} : vector<384x256xf32> to vector<16x128xf32>
    %199 = vector.extract_strided_slice %43 {offsets = [336, 128], sizes = [16, 128], strides = [1, 1]} : vector<384x256xf32> to vector<16x128xf32>
    %200 = arith.addf %198, %199 : vector<16x128xf32>
    %cst_82 = arith.constant -1.000000e+00 : f32
    %cst_83 = arith.constant 1.000000e+00 : f32
    %201 = vector.broadcast %cst_82 : f32 to vector<16x128xf32>
    %202 = arith.maximumf %201, %200 : vector<16x128xf32>
    %203 = vector.broadcast %cst_83 : f32 to vector<16x128xf32>
    %204 = arith.minimumf %203, %202 : vector<16x128xf32>
    %cst_84 = arith.constant 3.276700e+04 : f32
    %205 = vector.broadcast %cst_84 : f32 to vector<16x128xf32>
    %206 = arith.mulf %204, %205 : vector<16x128xf32>
    %207 = arith.fptosi %206 : vector<16x128xf32> to vector<16x128xi16>
    %c224 = arith.constant 224 : index
    %c0_85 = arith.constant 0 : index
    %208 = vector.load %arg11[%c224, %c0_85] : memref<256x128xi16, #tpu.memory_space<vmem>>, vector<16x128xi16>
    tpu.vector_store %arg11[%c224, %c0_85], %207 {strides = array<i32>} : memref<256x128xi16, #tpu.memory_space<vmem>>, vector<16x128xi16>,
    %209 = vector.extract_strided_slice %43 {offsets = [361, 0], sizes = [16, 128], strides = [1, 1]} : vector<384x256xf32> to vector<16x128xf32>
    %210 = vector.extract_strided_slice %43 {offsets = [360, 128], sizes = [16, 128], strides = [1, 1]} : vector<384x256xf32> to vector<16x128xf32>
    %211 = arith.addf %209, %210 : vector<16x128xf32>
    %cst_86 = arith.constant -1.000000e+00 : f32
    %cst_87 = arith.constant 1.000000e+00 : f32
    %212 = vector.broadcast %cst_86 : f32 to vector<16x128xf32>
    %213 = arith.maximumf %212, %211 : vector<16x128xf32>
    %214 = vector.broadcast %cst_87 : f32 to vector<16x128xf32>
    %215 = arith.minimumf %214, %213 : vector<16x128xf32>
    %cst_88 = arith.constant 3.276700e+04 : f32
    %216 = vector.broadcast %cst_88 : f32 to vector<16x128xf32>
    %217 = arith.mulf %215, %216 : vector<16x128xf32>
    %218 = arith.fptosi %217 : vector<16x128xf32> to vector<16x128xi16>
    %c240 = arith.constant 240 : index
    %c0_89 = arith.constant 0 : index
    %219 = vector.load %arg11[%c240, %c0_89] : memref<256x128xi16, #tpu.memory_space<vmem>>, vector<16x128xi16>
    tpu.vector_store %arg11[%c240, %c0_89], %218 {strides = array<i32>} : memref<256x128xi16, #tpu.memory_space<vmem>>, vector<16x128xi16>,
    return
  }
  func.func @transform_0(%arg0: i32) -> (i32, i32) {
    %c0_i32 = arith.constant 0 : i32
    %c0_i32_0 = arith.constant 0 : i32
    return %arg0, %c0_i32 : i32, i32
  }
  func.func @transform_1(%arg0: i32) -> (i32, i32) {
    %c0_i32 = arith.constant 0 : i32
    %c0_i32_0 = arith.constant 0 : i32
    return %arg0, %c0_i32 : i32, i32
  }
  func.func @transform_2(%arg0: i32) -> (i32, i32) {
    %c0_i32 = arith.constant 0 : i32
    %c0_i32_0 = arith.constant 0 : i32
    %c0_i32_1 = arith.constant 0 : i32
    return %c0_i32, %c0_i32_0 : i32, i32
  }
  func.func @transform_3(%arg0: i32) -> (i32, i32) {
    %c0_i32 = arith.constant 0 : i32
    %c0_i32_0 = arith.constant 0 : i32
    %c0_i32_1 = arith.constant 0 : i32
    return %c0_i32, %c0_i32_0 : i32, i32
  }
  func.func @transform_4(%arg0: i32) -> (i32, i32) {
    %c0_i32 = arith.constant 0 : i32
    %c0_i32_0 = arith.constant 0 : i32
    %c0_i32_1 = arith.constant 0 : i32
    return %c0_i32, %c0_i32_0 : i32, i32
  }
  func.func @transform_5(%arg0: i32) -> (i32, i32) {
    %c0_i32 = arith.constant 0 : i32
    %c0_i32_0 = arith.constant 0 : i32
    %c0_i32_1 = arith.constant 0 : i32
    return %c0_i32, %c0_i32_0 : i32, i32
  }
  func.func @transform_6(%arg0: i32) -> (i32, i32) {
    %c0_i32 = arith.constant 0 : i32
    %c0_i32_0 = arith.constant 0 : i32
    %c0_i32_1 = arith.constant 0 : i32
    return %c0_i32, %c0_i32_0 : i32, i32
  }
  func.func @transform_7(%arg0: i32) -> (i32, i32) {
    %c0_i32 = arith.constant 0 : i32
    %c0_i32_0 = arith.constant 0 : i32
    %c0_i32_1 = arith.constant 0 : i32
    return %c0_i32, %c0_i32_0 : i32, i32
  }
  func.func @transform_8(%arg0: i32) -> (i32, i32) {
    %c0_i32 = arith.constant 0 : i32
    %c0_i32_0 = arith.constant 0 : i32
    %c0_i32_1 = arith.constant 0 : i32
    return %c0_i32, %c0_i32_0 : i32, i32
  }
  func.func @transform_9(%arg0: i32) -> (i32, i32) {
    %c0_i32 = arith.constant 0 : i32
    %c0_i32_0 = arith.constant 0 : i32
    %c0_i32_1 = arith.constant 0 : i32
    return %c0_i32, %c0_i32_0 : i32, i32
  }
  func.func @transform_10(%arg0: i32) -> (i32, i32) {
    %c0_i32 = arith.constant 0 : i32
    %c0_i32_0 = arith.constant 0 : i32
    return %arg0, %c0_i32 : i32, i32
  }
}

</mosaic_0001>

<llo_original>
// kernel: gtcrn_custom_forward.1
$region0: #{gtcrn_custom_forward.1}
  #allocation0 [shape = 'u32[]', space=smem, size = 0x4, offset = 0x4, fixed_abs, tag = 'smem constant byte address 0x4 - core index']
  #allocation1 [shape = 'u32[144,128]{1,0:T(1,128)}', space=vmem, size = 0x12000, scoped, tag = 'internal scratch']
  %s0 = inlined_call_operand.vmem [shape: s16[1536,128], index: 0, kind: input, shape index: {}]
  %s1 = inlined_call_operand.vmem [shape: s16[1536,128], index: 1, kind: input, shape index: {}]
  %s2 = inlined_call_operand.vmem [shape: f32[128,512], index: 2, kind: input, shape index: {}]
  %s3 = inlined_call_operand.vmem [shape: f32[128,512], index: 3, kind: input, shape index: {}]
  %s4 = inlined_call_operand.vmem [shape: f32[256,128], index: 4, kind: input, shape index: {}]
  %s5 = inlined_call_operand.vmem [shape: f32[1,128], index: 5, kind: input, shape index: {}]
  %s6 = inlined_call_operand.vmem [shape: f32[128,512], index: 6, kind: input, shape index: {}]
  %s7 = inlined_call_operand.vmem [shape: f32[1,512], index: 7, kind: input, shape index: {}]
  %s8 = inlined_call_operand.vmem [shape: f32[256,256], index: 8, kind: input, shape index: {}]
  %s9 = inlined_call_operand.vmem [shape: f32[256,256], index: 9, kind: input, shape index: {}]
  %s10 = inlined_call_operand.vmem [shape: s16[1024,128], index: 10, kind: output, shape index: {}]
  %s11 = sld [smem:[#allocation0]]
  $region73: #{gtcrn_custom_forward.1} parent=0
    _
  %s13 = ssub.s32 1, %s11
  %s14 = scalar_select 0, %s13, %s11
  loop: start=0, step=1, limit=6
  $region2: #{gtcrn_custom_forward.1} parent=0 // loop_pre_header
    _
  $region3: #{gtcrn_custom_forward.1} parent=0 // loop_header
    %s16 = sphi 0, %s20
    %p17 = scmp.ge.s32.totalorder %s16, 6
    %s26 = sphi 0, %s28
    %s29 = sphi 0, %s26
    %s30 = sphi 0, %s29
    %s46 = sphi 0, %s30
    %s52 = sphi 0, %s54
    %s55 = sphi 0, %s52
    %s56 = sphi 0, %s55
    %s72 = sphi 0, %s56
    %s76 = sphi 0, %s76
    %s78 = sphi 0, %s76
    %s79 = sphi 0, %s78
    %s93 = sphi 0, %s79
    %s97 = sphi 0, %s97
    %s99 = sphi 0, %s97
    %s100 = sphi 0, %s99
    %s114 = sphi 0, %s100
    %s118 = sphi 0, %s118
    %s120 = sphi 0, %s118
    %s121 = sphi 0, %s120
    %s135 = sphi 0, %s121
    %s139 = sphi 0, %s139
    %s141 = sphi 0, %s139
    %s142 = sphi 0, %s141
    %s156 = sphi 0, %s142
    %s160 = sphi 0, %s160
    %s162 = sphi 0, %s160
    %s163 = sphi 0, %s162
    %s177 = sphi 0, %s163
    %s181 = sphi 0, %s181
    %s183 = sphi 0, %s181
    %s184 = sphi 0, %s183
    %s198 = sphi 0, %s184
    %s202 = sphi 0, %s202
    %s204 = sphi 0, %s202
    %s205 = sphi 0, %s204
    %s219 = sphi 0, %s205
    %s223 = sphi 0, %s223
    %s225 = sphi 0, %s223
    %s226 = sphi 0, %s225
    %s240 = sphi 0, %s226
    %s246 = sphi 0, %s248
    %s249 = sphi 0, %s246
    %s250 = sphi 0, %s249
    %s266 = sphi 0, %s250
  $region4: #{gtcrn_custom_forward.1} parent=0 // loop_header_branch
    %19 = sbr.rel (%p17) target = $region8
  $region5: #{gtcrn_custom_forward.1} parent=0 // loop_body
    %s21 = ssub.s32 %s16, 1
    %s22 = ssub.s32 %s16, 2
    %s23 = sadd.s32 %s16, 1
    %s24 = ssub.s32 %s16, %s23
    %p25 = scmp.eq.s32.totalorder %s24, 0
    %s27 = sadd.s32 %s26, 1
    %s28 = scalar_select %p25, %s26, %s27
    %p31 = pneg %p25
    %p32 = scmp.eq.s32.totalorder %s16, 3
    %p33 = por %p31, %p32
    %p34 = scmp.ne.s32.totalorder %s26, %s29
    %p35 = scmp.eq.s32.totalorder %s16, 0
    %p36 = por %p34, %p35
    %p37 = scmp.ne.s32.totalorder %s26, %s29
    %p38 = scmp.eq.s32.totalorder %s21, 3
    %p39 = por %p37, %p38
    %p40 = scmp.ne.s32.totalorder %s29, %s30
    %p41 = scmp.eq.s32.totalorder %s21, 0
    %p42 = por %p40, %p41
    %p43 = scmp.ne.s32.totalorder %s29, %s30
    %p44 = scmp.eq.s32.totalorder %s22, 3
    %p45 = por %p43, %p44
    %p47 = scmp.ne.s32.totalorder %s30, %s46
    %p48 = scmp.eq.s32.totalorder %s22, 0
    %p49 = por %p47, %p48
    %s50 = ssub.s32 %s16, %s23
    %p51 = scmp.eq.s32.totalorder %s50, 0
    %s53 = sadd.s32 %s52, 1
    %s54 = scalar_select %p51, %s52, %s53
    %p57 = pneg %p51
    %p58 = scmp.eq.s32.totalorder %s16, 3
    %p59 = por %p57, %p58
    %p60 = scmp.ne.s32.totalorder %s52, %s55
    %p61 = scmp.eq.s32.totalorder %s16, 0
    %p62 = por %p60, %p61
    %p63 = scmp.ne.s32.totalorder %s52, %s55
    %p64 = scmp.eq.s32.totalorder %s21, 3
    %p65 = por %p63, %p64
    %p66 = scmp.ne.s32.totalorder %s55, %s56
    %p67 = scmp.eq.s32.totalorder %s21, 0
    %p68 = por %p66, %p67
    %p69 = scmp.ne.s32.totalorder %s55, %s56
    %p70 = scmp.eq.s32.totalorder %s22, 3
    %p71 = por %p69, %p70
    %p73 = scmp.ne.s32.totalorder %s56, %s72
    %p74 = scmp.eq.s32.totalorder %s22, 0
    %p75 = por %p73, %p74
    %s77 = sadd.s32 %s76, 1
    %p80 = scmp.eq.s32.totalorder %s16, 3
    %p81 = scmp.ne.s32.totalorder %s76, %s78
    %p82 = scmp.eq.s32.totalorder %s16, 0
    %p83 = por %p81, %p82
    %p84 = scmp.ne.s32.totalorder %s76, %s78
    %p85 = scmp.eq.s32.totalorder %s21, 3
    %p86 = por %p84, %p85
    %p87 = scmp.ne.s32.totalorder %s78, %s79
    %p88 = scmp.eq.s32.totalorder %s21, 0
    %p89 = por %p87, %p88
    %p90 = scmp.ne.s32.totalorder %s78, %s79
    %p91 = scmp.eq.s32.totalorder %s22, 3
    %p92 = por %p90, %p91
    %p94 = scmp.ne.s32.totalorder %s79, %s93
    %p95 = scmp.eq.s32.totalorder %s22, 0
    %p96 = por %p94, %p95
    %s98 = sadd.s32 %s97, 1
    %p101 = scmp.eq.s32.totalorder %s16, 3
    %p102 = scmp.ne.s32.totalorder %s97, %s99
    %p103 = scmp.eq.s32.totalorder %s16, 0
    %p104 = por %p102, %p103
    %p105 = scmp.ne.s32.totalorder %s97, %s99
    %p106 = scmp.eq.s32.totalorder %s21, 3
    %p107 = por %p105, %p106
    %p108 = scmp.ne.s32.totalorder %s99, %s100
    %p109 = scmp.eq.s32.totalorder %s21, 0
    %p110 = por %p108, %p109
    %p111 = scmp.ne.s32.totalorder %s99, %s100
    %p112 = scmp.eq.s32.totalorder %s22, 3
    %p113 = por %p111, %p112
    %p115 = scmp.ne.s32.totalorder %s100, %s114
    %p116 = scmp.eq.s32.totalorder %s22, 0
    %p117 = por %p115, %p116
    %s119 = sadd.s32 %s118, 1
    %p122 = scmp.eq.s32.totalorder %s16, 3
    %p123 = scmp.ne.s32.totalorder %s118, %s120
    %p124 = scmp.eq.s32.totalorder %s16, 0
    %p125 = por %p123, %p124
    %p126 = scmp.ne.s32.totalorder %s118, %s120
    %p127 = scmp.eq.s32.totalorder %s21, 3
    %p128 = por %p126, %p127
    %p129 = scmp.ne.s32.totalorder %s120, %s121
    %p130 = scmp.eq.s32.totalorder %s21, 0
    %p131 = por %p129, %p130
    %p132 = scmp.ne.s32.totalorder %s120, %s121
    %p133 = scmp.eq.s32.totalorder %s22, 3
    %p134 = por %p132, %p133
    %p136 = scmp.ne.s32.totalorder %s121, %s135
    %p137 = scmp.eq.s32.totalorder %s22, 0
    %p138 = por %p136, %p137
    %s140 = sadd.s32 %s139, 1
    %p143 = scmp.eq.s32.totalorder %s16, 3
    %p144 = scmp.ne.s32.totalorder %s139, %s141
    %p145 = scmp.eq.s32.totalorder %s16, 0
    %p146 = por %p144, %p145
    %p147 = scmp.ne.s32.totalorder %s139, %s141
    %p148 = scmp.eq.s32.totalorder %s21, 3
    %p149 = por %p147, %p148
    %p150 = scmp.ne.s32.totalorder %s141, %s142
    %p151 = scmp.eq.s32.totalorder %s21, 0
    %p152 = por %p150, %p151
    %p153 = scmp.ne.s32.totalorder %s141, %s142
    %p154 = scmp.eq.s32.totalorder %s22, 3
    %p155 = por %p153, %p154
    %p157 = scmp.ne.s32.totalorder %s142, %s156
    %p158 = scmp.eq.s32.totalorder %s22, 0
    %p159 = por %p157, %p158
    %s161 = sadd.s32 %s160, 1
    %p164 = scmp.eq.s32.totalorder %s16, 3
    %p165 = scmp.ne.s32.totalorder %s160, %s162
    %p166 = scmp.eq.s32.totalorder %s16, 0
    %p167 = por %p165, %p166
    %p168 = scmp.ne.s32.totalorder %s160, %s162
    %p169 = scmp.eq.s32.totalorder %s21, 3
    %p170 = por %p168, %p169
    %p171 = scmp.ne.s32.totalorder %s162, %s163
    %p172 = scmp.eq.s32.totalorder %s21, 0
    %p173 = por %p171, %p172
    %p174 = scmp.ne.s32.totalorder %s162, %s163
    %p175 = scmp.eq.s32.totalorder %s22, 3
    %p176 = por %p174, %p175
    %p178 = scmp.ne.s32.totalorder %s163, %s177
    %p179 = scmp.eq.s32.totalorder %s22, 0
    %p180 = por %p178, %p179
    %s182 = sadd.s32 %s181, 1
    %p185 = scmp.eq.s32.totalorder %s16, 3
    %p186 = scmp.ne.s32.totalorder %s181, %s183
    %p187 = scmp.eq.s32.totalorder %s16, 0
    %p188 = por %p186, %p187
    %p189 = scmp.ne.s32.totalorder %s181, %s183
    %p190 = scmp.eq.s32.totalorder %s21, 3
    %p191 = por %p189, %p190
    %p192 = scmp.ne.s32.totalorder %s183, %s184
    %p193 = scmp.eq.s32.totalorder %s21, 0
    %p194 = por %p192, %p193
    %p195 = scmp.ne.s32.totalorder %s183, %s184
    %p196 = scmp.eq.s32.totalorder %s22, 3
    %p197 = por %p195, %p196
    %p199 = scmp.ne.s32.totalorder %s184, %s198
    %p200 = scmp.eq.s32.totalorder %s22, 0
    %p201 = por %p199, %p200
    %s203 = sadd.s32 %s202, 1
    %p206 = scmp.eq.s32.totalorder %s16, 3
    %p207 = scmp.ne.s32.totalorder %s202, %s204
    %p208 = scmp.eq.s32.totalorder %s16, 0
    %p209 = por %p207, %p208
    %p210 = scmp.ne.s32.totalorder %s202, %s204
    %p211 = scmp.eq.s32.totalorder %s21, 3
    %p212 = por %p210, %p211
    %p213 = scmp.ne.s32.totalorder %s204, %s205
    %p214 = scmp.eq.s32.totalorder %s21, 0
    %p215 = por %p213, %p214
    %p216 = scmp.ne.s32.totalorder %s204, %s205
    %p217 = scmp.eq.s32.totalorder %s22, 3
    %p218 = por %p216, %p217
    %p220 = scmp.ne.s32.totalorder %s205, %s219
    %p221 = scmp.eq.s32.totalorder %s22, 0
    %p222 = por %p220, %p221
    %s224 = sadd.s32 %s223, 1
    %p227 = scmp.eq.s32.totalorder %s16, 3
    %p228 = scmp.ne.s32.totalorder %s223, %s225
    %p229 = scmp.eq.s32.totalorder %s16, 0
    %p230 = por %p228, %p229
    %p231 = scmp.ne.s32.totalorder %s223, %s225
    %p232 = scmp.eq.s32.totalorder %s21, 3
    %p233 = por %p231, %p232
    %p234 = scmp.ne.s32.totalorder %s225, %s226
    %p235 = scmp.eq.s32.totalorder %s21, 0
    %p236 = por %p234, %p235
    %p237 = scmp.ne.s32.totalorder %s225, %s226
    %p238 = scmp.eq.s32.totalorder %s22, 3
    %p239 = por %p237, %p238
    %p241 = scmp.ne.s32.totalorder %s226, %s240
    %p242 = scmp.eq.s32.totalorder %s22, 0
    %p243 = por %p241, %p242
    %s244 = ssub.s32 %s16, %s23
    %p245 = scmp.eq.s32.totalorder %s244, 0
    %s247 = sadd.s32 %s246, 1
    %s248 = scalar_select %p245, %s246, %s247
    %p251 = pneg %p245
    %p252 = scmp.eq.s32.totalorder %s16, 3
    %p253 = por %p251, %p252
    %p254 = scmp.ne.s32.totalorder %s246, %s249
    %p255 = scmp.eq.s32.totalorder %s16, 0
    %p256 = por %p254, %p255
    %p257 = scmp.ne.s32.totalorder %s246, %s249
    %p258 = scmp.eq.s32.totalorder %s21, 3
    %p259 = por %p257, %p258
    %p260 = scmp.ne.s32.totalorder %s249, %s250
    %p261 = scmp.eq.s32.totalorder %s21, 0
    %p262 = por %p260, %p261
    %p263 = scmp.ne.s32.totalorder %s249, %s250
    %p264 = scmp.eq.s32.totalorder %s22, 3
    %p265 = por %p263, %p264
    %p267 = scmp.ne.s32.totalorder %s250, %s266
    %p268 = scmp.eq.s32.totalorder %s22, 0
    %p269 = por %p267, %p268
    %p270 = scmp.le.s32.totalorder 1, %s16
    %p271 = scmp.lt.s32.totalorder %s16, 5
    %p272 = pnand %p270, %p271
    %p273 = pneg %p272
    // Predicated region
    $region9: #{gtcrn_custom_forward.1} parent=5 // pred_check
      _
    $region10: #{gtcrn_custom_forward.1} parent=5 // pred_check_branch
      %275 = sbr.rel (%p272) target = $region12
    $region11: #{gtcrn_custom_forward.1} parent=5 // pred_region
      %s276 = ssub.s32 %s16, 1
      // Predicated region
      $region13: #{gtcrn_custom_forward.1} parent=11 // pred_check
        %p277 = pneg %p89
      $region14: #{gtcrn_custom_forward.1} parent=11 // pred_check_branch
        %279 = sbr.rel (%p277) target = $region16
      $region15: #{gtcrn_custom_forward.1} parent=11 // pred_region
        _
      $region16: #{gtcrn_custom_forward.1} parent=11 // pred_fallthru
        _
      // Predicated region
      $region17: #{gtcrn_custom_forward.1} parent=11 // pred_check
        %p280 = pneg %p110
      $region18: #{gtcrn_custom_forward.1} parent=11 // pred_check_branch
        %282 = sbr.rel (%p280) target = $region20
      $region19: #{gtcrn_custom_forward.1} parent=11 // pred_region
        _
      $region20: #{gtcrn_custom_forward.1} parent=11 // pred_fallthru
        _
      // Predicated region
      $region21: #{gtcrn_custom_forward.1} parent=11 // pred_check
        %p283 = pneg %p131
      $region22: #{gtcrn_custom_forward.1} parent=11 // pred_check_branch
        %285 = sbr.rel (%p283) target = $region24
      $region23: #{gtcrn_custom_forward.1} parent=11 // pred_region
        _
      $region24: #{gtcrn_custom_forward.1} parent=11 // pred_fallthru
        _
      // Predicated region
      $region25: #{gtcrn_custom_forward.1} parent=11 // pred_check
        %p286 = pneg %p152
      $region26: #{gtcrn_custom_forward.1} parent=11 // pred_check_branch
        %288 = sbr.rel (%p286) target = $region28
      $region27: #{gtcrn_custom_forward.1} parent=11 // pred_region
        _
      $region28: #{gtcrn_custom_forward.1} parent=11 // pred_fallthru
        _
      // Predicated region
      $region29: #{gtcrn_custom_forward.1} parent=11 // pred_check
        %p289 = pneg %p173
      $region30: #{gtcrn_custom_forward.1} parent=11 // pred_check_branch
        %291 = sbr.rel (%p289) target = $region32
      $region31: #{gtcrn_custom_forward.1} parent=11 // pred_region
        _
      $region32: #{gtcrn_custom_forward.1} parent=11 // pred_fallthru
        _
      // Predicated region
      $region33: #{gtcrn_custom_forward.1} parent=11 // pred_check
        %p292 = pneg %p194
      $region34: #{gtcrn_custom_forward.1} parent=11 // pred_check_branch
        %294 = sbr.rel (%p292) target = $region36
      $region35: #{gtcrn_custom_forward.1} parent=11 // pred_region
        _
      $region36: #{gtcrn_custom_forward.1} parent=11 // pred_fallthru
        _
      // Predicated region
      $region37: #{gtcrn_custom_forward.1} parent=11 // pred_check
        %p295 = pneg %p215
      $region38: #{gtcrn_custom_forward.1} parent=11 // pred_check_branch
        %297 = sbr.rel (%p295) target = $region40
      $region39: #{gtcrn_custom_forward.1} parent=11 // pred_region
        _
      $region40: #{gtcrn_custom_forward.1} parent=11 // pred_fallthru
        _
      // Predicated region
      $region41: #{gtcrn_custom_forward.1} parent=11 // pred_check
        %p298 = pneg %p236
      $region42: #{gtcrn_custom_forward.1} parent=11 // pred_check_branch
        %300 = sbr.rel (%p298) target = $region44
      $region43: #{gtcrn_custom_forward.1} parent=11 // pred_region
        _
      $region44: #{gtcrn_custom_forward.1} parent=11 // pred_fallthru
        _
    $region12: #{gtcrn_custom_forward.1} parent=5 // pred_fallthru
      _
    %p301 = scmp.lt.s32.totalorder %s16, 4
    // Predicated region
    $region45: #{gtcrn_custom_forward.1} parent=5 // pred_check
      %p302 = pneg %p301
    $region46: #{gtcrn_custom_forward.1} parent=5 // pred_check_branch
      %304 = sbr.rel (%p302) target = $region48
    $region47: #{gtcrn_custom_forward.1} parent=5 // pred_region
      // Predicated region
      $region49: #{gtcrn_custom_forward.1} parent=47 // pred_check
        %p305 = pneg %p36
      $region50: #{gtcrn_custom_forward.1} parent=47 // pred_check_branch
        %307 = sbr.rel (%p305) target = $region52
      $region51: #{gtcrn_custom_forward.1} parent=47 // pred_region
        %s308 = smul.u32 48, %s16
        %p309 = scmp.lt.s32.totalorder %s308, 191
        %s310 = scalar_select %p309, %s308, 191
        %s311 = smul.addr %s310, 4
        %s312 = scalar_lea.vmem %s0, %s311
        %s313 = smul.u32 48, %s16
      $region52: #{gtcrn_custom_forward.1} parent=47 // pred_fallthru
        _
      // Predicated region
      $region53: #{gtcrn_custom_forward.1} parent=47 // pred_check
        %p314 = pneg %p62
      $region54: #{gtcrn_custom_forward.1} parent=47 // pred_check_branch
        %316 = sbr.rel (%p314) target = $region56
      $region55: #{gtcrn_custom_forward.1} parent=47 // pred_region
        %s317 = smul.u32 48, %s16
        %p318 = scmp.lt.s32.totalorder %s317, 191
        %s319 = scalar_select %p318, %s317, 191
        %s320 = smul.addr %s319, 4
        %s321 = scalar_lea.vmem %s1, %s320
        %s322 = smul.u32 48, %s16
      $region56: #{gtcrn_custom_forward.1} parent=47 // pred_fallthru
        _
    $region48: #{gtcrn_custom_forward.1} parent=5 // pred_fallthru
      _
    %p323 = scmp.le.s32.totalorder 1, %s16
    %p324 = scmp.lt.s32.totalorder %s16, 5
    %p325 = pnand %p323, %p324
    %p326 = pneg %p325
    // Predicated region
    $region57: #{gtcrn_custom_forward.1} parent=5 // pred_check
      _
    $region58: #{gtcrn_custom_forward.1} parent=5 // pred_check_branch
      %328 = sbr.rel (%p325) target = $region60
    $region59: #{gtcrn_custom_forward.1} parent=5 // pred_region
      %s329 = ssub.s32 %s16, 1
      %s330 = smul.u32 48, %s21
      %p331 = scmp.lt.s32.totalorder %s330, 191
      %s332 = scalar_select %p331, %s330, 191
      %s333 = smul.addr %s332, 4
      %s334 = scalar_lea.vmem %s0, %s333
      %p335 = pneg %p42
      %p336 = pneg %p39
      %s337 = smul.u32 48, %s21
      %p338 = scmp.lt.s32.totalorder %s337, 191
      %s339 = scalar_select %p338, %s337, 191
      %s340 = smul.addr %s339, 4
      %s341 = scalar_lea.vmem %s1, %s340
      %p342 = pneg %p68
      %p343 = pneg %p65
      %p344 = pneg %p89
      %p345 = pneg %p86
      %p346 = pneg %p110
      %p347 = pneg %p107
      %p348 = pneg %p131
      %p349 = pneg %p128
      %p350 = pneg %p152
      %p351 = pneg %p149
      %p352 = pneg %p173
      %p353 = pneg %p170
      %p354 = pneg %p194
      %p355 = pneg %p191
      %p356 = pneg %p215
      %p357 = pneg %p212
      %p358 = pneg %p236
      %p359 = pneg %p233
      %p360 = pneg %p262
      %p361 = pneg %p259
      %s362 = smul.u32 32, %s21
      %p363 = scmp.lt.s32.totalorder %s362, 127
      %s364 = scalar_select %p363, %s362, 127
      %s365 = smul.addr %s364, 4
      %s366 = scalar_lea.vmem %s10, %s365
      %s367 = smul.u32 48, %s21
      %p368 = scmp.lt.s32.totalorder %s367, 191
      %s369 = scalar_select %p368, %s367, 191
      %s370 = smul.addr %s369, 4
      %s371 = scalar_lea.vmem %s0, %s370
      %s372 = smul.u32 48, %s21
      %s373 = smul.u32 48, %s21
      %p374 = scmp.lt.s32.totalorder %s373, 191
      %s375 = scalar_select %p374, %s373, 191
      %s376 = smul.addr %s375, 4
      %s377 = scalar_lea.vmem %s1, %s376
      %s378 = smul.u32 48, %s21
      %s379 = smul.u32 32, %s21
      %p380 = scmp.lt.s32.totalorder %s379, 127
      %s381 = scalar_select %p380, %s379, 127
      %s382 = smul.addr %s381, 4
      %s383 = scalar_lea.vmem %s10, %s382
      %s384 = smul.u32 32, %s21
      %v385 = vld [vmem:[%s371] sm:$0xf]
      %v386 = vld [vmem:[%s371 + $0x4] sm:$0xf]
      %v387 = vld [vmem:[%s371 + $0x8] sm:$0xf]
      %v388 = vld [vmem:[%s371 + $0xc] sm:$0xf]
      %v389 = vld [vmem:[%s371 + $0x10] sm:$0xf]
      %v390 = vld [vmem:[%s371 + $0x14] sm:$0xf]
      %v391 = vld [vmem:[%s371 + $0x18] sm:$0xf]
      %v392 = vld [vmem:[%s371 + $0x1c] sm:$0xf]
      %v393 = vld [vmem:[%s371 + $0x20] sm:$0xf]
      %v394 = vld [vmem:[%s371 + $0x24] sm:$0xf]
      %v395 = vld [vmem:[%s371 + $0x28] sm:$0xf]
      %v396 = vld [vmem:[%s371 + $0x2c] sm:$0xf]
      %v397 = vld [vmem:[%s371 + $0x30] sm:$0xf]
      %v398 = vld [vmem:[%s371 + $0x34] sm:$0xf]
      %v399 = vld [vmem:[%s371 + $0x38] sm:$0xf]
      %v400 = vld [vmem:[%s371 + $0x3c] sm:$0xf]
      %v401 = vld [vmem:[%s371 + $0x40] sm:$0xf]
      %v402 = vld [vmem:[%s371 + $0x44] sm:$0xf]
      %v403 = vld [vmem:[%s371 + $0x48] sm:$0xf]
      %v404 = vld [vmem:[%s371 + $0x4c] sm:$0xf]
      %v405 = vld [vmem:[%s371 + $0x50] sm:$0xf]
      %v406 = vld [vmem:[%s371 + $0x54] sm:$0xf]
      %v407 = vld [vmem:[%s371 + $0x58] sm:$0xf]
      %v408 = vld [vmem:[%s371 + $0x5c] sm:$0xf]
      %v409 = vld [vmem:[%s371 + $0x60] sm:$0xf]
      %v410 = vld [vmem:[%s371 + $0x64] sm:$0xf]
      %v411 = vld [vmem:[%s371 + $0x68] sm:$0xf]
      %v412 = vld [vmem:[%s371 + $0x6c] sm:$0xf]
      %v413 = vld [vmem:[%s371 + $0x70] sm:$0xf]
      %v414 = vld [vmem:[%s371 + $0x74] sm:$0xf]
      %v415 = vld [vmem:[%s371 + $0x78] sm:$0xf]
      %v416 = vld [vmem:[%s371 + $0x7c] sm:$0xf]
      %v417 = vld [vmem:[%s371 + $0x80] sm:$0xf]
      %v418 = vld [vmem:[%s371 + $0x84] sm:$0xf]
      %v419 = vld [vmem:[%s371 + $0x88] sm:$0xf]
      %v420 = vld [vmem:[%s371 + $0x8c] sm:$0xf]
      %v421 = vld [vmem:[%s371 + $0x90] sm:$0xf]
      %v422 = vld [vmem:[%s371 + $0x94] sm:$0xf]
      %v423 = vld [vmem:[%s371 + $0x98] sm:$0xf]
      %v424 = vld [vmem:[%s371 + $0x9c] sm:$0xf]
      %v425 = vld [vmem:[%s371 + $0xa0] sm:$0xf]
      %v426 = vld [vmem:[%s371 + $0xa4] sm:$0xf]
      %v427 = vld [vmem:[%s371 + $0xa8] sm:$0xf]
      %v428 = vld [vmem:[%s371 + $0xac] sm:$0xf]
      %v429 = vld [vmem:[%s371 + $0xb0] sm:$0xf]
      %v430 = vld [vmem:[%s371 + $0xb4] sm:$0xf]
      %v431 = vld [vmem:[%s371 + $0xb8] sm:$0xf]
      %v432 = vld [vmem:[%s371 + $0xbc] sm:$0xf]
      %v433 = vunpack.c.l.b16 %v385
      %v434 = vunpack.c.l.b16 %v386
      %v435 = vunpack.c.l.b16 %v387
      %v436 = vunpack.c.l.b16 %v388
      %v437 = vunpack.c.l.b16 %v389
      %v438 = vunpack.c.l.b16 %v390
      %v439 = vunpack.c.l.b16 %v391
      %v440 = vunpack.c.l.b16 %v392
      %v441 = vunpack.c.l.b16 %v393
      %v442 = vunpack.c.l.b16 %v394
      %v443 = vunpack.c.l.b16 %v395
      %v444 = vunpack.c.l.b16 %v396
      %v445 = vunpack.c.l.b16 %v397
      %v446 = vunpack.c.l.b16 %v398
      %v447 = vunpack.c.l.b16 %v399
      %v448 = vunpack.c.l.b16 %v400
      %v449 = vunpack.c.l.b16 %v401
      %v450 = vunpack.c.l.b16 %v402
      %v451 = vunpack.c.l.b16 %v403
      %v452 = vunpack.c.l.b16 %v404
      %v453 = vunpack.c.l.b16 %v405
      %v454 = vunpack.c.l.b16 %v406
      %v455 = vunpack.c.l.b16 %v407
      %v456 = vunpack.c.l.b16 %v408
      %v457 = vunpack.c.l.b16 %v409
      %v458 = vunpack.c.l.b16 %v410
      %v459 = vunpack.c.l.b16 %v411
      %v460 = vunpack.c.l.b16 %v412
      %v461 = vunpack.c.l.b16 %v413
      %v462 = vunpack.c.l.b16 %v414
      %v463 = vunpack.c.l.b16 %v415
      %v464 = vunpack.c.l.b16 %v416
      %v465 = vunpack.c.l.b16 %v417
      %v466 = vunpack.c.l.b16 %v418
      %v467 = vunpack.c.l.b16 %v419
      %v468 = vunpack.c.l.b16 %v420
      %v469 = vunpack.c.l.b16 %v421
      %v470 = vunpack.c.l.b16 %v422
      %v471 = vunpack.c.l.b16 %v423
      %v472 = vunpack.c.l.b16 %v424
      %v473 = vunpack.c.l.b16 %v425
      %v474 = vunpack.c.l.b16 %v426
      %v475 = vunpack.c.l.b16 %v427
      %v476 = vunpack.c.l.b16 %v428
      %v477 = vunpack.c.l.b16 %v429
      %v478 = vunpack.c.l.b16 %v430
      %v479 = vunpack.c.l.b16 %v431
      %v480 = vunpack.c.l.b16 %v432
      %v481 = vcvt.s32.f32 %v433
      %v482 = vcvt.s32.f32 %v434
      %v483 = vcvt.s32.f32 %v435
      %v484 = vcvt.s32.f32 %v436
      %v485 = vcvt.s32.f32 %v437
      %v486 = vcvt.s32.f32 %v438
      %v487 = vcvt.s32.f32 %v439
      %v488 = vcvt.s32.f32 %v440
      %v489 = vcvt.s32.f32 %v441
      %v490 = vcvt.s32.f32 %v442
      %v491 = vcvt.s32.f32 %v443
      %v492 = vcvt.s32.f32 %v444
      %v493 = vcvt.s32.f32 %v445
      %v494 = vcvt.s32.f32 %v446
      %v495 = vcvt.s32.f32 %v447
      %v496 = vcvt.s32.f32 %v448
      %v497 = vcvt.s32.f32 %v449
      %v498 = vcvt.s32.f32 %v450
      %v499 = vcvt.s32.f32 %v451
      %v500 = vcvt.s32.f32 %v452
      %v501 = vcvt.s32.f32 %v453
      %v502 = vcvt.s32.f32 %v454
      %v503 = vcvt.s32.f32 %v455
      %v504 = vcvt.s32.f32 %v456
      %v505 = vcvt.s32.f32 %v457
      %v506 = vcvt.s32.f32 %v458
      %v507 = vcvt.s32.f32 %v459
      %v508 = vcvt.s32.f32 %v460
      %v509 = vcvt.s32.f32 %v461
      %v510 = vcvt.s32.f32 %v462
      %v511 = vcvt.s32.f32 %v463
      %v512 = vcvt.s32.f32 %v464
      %v513 = vcvt.s32.f32 %v465
      %v514 = vcvt.s32.f32 %v466
      %v515 = vcvt.s32.f32 %v467
      %v516 = vcvt.s32.f32 %v468
      %v517 = vcvt.s32.f32 %v469
      %v518 = vcvt.s32.f32 %v470
      %v519 = vcvt.s32.f32 %v471
      %v520 = vcvt.s32.f32 %v472
      %v521 = vcvt.s32.f32 %v473
      %v522 = vcvt.s32.f32 %v474
      %v523 = vcvt.s32.f32 %v475
      %v524 = vcvt.s32.f32 %v476
      %v525 = vcvt.s32.f32 %v477
      %v526 = vcvt.s32.f32 %v478
      %v527 = vcvt.s32.f32 %v479
      %v528 = vcvt.s32.f32 %v480
      %v529 = vld [vmem:[%s377] sm:$0xf]
      %v530 = vld [vmem:[%s377 + $0x4] sm:$0xf]
      %v531 = vld [vmem:[%s377 + $0x8] sm:$0xf]
      %v532 = vld [vmem:[%s377 + $0xc] sm:$0xf]
      %v533 = vld [vmem:[%s377 + $0x10] sm:$0xf]
      %v534 = vld [vmem:[%s377 + $0x14] sm:$0xf]
      %v535 = vld [vmem:[%s377 + $0x18] sm:$0xf]
      %v536 = vld [vmem:[%s377 + $0x1c] sm:$0xf]
      %v537 = vld [vmem:[%s377 + $0x20] sm:$0xf]
      %v538 = vld [vmem:[%s377 + $0x24] sm:$0xf]
      %v539 = vld [vmem:[%s377 + $0x28] sm:$0xf]
      %v540 = vld [vmem:[%s377 + $0x2c] sm:$0xf]
      %v541 = vld [vmem:[%s377 + $0x30] sm:$0xf]
      %v542 = vld [vmem:[%s377 + $0x34] sm:$0xf]
      %v543 = vld [vmem:[%s377 + $0x38] sm:$0xf]
      %v544 = vld [vmem:[%s377 + $0x3c] sm:$0xf]
      %v545 = vld [vmem:[%s377 + $0x40] sm:$0xf]
      %v546 = vld [vmem:[%s377 + $0x44] sm:$0xf]
      %v547 = vld [vmem:[%s377 + $0x48] sm:$0xf]
      %v548 = vld [vmem:[%s377 + $0x4c] sm:$0xf]
      %v549 = vld [vmem:[%s377 + $0x50] sm:$0xf]
      %v550 = vld [vmem:[%s377 + $0x54] sm:$0xf]
      %v551 = vld [vmem:[%s377 + $0x58] sm:$0xf]
      %v552 = vld [vmem:[%s377 + $0x5c] sm:$0xf]
      %v553 = vld [vmem:[%s377 + $0x60] sm:$0xf]
      %v554 = vld [vmem:[%s377 + $0x64] sm:$0xf]
      %v555 = vld [vmem:[%s377 + $0x68] sm:$0xf]
      %v556 = vld [vmem:[%s377 + $0x6c] sm:$0xf]
      %v557 = vld [vmem:[%s377 + $0x70] sm:$0xf]
      %v558 = vld [vmem:[%s377 + $0x74] sm:$0xf]
      %v559 = vld [vmem:[%s377 + $0x78] sm:$0xf]
      %v560 = vld [vmem:[%s377 + $0x7c] sm:$0xf]
      %v561 = vld [vmem:[%s377 + $0x80] sm:$0xf]
      %v562 = vld [vmem:[%s377 + $0x84] sm:$0xf]
      %v563 = vld [vmem:[%s377 + $0x88] sm:$0xf]
      %v564 = vld [vmem:[%s377 + $0x8c] sm:$0xf]
      %v565 = vld [vmem:[%s377 + $0x90] sm:$0xf]
      %v566 = vld [vmem:[%s377 + $0x94] sm:$0xf]
      %v567 = vld [vmem:[%s377 + $0x98] sm:$0xf]
      %v568 = vld [vmem:[%s377 + $0x9c] sm:$0xf]
      %v569 = vld [vmem:[%s377 + $0xa0] sm:$0xf]
      %v570 = vld [vmem:[%s377 + $0xa4] sm:$0xf]
      %v571 = vld [vmem:[%s377 + $0xa8] sm:$0xf]
      %v572 = vld [vmem:[%s377 + $0xac] sm:$0xf]
      %v573 = vld [vmem:[%s377 + $0xb0] sm:$0xf]
      %v574 = vld [vmem:[%s377 + $0xb4] sm:$0xf]
      %v575 = vld [vmem:[%s377 + $0xb8] sm:$0xf]
      %v576 = vld [vmem:[%s377 + $0xbc] sm:$0xf]
      %v577 = vunpack.c.l.b16 %v529
      %v578 = vunpack.c.l.b16 %v530
      %v579 = vunpack.c.l.b16 %v531
      %v580 = vunpack.c.l.b16 %v532
      %v581 = vunpack.c.l.b16 %v533
      %v582 = vunpack.c.l.b16 %v534
      %v583 = vunpack.c.l.b16 %v535
      %v584 = vunpack.c.l.b16 %v536
      %v585 = vunpack.c.l.b16 %v537
      %v586 = vunpack.c.l.b16 %v538
      %v587 = vunpack.c.l.b16 %v539
      %v588 = vunpack.c.l.b16 %v540
      %v589 = vunpack.c.l.b16 %v541
      %v590 = vunpack.c.l.b16 %v542
      %v591 = vunpack.c.l.b16 %v543
      %v592 = vunpack.c.l.b16 %v544
      %v593 = vunpack.c.l.b16 %v545
      %v594 = vunpack.c.l.b16 %v546
      %v595 = vunpack.c.l.b16 %v547
      %v596 = vunpack.c.l.b16 %v548
      %v597 = vunpack.c.l.b16 %v549
      %v598 = vunpack.c.l.b16 %v550
      %v599 = vunpack.c.l.b16 %v551
      %v600 = vunpack.c.l.b16 %v552
      %v601 = vunpack.c.l.b16 %v553
      %v602 = vunpack.c.l.b16 %v554
      %v603 = vunpack.c.l.b16 %v555
      %v604 = vunpack.c.l.b16 %v556
      %v605 = vunpack.c.l.b16 %v557
      %v606 = vunpack.c.l.b16 %v558
      %v607 = vunpack.c.l.b16 %v559
      %v608 = vunpack.c.l.b16 %v560
      %v609 = vunpack.c.l.b16 %v561
      %v610 = vunpack.c.l.b16 %v562
      %v611 = vunpack.c.l.b16 %v563
      %v612 = vunpack.c.l.b16 %v564
      %v613 = vunpack.c.l.b16 %v565
      %v614 = vunpack.c.l.b16 %v566
      %v615 = vunpack.c.l.b16 %v567
      %v616 = vunpack.c.l.b16 %v568
      %v617 = vunpack.c.l.b16 %v569
      %v618 = vunpack.c.l.b16 %v570
      %v619 = vunpack.c.l.b16 %v571
      %v620 = vunpack.c.l.b16 %v572
      %v621 = vunpack.c.l.b16 %v573
      %v622 = vunpack.c.l.b16 %v574
      %v623 = vunpack.c.l.b16 %v575
      %v624 = vunpack.c.l.b16 %v576
      %v625 = vcvt.s32.f32 %v577
      %v626 = vcvt.s32.f32 %v578
      %v627 = vcvt.s32.f32 %v579
      %v628 = vcvt.s32.f32 %v580
      %v629 = vcvt.s32.f32 %v581
      %v630 = vcvt.s32.f32 %v582
      %v631 = vcvt.s32.f32 %v583
      %v632 = vcvt.s32.f32 %v584
      %v633 = vcvt.s32.f32 %v585
      %v634 = vcvt.s32.f32 %v586
      %v635 = vcvt.s32.f32 %v587
      %v636 = vcvt.s32.f32 %v588
      %v637 = vcvt.s32.f32 %v589
      %v638 = vcvt.s32.f32 %v590
      %v639 = vcvt.s32.f32 %v591
      %v640 = vcvt.s32.f32 %v592
      %v641 = vcvt.s32.f32 %v593
      %v642 = vcvt.s32.f32 %v594
      %v643 = vcvt.s32.f32 %v595
      %v644 = vcvt.s32.f32 %v596
      %v645 = vcvt.s32.f32 %v597
      %v646 = vcvt.s32.f32 %v598
      %v647 = vcvt.s32.f32 %v599
      %v648 = vcvt.s32.f32 %v600
      %v649 = vcvt.s32.f32 %v601
      %v650 = vcvt.s32.f32 %v602
      %v651 = vcvt.s32.f32 %v603
      %v652 = vcvt.s32.f32 %v604
      %v653 = vcvt.s32.f32 %v605
      %v654 = vcvt.s32.f32 %v606
      %v655 = vcvt.s32.f32 %v607
      %v656 = vcvt.s32.f32 %v608
      %v657 = vcvt.s32.f32 %v609
      %v658 = vcvt.s32.f32 %v610
      %v659 = vcvt.s32.f32 %v611
      %v660 = vcvt.s32.f32 %v612
      %v661 = vcvt.s32.f32 %v613
      %v662 = vcvt.s32.f32 %v614
      %v663 = vcvt.s32.f32 %v615
      %v664 = vcvt.s32.f32 %v616
      %v665 = vcvt.s32.f32 %v617
      %v666 = vcvt.s32.f32 %v618
      %v667 = vcvt.s32.f32 %v619
      %v668 = vcvt.s32.f32 %v620
      %v669 = vcvt.s32.f32 %v621
      %v670 = vcvt.s32.f32 %v622
      %v671 = vcvt.s32.f32 %v623
      %v672 = vcvt.s32.f32 %v624
      %v673 = vld [vmem:[%s2] sm:$0xff]
      %v674 = vld [vmem:[%s2 + $0x8] sm:$0xff]
      %v675 = vld [vmem:[%s2 + $0x10] sm:$0xff]
      %v676 = vld [vmem:[%s2 + $0x18] sm:$0xff]
      %v677 = vld [vmem:[%s2 + $0x20] sm:$0xff]
      %v678 = vld [vmem:[%s2 + $0x28] sm:$0xff]
      %v679 = vld [vmem:[%s2 + $0x30] sm:$0xff]
      %v680 = vld [vmem:[%s2 + $0x38] sm:$0xff]
      %v681 = vld [vmem:[%s2 + $0x40] sm:$0xff]
      %v682 = vld [vmem:[%s2 + $0x48] sm:$0xff]
      %v683 = vld [vmem:[%s2 + $0x50] sm:$0xff]
      %v684 = vld [vmem:[%s2 + $0x58] sm:$0xff]
      %v685 = vld [vmem:[%s2 + $0x60] sm:$0xff]
      %v686 = vld [vmem:[%s2 + $0x68] sm:$0xff]
      %v687 = vld [vmem:[%s2 + $0x70] sm:$0xff]
      %v688 = vld [vmem:[%s2 + $0x78] sm:$0xff]
      %v689 = vld [vmem:[%s2 + $0x80] sm:$0xff]
      %v690 = vld [vmem:[%s2 + $0x88] sm:$0xff]
      %v691 = vld [vmem:[%s2 + $0x90] sm:$0xff]
      %v692 = vld [vmem:[%s2 + $0x98] sm:$0xff]
      %v693 = vld [vmem:[%s2 + $0xa0] sm:$0xff]
      %v694 = vld [vmem:[%s2 + $0xa8] sm:$0xff]
      %v695 = vld [vmem:[%s2 + $0xb0] sm:$0xff]
      %v696 = vld [vmem:[%s2 + $0xb8] sm:$0xff]
      %v697 = vld [vmem:[%s2 + $0xc0] sm:$0xff]
      %v698 = vld [vmem:[%s2 + $0xc8] sm:$0xff]
      %v699 = vld [vmem:[%s2 + $0xd0] sm:$0xff]
      %v700 = vld [vmem:[%s2 + $0xd8] sm:$0xff]
      %v701 = vld [vmem:[%s2 + $0xe0] sm:$0xff]
      %v702 = vld [vmem:[%s2 + $0xe8] sm:$0xff]
      %v703 = vld [vmem:[%s2 + $0xf0] sm:$0xff]
      %v704 = vld [vmem:[%s2 + $0xf8] sm:$0xff]
      %v705 = vld [vmem:[%s2 + $0x100] sm:$0xff]
      %v706 = vld [vmem:[%s2 + $0x108] sm:$0xff]
      %v707 = vld [vmem:[%s2 + $0x110] sm:$0xff]
      %v708 = vld [vmem:[%s2 + $0x118] sm:$0xff]
      %v709 = vld [vmem:[%s2 + $0x120] sm:$0xff]
      %v710 = vld [vmem:[%s2 + $0x128] sm:$0xff]
      %v711 = vld [vmem:[%s2 + $0x130] sm:$0xff]
      %v712 = vld [vmem:[%s2 + $0x138] sm:$0xff]
      %v713 = vld [vmem:[%s2 + $0x140] sm:$0xff]
      %v714 = vld [vmem:[%s2 + $0x148] sm:$0xff]
      %v715 = vld [vmem:[%s2 + $0x150] sm:$0xff]
      %v716 = vld [vmem:[%s2 + $0x158] sm:$0xff]
      %v717 = vld [vmem:[%s2 + $0x160] sm:$0xff]
      %v718 = vld [vmem:[%s2 + $0x168] sm:$0xff]
      %v719 = vld [vmem:[%s2 + $0x170] sm:$0xff]
      %v720 = vld [vmem:[%s2 + $0x178] sm:$0xff]
      %v721 = vld [vmem:[%s2 + $0x180] sm:$0xff]
      %v722 = vld [vmem:[%s2 + $0x188] sm:$0xff]
      %v723 = vld [vmem:[%s2 + $0x190] sm:$0xff]
      %v724 = vld [vmem:[%s2 + $0x198] sm:$0xff]
      %v725 = vld [vmem:[%s2 + $0x1a0] sm:$0xff]
      %v726 = vld [vmem:[%s2 + $0x1a8] sm:$0xff]
      %v727 = vld [vmem:[%s2 + $0x1b0] sm:$0xff]
      %v728 = vld [vmem:[%s2 + $0x1b8] sm:$0xff]
      %v729 = vld [vmem:[%s2 + $0x1c0] sm:$0xff]
      %v730 = vld [vmem:[%s2 + $0x1c8] sm:$0xff]
      %v731 = vld [vmem:[%s2 + $0x1d0] sm:$0xff]
      %v732 = vld [vmem:[%s2 + $0x1d8] sm:$0xff]
      %v733 = vld [vmem:[%s2 + $0x1e0] sm:$0xff]
      %v734 = vld [vmem:[%s2 + $0x1e8] sm:$0xff]
      %v735 = vld [vmem:[%s2 + $0x1f0] sm:$0xff]
      %v736 = vld [vmem:[%s2 + $0x1f8] sm:$0xff]
      %v737 = vld [vmem:[%s3] sm:$0xff]
      %v738 = vld [vmem:[%s3 + $0x8] sm:$0xff]
      %v739 = vld [vmem:[%s3 + $0x10] sm:$0xff]
      %v740 = vld [vmem:[%s3 + $0x18] sm:$0xff]
      %v741 = vld [vmem:[%s3 + $0x20] sm:$0xff]
      %v742 = vld [vmem:[%s3 + $0x28] sm:$0xff]
      %v743 = vld [vmem:[%s3 + $0x30] sm:$0xff]
      %v744 = vld [vmem:[%s3 + $0x38] sm:$0xff]
      %v745 = vld [vmem:[%s3 + $0x40] sm:$0xff]
      %v746 = vld [vmem:[%s3 + $0x48] sm:$0xff]
      %v747 = vld [vmem:[%s3 + $0x50] sm:$0xff]
      %v748 = vld [vmem:[%s3 + $0x58] sm:$0xff]
      %v749 = vld [vmem:[%s3 + $0x60] sm:$0xff]
      %v750 = vld [vmem:[%s3 + $0x68] sm:$0xff]
      %v751 = vld [vmem:[%s3 + $0x70] sm:$0xff]
      %v752 = vld [vmem:[%s3 + $0x78] sm:$0xff]
      %v753 = vld [vmem:[%s3 + $0x80] sm:$0xff]
      %v754 = vld [vmem:[%s3 + $0x88] sm:$0xff]
      %v755 = vld [vmem:[%s3 + $0x90] sm:$0xff]
      %v756 = vld [vmem:[%s3 + $0x98] sm:$0xff]
      %v757 = vld [vmem:[%s3 + $0xa0] sm:$0xff]
      %v758 = vld [vmem:[%s3 + $0xa8] sm:$0xff]
      %v759 = vld [vmem:[%s3 + $0xb0] sm:$0xff]
      %v760 = vld [vmem:[%s3 + $0xb8] sm:$0xff]
      %v761 = vld [vmem:[%s3 + $0xc0] sm:$0xff]
      %v762 = vld [vmem:[%s3 + $0xc8] sm:$0xff]
      %v763 = vld [vmem:[%s3 + $0xd0] sm:$0xff]
      %v764 = vld [vmem:[%s3 + $0xd8] sm:$0xff]
      %v765 = vld [vmem:[%s3 + $0xe0] sm:$0xff]
      %v766 = vld [vmem:[%s3 + $0xe8] sm:$0xff]
      %v767 = vld [vmem:[%s3 + $0xf0] sm:$0xff]
      %v768 = vld [vmem:[%s3 + $0xf8] sm:$0xff]
      %v769 = vld [vmem:[%s3 + $0x100] sm:$0xff]
      %v770 = vld [vmem:[%s3 + $0x108] sm:$0xff]
      %v771 = vld [vmem:[%s3 + $0x110] sm:$0xff]
      %v772 = vld [vmem:[%s3 + $0x118] sm:$0xff]
      %v773 = vld [vmem:[%s3 + $0x120] sm:$0xff]
      %v774 = vld [vmem:[%s3 + $0x128] sm:$0xff]
      %v775 = vld [vmem:[%s3 + $0x130] sm:$0xff]
      %v776 = vld [vmem:[%s3 + $0x138] sm:$0xff]
      %v777 = vld [vmem:[%s3 + $0x140] sm:$0xff]
      %v778 = vld [vmem:[%s3 + $0x148] sm:$0xff]
      %v779 = vld [vmem:[%s3 + $0x150] sm:$0xff]
      %v780 = vld [vmem:[%s3 + $0x158] sm:$0xff]
      %v781 = vld [vmem:[%s3 + $0x160] sm:$0xff]
      %v782 = vld [vmem:[%s3 + $0x168] sm:$0xff]
      %v783 = vld [vmem:[%s3 + $0x170] sm:$0xff]
      %v784 = vld [vmem:[%s3 + $0x178] sm:$0xff]
      %v785 = vld [vmem:[%s3 + $0x180] sm:$0xff]
      %v786 = vld [vmem:[%s3 + $0x188] sm:$0xff]
      %v787 = vld [vmem:[%s3 + $0x190] sm:$0xff]
      %v788 = vld [vmem:[%s3 + $0x198] sm:$0xff]
      %v789 = vld [vmem:[%s3 + $0x1a0] sm:$0xff]
      %v790 = vld [vmem:[%s3 + $0x1a8] sm:$0xff]
      %v791 = vld [vmem:[%s3 + $0x1b0] sm:$0xff]
      %v792 = vld [vmem:[%s3 + $0x1b8] sm:$0xff]
      %v793 = vld [vmem:[%s3 + $0x1c0] sm:$0xff]
      %v794 = vld [vmem:[%s3 + $0x1c8] sm:$0xff]
      %v795 = vld [vmem:[%s3 + $0x1d0] sm:$0xff]
      %v796 = vld [vmem:[%s3 + $0x1d8] sm:$0xff]
      %v797 = vld [vmem:[%s3 + $0x1e0] sm:$0xff]
      %v798 = vld [vmem:[%s3 + $0x1e8] sm:$0xff]
      %v799 = vld [vmem:[%s3 + $0x1f0] sm:$0xff]
      %v800 = vld [vmem:[%s3 + $0x1f8] sm:$0xff]
      %801 = vmatprep.subr.mxu0 %v738
      %802 = vmatpush1.msra.mxu0 %v737
      %803 = vmatprep.subr.mxu0 %v742
      %804 = vmatpush1.msra.mxu0 %v741
      %805 = vmatprep.subr.mxu0 %v746
      %806 = vmatpush1.msra.mxu0 %v745
      %807 = vmatprep.subr.mxu0 %v750
      %808 = vmatpush1.msra.mxu0 %v749
      %809 = vmatprep.subr.mxu0 %v754
      %810 = vmatpush1.msra.mxu0 %v753
      %811 = vmatprep.subr.mxu0 %v758
      %812 = vmatpush1.msra.mxu0 %v757
      %813 = vmatprep.subr.mxu0 %v762
      %814 = vmatpush1.msra.mxu0 %v761
      %815 = vmatprep.subr.mxu0 %v766
      %816 = vmatpush1.msra.mxu0 %v765
      %817 = vmatprep.subr.mxu0 %v770
      %818 = vmatpush1.msra.mxu0 %v769
      %819 = vmatprep.subr.mxu0 %v774
      %820 = vmatpush1.msra.mxu0 %v773
      %821 = vmatprep.subr.mxu0 %v778
      %822 = vmatpush1.msra.mxu0 %v777
      %823 = vmatprep.subr.mxu0 %v782
      %824 = vmatpush1.msra.mxu0 %v781
      %825 = vmatprep.subr.mxu0 %v786
      %826 = vmatpush1.msra.mxu0 %v785
      %827 = vmatprep.subr.mxu0 %v790
      %828 = vmatpush1.msra.mxu0 %v789
      %829 = vmatprep.subr.mxu0 %v794
      %830 = vmatpush1.msra.mxu0 %v793
      %831 = vmatprep.subr.mxu0 %v798
      %832 = vmatpush1.msra.mxu0 %v797
      %833 = vmatprep.subr.mxu0 0.0
      %834 = vmatpush1.msra.mxu0 0.0
      %835 = vmatprep.subr.mxu0 0.0
      %836 = vmatpush1.msra.mxu0 0.0
      %837 = vmatprep.subr.mxu0 0.0
      %838 = vmatpush1.msra.mxu0 0.0
      %839 = vmatprep.subr.mxu0 0.0
      %840 = vmatpush1.msra.mxu0 0.0
      %841 = vmatprep.subr.mxu0 0.0
      %842 = vmatpush1.msra.mxu0 0.0
      %843 = vmatprep.subr.mxu0 0.0
      %844 = vmatpush1.msra.mxu0 0.0
      %845 = vmatprep.subr.mxu0 0.0
      %846 = vmatpush1.msra.mxu0 0.0
      %847 = vmatprep.subr.mxu0 0.0
      %848 = vmatpush1.msra.mxu0 0.0
      %849 = vmatprep.subr.mxu0 0.0
      %850 = vmatpush1.msra.mxu0 0.0
      %851 = vmatprep.subr.mxu0 0.0
      %852 = vmatpush1.msra.mxu0 0.0
      %853 = vmatprep.subr.mxu0 0.0
      %854 = vmatpush1.msra.mxu0 0.0
      %855 = vmatprep.subr.mxu0 0.0
      %856 = vmatpush1.msra.mxu0 0.0
      %857 = vmatprep.subr.mxu0 0.0
      %858 = vmatpush1.msra.mxu0 0.0
      %859 = vmatprep.subr.mxu0 0.0
      %860 = vmatpush1.msra.mxu0 0.0
      %861 = vmatprep.subr.mxu0 0.0
      %862 = vmatpush1.msra.mxu0 0.0
      %863 = vmatprep.subr.mxu0 0.0
      %864 = vmatpush1.msra.mxu0 0.0
      %865 = vmatprep.mubr.f32.mxu0 0.0
      %866 = vmatmul.mubr.f32.gmra.mrb[0].mxu0 %v625
      %v867 = vpop.f32.mrb[0].mxu0
      %v868 = vadd.f32 0.0, %v867
      %v869 = vpop.f32.mrb[0].mxu0
      %v870 = vadd.f32 0.0, %v869
      %871 = vmatprep.mubr.f32.mxu0 0.0
      %872 = vmatmul.mubr.f32.gmra.mrb[0].mxu0 %v626
      %v873 = vpop.f32.mrb[0].mxu0
      %v874 = vadd.f32 0.0, %v873
      %v875 = vpop.f32.mrb[0].mxu0
      %v876 = vadd.f32 0.0, %v875
      %877 = vmatprep.mubr.f32.mxu0 0.0
      %878 = vmatmul.mubr.f32.gmra.mrb[0].mxu0 %v627
      %v879 = vpop.f32.mrb[0].mxu0
      %v880 = vadd.f32 0.0, %v879
      %v881 = vpop.f32.mrb[0].mxu0
      %v882 = vadd.f32 0.0, %v881
      %883 = vmatprep.mubr.f32.mxu0 0.0
      %884 = vmatmul.mubr.f32.gmra.mrb[0].mxu0 %v628
      %v885 = vpop.f32.mrb[0].mxu0
      %v886 = vadd.f32 0.0, %v885
      %v887 = vpop.f32.mrb[0].mxu0
      %v888 = vadd.f32 0.0, %v887
      %889 = vmatprep.mubr.f32.mxu0 0.0
      %890 = vmatmul.mubr.f32.gmra.mrb[0].mxu0 %v629
      %v891 = vpop.f32.mrb[0].mxu0
      %v892 = vadd.f32 0.0, %v891
      %v893 = vpop.f32.mrb[0].mxu0
      %v894 = vadd.f32 0.0, %v893
      %895 = vmatprep.mubr.f32.mxu0 0.0
      %896 = vmatmul.mubr.f32.gmra.mrb[0].mxu0 %v630
      %v897 = vpop.f32.mrb[0].mxu0
      %v898 = vadd.f32 0.0, %v897
      %v899 = vpop.f32.mrb[0].mxu0
      %v900 = vadd.f32 0.0, %v899
      %901 = vmatprep.mubr.f32.mxu0 0.0
      %902 = vmatmul.mubr.f32.gmra.mrb[0].mxu0 %v631
      %v903 = vpop.f32.mrb[0].mxu0
      %v904 = vadd.f32 0.0, %v903
      %v905 = vpop.f32.mrb[0].mxu0
      %v906 = vadd.f32 0.0, %v905
      %907 = vmatprep.mubr.f32.mxu0 0.0
      %908 = vmatmul.mubr.f32.gmra.mrb[0].mxu0 %v632
      %v909 = vpop.f32.mrb[0].mxu0
      %v910 = vadd.f32 0.0, %v909
      %v911 = vpop.f32.mrb[0].mxu0
      %v912 = vadd.f32 0.0, %v911
      %913 = vmatprep.mubr.f32.mxu0 0.0
      %914 = vmatmul.mubr.f32.gmra.mrb[0].mxu0 %v633
      %v915 = vpop.f32.mrb[0].mxu0
      %v916 = vadd.f32 0.0, %v915
      %v917 = vpop.f32.mrb[0].mxu0
      %v918 = vadd.f32 0.0, %v917
      %919 = vmatprep.mubr.f32.mxu0 0.0
      %920 = vmatmul.mubr.f32.gmra.mrb[0].mxu0 %v634
      %v921 = vpop.f32.mrb[0].mxu0
      %v922 = vadd.f32 0.0, %v921
      %v923 = vpop.f32.mrb[0].mxu0
      %v924 = vadd.f32 0.0, %v923
      %925 = vmatprep.mubr.f32.mxu0 0.0
      %926 = vmatmul.mubr.f32.gmra.mrb[0].mxu0 %v635
      %v927 = vpop.f32.mrb[0].mxu0
      %v928 = vadd.f32 0.0, %v927
      %v929 = vpop.f32.mrb[0].mxu0
      %v930 = vadd.f32 0.0, %v929
      %931 = vmatprep.mubr.f32.mxu0 0.0
      %932 = vmatmul.mubr.f32.gmra.mrb[0].mxu0 %v636
      %v933 = vpop.f32.mrb[0].mxu0
      %v934 = vadd.f32 0.0, %v933
      %v935 = vpop.f32.mrb[0].mxu0
      %v936 = vadd.f32 0.0, %v935
      %937 = vmatprep.mubr.f32.mxu0 0.0
      %938 = vmatmul.mubr.f32.gmra.mrb[0].mxu0 %v637
      %v939 = vpop.f32.mrb[0].mxu0
      %v940 = vadd.f32 0.0, %v939
      %v941 = vpop.f32.mrb[0].mxu0
      %v942 = vadd.f32 0.0, %v941
      %943 = vmatprep.mubr.f32.mxu0 0.0
      %944 = vmatmul.mubr.f32.gmra.mrb[0].mxu0 %v638
      %v945 = vpop.f32.mrb[0].mxu0
      %v946 = vadd.f32 0.0, %v945
      %v947 = vpop.f32.mrb[0].mxu0
      %v948 = vadd.f32 0.0, %v947
      %949 = vmatprep.mubr.f32.mxu0 0.0
      %950 = vmatmul.mubr.f32.gmra.mrb[0].mxu0 %v639
      %v951 = vpop.f32.mrb[0].mxu0
      %v952 = vadd.f32 0.0, %v951
      %v953 = vpop.f32.mrb[0].mxu0
      %v954 = vadd.f32 0.0, %v953
      %955 = vmatprep.mubr.f32.mxu0 0.0
      %956 = vmatmul.mubr.f32.gmra.mrb[0].mxu0 %v640
      %v957 = vpop.f32.mrb[0].mxu0
      %v958 = vadd.f32 0.0, %v957
      %v959 = vpop.f32.mrb[0].mxu0
      %v960 = vadd.f32 0.0, %v959
      %961 = vmatprep.mubr.f32.mxu0 0.0
      %962 = vmatmul.mubr.f32.gmra.mrb[0].mxu0 %v641
      %v963 = vpop.f32.mrb[0].mxu0
      %v964 = vadd.f32 0.0, %v963
      %v965 = vpop.f32.mrb[0].mxu0
      %v966 = vadd.f32 0.0, %v965
      %967 = vmatprep.mubr.f32.mxu0 0.0
      %968 = vmatmul.mubr.f32.gmra.mrb[0].mxu0 %v642
      %v969 = vpop.f32.mrb[0].mxu0
      %v970 = vadd.f32 0.0, %v969
      %v971 = vpop.f32.mrb[0].mxu0
      %v972 = vadd.f32 0.0, %v971
      %973 = vmatprep.mubr.f32.mxu0 0.0
      %974 = vmatmul.mubr.f32.gmra.mrb[0].mxu0 %v643
      %v975 = vpop.f32.mrb[0].mxu0
      %v976 = vadd.f32 0.0, %v975
      %v977 = vpop.f32.mrb[0].mxu0
      %v978 = vadd.f32 0.0, %v977
      %979 = vmatprep.mubr.f32.mxu0 0.0
      %980 = vmatmul.mubr.f32.gmra.mrb[0].mxu0 %v644
      %v981 = vpop.f32.mrb[0].mxu0
      %v982 = vadd.f32 0.0, %v981
      %v983 = vpop.f32.mrb[0].mxu0
      %v984 = vadd.f32 0.0, %v983
      %985 = vmatprep.mubr.f32.mxu0 0.0
      %986 = vmatmul.mubr.f32.gmra.mrb[0].mxu0 %v645
      %v987 = vpop.f32.mrb[0].mxu0
      %v988 = vadd.f32 0.0, %v987
      %v989 = vpop.f32.mrb[0].mxu0
      %v990 = vadd.f32 0.0, %v989
      %991 = vmatprep.mubr.f32.mxu0 0.0
      %992 = vmatmul.mubr.f32.gmra.mrb[0].mxu0 %v646
      %v993 = vpop.f32.mrb[0].mxu0
      %v994 = vadd.f32 0.0, %v993
      %v995 = vpop.f32.mrb[0].mxu0
      %v996 = vadd.f32 0.0, %v995
      %997 = vmatprep.mubr.f32.mxu0 0.0
      %998 = vmatmul.mubr.f32.gmra.mrb[0].mxu0 %v647
      %v999 = vpop.f32.mrb[0].mxu0
      %v1000 = vadd.f32 0.0, %v999
      %v1001 = vpop.f32.mrb[0].mxu0
      %v1002 = vadd.f32 0.0, %v1001
      %1003 = vmatprep.mubr.f32.mxu0 0.0
      %1004 = vmatmul.mubr.f32.gmra.mrb[0].mxu0 %v648
      %v1005 = vpop.f32.mrb[0].mxu0
      %v1006 = vadd.f32 0.0, %v1005
      %v1007 = vpop.f32.mrb[0].mxu0
      %v1008 = vadd.f32 0.0, %v1007
      %1009 = vmatprep.mubr.f32.mxu0 0.0
      %1010 = vmatmul.mubr.f32.gmra.mrb[0].mxu0 %v649
      %v1011 = vpop.f32.mrb[0].mxu0
      %v1012 = vadd.f32 0.0, %v1011
      %v1013 = vpop.f32.mrb[0].mxu0
      %v1014 = vadd.f32 0.0, %v1013
      %1015 = vmatprep.mubr.f32.mxu0 0.0
      %1016 = vmatmul.mubr.f32.gmra.mrb[0].mxu0 %v650
      %v1017 = vpop.f32.mrb[0].mxu0
      %v1018 = vadd.f32 0.0, %v1017
      %v1019 = vpop.f32.mrb[0].mxu0
      %v1020 = vadd.f32 0.0, %v1019
      %1021 = vmatprep.mubr.f32.mxu0 0.0
      %1022 = vmatmul.mubr.f32.gmra.mrb[0].mxu0 %v651
      %v1023 = vpop.f32.mrb[0].mxu0
      %v1024 = vadd.f32 0.0, %v1023
      %v1025 = vpop.f32.mrb[0].mxu0
      %v1026 = vadd.f32 0.0, %v1025
      %1027 = vmatprep.mubr.f32.mxu0 0.0
      %1028 = vmatmul.mubr.f32.gmra.mrb[0].mxu0 %v652
      %v1029 = vpop.f32.mrb[0].mxu0
      %v1030 = vadd.f32 0.0, %v1029
      %v1031 = vpop.f32.mrb[0].mxu0
      %v1032 = vadd.f32 0.0, %v1031
      %1033 = vmatprep.mubr.f32.mxu0 0.0
      %1034 = vmatmul.mubr.f32.gmra.mrb[0].mxu0 %v653
      %v1035 = vpop.f32.mrb[0].mxu0
      %v1036 = vadd.f32 0.0, %v1035
      %v1037 = vpop.f32.mrb[0].mxu0
      %v1038 = vadd.f32 0.0, %v1037
      %1039 = vmatprep.mubr.f32.mxu0 0.0
      %1040 = vmatmul.mubr.f32.gmra.mrb[0].mxu0 %v654
      %v1041 = vpop.f32.mrb[0].mxu0
      %v1042 = vadd.f32 0.0, %v1041
      %v1043 = vpop.f32.mrb[0].mxu0
      %v1044 = vadd.f32 0.0, %v1043
      %1045 = vmatprep.mubr.f32.mxu0 0.0
      %1046 = vmatmul.mubr.f32.gmra.mrb[0].mxu0 %v655
      %v1047 = vpop.f32.mrb[0].mxu0
      %v1048 = vadd.f32 0.0, %v1047
      %v1049 = vpop.f32.mrb[0].mxu0
      %v1050 = vadd.f32 0.0, %v1049
      %1051 = vmatprep.mubr.f32.mxu0 0.0
      %1052 = vmatmul.mubr.f32.gmra.mrb[0].mxu0 %v656
      %v1053 = vpop.f32.mrb[0].mxu0
      %v1054 = vadd.f32 0.0, %v1053
      %v1055 = vpop.f32.mrb[0].mxu0
      %v1056 = vadd.f32 0.0, %v1055
      %1057 = vmatprep.mubr.f32.mxu0 0.0
      %1058 = vmatmul.mubr.f32.gmra.mrb[0].mxu0 %v657
      %v1059 = vpop.f32.mrb[0].mxu0
      %v1060 = vadd.f32 0.0, %v1059
      %v1061 = vpop.f32.mrb[0].mxu0
      %v1062 = vadd.f32 0.0, %v1061
      %1063 = vmatprep.mubr.f32.mxu0 0.0
      %1064 = vmatmul.mubr.f32.gmra.mrb[0].mxu0 %v658
      %v1065 = vpop.f32.mrb[0].mxu0
      %v1066 = vadd.f32 0.0, %v1065
      %v1067 = vpop.f32.mrb[0].mxu0
      %v1068 = vadd.f32 0.0, %v1067
      %1069 = vmatprep.mubr.f32.mxu0 0.0
      %1070 = vmatmul.mubr.f32.gmra.mrb[0].mxu0 %v659
      %v1071 = vpop.f32.mrb[0].mxu0
      %v1072 = vadd.f32 0.0, %v1071
      %v1073 = vpop.f32.mrb[0].mxu0
      %v1074 = vadd.f32 0.0, %v1073
      %1075 = vmatprep.mubr.f32.mxu0 0.0
      %1076 = vmatmul.mubr.f32.gmra.mrb[0].mxu0 %v660
      %v1077 = vpop.f32.mrb[0].mxu0
      %v1078 = vadd.f32 0.0, %v1077
      %v1079 = vpop.f32.mrb[0].mxu0
      %v1080 = vadd.f32 0.0, %v1079
      %1081 = vmatprep.mubr.f32.mxu0 0.0
      %1082 = vmatmul.mubr.f32.gmra.mrb[0].mxu0 %v661
      %v1083 = vpop.f32.mrb[0].mxu0
      %v1084 = vadd.f32 0.0, %v1083
      %v1085 = vpop.f32.mrb[0].mxu0
      %v1086 = vadd.f32 0.0, %v1085
      %1087 = vmatprep.mubr.f32.mxu0 0.0
      %1088 = vmatmul.mubr.f32.gmra.mrb[0].mxu0 %v662
      %v1089 = vpop.f32.mrb[0].mxu0
      %v1090 = vadd.f32 0.0, %v1089
      %v1091 = vpop.f32.mrb[0].mxu0
      %v1092 = vadd.f32 0.0, %v1091
      %1093 = vmatprep.mubr.f32.mxu0 0.0
      %1094 = vmatmul.mubr.f32.gmra.mrb[0].mxu0 %v663
      %v1095 = vpop.f32.mrb[0].mxu0
      %v1096 = vadd.f32 0.0, %v1095
      %v1097 = vpop.f32.mrb[0].mxu0
      %v1098 = vadd.f32 0.0, %v1097
      %1099 = vmatprep.mubr.f32.mxu0 0.0
      %1100 = vmatmul.mubr.f32.gmra.mrb[0].mxu0 %v664
      %v1101 = vpop.f32.mrb[0].mxu0
      %v1102 = vadd.f32 0.0, %v1101
      %v1103 = vpop.f32.mrb[0].mxu0
      %v1104 = vadd.f32 0.0, %v1103
      %1105 = vmatprep.mubr.f32.mxu0 0.0
      %1106 = vmatmul.mubr.f32.gmra.mrb[0].mxu0 %v665
      %v1107 = vpop.f32.mrb[0].mxu0
      %v1108 = vadd.f32 0.0, %v1107
      %v1109 = vpop.f32.mrb[0].mxu0
      %v1110 = vadd.f32 0.0, %v1109
      %1111 = vmatprep.mubr.f32.mxu0 0.0
      %1112 = vmatmul.mubr.f32.gmra.mrb[0].mxu0 %v666
      %v1113 = vpop.f32.mrb[0].mxu0
      %v1114 = vadd.f32 0.0, %v1113
      %v1115 = vpop.f32.mrb[0].mxu0
      %v1116 = vadd.f32 0.0, %v1115
      %1117 = vmatprep.mubr.f32.mxu0 0.0
      %1118 = vmatmul.mubr.f32.gmra.mrb[0].mxu0 %v667
      %v1119 = vpop.f32.mrb[0].mxu0
      %v1120 = vadd.f32 0.0, %v1119
      %v1121 = vpop.f32.mrb[0].mxu0
      %v1122 = vadd.f32 0.0, %v1121
      %1123 = vmatprep.mubr.f32.mxu0 0.0
      %1124 = vmatmul.mubr.f32.gmra.mrb[0].mxu0 %v668
      %v1125 = vpop.f32.mrb[0].mxu0
      %v1126 = vadd.f32 0.0, %v1125
      %v1127 = vpop.f32.mrb[0].mxu0
      %v1128 = vadd.f32 0.0, %v1127
      %1129 = vmatprep.mubr.f32.mxu0 0.0
      %1130 = vmatmul.mubr.f32.gmra.mrb[0].mxu0 %v669
      %v1131 = vpop.f32.mrb[0].mxu0
      %v1132 = vadd.f32 0.0, %v1131
      %v1133 = vpop.f32.mrb[0].mxu0
      %v1134 = vadd.f32 0.0, %v1133
      %1135 = vmatprep.mubr.f32.mxu0 0.0
      %1136 = vmatmul.mubr.f32.gmra.mrb[0].mxu0 %v670
      %v1137 = vpop.f32.mrb[0].mxu0
      %v1138 = vadd.f32 0.0, %v1137
      %v1139 = vpop.f32.mrb[0].mxu0
      %v1140 = vadd.f32 0.0, %v1139
      %1141 = vmatprep.mubr.f32.mxu0 0.0
      %1142 = vmatmul.mubr.f32.gmra.mrb[0].mxu0 %v671
      %v1143 = vpop.f32.mrb[0].mxu0
      %v1144 = vadd.f32 0.0, %v1143
      %v1145 = vpop.f32.mrb[0].mxu0
      %v1146 = vadd.f32 0.0, %v1145
      %1147 = vmatprep.mubr.f32.mxu0 0.0
      %1148 = vmatmul.mubr.f32.gmra.mrb[0].mxu0 %v672
      %v1149 = vpop.f32.mrb[0].mxu0
      %v1150 = vadd.f32 0.0, %v1149
      %v1151 = vpop.f32.mrb[0].mxu0
      %v1152 = vadd.f32 0.0, %v1151
      %1153 = vdwg.mxu0
      %1154 = vmatprep.subr.mxu0 %v740
      %1155 = vmatpush1.msra.mxu0 %v739
      %1156 = vmatprep.subr.mxu0 %v744
      %1157 = vmatpush1.msra.mxu0 %v743
      %1158 = vmatprep.subr.mxu0 %v748
      %1159 = vmatpush1.msra.mxu0 %v747
      %1160 = vmatprep.subr.mxu0 %v752
      %1161 = vmatpush1.msra.mxu0 %v751
      %1162 = vmatprep.subr.mxu0 %v756
      %1163 = vmatpush1.msra.mxu0 %v755
      %1164 = vmatprep.subr.mxu0 %v760
      %1165 = vmatpush1.msra.mxu0 %v759
      %1166 = vmatprep.subr.mxu0 %v764
      %1167 = vmatpush1.msra.mxu0 %v763
      %1168 = vmatprep.subr.mxu0 %v768
      %1169 = vmatpush1.msra.mxu0 %v767
      %1170 = vmatprep.subr.mxu0 %v772
      %1171 = vmatpush1.msra.mxu0 %v771
      %1172 = vmatprep.subr.mxu0 %v776
      %1173 = vmatpush1.msra.mxu0 %v775
      %1174 = vmatprep.subr.mxu0 %v780
      %1175 = vmatpush1.msra.mxu0 %v779
      %1176 = vmatprep.subr.mxu0 %v784
      %1177 = vmatpush1.msra.mxu0 %v783
      %1178 = vmatprep.subr.mxu0 %v788
      %1179 = vmatpush1.msra.mxu0 %v787
      %1180 = vmatprep.subr.mxu0 %v792
      %1181 = vmatpush1.msra.mxu0 %v791
      %1182 = vmatprep.subr.mxu0 %v796
      %1183 = vmatpush1.msra.mxu0 %v795
      %1184 = vmatprep.subr.mxu0 %v800
      %1185 = vmatpush1.msra.mxu0 %v799
      %1186 = vmatprep.subr.mxu0 0.0
      %1187 = vmatpush1.msra.mxu0 0.0
      %1188 = vmatprep.subr.mxu0 0.0
      %1189 = vmatpush1.msra.mxu0 0.0
      %1190 = vmatprep.subr.mxu0 0.0
      %1191 = vmatpush1.msra.mxu0 0.0
      %1192 = vmatprep.subr.mxu0 0.0
      %1193 = vmatpush1.msra.mxu0 0.0
      %1194 = vmatprep.subr.mxu0 0.0
      %1195 = vmatpush1.msra.mxu0 0.0
      %1196 = vmatprep.subr.mxu0 0.0
      %1197 = vmatpush1.msra.mxu0 0.0
      %1198 = vmatprep.subr.mxu0 0.0
      %1199 = vmatpush1.msra.mxu0 0.0
      %1200 = vmatprep.subr.mxu0 0.0
      %1201 = vmatpush1.msra.mxu0 0.0
      %1202 = vmatprep.subr.mxu0 0.0
      %1203 = vmatpush1.msra.mxu0 0.0
      %1204 = vmatprep.subr.mxu0 0.0
      %1205 = vmatpush1.msra.mxu0 0.0
      %1206 = vmatprep.subr.mxu0 0.0
      %1207 = vmatpush1.msra.mxu0 0.0
      %1208 = vmatprep.subr.mxu0 0.0
      %1209 = vmatpush1.msra.mxu0 0.0
      %1210 = vmatprep.subr.mxu0 0.0
      %1211 = vmatpush1.msra.mxu0 0.0
      %1212 = vmatprep.subr.mxu0 0.0
      %1213 = vmatpush1.msra.mxu0 0.0
      %1214 = vmatprep.subr.mxu0 0.0
      %1215 = vmatpush1.msra.mxu0 0.0
      %1216 = vmatprep.subr.mxu0 0.0
      %1217 = vmatpush1.msra.mxu0 0.0
      %1218 = vmatprep.mubr.f32.mxu0 0.0
      %1219 = vmatmul.mubr.f32.gmra.mrb[0].mxu0 %v625
      %v1220 = vpop.f32.mrb[0].mxu0
      %v1221 = vadd.f32 0.0, %v1220
      %v1222 = vpop.f32.mrb[0].mxu0
      %v1223 = vadd.f32 0.0, %v1222
      %1224 = vmatprep.mubr.f32.mxu0 0.0
      %1225 = vmatmul.mubr.f32.gmra.mrb[0].mxu0 %v626
      %v1226 = vpop.f32.mrb[0].mxu0
      %v1227 = vadd.f32 0.0, %v1226
      %v1228 = vpop.f32.mrb[0].mxu0
      %v1229 = vadd.f32 0.0, %v1228
      %1230 = vmatprep.mubr.f32.mxu0 0.0
      %1231 = vmatmul.mubr.f32.gmra.mrb[0].mxu0 %v627
      %v1232 = vpop.f32.mrb[0].mxu0
      %v1233 = vadd.f32 0.0, %v1232
      %v1234 = vpop.f32.mrb[0].mxu0
      %v1235 = vadd.f32 0.0, %v1234
      %1236 = vmatprep.mubr.f32.mxu0 0.0
      %1237 = vmatmul.mubr.f32.gmra.mrb[0].mxu0 %v628
      %v1238 = vpop.f32.mrb[0].mxu0
      %v1239 = vadd.f32 0.0, %v1238
      %v1240 = vpop.f32.mrb[0].mxu0
      %v1241 = vadd.f32 0.0, %v1240
      %1242 = vmatprep.mubr.f32.mxu0 0.0
      %1243 = vmatmul.mubr.f32.gmra.mrb[0].mxu0 %v629
      %v1244 = vpop.f32.mrb[0].mxu0
      %v1245 = vadd.f32 0.0, %v1244
      %v1246 = vpop.f32.mrb[0].mxu0
      %v1247 = vadd.f32 0.0, %v1246
      %1248 = vmatprep.mubr.f32.mxu0 0.0
      %1249 = vmatmul.mubr.f32.gmra.mrb[0].mxu0 %v630
      %v1250 = vpop.f32.mrb[0].mxu0
      %v1251 = vadd.f32 0.0, %v1250
      %v1252 = vpop.f32.mrb[0].mxu0
      %v1253 = vadd.f32 0.0, %v1252
      %1254 = vmatprep.mubr.f32.mxu0 0.0
      %1255 = vmatmul.mubr.f32.gmra.mrb[0].mxu0 %v631
      %v1256 = vpop.f32.mrb[0].mxu0
      %v1257 = vadd.f32 0.0, %v1256
      %v1258 = vpop.f32.mrb[0].mxu0
      %v1259 = vadd.f32 0.0, %v1258
      %1260 = vmatprep.mubr.f32.mxu0 0.0
      %1261 = vmatmul.mubr.f32.gmra.mrb[0].mxu0 %v632
      %v1262 = vpop.f32.mrb[0].mxu0
      %v1263 = vadd.f32 0.0, %v1262
      %v1264 = vpop.f32.mrb[0].mxu0
      %v1265 = vadd.f32 0.0, %v1264
      %1266 = vmatprep.mubr.f32.mxu0 0.0
      %1267 = vmatmul.mubr.f32.gmra.mrb[0].mxu0 %v633
      %v1268 = vpop.f32.mrb[0].mxu0
      %v1269 = vadd.f32 0.0, %v1268
      %v1270 = vpop.f32.mrb[0].mxu0
      %v1271 = vadd.f32 0.0, %v1270
      %1272 = vmatprep.mubr.f32.mxu0 0.0
      %1273 = vmatmul.mubr.f32.gmra.mrb[0].mxu0 %v634
      %v1274 = vpop.f32.mrb[0].mxu0
      %v1275 = vadd.f32 0.0, %v1274
      %v1276 = vpop.f32.mrb[0].mxu0
      %v1277 = vadd.f32 0.0, %v1276
      %1278 = vmatprep.mubr.f32.mxu0 0.0
      %1279 = vmatmul.mubr.f32.gmra.mrb[0].mxu0 %v635
      %v1280 = vpop.f32.mrb[0].mxu0
      %v1281 = vadd.f32 0.0, %v1280
      %v1282 = vpop.f32.mrb[0].mxu0
      %v1283 = vadd.f32 0.0, %v1282
      %1284 = vmatprep.mubr.f32.mxu0 0.0
      %1285 = vmatmul.mubr.f32.gmra.mrb[0].mxu0 %v636
      %v1286 = vpop.f32.mrb[0].mxu0
      %v1287 = vadd.f32 0.0, %v1286
      %v1288 = vpop.f32.mrb[0].mxu0
      %v1289 = vadd.f32 0.0, %v1288
      %1290 = vmatprep.mubr.f32.mxu0 0.0
      %1291 = vmatmul.mubr.f32.gmra.mrb[0].mxu0 %v637
      %v1292 = vpop.f32.mrb[0].mxu0
      %v1293 = vadd.f32 0.0, %v1292
      %v1294 = vpop.f32.mrb[0].mxu0
      %v1295 = vadd.f32 0.0, %v1294
      %1296 = vmatprep.mubr.f32.mxu0 0.0
      %1297 = vmatmul.mubr.f32.gmra.mrb[0].mxu0 %v638
      %v1298 = vpop.f32.mrb[0].mxu0
      %v1299 = vadd.f32 0.0, %v1298
      %v1300 = vpop.f32.mrb[0].mxu0
      %v1301 = vadd.f32 0.0, %v1300
      %1302 = vmatprep.mubr.f32.mxu0 0.0
      %1303 = vmatmul.mubr.f32.gmra.mrb[0].mxu0 %v639
      %v1304 = vpop.f32.mrb[0].mxu0
      %v1305 = vadd.f32 0.0, %v1304
      %v1306 = vpop.f32.mrb[0].mxu0
      %v1307 = vadd.f32 0.0, %v1306
      %1308 = vmatprep.mubr.f32.mxu0 0.0
      %1309 = vmatmul.mubr.f32.gmra.mrb[0].mxu0 %v640
      %v1310 = vpop.f32.mrb[0].mxu0
      %v1311 = vadd.f32 0.0, %v1310
      %v1312 = vpop.f32.mrb[0].mxu0
      %v1313 = vadd.f32 0.0, %v1312
      %1314 = vmatprep.mubr.f32.mxu0 0.0
      %1315 = vmatmul.mubr.f32.gmra.mrb[0].mxu0 %v641
      %v1316 = vpop.f32.mrb[0].mxu0
      %v1317 = vadd.f32 0.0, %v1316
      %v1318 = vpop.f32.mrb[0].mxu0
      %v1319 = vadd.f32 0.0, %v1318
      %1320 = vmatprep.mubr.f32.mxu0 0.0
      %1321 = vmatmul.mubr.f32.gmra.mrb[0].mxu0 %v642
      %v1322 = vpop.f32.mrb[0].mxu0
      %v1323 = vadd.f32 0.0, %v1322
      %v1324 = vpop.f32.mrb[0].mxu0
      %v1325 = vadd.f32 0.0, %v1324
      %1326 = vmatprep.mubr.f32.mxu0 0.0
      %1327 = vmatmul.mubr.f32.gmra.mrb[0].mxu0 %v643
      %v1328 = vpop.f32.mrb[0].mxu0
      %v1329 = vadd.f32 0.0, %v1328
      %v1330 = vpop.f32.mrb[0].mxu0
      %v1331 = vadd.f32 0.0, %v1330
      %1332 = vmatprep.mubr.f32.mxu0 0.0
      %1333 = vmatmul.mubr.f32.gmra.mrb[0].mxu0 %v644
      %v1334 = vpop.f32.mrb[0].mxu0
      %v1335 = vadd.f32 0.0, %v1334
      %v1336 = vpop.f32.mrb[0].mxu0
      %v1337 = vadd.f32 0.0, %v1336
      %1338 = vmatprep.mubr.f32.mxu0 0.0
      %1339 = vmatmul.mubr.f32.gmra.mrb[0].mxu0 %v645
      %v1340 = vpop.f32.mrb[0].mxu0
      %v1341 = vadd.f32 0.0, %v1340
      %v1342 = vpop.f32.mrb[0].mxu0
      %v1343 = vadd.f32 0.0, %v1342
      %1344 = vmatprep.mubr.f32.mxu0 0.0
      %1345 = vmatmul.mubr.f32.gmra.mrb[0].mxu0 %v646
      %v1346 = vpop.f32.mrb[0].mxu0
      %v1347 = vadd.f32 0.0, %v1346
      %v1348 = vpop.f32.mrb[0].mxu0
      %v1349 = vadd.f32 0.0, %v1348
      %1350 = vmatprep.mubr.f32.mxu0 0.0
      %1351 = vmatmul.mubr.f32.gmra.mrb[0].mxu0 %v647
      %v1352 = vpop.f32.mrb[0].mxu0
      %v1353 = vadd.f32 0.0, %v1352
      %v1354 = vpop.f32.mrb[0].mxu0
      %v1355 = vadd.f32 0.0, %v1354
      %1356 = vmatprep.mubr.f32.mxu0 0.0
      %1357 = vmatmul.mubr.f32.gmra.mrb[0].mxu0 %v648
      %v1358 = vpop.f32.mrb[0].mxu0
      %v1359 = vadd.f32 0.0, %v1358
      %v1360 = vpop.f32.mrb[0].mxu0
      %v1361 = vadd.f32 0.0, %v1360
      %1362 = vmatprep.mubr.f32.mxu0 0.0
      %1363 = vmatmul.mubr.f32.gmra.mrb[0].mxu0 %v649
      %v1364 = vpop.f32.mrb[0].mxu0
      %v1365 = vadd.f32 0.0, %v1364
      %v1366 = vpop.f32.mrb[0].mxu0
      %v1367 = vadd.f32 0.0, %v1366
      %1368 = vmatprep.mubr.f32.mxu0 0.0
      %1369 = vmatmul.mubr.f32.gmra.mrb[0].mxu0 %v650
      %v1370 = vpop.f32.mrb[0].mxu0
      %v1371 = vadd.f32 0.0, %v1370
      %v1372 = vpop.f32.mrb[0].mxu0
      %v1373 = vadd.f32 0.0, %v1372
      %1374 = vmatprep.mubr.f32.mxu0 0.0
      %1375 = vmatmul.mubr.f32.gmra.mrb[0].mxu0 %v651
      %v1376 = vpop.f32.mrb[0].mxu0
      %v1377 = vadd.f32 0.0, %v1376
      %v1378 = vpop.f32.mrb[0].mxu0
      %v1379 = vadd.f32 0.0, %v1378
      %1380 = vmatprep.mubr.f32.mxu0 0.0
      %1381 = vmatmul.mubr.f32.gmra.mrb[0].mxu0 %v652
      %v1382 = vpop.f32.mrb[0].mxu0
      %v1383 = vadd.f32 0.0, %v1382
      %v1384 = vpop.f32.mrb[0].mxu0
      %v1385 = vadd.f32 0.0, %v1384
      %1386 = vmatprep.mubr.f32.mxu0 0.0
      %1387 = vmatmul.mubr.f32.gmra.mrb[0].mxu0 %v653
      %v1388 = vpop.f32.mrb[0].mxu0
      %v1389 = vadd.f32 0.0, %v1388
      %v1390 = vpop.f32.mrb[0].mxu0
      %v1391 = vadd.f32 0.0, %v1390
      %1392 = vmatprep.mubr.f32.mxu0 0.0
      %1393 = vmatmul.mubr.f32.gmra.mrb[0].mxu0 %v654
      %v1394 = vpop.f32.mrb[0].mxu0
      %v1395 = vadd.f32 0.0, %v1394
      %v1396 = vpop.f32.mrb[0].mxu0
      %v1397 = vadd.f32 0.0, %v1396
      %1398 = vmatprep.mubr.f32.mxu0 0.0
      %1399 = vmatmul.mubr.f32.gmra.mrb[0].mxu0 %v655
      %v1400 = vpop.f32.mrb[0].mxu0
      %v1401 = vadd.f32 0.0, %v1400
      %v1402 = vpop.f32.mrb[0].mxu0
      %v1403 = vadd.f32 0.0, %v1402
      %1404 = vmatprep.mubr.f32.mxu0 0.0
      %1405 = vmatmul.mubr.f32.gmra.mrb[0].mxu0 %v656
      %v1406 = vpop.f32.mrb[0].mxu0
      %v1407 = vadd.f32 0.0, %v1406
      %v1408 = vpop.f32.mrb[0].mxu0
      %v1409 = vadd.f32 0.0, %v1408
      %1410 = vmatprep.mubr.f32.mxu0 0.0
      %1411 = vmatmul.mubr.f32.gmra.mrb[0].mxu0 %v657
      %v1412 = vpop.f32.mrb[0].mxu0
      %v1413 = vadd.f32 0.0, %v1412
      %v1414 = vpop.f32.mrb[0].mxu0
      %v1415 = vadd.f32 0.0, %v1414
      %1416 = vmatprep.mubr.f32.mxu0 0.0
      %1417 = vmatmul.mubr.f32.gmra.mrb[0].mxu0 %v658
      %v1418 = vpop.f32.mrb[0].mxu0
      %v1419 = vadd.f32 0.0, %v1418
      %v1420 = vpop.f32.mrb[0].mxu0
      %v1421 = vadd.f32 0.0, %v1420
      %1422 = vmatprep.mubr.f32.mxu0 0.0
      %1423 = vmatmul.mubr.f32.gmra.mrb[0].mxu0 %v659
      %v1424 = vpop.f32.mrb[0].mxu0
      %v1425 = vadd.f32 0.0, %v1424
      %v1426 = vpop.f32.mrb[0].mxu0
      %v1427 = vadd.f32 0.0, %v1426
      %1428 = vmatprep.mubr.f32.mxu0 0.0
      %1429 = vmatmul.mubr.f32.gmra.mrb[0].mxu0 %v660
      %v1430 = vpop.f32.mrb[0].mxu0
      %v1431 = vadd.f32 0.0, %v1430
      %v1432 = vpop.f32.mrb[0].mxu0
      %v1433 = vadd.f32 0.0, %v1432
      %1434 = vmatprep.mubr.f32.mxu0 0.0
      %1435 = vmatmul.mubr.f32.gmra.mrb[0].mxu0 %v661
      %v1436 = vpop.f32.mrb[0].mxu0
      %v1437 = vadd.f32 0.0, %v1436
      %v1438 = vpop.f32.mrb[0].mxu0
      %v1439 = vadd.f32 0.0, %v1438
      %1440 = vmatprep.mubr.f32.mxu0 0.0
      %1441 = vmatmul.mubr.f32.gmra.mrb[0].mxu0 %v662
      %v1442 = vpop.f32.mrb[0].mxu0
      %v1443 = vadd.f32 0.0, %v1442
      %v1444 = vpop.f32.mrb[0].mxu0
      %v1445 = vadd.f32 0.0, %v1444
      %1446 = vmatprep.mubr.f32.mxu0 0.0
      %1447 = vmatmul.mubr.f32.gmra.mrb[0].mxu0 %v663
      %v1448 = vpop.f32.mrb[0].mxu0
      %v1449 = vadd.f32 0.0, %v1448
      %v1450 = vpop.f32.mrb[0].mxu0
      %v1451 = vadd.f32 0.0, %v1450
      %1452 = vmatprep.mubr.f32.mxu0 0.0
      %1453 = vmatmul.mubr.f32.gmra.mrb[0].mxu0 %v664
      %v1454 = vpop.f32.mrb[0].mxu0
      %v1455 = vadd.f32 0.0, %v1454
      %v1456 = vpop.f32.mrb[0].mxu0
      %v1457 = vadd.f32 0.0, %v1456
      %1458 = vmatprep.mubr.f32.mxu0 0.0
      %1459 = vmatmul.mubr.f32.gmra.mrb[0].mxu0 %v665
      %v1460 = vpop.f32.mrb[0].mxu0
      %v1461 = vadd.f32 0.0, %v1460
      %v1462 = vpop.f32.mrb[0].mxu0
      %v1463 = vadd.f32 0.0, %v1462
      %1464 = vmatprep.mubr.f32.mxu0 0.0
      %1465 = vmatmul.mubr.f32.gmra.mrb[0].mxu0 %v666
      %v1466 = vpop.f32.mrb[0].mxu0
      %v1467 = vadd.f32 0.0, %v1466
      %v1468 = vpop.f32.mrb[0].mxu0
      %v1469 = vadd.f32 0.0, %v1468
      %1470 = vmatprep.mubr.f32.mxu0 0.0
      %1471 = vmatmul.mubr.f32.gmra.mrb[0].mxu0 %v667
      %v1472 = vpop.f32.mrb[0].mxu0
      %v1473 = vadd.f32 0.0, %v1472
      %v1474 = vpop.f32.mrb[0].mxu0
      %v1475 = vadd.f32 0.0, %v1474
      %1476 = vmatprep.mubr.f32.mxu0 0.0
      %1477 = vmatmul.mubr.f32.gmra.mrb[0].mxu0 %v668
      %v1478 = vpop.f32.mrb[0].mxu0
      %v1479 = vadd.f32 0.0, %v1478
      %v1480 = vpop.f32.mrb[0].mxu0
      %v1481 = vadd.f32 0.0, %v1480
      %1482 = vmatprep.mubr.f32.mxu0 0.0
      %1483 = vmatmul.mubr.f32.gmra.mrb[0].mxu0 %v669
      %v1484 = vpop.f32.mrb[0].mxu0
      %v1485 = vadd.f32 0.0, %v1484
      %v1486 = vpop.f32.mrb[0].mxu0
      %v1487 = vadd.f32 0.0, %v1486
      %1488 = vmatprep.mubr.f32.mxu0 0.0
      %1489 = vmatmul.mubr.f32.gmra.mrb[0].mxu0 %v670
      %v1490 = vpop.f32.mrb[0].mxu0
      %v1491 = vadd.f32 0.0, %v1490
      %v1492 = vpop.f32.mrb[0].mxu0
      %v1493 = vadd.f32 0.0, %v1492
      %1494 = vmatprep.mubr.f32.mxu0 0.0
      %1495 = vmatmul.mubr.f32.gmra.mrb[0].mxu0 %v671
      %v1496 = vpop.f32.mrb[0].mxu0
      %v1497 = vadd.f32 0.0, %v1496
      %v1498 = vpop.f32.mrb[0].mxu0
      %v1499 = vadd.f32 0.0, %v1498
      %1500 = vmatprep.mubr.f32.mxu0 0.0
      %1501 = vmatmul.mubr.f32.gmra.mrb[0].mxu0 %v672
      %v1502 = vpop.f32.mrb[0].mxu0
      %v1503 = vadd.f32 0.0, %v1502
      %v1504 = vpop.f32.mrb[0].mxu0
      %v1505 = vadd.f32 0.0, %v1504
      %1506 = vdwg.mxu0
      %1507 = vmatprep.subr.mxu0 %v674
      %1508 = vmatpush1.msra.mxu0 %v673
      %1509 = vmatprep.subr.mxu0 %v678
      %1510 = vmatpush1.msra.mxu0 %v677
      %1511 = vmatprep.subr.mxu0 %v682
      %1512 = vmatpush1.msra.mxu0 %v681
      %1513 = vmatprep.subr.mxu0 %v686
      %1514 = vmatpush1.msra.mxu0 %v685
      %1515 = vmatprep.subr.mxu0 %v690
      %1516 = vmatpush1.msra.mxu0 %v689
      %1517 = vmatprep.subr.mxu0 %v694
      %1518 = vmatpush1.msra.mxu0 %v693
      %1519 = vmatprep.subr.mxu0 %v698
      %1520 = vmatpush1.msra.mxu0 %v697
      %1521 = vmatprep.subr.mxu0 %v702
      %1522 = vmatpush1.msra.mxu0 %v701
      %1523 = vmatprep.subr.mxu0 %v706
      %1524 = vmatpush1.msra.mxu0 %v705
      %1525 = vmatprep.subr.mxu0 %v710
      %1526 = vmatpush1.msra.mxu0 %v709
      %1527 = vmatprep.subr.mxu0 %v714
      %1528 = vmatpush1.msra.mxu0 %v713
      %1529 = vmatprep.subr.mxu0 %v718
      %1530 = vmatpush1.msra.mxu0 %v717
      %1531 = vmatprep.subr.mxu0 %v722
      %1532 = vmatpush1.msra.mxu0 %v721
      %1533 = vmatprep.subr.mxu0 %v726
      %1534 = vmatpush1.msra.mxu0 %v725
      %1535 = vmatprep.subr.mxu0 %v730
      %1536 = vmatpush1.msra.mxu0 %v729
      %1537 = vmatprep.subr.mxu0 %v734
      %1538 = vmatpush1.msra.mxu0 %v733
      %1539 = vmatprep.subr.mxu0 0.0
      %1540 = vmatpush1.msra.mxu0 0.0
      %1541 = vmatprep.subr.mxu0 0.0
      %1542 = vmatpush1.msra.mxu0 0.0
      %1543 = vmatprep.subr.mxu0 0.0
      %1544 = vmatpush1.msra.mxu0 0.0
      %1545 = vmatprep.subr.mxu0 0.0
      %1546 = vmatpush1.msra.mxu0 0.0
      %1547 = vmatprep.subr.mxu0 0.0
      %1548 = vmatpush1.msra.mxu0 0.0
      %1549 = vmatprep.subr.mxu0 0.0
      %1550 = vmatpush1.msra.mxu0 0.0
      %1551 = vmatprep.subr.mxu0 0.0
      %1552 = vmatpush1.msra.mxu0 0.0
      %1553 = vmatprep.subr.mxu0 0.0
      %1554 = vmatpush1.msra.mxu0 0.0
      %1555 = vmatprep.subr.mxu0 0.0
      %1556 = vmatpush1.msra.mxu0 0.0
      %1557 = vmatprep.subr.mxu0 0.0
      %1558 = vmatpush1.msra.mxu0 0.0
      %1559 = vmatprep.subr.mxu0 0.0
      %1560 = vmatpush1.msra.mxu0 0.0
      %1561 = vmatprep.subr.mxu0 0.0
      %1562 = vmatpush1.msra.mxu0 0.0
      %1563 = vmatprep.subr.mxu0 0.0
      %1564 = vmatpush1.msra.mxu0 0.0
      %1565 = vmatprep.subr.mxu0 0.0
      %1566 = vmatpush1.msra.mxu0 0.0
      %1567 = vmatprep.subr.mxu0 0.0
      %1568 = vmatpush1.msra.mxu0 0.0
      %1569 = vmatprep.subr.mxu0 0.0
      %1570 = vmatpush1.msra.mxu0 0.0
      %1571 = vmatprep.mubr.f32.mxu0 0.0
      %1572 = vmatmul.mubr.f32.gmra.mrb[0].mxu0 %v481
      %v1573 = vpop.f32.mrb[0].mxu0
      %v1574 = vadd.f32 %v868, %v1573
      %v1575 = vpop.f32.mrb[0].mxu0
      %v1576 = vadd.f32 %v870, %v1575
      %1577 = vmatprep.mubr.f32.mxu0 0.0
      %1578 = vmatmul.mubr.f32.gmra.mrb[0].mxu0 %v482
      %v1579 = vpop.f32.mrb[0].mxu0
      %v1580 = vadd.f32 %v874, %v1579
      %v1581 = vpop.f32.mrb[0].mxu0
      %v1582 = vadd.f32 %v876, %v1581
      %1583 = vmatprep.mubr.f32.mxu0 0.0
      %1584 = vmatmul.mubr.f32.gmra.mrb[0].mxu0 %v483
      %v1585 = vpop.f32.mrb[0].mxu0
      %v1586 = vadd.f32 %v880, %v1585
      %v1587 = vpop.f32.mrb[0].mxu0
      %v1588 = vadd.f32 %v882, %v1587
      %1589 = vmatprep.mubr.f32.mxu0 0.0
      %1590 = vmatmul.mubr.f32.gmra.mrb[0].mxu0 %v484
      %v1591 = vpop.f32.mrb[0].mxu0
      %v1592 = vadd.f32 %v886, %v1591
      %v1593 = vpop.f32.mrb[0].mxu0
      %v1594 = vadd.f32 %v888, %v1593
      %1595 = vmatprep.mubr.f32.mxu0 0.0
      %1596 = vmatmul.mubr.f32.gmra.mrb[0].mxu0 %v485
      %v1597 = vpop.f32.mrb[0].mxu0
      %v1598 = vadd.f32 %v892, %v1597
      %v1599 = vpop.f32.mrb[0].mxu0
      %v1600 = vadd.f32 %v894, %v1599
      %1601 = vmatprep.mubr.f32.mxu0 0.0
      %1602 = vmatmul.mubr.f32.gmra.mrb[0].mxu0 %v486
      %v1603 = vpop.f32.mrb[0].mxu0
      %v1604 = vadd.f32 %v898, %v1603
      %v1605 = vpop.f32.mrb[0].mxu0
      %v1606 = vadd.f32 %v900, %v1605
      %1607 = vmatprep.mubr.f32.mxu0 0.0
      %1608 = vmatmul.mubr.f32.gmra.mrb[0].mxu0 %v487
      %v1609 = vpop.f32.mrb[0].mxu0
      %v1610 = vadd.f32 %v904, %v1609
      %v1611 = vpop.f32.mrb[0].mxu0
      %v1612 = vadd.f32 %v906, %v1611
      %1613 = vmatprep.mubr.f32.mxu0 0.0
      %1614 = vmatmul.mubr.f32.gmra.mrb[0].mxu0 %v488
      %v1615 = vpop.f32.mrb[0].mxu0
      %v1616 = vadd.f32 %v910, %v1615
      %v1617 = vpop.f32.mrb[0].mxu0
      %v1618 = vadd.f32 %v912, %v1617
      %1619 = vmatprep.mubr.f32.mxu0 0.0
      %1620 = vmatmul.mubr.f32.gmra.mrb[0].mxu0 %v489
      %v1621 = vpop.f32.mrb[0].mxu0
      %v1622 = vadd.f32 %v916, %v1621
      %v1623 = vpop.f32.mrb[0].mxu0
      %v1624 = vadd.f32 %v918, %v1623
      %1625 = vmatprep.mubr.f32.mxu0 0.0
      %1626 = vmatmul.mubr.f32.gmra.mrb[0].mxu0 %v490
      %v1627 = vpop.f32.mrb[0].mxu0
      %v1628 = vadd.f32 %v922, %v1627
      %v1629 = vpop.f32.mrb[0].mxu0
      %v1630 = vadd.f32 %v924, %v1629
      %1631 = vmatprep.mubr.f32.mxu0 0.0
      %1632 = vmatmul.mubr.f32.gmra.mrb[0].mxu0 %v491
      %v1633 = vpop.f32.mrb[0].mxu0
      %v1634 = vadd.f32 %v928, %v1633
      %v1635 = vpop.f32.mrb[0].mxu0
      %v1636 = vadd.f32 %v930, %v1635
      %1637 = vmatprep.mubr.f32.mxu0 0.0
      %1638 = vmatmul.mubr.f32.gmra.mrb[0].mxu0 %v492
      %v1639 = vpop.f32.mrb[0].mxu0
      %v1640 = vadd.f32 %v934, %v1639
      %v1641 = vpop.f32.mrb[0].mxu0
      %v1642 = vadd.f32 %v936, %v1641
      %1643 = vmatprep.mubr.f32.mxu0 0.0
      %1644 = vmatmul.mubr.f32.gmra.mrb[0].mxu0 %v493
      %v1645 = vpop.f32.mrb[0].mxu0
      %v1646 = vadd.f32 %v940, %v1645
      %v1647 = vpop.f32.mrb[0].mxu0
      %v1648 = vadd.f32 %v942, %v1647
      %1649 = vmatprep.mubr.f32.mxu0 0.0
      %1650 = vmatmul.mubr.f32.gmra.mrb[0].mxu0 %v494
      %v1651 = vpop.f32.mrb[0].mxu0
      %v1652 = vadd.f32 %v946, %v1651
      %v1653 = vpop.f32.mrb[0].mxu0
      %v1654 = vadd.f32 %v948, %v1653
      %1655 = vmatprep.mubr.f32.mxu0 0.0
      %1656 = vmatmul.mubr.f32.gmra.mrb[0].mxu0 %v495
      %v1657 = vpop.f32.mrb[0].mxu0
      %v1658 = vadd.f32 %v952, %v1657
      %v1659 = vpop.f32.mrb[0].mxu0
      %v1660 = vadd.f32 %v954, %v1659
      %1661 = vmatprep.mubr.f32.mxu0 0.0
      %1662 = vmatmul.mubr.f32.gmra.mrb[0].mxu0 %v496
      %v1663 = vpop.f32.mrb[0].mxu0
      %v1664 = vadd.f32 %v958, %v1663
      %v1665 = vpop.f32.mrb[0].mxu0
      %v1666 = vadd.f32 %v960, %v1665
      %1667 = vmatprep.mubr.f32.mxu0 0.0
      %1668 = vmatmul.mubr.f32.gmra.mrb[0].mxu0 %v497
      %v1669 = vpop.f32.mrb[0].mxu0
      %v1670 = vadd.f32 %v964, %v1669
      %v1671 = vpop.f32.mrb[0].mxu0
      %v1672 = vadd.f32 %v966, %v1671
      %1673 = vmatprep.mubr.f32.mxu0 0.0
      %1674 = vmatmul.mubr.f32.gmra.mrb[0].mxu0 %v498
      %v1675 = vpop.f32.mrb[0].mxu0
      %v1676 = vadd.f32 %v970, %v1675
      %v1677 = vpop.f32.mrb[0].mxu0
      %v1678 = vadd.f32 %v972, %v1677
      %1679 = vmatprep.mubr.f32.mxu0 0.0
      %1680 = vmatmul.mubr.f32.gmra.mrb[0].mxu0 %v499
      %v1681 = vpop.f32.mrb[0].mxu0
      %v1682 = vadd.f32 %v976, %v1681
      %v1683 = vpop.f32.mrb[0].mxu0
      %v1684 = vadd.f32 %v978, %v1683
      %1685 = vmatprep.mubr.f32.mxu0 0.0
      %1686 = vmatmul.mubr.f32.gmra.mrb[0].mxu0 %v500
      %v1687 = vpop.f32.mrb[0].mxu0
      %v1688 = vadd.f32 %v982, %v1687
      %v1689 = vpop.f32.mrb[0].mxu0
      %v1690 = vadd.f32 %v984, %v1689
      %1691 = vmatprep.mubr.f32.mxu0 0.0
      %1692 = vmatmul.mubr.f32.gmra.mrb[0].mxu0 %v501
      %v1693 = vpop.f32.mrb[0].mxu0
      %v1694 = vadd.f32 %v988, %v1693
      %v1695 = vpop.f32.mrb[0].mxu0
      %v1696 = vadd.f32 %v990, %v1695
      %1697 = vmatprep.mubr.f32.mxu0 0.0
      %1698 = vmatmul.mubr.f32.gmra.mrb[0].mxu0 %v502
      %v1699 = vpop.f32.mrb[0].mxu0
      %v1700 = vadd.f32 %v994, %v1699
      %v1701 = vpop.f32.mrb[0].mxu0
      %v1702 = vadd.f32 %v996, %v1701
      %1703 = vmatprep.mubr.f32.mxu0 0.0
      %1704 = vmatmul.mubr.f32.gmra.mrb[0].mxu0 %v503
      %v1705 = vpop.f32.mrb[0].mxu0
      %v1706 = vadd.f32 %v1000, %v1705
      %v1707 = vpop.f32.mrb[0].mxu0
      %v1708 = vadd.f32 %v1002, %v1707
      %1709 = vmatprep.mubr.f32.mxu0 0.0
      %1710 = vmatmul.mubr.f32.gmra.mrb[0].mxu0 %v504
      %v1711 = vpop.f32.mrb[0].mxu0
      %v1712 = vadd.f32 %v1006, %v1711
      %v1713 = vpop.f32.mrb[0].mxu0
      %v1714 = vadd.f32 %v1008, %v1713
      %1715 = vmatprep.mubr.f32.mxu0 0.0
      %1716 = vmatmul.mubr.f32.gmra.mrb[0].mxu0 %v505
      %v1717 = vpop.f32.mrb[0].mxu0
      %v1718 = vadd.f32 %v1012, %v1717
      %v1719 = vpop.f32.mrb[0].mxu0
      %v1720 = vadd.f32 %v1014, %v1719
      %1721 = vmatprep.mubr.f32.mxu0 0.0
      %1722 = vmatmul.mubr.f32.gmra.mrb[0].mxu0 %v506
      %v1723 = vpop.f32.mrb[0].mxu0
      %v1724 = vadd.f32 %v1018, %v1723
      %v1725 = vpop.f32.mrb[0].mxu0
      %v1726 = vadd.f32 %v1020, %v1725
      %1727 = vmatprep.mubr.f32.mxu0 0.0
      %1728 = vmatmul.mubr.f32.gmra.mrb[0].mxu0 %v507
      %v1729 = vpop.f32.mrb[0].mxu0
      %v1730 = vadd.f32 %v1024, %v1729
      %v1731 = vpop.f32.mrb[0].mxu0
      %v1732 = vadd.f32 %v1026, %v1731
      %1733 = vmatprep.mubr.f32.mxu0 0.0
      %1734 = vmatmul.mubr.f32.gmra.mrb[0].mxu0 %v508
      %v1735 = vpop.f32.mrb[0].mxu0
      %v1736 = vadd.f32 %v1030, %v1735
      %v1737 = vpop.f32.mrb[0].mxu0
      %v1738 = vadd.f32 %v1032, %v1737
      %1739 = vmatprep.mubr.f32.mxu0 0.0
      %1740 = vmatmul.mubr.f32.gmra.mrb[0].mxu0 %v509
      %v1741 = vpop.f32.mrb[0].mxu0
      %v1742 = vadd.f32 %v1036, %v1741
      %v1743 = vpop.f32.mrb[0].mxu0
      %v1744 = vadd.f32 %v1038, %v1743
      %1745 = vmatprep.mubr.f32.mxu0 0.0
      %1746 = vmatmul.mubr.f32.gmra.mrb[0].mxu0 %v510
      %v1747 = vpop.f32.mrb[0].mxu0
      %v1748 = vadd.f32 %v1042, %v1747
      %v1749 = vpop.f32.mrb[0].mxu0
      %v1750 = vadd.f32 %v1044, %v1749
      %1751 = vmatprep.mubr.f32.mxu0 0.0
      %1752 = vmatmul.mubr.f32.gmra.mrb[0].mxu0 %v511
      %v1753 = vpop.f32.mrb[0].mxu0
      %v1754 = vadd.f32 %v1048, %v1753
      %v1755 = vpop.f32.mrb[0].mxu0
      %v1756 = vadd.f32 %v1050, %v1755
      %1757 = vmatprep.mubr.f32.mxu0 0.0
      %1758 = vmatmul.mubr.f32.gmra.mrb[0].mxu0 %v512
      %v1759 = vpop.f32.mrb[0].mxu0
      %v1760 = vadd.f32 %v1054, %v1759
      %v1761 = vpop.f32.mrb[0].mxu0
      %v1762 = vadd.f32 %v1056, %v1761
      %1763 = vmatprep.mubr.f32.mxu0 0.0
      %1764 = vmatmul.mubr.f32.gmra.mrb[0].mxu0 %v513
      %v1765 = vpop.f32.mrb[0].mxu0
      %v1766 = vadd.f32 %v1060, %v1765
      %v1767 = vpop.f32.mrb[0].mxu0
      %v1768 = vadd.f32 %v1062, %v1767
      %1769 = vmatprep.mubr.f32.mxu0 0.0
      %1770 = vmatmul.mubr.f32.gmra.mrb[0].mxu0 %v514
      %v1771 = vpop.f32.mrb[0].mxu0
      %v1772 = vadd.f32 %v1066, %v1771
      %v1773 = vpop.f32.mrb[0].mxu0
      %v1774 = vadd.f32 %v1068, %v1773
      %1775 = vmatprep.mubr.f32.mxu0 0.0
      %1776 = vmatmul.mubr.f32.gmra.mrb[0].mxu0 %v515
      %v1777 = vpop.f32.mrb[0].mxu0
      %v1778 = vadd.f32 %v1072, %v1777
      %v1779 = vpop.f32.mrb[0].mxu0
      %v1780 = vadd.f32 %v1074, %v1779
      %1781 = vmatprep.mubr.f32.mxu0 0.0
      %1782 = vmatmul.mubr.f32.gmra.mrb[0].mxu0 %v516
      %v1783 = vpop.f32.mrb[0].mxu0
      %v1784 = vadd.f32 %v1078, %v1783
      %v1785 = vpop.f32.mrb[0].mxu0
      %v1786 = vadd.f32 %v1080, %v1785
      %1787 = vmatprep.mubr.f32.mxu0 0.0
      %1788 = vmatmul.mubr.f32.gmra.mrb[0].mxu0 %v517
      %v1789 = vpop.f32.mrb[0].mxu0
      %v1790 = vadd.f32 %v1084, %v1789
      %v1791 = vpop.f32.mrb[0].mxu0
      %v1792 = vadd.f32 %v1086, %v1791
      %1793 = vmatprep.mubr.f32.mxu0 0.0
      %1794 = vmatmul.mubr.f32.gmra.mrb[0].mxu0 %v518
      %v1795 = vpop.f32.mrb[0].mxu0
      %v1796 = vadd.f32 %v1090, %v1795
      %v1797 = vpop.f32.mrb[0].mxu0
      %v1798 = vadd.f32 %v1092, %v1797
      %1799 = vmatprep.mubr.f32.mxu0 0.0
      %1800 = vmatmul.mubr.f32.gmra.mrb[0].mxu0 %v519
      %v1801 = vpop.f32.mrb[0].mxu0
      %v1802 = vadd.f32 %v1096, %v1801
      %v1803 = vpop.f32.mrb[0].mxu0
      %v1804 = vadd.f32 %v1098, %v1803
      %1805 = vmatprep.mubr.f32.mxu0 0.0
      %1806 = vmatmul.mubr.f32.gmra.mrb[0].mxu0 %v520
      %v1807 = vpop.f32.mrb[0].mxu0
      %v1808 = vadd.f32 %v1102, %v1807
      %v1809 = vpop.f32.mrb[0].mxu0
      %v1810 = vadd.f32 %v1104, %v1809
      %1811 = vmatprep.mubr.f32.mxu0 0.0
      %1812 = vmatmul.mubr.f32.gmra.mrb[0].mxu0 %v521
      %v1813 = vpop.f32.mrb[0].mxu0
      %v1814 = vadd.f32 %v1108, %v1813
      %v1815 = vpop.f32.mrb[0].mxu0
      %v1816 = vadd.f32 %v1110, %v1815
      %1817 = vmatprep.mubr.f32.mxu0 0.0
      %1818 = vmatmul.mubr.f32.gmra.mrb[0].mxu0 %v522
      %v1819 = vpop.f32.mrb[0].mxu0
      %v1820 = vadd.f32 %v1114, %v1819
      %v1821 = vpop.f32.mrb[0].mxu0
      %v1822 = vadd.f32 %v1116, %v1821
      %1823 = vmatprep.mubr.f32.mxu0 0.0
      %1824 = vmatmul.mubr.f32.gmra.mrb[0].mxu0 %v523
      %v1825 = vpop.f32.mrb[0].mxu0
      %v1826 = vadd.f32 %v1120, %v1825
      %v1827 = vpop.f32.mrb[0].mxu0
      %v1828 = vadd.f32 %v1122, %v1827
      %1829 = vmatprep.mubr.f32.mxu0 0.0
      %1830 = vmatmul.mubr.f32.gmra.mrb[0].mxu0 %v524
      %v1831 = vpop.f32.mrb[0].mxu0
      %v1832 = vadd.f32 %v1126, %v1831
      %v1833 = vpop.f32.mrb[0].mxu0
      %v1834 = vadd.f32 %v1128, %v1833
      %1835 = vmatprep.mubr.f32.mxu0 0.0
      %1836 = vmatmul.mubr.f32.gmra.mrb[0].mxu0 %v525
      %v1837 = vpop.f32.mrb[0].mxu0
      %v1838 = vadd.f32 %v1132, %v1837
      %v1839 = vpop.f32.mrb[0].mxu0
      %v1840 = vadd.f32 %v1134, %v1839
      %1841 = vmatprep.mubr.f32.mxu0 0.0
      %1842 = vmatmul.mubr.f32.gmra.mrb[0].mxu0 %v526
      %v1843 = vpop.f32.mrb[0].mxu0
      %v1844 = vadd.f32 %v1138, %v1843
      %v1845 = vpop.f32.mrb[0].mxu0
      %v1846 = vadd.f32 %v1140, %v1845
      %1847 = vmatprep.mubr.f32.mxu0 0.0
      %1848 = vmatmul.mubr.f32.gmra.mrb[0].mxu0 %v527
      %v1849 = vpop.f32.mrb[0].mxu0
      %v1850 = vadd.f32 %v1144, %v1849
      %v1851 = vpop.f32.mrb[0].mxu0
      %v1852 = vadd.f32 %v1146, %v1851
      %1853 = vmatprep.mubr.f32.mxu0 0.0
      %1854 = vmatmul.mubr.f32.gmra.mrb[0].mxu0 %v528
      %v1855 = vpop.f32.mrb[0].mxu0
      %v1856 = vadd.f32 %v1150, %v1855
      %v1857 = vpop.f32.mrb[0].mxu0
      %v1858 = vadd.f32 %v1152, %v1857
      %1859 = vdwg.mxu0
      %1860 = vmatprep.subr.mxu0 %v676
      %1861 = vmatpush1.msra.mxu0 %v675
      %1862 = vmatprep.subr.mxu0 %v680
      %1863 = vmatpush1.msra.mxu0 %v679
      %1864 = vmatprep.subr.mxu0 %v684
      %1865 = vmatpush1.msra.mxu0 %v683
      %1866 = vmatprep.subr.mxu0 %v688
      %1867 = vmatpush1.msra.mxu0 %v687
      %1868 = vmatprep.subr.mxu0 %v692
      %1869 = vmatpush1.msra.mxu0 %v691
      %1870 = vmatprep.subr.mxu0 %v696
      %1871 = vmatpush1.msra.mxu0 %v695
      %1872 = vmatprep.subr.mxu0 %v700
      %1873 = vmatpush1.msra.mxu0 %v699
      %1874 = vmatprep.subr.mxu0 %v704
      %1875 = vmatpush1.msra.mxu0 %v703
      %1876 = vmatprep.subr.mxu0 %v708
      %1877 = vmatpush1.msra.mxu0 %v707
      %1878 = vmatprep.subr.mxu0 %v712
      %1879 = vmatpush1.msra.mxu0 %v711
      %1880 = vmatprep.subr.mxu0 %v716
      %1881 = vmatpush1.msra.mxu0 %v715
      %1882 = vmatprep.subr.mxu0 %v720
      %1883 = vmatpush1.msra.mxu0 %v719
      %1884 = vmatprep.subr.mxu0 %v724
      %1885 = vmatpush1.msra.mxu0 %v723
      %1886 = vmatprep.subr.mxu0 %v728
      %1887 = vmatpush1.msra.mxu0 %v727
      %1888 = vmatprep.subr.mxu0 %v732
      %1889 = vmatpush1.msra.mxu0 %v731
      %1890 = vmatprep.subr.mxu0 %v736
      %1891 = vmatpush1.msra.mxu0 %v735
      %1892 = vmatprep.subr.mxu0 0.0
      %1893 = vmatpush1.msra.mxu0 0.0
      %1894 = vmatprep.subr.mxu0 0.0
      %1895 = vmatpush1.msra.mxu0 0.0
      %1896 = vmatprep.subr.mxu0 0.0
      %1897 = vmatpush1.msra.mxu0 0.0
      %1898 = vmatprep.subr.mxu0 0.0
      %1899 = vmatpush1.msra.mxu0 0.0
      %1900 = vmatprep.subr.mxu0 0.0
      %1901 = vmatpush1.msra.mxu0 0.0
      %1902 = vmatprep.subr.mxu0 0.0
      %1903 = vmatpush1.msra.mxu0 0.0
      %1904 = vmatprep.subr.mxu0 0.0
      %1905 = vmatpush1.msra.mxu0 0.0
      %1906 = vmatprep.subr.mxu0 0.0
      %1907 = vmatpush1.msra.mxu0 0.0
      %1908 = vmatprep.subr.mxu0 0.0
      %1909 = vmatpush1.msra.mxu0 0.0
      %1910 = vmatprep.subr.mxu0 0.0
      %1911 = vmatpush1.msra.mxu0 0.0
      %1912 = vmatprep.subr.mxu0 0.0
      %1913 = vmatpush1.msra.mxu0 0.0
      %1914 = vmatprep.subr.mxu0 0.0
      %1915 = vmatpush1.msra.mxu0 0.0
      %1916 = vmatprep.subr.mxu0 0.0
      %1917 = vmatpush1.msra.mxu0 0.0
      %1918 = vmatprep.subr.mxu0 0.0
      %1919 = vmatpush1.msra.mxu0 0.0
      %1920 = vmatprep.subr.mxu0 0.0
      %1921 = vmatpush1.msra.mxu0 0.0
      %1922 = vmatprep.subr.mxu0 0.0
      %1923 = vmatpush1.msra.mxu0 0.0
      %1924 = vmatprep.mubr.f32.mxu0 0.0
      %1925 = vmatmul.mubr.f32.gmra.mrb[0].mxu0 %v481
      %v1926 = vpop.f32.mrb[0].mxu0
      %v1927 = vadd.f32 %v1221, %v1926
      %v1928 = vpop.f32.mrb[0].mxu0
      %v1929 = vadd.f32 %v1223, %v1928
      %1930 = vmatprep.mubr.f32.mxu0 0.0
      %1931 = vmatmul.mubr.f32.gmra.mrb[0].mxu0 %v482
      %v1932 = vpop.f32.mrb[0].mxu0
      %v1933 = vadd.f32 %v1227, %v1932
      %v1934 = vpop.f32.mrb[0].mxu0
      %v1935 = vadd.f32 %v1229, %v1934
      %1936 = vmatprep.mubr.f32.mxu0 0.0
      %1937 = vmatmul.mubr.f32.gmra.mrb[0].mxu0 %v483
      %v1938 = vpop.f32.mrb[0].mxu0
      %v1939 = vadd.f32 %v1233, %v1938
      %v1940 = vpop.f32.mrb[0].mxu0
      %v1941 = vadd.f32 %v1235, %v1940
      %1942 = vmatprep.mubr.f32.mxu0 0.0
      %1943 = vmatmul.mubr.f32.gmra.mrb[0].mxu0 %v484
      %v1944 = vpop.f32.mrb[0].mxu0
      %v1945 = vadd.f32 %v1239, %v1944
      %v1946 = vpop.f32.mrb[0].mxu0
      %v1947 = vadd.f32 %v1241, %v1946
      %1948 = vmatprep.mubr.f32.mxu0 0.0
      %1949 = vmatmul.mubr.f32.gmra.mrb[0].mxu0 %v485
      %v1950 = vpop.f32.mrb[0].mxu0
      %v1951 = vadd.f32 %v1245, %v1950
      %v1952 = vpop.f32.mrb[0].mxu0
      %v1953 = vadd.f32 %v1247, %v1952
      %1954 = vmatprep.mubr.f32.mxu0 0.0
      %1955 = vmatmul.mubr.f32.gmra.mrb[0].mxu0 %v486
      %v1956 = vpop.f32.mrb[0].mxu0
      %v1957 = vadd.f32 %v1251, %v1956
      %v1958 = vpop.f32.mrb[0].mxu0
      %v1959 = vadd.f32 %v1253, %v1958
      %1960 = vmatprep.mubr.f32.mxu0 0.0
      %1961 = vmatmul.mubr.f32.gmra.mrb[0].mxu0 %v487
      %v1962 = vpop.f32.mrb[0].mxu0
      %v1963 = vadd.f32 %v1257, %v1962
      %v1964 = vpop.f32.mrb[0].mxu0
      %v1965 = vadd.f32 %v1259, %v1964
      %1966 = vmatprep.mubr.f32.mxu0 0.0
      %1967 = vmatmul.mubr.f32.gmra.mrb[0].mxu0 %v488
      %v1968 = vpop.f32.mrb[0].mxu0
      %v1969 = vadd.f32 %v1263, %v1968
      %v1970 = vpop.f32.mrb[0].mxu0
      %v1971 = vadd.f32 %v1265, %v1970
      %1972 = vmatprep.mubr.f32.mxu0 0.0
      %1973 = vmatmul.mubr.f32.gmra.mrb[0].mxu0 %v489
      %v1974 = vpop.f32.mrb[0].mxu0
      %v1975 = vadd.f32 %v1269, %v1974
      %v1976 = vpop.f32.mrb[0].mxu0
      %v1977 = vadd.f32 %v1271, %v1976
      %1978 = vmatprep.mubr.f32.mxu0 0.0
      %1979 = vmatmul.mubr.f32.gmra.mrb[0].mxu0 %v490
      %v1980 = vpop.f32.mrb[0].mxu0
      %v1981 = vadd.f32 %v1275, %v1980
      %v1982 = vpop.f32.mrb[0].mxu0
      %v1983 = vadd.f32 %v1277, %v1982
      %1984 = vmatprep.mubr.f32.mxu0 0.0
      %1985 = vmatmul.mubr.f32.gmra.mrb[0].mxu0 %v491
      %v1986 = vpop.f32.mrb[0].mxu0
      %v1987 = vadd.f32 %v1281, %v1986
      %v1988 = vpop.f32.mrb[0].mxu0
      %v1989 = vadd.f32 %v1283, %v1988
      %1990 = vmatprep.mubr.f32.mxu0 0.0
      %1991 = vmatmul.mubr.f32.gmra.mrb[0].mxu0 %v492
      %v1992 = vpop.f32.mrb[0].mxu0
      %v1993 = vadd.f32 %v1287, %v1992
      %v1994 = vpop.f32.mrb[0].mxu0
      %v1995 = vadd.f32 %v1289, %v1994
      %1996 = vmatprep.mubr.f32.mxu0 0.0
      %1997 = vmatmul.mubr.f32.gmra.mrb[0].mxu0 %v493
      %v1998 = vpop.f32.mrb[0].mxu0
      %v1999 = vadd.f32 %v1293, %v1998
      %v2000 = vpop.f32.mrb[0].mxu0
      %v2001 = vadd.f32 %v1295, %v2000
      %2002 = vmatprep.mubr.f32.mxu0 0.0
      %2003 = vmatmul.mubr.f32.gmra.mrb[0].mxu0 %v494
      %v2004 = vpop.f32.mrb[0].mxu0
      %v2005 = vadd.f32 %v1299, %v2004
      %v2006 = vpop.f32.mrb[0].mxu0
      %v2007 = vadd.f32 %v1301, %v2006
      %2008 = vmatprep.mubr.f32.mxu0 0.0
      %2009 = vmatmul.mubr.f32.gmra.mrb[0].mxu0 %v495
      %v2010 = vpop.f32.mrb[0].mxu0
      %v2011 = vadd.f32 %v1305, %v2010
      %v2012 = vpop.f32.mrb[0].mxu0
      %v2013 = vadd.f32 %v1307, %v2012
      %2014 = vmatprep.mubr.f32.mxu0 0.0
      %2015 = vmatmul.mubr.f32.gmra.mrb[0].mxu0 %v496
      %v2016 = vpop.f32.mrb[0].mxu0
      %v2017 = vadd.f32 %v1311, %v2016
      %v2018 = vpop.f32.mrb[0].mxu0
      %v2019 = vadd.f32 %v1313, %v2018
      %2020 = vmatprep.mubr.f32.mxu0 0.0
      %2021 = vmatmul.mubr.f32.gmra.mrb[0].mxu0 %v497
      %v2022 = vpop.f32.mrb[0].mxu0
      %v2023 = vadd.f32 %v1317, %v2022
      %v2024 = vpop.f32.mrb[0].mxu0
      %v2025 = vadd.f32 %v1319, %v2024
      %2026 = vmatprep.mubr.f32.mxu0 0.0
      %2027 = vmatmul.mubr.f32.gmra.mrb[0].mxu0 %v498
      %v2028 = vpop.f32.mrb[0].mxu0
      %v2029 = vadd.f32 %v1323, %v2028
      %v2030 = vpop.f32.mrb[0].mxu0
      %v2031 = vadd.f32 %v1325, %v2030
      %2032 = vmatprep.mubr.f32.mxu0 0.0
      %2033 = vmatmul.mubr.f32.gmra.mrb[0].mxu0 %v499
      %v2034 = vpop.f32.mrb[0].mxu0
      %v2035 = vadd.f32 %v1329, %v2034
      %v2036 = vpop.f32.mrb[0].mxu0
      %v2037 = vadd.f32 %v1331, %v2036
      %2038 = vmatprep.mubr.f32.mxu0 0.0
      %2039 = vmatmul.mubr.f32.gmra.mrb[0].mxu0 %v500
      %v2040 = vpop.f32.mrb[0].mxu0
      %v2041 = vadd.f32 %v1335, %v2040
      %v2042 = vpop.f32.mrb[0].mxu0
      %v2043 = vadd.f32 %v1337, %v2042
      %2044 = vmatprep.mubr.f32.mxu0 0.0
      %2045 = vmatmul.mubr.f32.gmra.mrb[0].mxu0 %v501
      %v2046 = vpop.f32.mrb[0].mxu0
      %v2047 = vadd.f32 %v1341, %v2046
      %v2048 = vpop.f32.mrb[0].mxu0
      %v2049 = vadd.f32 %v1343, %v2048
      %2050 = vmatprep.mubr.f32.mxu0 0.0
      %2051 = vmatmul.mubr.f32.gmra.mrb[0].mxu0 %v502
      %v2052 = vpop.f32.mrb[0].mxu0
      %v2053 = vadd.f32 %v1347, %v2052
      %v2054 = vpop.f32.mrb[0].mxu0
      %v2055 = vadd.f32 %v1349, %v2054
      %2056 = vmatprep.mubr.f32.mxu0 0.0
      %2057 = vmatmul.mubr.f32.gmra.mrb[0].mxu0 %v503
      %v2058 = vpop.f32.mrb[0].mxu0
      %v2059 = vadd.f32 %v1353, %v2058
      %v2060 = vpop.f32.mrb[0].mxu0
      %v2061 = vadd.f32 %v1355, %v2060
      %2062 = vmatprep.mubr.f32.mxu0 0.0
      %2063 = vmatmul.mubr.f32.gmra.mrb[0].mxu0 %v504
      %v2064 = vpop.f32.mrb[0].mxu0
      %v2065 = vadd.f32 %v1359, %v2064
      %v2066 = vpop.f32.mrb[0].mxu0
      %v2067 = vadd.f32 %v1361, %v2066
      %2068 = vmatprep.mubr.f32.mxu0 0.0
      %2069 = vmatmul.mubr.f32.gmra.mrb[0].mxu0 %v505
      %v2070 = vpop.f32.mrb[0].mxu0
      %v2071 = vadd.f32 %v1365, %v2070
      %v2072 = vpop.f32.mrb[0].mxu0
      %v2073 = vadd.f32 %v1367, %v2072
      %2074 = vmatprep.mubr.f32.mxu0 0.0
      %2075 = vmatmul.mubr.f32.gmra.mrb[0].mxu0 %v506
      %v2076 = vpop.f32.mrb[0].mxu0
      %v2077 = vadd.f32 %v1371, %v2076
      %v2078 = vpop.f32.mrb[0].mxu0
      %v2079 = vadd.f32 %v1373, %v2078
      %2080 = vmatprep.mubr.f32.mxu0 0.0
      %2081 = vmatmul.mubr.f32.gmra.mrb[0].mxu0 %v507
      %v2082 = vpop.f32.mrb[0].mxu0
      %v2083 = vadd.f32 %v1377, %v2082
      %v2084 = vpop.f32.mrb[0].mxu0
      %v2085 = vadd.f32 %v1379, %v2084
      %2086 = vmatprep.mubr.f32.mxu0 0.0
      %2087 = vmatmul.mubr.f32.gmra.mrb[0].mxu0 %v508
      %v2088 = vpop.f32.mrb[0].mxu0
      %v2089 = vadd.f32 %v1383, %v2088
      %v2090 = vpop.f32.mrb[0].mxu0
      %v2091 = vadd.f32 %v1385, %v2090
      %2092 = vmatprep.mubr.f32.mxu0 0.0
      %2093 = vmatmul.mubr.f32.gmra.mrb[0].mxu0 %v509
      %v2094 = vpop.f32.mrb[0].mxu0
      %v2095 = vadd.f32 %v1389, %v2094
      %v2096 = vpop.f32.mrb[0].mxu0
      %v2097 = vadd.f32 %v1391, %v2096
      %2098 = vmatprep.mubr.f32.mxu0 0.0
      %2099 = vmatmul.mubr.f32.gmra.mrb[0].mxu0 %v510
      %v2100 = vpop.f32.mrb[0].mxu0
      %v2101 = vadd.f32 %v1395, %v2100
      %v2102 = vpop.f32.mrb[0].mxu0
      %v2103 = vadd.f32 %v1397, %v2102
      %2104 = vmatprep.mubr.f32.mxu0 0.0
      %2105 = vmatmul.mubr.f32.gmra.mrb[0].mxu0 %v511
      %v2106 = vpop.f32.mrb[0].mxu0
      %v2107 = vadd.f32 %v1401, %v2106
      %v2108 = vpop.f32.mrb[0].mxu0
      %v2109 = vadd.f32 %v1403, %v2108
      %2110 = vmatprep.mubr.f32.mxu0 0.0
      %2111 = vmatmul.mubr.f32.gmra.mrb[0].mxu0 %v512
      %v2112 = vpop.f32.mrb[0].mxu0
      %v2113 = vadd.f32 %v1407, %v2112
      %v2114 = vpop.f32.mrb[0].mxu0
      %v2115 = vadd.f32 %v1409, %v2114
      %2116 = vmatprep.mubr.f32.mxu0 0.0
      %2117 = vmatmul.mubr.f32.gmra.mrb[0].mxu0 %v513
      %v2118 = vpop.f32.mrb[0].mxu0
      %v2119 = vadd.f32 %v1413, %v2118
      %v2120 = vpop.f32.mrb[0].mxu0
      %v2121 = vadd.f32 %v1415, %v2120
      %2122 = vmatprep.mubr.f32.mxu0 0.0
      %2123 = vmatmul.mubr.f32.gmra.mrb[0].mxu0 %v514
      %v2124 = vpop.f32.mrb[0].mxu0
      %v2125 = vadd.f32 %v1419, %v2124
      %v2126 = vpop.f32.mrb[0].mxu0
      %v2127 = vadd.f32 %v1421, %v2126
      %2128 = vmatprep.mubr.f32.mxu0 0.0
      %2129 = vmatmul.mubr.f32.gmra.mrb[0].mxu0 %v515
      %v2130 = vpop.f32.mrb[0].mxu0
      %v2131 = vadd.f32 %v1425, %v2130
      %v2132 = vpop.f32.mrb[0].mxu0
      %v2133 = vadd.f32 %v1427, %v2132
      %2134 = vmatprep.mubr.f32.mxu0 0.0
      %2135 = vmatmul.mubr.f32.gmra.mrb[0].mxu0 %v516
      %v2136 = vpop.f32.mrb[0].mxu0
      %v2137 = vadd.f32 %v1431, %v2136
      %v2138 = vpop.f32.mrb[0].mxu0
      %v2139 = vadd.f32 %v1433, %v2138
      %2140 = vmatprep.mubr.f32.mxu0 0.0
      %2141 = vmatmul.mubr.f32.gmra.mrb[0].mxu0 %v517
      %v2142 = vpop.f32.mrb[0].mxu0
      %v2143 = vadd.f32 %v1437, %v2142
      %v2144 = vpop.f32.mrb[0].mxu0
      %v2145 = vadd.f32 %v1439, %v2144
      %2146 = vmatprep.mubr.f32.mxu0 0.0
      %2147 = vmatmul.mubr.f32.gmra.mrb[0].mxu0 %v518
      %v2148 = vpop.f32.mrb[0].mxu0
      %v2149 = vadd.f32 %v1443, %v2148
      %v2150 = vpop.f32.mrb[0].mxu0
      %v2151 = vadd.f32 %v1445, %v2150
      %2152 = vmatprep.mubr.f32.mxu0 0.0
      %2153 = vmatmul.mubr.f32.gmra.mrb[0].mxu0 %v519
      %v2154 = vpop.f32.mrb[0].mxu0
      %v2155 = vadd.f32 %v1449, %v2154
      %v2156 = vpop.f32.mrb[0].mxu0
      %v2157 = vadd.f32 %v1451, %v2156
      %2158 = vmatprep.mubr.f32.mxu0 0.0
      %2159 = vmatmul.mubr.f32.gmra.mrb[0].mxu0 %v520
      %v2160 = vpop.f32.mrb[0].mxu0
      %v2161 = vadd.f32 %v1455, %v2160
      %v2162 = vpop.f32.mrb[0].mxu0
      %v2163 = vadd.f32 %v1457, %v2162
      %2164 = vmatprep.mubr.f32.mxu0 0.0
      %2165 = vmatmul.mubr.f32.gmra.mrb[0].mxu0 %v521
      %v2166 = vpop.f32.mrb[0].mxu0
      %v2167 = vadd.f32 %v1461, %v2166
      %v2168 = vpop.f32.mrb[0].mxu0
      %v2169 = vadd.f32 %v1463, %v2168
      %2170 = vmatprep.mubr.f32.mxu0 0.0
      %2171 = vmatmul.mubr.f32.gmra.mrb[0].mxu0 %v522
      %v2172 = vpop.f32.mrb[0].mxu0
      %v2173 = vadd.f32 %v1467, %v2172
      %v2174 = vpop.f32.mrb[0].mxu0
      %v2175 = vadd.f32 %v1469, %v2174
      %2176 = vmatprep.mubr.f32.mxu0 0.0
      %2177 = vmatmul.mubr.f32.gmra.mrb[0].mxu0 %v523
      %v2178 = vpop.f32.mrb[0].mxu0
      %v2179 = vadd.f32 %v1473, %v2178
      %v2180 = vpop.f32.mrb[0].mxu0
      %v2181 = vadd.f32 %v1475, %v2180
      %2182 = vmatprep.mubr.f32.mxu0 0.0
      %2183 = vmatmul.mubr.f32.gmra.mrb[0].mxu0 %v524
      %v2184 = vpop.f32.mrb[0].mxu0
      %v2185 = vadd.f32 %v1479, %v2184
      %v2186 = vpop.f32.mrb[0].mxu0
      %v2187 = vadd.f32 %v1481, %v2186
      %2188 = vmatprep.mubr.f32.mxu0 0.0
      %2189 = vmatmul.mubr.f32.gmra.mrb[0].mxu0 %v525
      %v2190 = vpop.f32.mrb[0].mxu0
      %v2191 = vadd.f32 %v1485, %v2190
      %v2192 = vpop.f32.mrb[0].mxu0
      %v2193 = vadd.f32 %v1487, %v2192
      %2194 = vmatprep.mubr.f32.mxu0 0.0
      %2195 = vmatmul.mubr.f32.gmra.mrb[0].mxu0 %v526
      %v2196 = vpop.f32.mrb[0].mxu0
      %v2197 = vadd.f32 %v1491, %v2196
      %v2198 = vpop.f32.mrb[0].mxu0
      %v2199 = vadd.f32 %v1493, %v2198
      %2200 = vmatprep.mubr.f32.mxu0 0.0
      %2201 = vmatmul.mubr.f32.gmra.mrb[0].mxu0 %v527
      %v2202 = vpop.f32.mrb[0].mxu0
      %v2203 = vadd.f32 %v1497, %v2202
      %v2204 = vpop.f32.mrb[0].mxu0
      %v2205 = vadd.f32 %v1499, %v2204
      %2206 = vmatprep.mubr.f32.mxu0 0.0
      %2207 = vmatmul.mubr.f32.gmra.mrb[0].mxu0 %v528
      %v2208 = vpop.f32.mrb[0].mxu0
      %v2209 = vadd.f32 %v1503, %v2208
      %v2210 = vpop.f32.mrb[0].mxu0
      %v2211 = vadd.f32 %v1505, %v2210
      %2212 = vdwg.mxu0
      %v2213 = vmul.f32 %v1574, %v1574
      %v2214 = vmul.f32 %v1576, %v1576
      %v2215 = vmul.f32 %v1580, %v1580
      %v2216 = vmul.f32 %v1582, %v1582
      %v2217 = vmul.f32 %v1586, %v1586
      %v2218 = vmul.f32 %v1588, %v1588
      %v2219 = vmul.f32 %v1592, %v1592
      %v2220 = vmul.f32 %v1594, %v1594
      %v2221 = vmul.f32 %v1598, %v1598
      %v2222 = vmul.f32 %v1600, %v1600
      %v2223 = vmul.f32 %v1604, %v1604
      %v2224 = vmul.f32 %v1606, %v1606
      %v2225 = vmul.f32 %v1610, %v1610
      %v2226 = vmul.f32 %v1612, %v1612
      %v2227 = vmul.f32 %v1616, %v1616
      %v2228 = vmul.f32 %v1618, %v1618
      %v2229 = vmul.f32 %v1622, %v1622
      %v2230 = vmul.f32 %v1624, %v1624
      %v2231 = vmul.f32 %v1628, %v1628
      %v2232 = vmul.f32 %v1630, %v1630
      %v2233 = vmul.f32 %v1634, %v1634
      %v2234 = vmul.f32 %v1636, %v1636
      %v2235 = vmul.f32 %v1640, %v1640
      %v2236 = vmul.f32 %v1642, %v1642
      %v2237 = vmul.f32 %v1646, %v1646
      %v2238 = vmul.f32 %v1648, %v1648
      %v2239 = vmul.f32 %v1652, %v1652
      %v2240 = vmul.f32 %v1654, %v1654
      %v2241 = vmul.f32 %v1658, %v1658
      %v2242 = vmul.f32 %v1660, %v1660
      %v2243 = vmul.f32 %v1664, %v1664
      %v2244 = vmul.f32 %v1666, %v1666
      %v2245 = vmul.f32 %v1670, %v1670
      %v2246 = vmul.f32 %v1672, %v1672
      %v2247 = vmul.f32 %v1676, %v1676
      %v2248 = vmul.f32 %v1678, %v1678
      %v2249 = vmul.f32 %v1682, %v1682
      %v2250 = vmul.f32 %v1684, %v1684
      %v2251 = vmul.f32 %v1688, %v1688
      %v2252 = vmul.f32 %v1690, %v1690
      %v2253 = vmul.f32 %v1694, %v1694
      %v2254 = vmul.f32 %v1696, %v1696
      %v2255 = vmul.f32 %v1700, %v1700
      %v2256 = vmul.f32 %v1702, %v1702
      %v2257 = vmul.f32 %v1706, %v1706
      %v2258 = vmul.f32 %v1708, %v1708
      %v2259 = vmul.f32 %v1712, %v1712
      %v2260 = vmul.f32 %v1714, %v1714
      %v2261 = vmul.f32 %v1718, %v1718
      %v2262 = vmul.f32 %v1720, %v1720
      %v2263 = vmul.f32 %v1724, %v1724
      %v2264 = vmul.f32 %v1726, %v1726
      %v2265 = vmul.f32 %v1730, %v1730
      %v2266 = vmul.f32 %v1732, %v1732
      %v2267 = vmul.f32 %v1736, %v1736
      %v2268 = vmul.f32 %v1738, %v1738
      %v2269 = vmul.f32 %v1742, %v1742
      %v2270 = vmul.f32 %v1744, %v1744
      %v2271 = vmul.f32 %v1748, %v1748
      %v2272 = vmul.f32 %v1750, %v1750
      %v2273 = vmul.f32 %v1754, %v1754
      %v2274 = vmul.f32 %v1756, %v1756
      %v2275 = vmul.f32 %v1760, %v1760
      %v2276 = vmul.f32 %v1762, %v1762
      %v2277 = vmul.f32 %v1766, %v1766
      %v2278 = vmul.f32 %v1768, %v1768
      %v2279 = vmul.f32 %v1772, %v1772
      %v2280 = vmul.f32 %v1774, %v1774
      %v2281 = vmul.f32 %v1778, %v1778
      %v2282 = vmul.f32 %v1780, %v1780
      %v2283 = vmul.f32 %v1784, %v1784
      %v2284 = vmul.f32 %v1786, %v1786
      %v2285 = vmul.f32 %v1790, %v1790
      %v2286 = vmul.f32 %v1792, %v1792
      %v2287 = vmul.f32 %v1796, %v1796
      %v2288 = vmul.f32 %v1798, %v1798
      %v2289 = vmul.f32 %v1802, %v1802
      %v2290 = vmul.f32 %v1804, %v1804
      %v2291 = vmul.f32 %v1808, %v1808
      %v2292 = vmul.f32 %v1810, %v1810
      %v2293 = vmul.f32 %v1814, %v1814
      %v2294 = vmul.f32 %v1816, %v1816
      %v2295 = vmul.f32 %v1820, %v1820
      %v2296 = vmul.f32 %v1822, %v1822
      %v2297 = vmul.f32 %v1826, %v1826
      %v2298 = vmul.f32 %v1828, %v1828
      %v2299 = vmul.f32 %v1832, %v1832
      %v2300 = vmul.f32 %v1834, %v1834
      %v2301 = vmul.f32 %v1838, %v1838
      %v2302 = vmul.f32 %v1840, %v1840
      %v2303 = vmul.f32 %v1844, %v1844
      %v2304 = vmul.f32 %v1846, %v1846
      %v2305 = vmul.f32 %v1850, %v1850
      %v2306 = vmul.f32 %v1852, %v1852
      %v2307 = vmul.f32 %v1856, %v1856
      %v2308 = vmul.f32 %v1858, %v1858
      %v2309 = vmul.f32 %v1927, %v1927
      %v2310 = vmul.f32 %v1929, %v1929
      %v2311 = vmul.f32 %v1933, %v1933
      %v2312 = vmul.f32 %v1935, %v1935
      %v2313 = vmul.f32 %v1939, %v1939
      %v2314 = vmul.f32 %v1941, %v1941
      %v2315 = vmul.f32 %v1945, %v1945
      %v2316 = vmul.f32 %v1947, %v1947
      %v2317 = vmul.f32 %v1951, %v1951
      %v2318 = vmul.f32 %v1953, %v1953
      %v2319 = vmul.f32 %v1957, %v1957
      %v2320 = vmul.f32 %v1959, %v1959
      %v2321 = vmul.f32 %v1963, %v1963
      %v2322 = vmul.f32 %v1965, %v1965
      %v2323 = vmul.f32 %v1969, %v1969
      %v2324 = vmul.f32 %v1971, %v1971
      %v2325 = vmul.f32 %v1975, %v1975
      %v2326 = vmul.f32 %v1977, %v1977
      %v2327 = vmul.f32 %v1981, %v1981
      %v2328 = vmul.f32 %v1983, %v1983
      %v2329 = vmul.f32 %v1987, %v1987
      %v2330 = vmul.f32 %v1989, %v1989
      %v2331 = vmul.f32 %v1993, %v1993
      %v2332 = vmul.f32 %v1995, %v1995
      %v2333 = vmul.f32 %v1999, %v1999
      %v2334 = vmul.f32 %v2001, %v2001
      %v2335 = vmul.f32 %v2005, %v2005
      %v2336 = vmul.f32 %v2007, %v2007
      %v2337 = vmul.f32 %v2011, %v2011
      %v2338 = vmul.f32 %v2013, %v2013
      %v2339 = vmul.f32 %v2017, %v2017
      %v2340 = vmul.f32 %v2019, %v2019
      %v2341 = vmul.f32 %v2023, %v2023
      %v2342 = vmul.f32 %v2025, %v2025
      %v2343 = vmul.f32 %v2029, %v2029
      %v2344 = vmul.f32 %v2031, %v2031
      %v2345 = vmul.f32 %v2035, %v2035
      %v2346 = vmul.f32 %v2037, %v2037
      %v2347 = vmul.f32 %v2041, %v2041
      %v2348 = vmul.f32 %v2043, %v2043
      %v2349 = vmul.f32 %v2047, %v2047
      %v2350 = vmul.f32 %v2049, %v2049
      %v2351 = vmul.f32 %v2053, %v2053
      %v2352 = vmul.f32 %v2055, %v2055
      %v2353 = vmul.f32 %v2059, %v2059
      %v2354 = vmul.f32 %v2061, %v2061
      %v2355 = vmul.f32 %v2065, %v2065
      %v2356 = vmul.f32 %v2067, %v2067
      %v2357 = vmul.f32 %v2071, %v2071
      %v2358 = vmul.f32 %v2073, %v2073
      %v2359 = vmul.f32 %v2077, %v2077
      %v2360 = vmul.f32 %v2079, %v2079
      %v2361 = vmul.f32 %v2083, %v2083
      %v2362 = vmul.f32 %v2085, %v2085
      %v2363 = vmul.f32 %v2089, %v2089
      %v2364 = vmul.f32 %v2091, %v2091
      %v2365 = vmul.f32 %v2095, %v2095
      %v2366 = vmul.f32 %v2097, %v2097
      %v2367 = vmul.f32 %v2101, %v2101
      %v2368 = vmul.f32 %v2103, %v2103
      %v2369 = vmul.f32 %v2107, %v2107
      %v2370 = vmul.f32 %v2109, %v2109
      %v2371 = vmul.f32 %v2113, %v2113
      %v2372 = vmul.f32 %v2115, %v2115
      %v2373 = vmul.f32 %v2119, %v2119
      %v2374 = vmul.f32 %v2121, %v2121
      %v2375 = vmul.f32 %v2125, %v2125
      %v2376 = vmul.f32 %v2127, %v2127
      %v2377 = vmul.f32 %v2131, %v2131
      %v2378 = vmul.f32 %v2133, %v2133
      %v2379 = vmul.f32 %v2137, %v2137
      %v2380 = vmul.f32 %v2139, %v2139
      %v2381 = vmul.f32 %v2143, %v2143
      %v2382 = vmul.f32 %v2145, %v2145
      %v2383 = vmul.f32 %v2149, %v2149
      %v2384 = vmul.f32 %v2151, %v2151
      %v2385 = vmul.f32 %v2155, %v2155
      %v2386 = vmul.f32 %v2157, %v2157
      %v2387 = vmul.f32 %v2161, %v2161
      %v2388 = vmul.f32 %v2163, %v2163
      %v2389 = vmul.f32 %v2167, %v2167
      %v2390 = vmul.f32 %v2169, %v2169
      %v2391 = vmul.f32 %v2173, %v2173
      %v2392 = vmul.f32 %v2175, %v2175
      %v2393 = vmul.f32 %v2179, %v2179
      %v2394 = vmul.f32 %v2181, %v2181
      %v2395 = vmul.f32 %v2185, %v2185
      %v2396 = vmul.f32 %v2187, %v2187
      %v2397 = vmul.f32 %v2191, %v2191
      %v2398 = vmul.f32 %v2193, %v2193
      %v2399 = vmul.f32 %v2197, %v2197
      %v2400 = vmul.f32 %v2199, %v2199
      %v2401 = vmul.f32 %v2203, %v2203
      %v2402 = vmul.f32 %v2205, %v2205
      %v2403 = vmul.f32 %v2209, %v2209
      %v2404 = vmul.f32 %v2211, %v2211
      %v2405 = vadd.f32 %v2213, %v2309
      %v2406 = vadd.f32 %v2214, %v2310
      %v2407 = vadd.f32 %v2215, %v2311
      %v2408 = vadd.f32 %v2216, %v2312
      %v2409 = vadd.f32 %v2217, %v2313
      %v2410 = vadd.f32 %v2218, %v2314
      %v2411 = vadd.f32 %v2219, %v2315
      %v2412 = vadd.f32 %v2220, %v2316
      %v2413 = vadd.f32 %v2221, %v2317
      %v2414 = vadd.f32 %v2222, %v2318
      %v2415 = vadd.f32 %v2223, %v2319
      %v2416 = vadd.f32 %v2224, %v2320
      %v2417 = vadd.f32 %v2225, %v2321
      %v2418 = vadd.f32 %v2226, %v2322
      %v2419 = vadd.f32 %v2227, %v2323
      %v2420 = vadd.f32 %v2228, %v2324
      %v2421 = vadd.f32 %v2229, %v2325
      %v2422 = vadd.f32 %v2230, %v2326
      %v2423 = vadd.f32 %v2231, %v2327
      %v2424 = vadd.f32 %v2232, %v2328
      %v2425 = vadd.f32 %v2233, %v2329
      %v2426 = vadd.f32 %v2234, %v2330
      %v2427 = vadd.f32 %v2235, %v2331
      %v2428 = vadd.f32 %v2236, %v2332
      %v2429 = vadd.f32 %v2237, %v2333
      %v2430 = vadd.f32 %v2238, %v2334
      %v2431 = vadd.f32 %v2239, %v2335
      %v2432 = vadd.f32 %v2240, %v2336
      %v2433 = vadd.f32 %v2241, %v2337
      %v2434 = vadd.f32 %v2242, %v2338
      %v2435 = vadd.f32 %v2243, %v2339
      %v2436 = vadd.f32 %v2244, %v2340
      %v2437 = vadd.f32 %v2245, %v2341
      %v2438 = vadd.f32 %v2246, %v2342
      %v2439 = vadd.f32 %v2247, %v2343
      %v2440 = vadd.f32 %v2248, %v2344
      %v2441 = vadd.f32 %v2249, %v2345
      %v2442 = vadd.f32 %v2250, %v2346
      %v2443 = vadd.f32 %v2251, %v2347
      %v2444 = vadd.f32 %v2252, %v2348
      %v2445 = vadd.f32 %v2253, %v2349
      %v2446 = vadd.f32 %v2254, %v2350
      %v2447 = vadd.f32 %v2255, %v2351
      %v2448 = vadd.f32 %v2256, %v2352
      %v2449 = vadd.f32 %v2257, %v2353
      %v2450 = vadd.f32 %v2258, %v2354
      %v2451 = vadd.f32 %v2259, %v2355
      %v2452 = vadd.f32 %v2260, %v2356
      %v2453 = vadd.f32 %v2261, %v2357
      %v2454 = vadd.f32 %v2262, %v2358
      %v2455 = vadd.f32 %v2263, %v2359
      %v2456 = vadd.f32 %v2264, %v2360
      %v2457 = vadd.f32 %v2265, %v2361
      %v2458 = vadd.f32 %v2266, %v2362
      %v2459 = vadd.f32 %v2267, %v2363
      %v2460 = vadd.f32 %v2268, %v2364
      %v2461 = vadd.f32 %v2269, %v2365
      %v2462 = vadd.f32 %v2270, %v2366
      %v2463 = vadd.f32 %v2271, %v2367
      %v2464 = vadd.f32 %v2272, %v2368
      %v2465 = vadd.f32 %v2273, %v2369
      %v2466 = vadd.f32 %v2274, %v2370
      %v2467 = vadd.f32 %v2275, %v2371
      %v2468 = vadd.f32 %v2276, %v2372
      %v2469 = vadd.f32 %v2277, %v2373
      %v2470 = vadd.f32 %v2278, %v2374
      %v2471 = vadd.f32 %v2279, %v2375
      %v2472 = vadd.f32 %v2280, %v2376
      %v2473 = vadd.f32 %v2281, %v2377
      %v2474 = vadd.f32 %v2282, %v2378
      %v2475 = vadd.f32 %v2283, %v2379
      %v2476 = vadd.f32 %v2284, %v2380
      %v2477 = vadd.f32 %v2285, %v2381
      %v2478 = vadd.f32 %v2286, %v2382
      %v2479 = vadd.f32 %v2287, %v2383
      %v2480 = vadd.f32 %v2288, %v2384
      %v2481 = vadd.f32 %v2289, %v2385
      %v2482 = vadd.f32 %v2290, %v2386
      %v2483 = vadd.f32 %v2291, %v2387
      %v2484 = vadd.f32 %v2292, %v2388
      %v2485 = vadd.f32 %v2293, %v2389
      %v2486 = vadd.f32 %v2294, %v2390
      %v2487 = vadd.f32 %v2295, %v2391
      %v2488 = vadd.f32 %v2296, %v2392
      %v2489 = vadd.f32 %v2297, %v2393
      %v2490 = vadd.f32 %v2298, %v2394
      %v2491 = vadd.f32 %v2299, %v2395
      %v2492 = vadd.f32 %v2300, %v2396
      %v2493 = vadd.f32 %v2301, %v2397
      %v2494 = vadd.f32 %v2302, %v2398
      %v2495 = vadd.f32 %v2303, %v2399
      %v2496 = vadd.f32 %v2304, %v2400
      %v2497 = vadd.f32 %v2305, %v2401
      %v2498 = vadd.f32 %v2306, %v2402
      %v2499 = vadd.f32 %v2307, %v2403
      %v2500 = vadd.f32 %v2308, %v2404
      %v2501 = vrsqrt.pop %v2405
      %v2502 = vmul.f32 %v2405, %v2501
      %vm2503 = vcmp.eq.f32.partialorder %v2405, inf
      %v2504 = vsel %vm2503, %v2405, %v2502
      %vm2505 = vcmp.eq.f32.partialorder %v2405, 0.0
      %v2506 = vand.u32 %v2405, 2147483648
      %v2507 = vsel %vm2505, %v2506, %v2504
      %v2508 = vrsqrt.pop %v2406
      %v2509 = vmul.f32 %v2406, %v2508
      %vm2510 = vcmp.eq.f32.partialorder %v2406, inf
      %v2511 = vsel %vm2510, %v2406, %v2509
      %vm2512 = vcmp.eq.f32.partialorder %v2406, 0.0
      %v2513 = vand.u32 %v2406, 2147483648
      %v2514 = vsel %vm2512, %v2513, %v2511
      %v2515 = vrsqrt.pop %v2407
      %v2516 = vmul.f32 %v2407, %v2515
      %vm2517 = vcmp.eq.f32.partialorder %v2407, inf
      %v2518 = vsel %vm2517, %v2407, %v2516
      %vm2519 = vcmp.eq.f32.partialorder %v2407, 0.0
      %v2520 = vand.u32 %v2407, 2147483648
      %v2521 = vsel %vm2519, %v2520, %v2518
      %v2522 = vrsqrt.pop %v2408
      %v2523 = vmul.f32 %v2408, %v2522
      %vm2524 = vcmp.eq.f32.partialorder %v2408, inf
      %v2525 = vsel %vm2524, %v2408, %v2523
      %vm2526 = vcmp.eq.f32.partialorder %v2408, 0.0
      %v2527 = vand.u32 %v2408, 2147483648
      %v2528 = vsel %vm2526, %v2527, %v2525
      %v2529 = vrsqrt.pop %v2409
      %v2530 = vmul.f32 %v2409, %v2529
      %vm2531 = vcmp.eq.f32.partialorder %v2409, inf
      %v2532 = vsel %vm2531, %v2409, %v2530
      %vm2533 = vcmp.eq.f32.partialorder %v2409, 0.0
      %v2534 = vand.u32 %v2409, 2147483648
      %v2535 = vsel %vm2533, %v2534, %v2532
      %v2536 = vrsqrt.pop %v2410
      %v2537 = vmul.f32 %v2410, %v2536
      %vm2538 = vcmp.eq.f32.partialorder %v2410, inf
      %v2539 = vsel %vm2538, %v2410, %v2537
      %vm2540 = vcmp.eq.f32.partialorder %v2410, 0.0
      %v2541 = vand.u32 %v2410, 2147483648
      %v2542 = vsel %vm2540, %v2541, %v2539
      %v2543 = vrsqrt.pop %v2411
      %v2544 = vmul.f32 %v2411, %v2543
      %vm2545 = vcmp.eq.f32.partialorder %v2411, inf
      %v2546 = vsel %vm2545, %v2411, %v2544
      %vm2547 = vcmp.eq.f32.partialorder %v2411, 0.0
      %v2548 = vand.u32 %v2411, 2147483648
      %v2549 = vsel %vm2547, %v2548, %v2546
      %v2550 = vrsqrt.pop %v2412
      %v2551 = vmul.f32 %v2412, %v2550
      %vm2552 = vcmp.eq.f32.partialorder %v2412, inf
      %v2553 = vsel %vm2552, %v2412, %v2551
      %vm2554 = vcmp.eq.f32.partialorder %v2412, 0.0
      %v2555 = vand.u32 %v2412, 2147483648
      %v2556 = vsel %vm2554, %v2555, %v2553
      %v2557 = vrsqrt.pop %v2413
      %v2558 = vmul.f32 %v2413, %v2557
      %vm2559 = vcmp.eq.f32.partialorder %v2413, inf
      %v2560 = vsel %vm2559, %v2413, %v2558
      %vm2561 = vcmp.eq.f32.partialorder %v2413, 0.0
      %v2562 = vand.u32 %v2413, 2147483648
      %v2563 = vsel %vm2561, %v2562, %v2560
      %v2564 = vrsqrt.pop %v2414
      %v2565 = vmul.f32 %v2414, %v2564
      %vm2566 = vcmp.eq.f32.partialorder %v2414, inf
      %v2567 = vsel %vm2566, %v2414, %v2565
      %vm2568 = vcmp.eq.f32.partialorder %v2414, 0.0
      %v2569 = vand.u32 %v2414, 2147483648
      %v2570 = vsel %vm2568, %v2569, %v2567
      %v2571 = vrsqrt.pop %v2415
      %v2572 = vmul.f32 %v2415, %v2571
      %vm2573 = vcmp.eq.f32.partialorder %v2415, inf
      %v2574 = vsel %vm2573, %v2415, %v2572
      %vm2575 = vcmp.eq.f32.partialorder %v2415, 0.0
      %v2576 = vand.u32 %v2415, 2147483648
      %v2577 = vsel %vm2575, %v2576, %v2574
      %v2578 = vrsqrt.pop %v2416
      %v2579 = vmul.f32 %v2416, %v2578
      %vm2580 = vcmp.eq.f32.partialorder %v2416, inf
      %v2581 = vsel %vm2580, %v2416, %v2579
      %vm2582 = vcmp.eq.f32.partialorder %v2416, 0.0
      %v2583 = vand.u32 %v2416, 2147483648
      %v2584 = vsel %vm2582, %v2583, %v2581
      %v2585 = vrsqrt.pop %v2417
      %v2586 = vmul.f32 %v2417, %v2585
      %vm2587 = vcmp.eq.f32.partialorder %v2417, inf
      %v2588 = vsel %vm2587, %v2417, %v2586
      %vm2589 = vcmp.eq.f32.partialorder %v2417, 0.0
      %v2590 = vand.u32 %v2417, 2147483648
      %v2591 = vsel %vm2589, %v2590, %v2588
      %v2592 = vrsqrt.pop %v2418
      %v2593 = vmul.f32 %v2418, %v2592
      %vm2594 = vcmp.eq.f32.partialorder %v2418, inf
      %v2595 = vsel %vm2594, %v2418, %v2593
      %vm2596 = vcmp.eq.f32.partialorder %v2418, 0.0
      %v2597 = vand.u32 %v2418, 2147483648
      %v2598 = vsel %vm2596, %v2597, %v2595
      %v2599 = vrsqrt.pop %v2419
      %v2600 = vmul.f32 %v2419, %v2599
      %vm2601 = vcmp.eq.f32.partialorder %v2419, inf
      %v2602 = vsel %vm2601, %v2419, %v2600
      %vm2603 = vcmp.eq.f32.partialorder %v2419, 0.0
      %v2604 = vand.u32 %v2419, 2147483648
      %v2605 = vsel %vm2603, %v2604, %v2602
      %v2606 = vrsqrt.pop %v2420
      %v2607 = vmul.f32 %v2420, %v2606
      %vm2608 = vcmp.eq.f32.partialorder %v2420, inf
      %v2609 = vsel %vm2608, %v2420, %v2607
      %vm2610 = vcmp.eq.f32.partialorder %v2420, 0.0
      %v2611 = vand.u32 %v2420, 2147483648
      %v2612 = vsel %vm2610, %v2611, %v2609
      %v2613 = vrsqrt.pop %v2421
      %v2614 = vmul.f32 %v2421, %v2613
      %vm2615 = vcmp.eq.f32.partialorder %v2421, inf
      %v2616 = vsel %vm2615, %v2421, %v2614
      %vm2617 = vcmp.eq.f32.partialorder %v2421, 0.0
      %v2618 = vand.u32 %v2421, 2147483648
      %v2619 = vsel %vm2617, %v2618, %v2616
      %v2620 = vrsqrt.pop %v2422
      %v2621 = vmul.f32 %v2422, %v2620
      %vm2622 = vcmp.eq.f32.partialorder %v2422, inf
      %v2623 = vsel %vm2622, %v2422, %v2621
      %vm2624 = vcmp.eq.f32.partialorder %v2422, 0.0
      %v2625 = vand.u32 %v2422, 2147483648
      %v2626 = vsel %vm2624, %v2625, %v2623
      %v2627 = vrsqrt.pop %v2423
      %v2628 = vmul.f32 %v2423, %v2627
      %vm2629 = vcmp.eq.f32.partialorder %v2423, inf
      %v2630 = vsel %vm2629, %v2423, %v2628
      %vm2631 = vcmp.eq.f32.partialorder %v2423, 0.0
      %v2632 = vand.u32 %v2423, 2147483648
      %v2633 = vsel %vm2631, %v2632, %v2630
      %v2634 = vrsqrt.pop %v2424
      %v2635 = vmul.f32 %v2424, %v2634
      %vm2636 = vcmp.eq.f32.partialorder %v2424, inf
      %v2637 = vsel %vm2636, %v2424, %v2635
      %vm2638 = vcmp.eq.f32.partialorder %v2424, 0.0
      %v2639 = vand.u32 %v2424, 2147483648
      %v2640 = vsel %vm2638, %v2639, %v2637
      %v2641 = vrsqrt.pop %v2425
      %v2642 = vmul.f32 %v2425, %v2641
      %vm2643 = vcmp.eq.f32.partialorder %v2425, inf
      %v2644 = vsel %vm2643, %v2425, %v2642
      %vm2645 = vcmp.eq.f32.partialorder %v2425, 0.0
      %v2646 = vand.u32 %v2425, 2147483648
      %v2647 = vsel %vm2645, %v2646, %v2644
      %v2648 = vrsqrt.pop %v2426
      %v2649 = vmul.f32 %v2426, %v2648
      %vm2650 = vcmp.eq.f32.partialorder %v2426, inf
      %v2651 = vsel %vm2650, %v2426, %v2649
      %vm2652 = vcmp.eq.f32.partialorder %v2426, 0.0
      %v2653 = vand.u32 %v2426, 2147483648
      %v2654 = vsel %vm2652, %v2653, %v2651
      %v2655 = vrsqrt.pop %v2427
      %v2656 = vmul.f32 %v2427, %v2655
      %vm2657 = vcmp.eq.f32.partialorder %v2427, inf
      %v2658 = vsel %vm2657, %v2427, %v2656
      %vm2659 = vcmp.eq.f32.partialorder %v2427, 0.0
      %v2660 = vand.u32 %v2427, 2147483648
      %v2661 = vsel %vm2659, %v2660, %v2658
      %v2662 = vrsqrt.pop %v2428
      %v2663 = vmul.f32 %v2428, %v2662
      %vm2664 = vcmp.eq.f32.partialorder %v2428, inf
      %v2665 = vsel %vm2664, %v2428, %v2663
      %vm2666 = vcmp.eq.f32.partialorder %v2428, 0.0
      %v2667 = vand.u32 %v2428, 2147483648
      %v2668 = vsel %vm2666, %v2667, %v2665
      %v2669 = vrsqrt.pop %v2429
      %v2670 = vmul.f32 %v2429, %v2669
      %vm2671 = vcmp.eq.f32.partialorder %v2429, inf
      %v2672 = vsel %vm2671, %v2429, %v2670
      %vm2673 = vcmp.eq.f32.partialorder %v2429, 0.0
      %v2674 = vand.u32 %v2429, 2147483648
      %v2675 = vsel %vm2673, %v2674, %v2672
      %v2676 = vrsqrt.pop %v2430
      %v2677 = vmul.f32 %v2430, %v2676
      %vm2678 = vcmp.eq.f32.partialorder %v2430, inf
      %v2679 = vsel %vm2678, %v2430, %v2677
      %vm2680 = vcmp.eq.f32.partialorder %v2430, 0.0
      %v2681 = vand.u32 %v2430, 2147483648
      %v2682 = vsel %vm2680, %v2681, %v2679
      %v2683 = vrsqrt.pop %v2431
      %v2684 = vmul.f32 %v2431, %v2683
      %vm2685 = vcmp.eq.f32.partialorder %v2431, inf
      %v2686 = vsel %vm2685, %v2431, %v2684
      %vm2687 = vcmp.eq.f32.partialorder %v2431, 0.0
      %v2688 = vand.u32 %v2431, 2147483648
      %v2689 = vsel %vm2687, %v2688, %v2686
      %v2690 = vrsqrt.pop %v2432
      %v2691 = vmul.f32 %v2432, %v2690
      %vm2692 = vcmp.eq.f32.partialorder %v2432, inf
      %v2693 = vsel %vm2692, %v2432, %v2691
      %vm2694 = vcmp.eq.f32.partialorder %v2432, 0.0
      %v2695 = vand.u32 %v2432, 2147483648
      %v2696 = vsel %vm2694, %v2695, %v2693
      %v2697 = vrsqrt.pop %v2433
      %v2698 = vmul.f32 %v2433, %v2697
      %vm2699 = vcmp.eq.f32.partialorder %v2433, inf
      %v2700 = vsel %vm2699, %v2433, %v2698
      %vm2701 = vcmp.eq.f32.partialorder %v2433, 0.0
      %v2702 = vand.u32 %v2433, 2147483648
      %v2703 = vsel %vm2701, %v2702, %v2700
      %v2704 = vrsqrt.pop %v2434
      %v2705 = vmul.f32 %v2434, %v2704
      %vm2706 = vcmp.eq.f32.partialorder %v2434, inf
      %v2707 = vsel %vm2706, %v2434, %v2705
      %vm2708 = vcmp.eq.f32.partialorder %v2434, 0.0
      %v2709 = vand.u32 %v2434, 2147483648
      %v2710 = vsel %vm2708, %v2709, %v2707
      %v2711 = vrsqrt.pop %v2435
      %v2712 = vmul.f32 %v2435, %v2711
      %vm2713 = vcmp.eq.f32.partialorder %v2435, inf
      %v2714 = vsel %vm2713, %v2435, %v2712
      %vm2715 = vcmp.eq.f32.partialorder %v2435, 0.0
      %v2716 = vand.u32 %v2435, 2147483648
      %v2717 = vsel %vm2715, %v2716, %v2714
      %v2718 = vrsqrt.pop %v2436
      %v2719 = vmul.f32 %v2436, %v2718
      %vm2720 = vcmp.eq.f32.partialorder %v2436, inf
      %v2721 = vsel %vm2720, %v2436, %v2719
      %vm2722 = vcmp.eq.f32.partialorder %v2436, 0.0
      %v2723 = vand.u32 %v2436, 2147483648
      %v2724 = vsel %vm2722, %v2723, %v2721
      %v2725 = vrsqrt.pop %v2437
      %v2726 = vmul.f32 %v2437, %v2725
      %vm2727 = vcmp.eq.f32.partialorder %v2437, inf
      %v2728 = vsel %vm2727, %v2437, %v2726
      %vm2729 = vcmp.eq.f32.partialorder %v2437, 0.0
      %v2730 = vand.u32 %v2437, 2147483648
      %v2731 = vsel %vm2729, %v2730, %v2728
      %v2732 = vrsqrt.pop %v2438
      %v2733 = vmul.f32 %v2438, %v2732
      %vm2734 = vcmp.eq.f32.partialorder %v2438, inf
      %v2735 = vsel %vm2734, %v2438, %v2733
      %vm2736 = vcmp.eq.f32.partialorder %v2438, 0.0
      %v2737 = vand.u32 %v2438, 2147483648
      %v2738 = vsel %vm2736, %v2737, %v2735
      %v2739 = vrsqrt.pop %v2439
      %v2740 = vmul.f32 %v2439, %v2739
      %vm2741 = vcmp.eq.f32.partialorder %v2439, inf
      %v2742 = vsel %vm2741, %v2439, %v2740
      %vm2743 = vcmp.eq.f32.partialorder %v2439, 0.0
      %v2744 = vand.u32 %v2439, 2147483648
      %v2745 = vsel %vm2743, %v2744, %v2742
      %v2746 = vrsqrt.pop %v2440
      %v2747 = vmul.f32 %v2440, %v2746
      %vm2748 = vcmp.eq.f32.partialorder %v2440, inf
      %v2749 = vsel %vm2748, %v2440, %v2747
      %vm2750 = vcmp.eq.f32.partialorder %v2440, 0.0
      %v2751 = vand.u32 %v2440, 2147483648
      %v2752 = vsel %vm2750, %v2751, %v2749
      %v2753 = vrsqrt.pop %v2441
      %v2754 = vmul.f32 %v2441, %v2753
      %vm2755 = vcmp.eq.f32.partialorder %v2441, inf
      %v2756 = vsel %vm2755, %v2441, %v2754
      %vm2757 = vcmp.eq.f32.partialorder %v2441, 0.0
      %v2758 = vand.u32 %v2441, 2147483648
      %v2759 = vsel %vm2757, %v2758, %v2756
      %v2760 = vrsqrt.pop %v2442
      %v2761 = vmul.f32 %v2442, %v2760
      %vm2762 = vcmp.eq.f32.partialorder %v2442, inf
      %v2763 = vsel %vm2762, %v2442, %v2761
      %vm2764 = vcmp.eq.f32.partialorder %v2442, 0.0
      %v2765 = vand.u32 %v2442, 2147483648
      %v2766 = vsel %vm2764, %v2765, %v2763
      %v2767 = vrsqrt.pop %v2443
      %v2768 = vmul.f32 %v2443, %v2767
      %vm2769 = vcmp.eq.f32.partialorder %v2443, inf
      %v2770 = vsel %vm2769, %v2443, %v2768
      %vm2771 = vcmp.eq.f32.partialorder %v2443, 0.0
      %v2772 = vand.u32 %v2443, 2147483648
      %v2773 = vsel %vm2771, %v2772, %v2770
      %v2774 = vrsqrt.pop %v2444
      %v2775 = vmul.f32 %v2444, %v2774
      %vm2776 = vcmp.eq.f32.partialorder %v2444, inf
      %v2777 = vsel %vm2776, %v2444, %v2775
      %vm2778 = vcmp.eq.f32.partialorder %v2444, 0.0
      %v2779 = vand.u32 %v2444, 2147483648
      %v2780 = vsel %vm2778, %v2779, %v2777
      %v2781 = vrsqrt.pop %v2445
      %v2782 = vmul.f32 %v2445, %v2781
      %vm2783 = vcmp.eq.f32.partialorder %v2445, inf
      %v2784 = vsel %vm2783, %v2445, %v2782
      %vm2785 = vcmp.eq.f32.partialorder %v2445, 0.0
      %v2786 = vand.u32 %v2445, 2147483648
      %v2787 = vsel %vm2785, %v2786, %v2784
      %v2788 = vrsqrt.pop %v2446
      %v2789 = vmul.f32 %v2446, %v2788
      %vm2790 = vcmp.eq.f32.partialorder %v2446, inf
      %v2791 = vsel %vm2790, %v2446, %v2789
      %vm2792 = vcmp.eq.f32.partialorder %v2446, 0.0
      %v2793 = vand.u32 %v2446, 2147483648
      %v2794 = vsel %vm2792, %v2793, %v2791
      %v2795 = vrsqrt.pop %v2447
      %v2796 = vmul.f32 %v2447, %v2795
      %vm2797 = vcmp.eq.f32.partialorder %v2447, inf
      %v2798 = vsel %vm2797, %v2447, %v2796
      %vm2799 = vcmp.eq.f32.partialorder %v2447, 0.0
      %v2800 = vand.u32 %v2447, 2147483648
      %v2801 = vsel %vm2799, %v2800, %v2798
      %v2802 = vrsqrt.pop %v2448
      %v2803 = vmul.f32 %v2448, %v2802
      %vm2804 = vcmp.eq.f32.partialorder %v2448, inf
      %v2805 = vsel %vm2804, %v2448, %v2803
      %vm2806 = vcmp.eq.f32.partialorder %v2448, 0.0
      %v2807 = vand.u32 %v2448, 2147483648
      %v2808 = vsel %vm2806, %v2807, %v2805
      %v2809 = vrsqrt.pop %v2449
      %v2810 = vmul.f32 %v2449, %v2809
      %vm2811 = vcmp.eq.f32.partialorder %v2449, inf
      %v2812 = vsel %vm2811, %v2449, %v2810
      %vm2813 = vcmp.eq.f32.partialorder %v2449, 0.0
      %v2814 = vand.u32 %v2449, 2147483648
      %v2815 = vsel %vm2813, %v2814, %v2812
      %v2816 = vrsqrt.pop %v2450
      %v2817 = vmul.f32 %v2450, %v2816
      %vm2818 = vcmp.eq.f32.partialorder %v2450, inf
      %v2819 = vsel %vm2818, %v2450, %v2817
      %vm2820 = vcmp.eq.f32.partialorder %v2450, 0.0
      %v2821 = vand.u32 %v2450, 2147483648
      %v2822 = vsel %vm2820, %v2821, %v2819
      %v2823 = vrsqrt.pop %v2451
      %v2824 = vmul.f32 %v2451, %v2823
      %vm2825 = vcmp.eq.f32.partialorder %v2451, inf
      %v2826 = vsel %vm2825, %v2451, %v2824
      %vm2827 = vcmp.eq.f32.partialorder %v2451, 0.0
      %v2828 = vand.u32 %v2451, 2147483648
      %v2829 = vsel %vm2827, %v2828, %v2826
      %v2830 = vrsqrt.pop %v2452
      %v2831 = vmul.f32 %v2452, %v2830
      %vm2832 = vcmp.eq.f32.partialorder %v2452, inf
      %v2833 = vsel %vm2832, %v2452, %v2831
      %vm2834 = vcmp.eq.f32.partialorder %v2452, 0.0
      %v2835 = vand.u32 %v2452, 2147483648
      %v2836 = vsel %vm2834, %v2835, %v2833
      %v2837 = vrsqrt.pop %v2453
      %v2838 = vmul.f32 %v2453, %v2837
      %vm2839 = vcmp.eq.f32.partialorder %v2453, inf
      %v2840 = vsel %vm2839, %v2453, %v2838
      %vm2841 = vcmp.eq.f32.partialorder %v2453, 0.0
      %v2842 = vand.u32 %v2453, 2147483648
      %v2843 = vsel %vm2841, %v2842, %v2840
      %v2844 = vrsqrt.pop %v2454
      %v2845 = vmul.f32 %v2454, %v2844
      %vm2846 = vcmp.eq.f32.partialorder %v2454, inf
      %v2847 = vsel %vm2846, %v2454, %v2845
      %vm2848 = vcmp.eq.f32.partialorder %v2454, 0.0
      %v2849 = vand.u32 %v2454, 2147483648
      %v2850 = vsel %vm2848, %v2849, %v2847
      %v2851 = vrsqrt.pop %v2455
      %v2852 = vmul.f32 %v2455, %v2851
      %vm2853 = vcmp.eq.f32.partialorder %v2455, inf
      %v2854 = vsel %vm2853, %v2455, %v2852
      %vm2855 = vcmp.eq.f32.partialorder %v2455, 0.0
      %v2856 = vand.u32 %v2455, 2147483648
      %v2857 = vsel %vm2855, %v2856, %v2854
      %v2858 = vrsqrt.pop %v2456
      %v2859 = vmul.f32 %v2456, %v2858
      %vm2860 = vcmp.eq.f32.partialorder %v2456, inf
      %v2861 = vsel %vm2860, %v2456, %v2859
      %vm2862 = vcmp.eq.f32.partialorder %v2456, 0.0
      %v2863 = vand.u32 %v2456, 2147483648
      %v2864 = vsel %vm2862, %v2863, %v2861
      %v2865 = vrsqrt.pop %v2457
      %v2866 = vmul.f32 %v2457, %v2865
      %vm2867 = vcmp.eq.f32.partialorder %v2457, inf
      %v2868 = vsel %vm2867, %v2457, %v2866
      %vm2869 = vcmp.eq.f32.partialorder %v2457, 0.0
      %v2870 = vand.u32 %v2457, 2147483648
      %v2871 = vsel %vm2869, %v2870, %v2868
      %v2872 = vrsqrt.pop %v2458
      %v2873 = vmul.f32 %v2458, %v2872
      %vm2874 = vcmp.eq.f32.partialorder %v2458, inf
      %v2875 = vsel %vm2874, %v2458, %v2873
      %vm2876 = vcmp.eq.f32.partialorder %v2458, 0.0
      %v2877 = vand.u32 %v2458, 2147483648
      %v2878 = vsel %vm2876, %v2877, %v2875
      %v2879 = vrsqrt.pop %v2459
      %v2880 = vmul.f32 %v2459, %v2879
      %vm2881 = vcmp.eq.f32.partialorder %v2459, inf
      %v2882 = vsel %vm2881, %v2459, %v2880
      %vm2883 = vcmp.eq.f32.partialorder %v2459, 0.0
      %v2884 = vand.u32 %v2459, 2147483648
      %v2885 = vsel %vm2883, %v2884, %v2882
      %v2886 = vrsqrt.pop %v2460
      %v2887 = vmul.f32 %v2460, %v2886
      %vm2888 = vcmp.eq.f32.partialorder %v2460, inf
      %v2889 = vsel %vm2888, %v2460, %v2887
      %vm2890 = vcmp.eq.f32.partialorder %v2460, 0.0
      %v2891 = vand.u32 %v2460, 2147483648
      %v2892 = vsel %vm2890, %v2891, %v2889
      %v2893 = vrsqrt.pop %v2461
      %v2894 = vmul.f32 %v2461, %v2893
      %vm2895 = vcmp.eq.f32.partialorder %v2461, inf
      %v2896 = vsel %vm2895, %v2461, %v2894
      %vm2897 = vcmp.eq.f32.partialorder %v2461, 0.0
      %v2898 = vand.u32 %v2461, 2147483648
      %v2899 = vsel %vm2897, %v2898, %v2896
      %v2900 = vrsqrt.pop %v2462
      %v2901 = vmul.f32 %v2462, %v2900
      %vm2902 = vcmp.eq.f32.partialorder %v2462, inf
      %v2903 = vsel %vm2902, %v2462, %v2901
      %vm2904 = vcmp.eq.f32.partialorder %v2462, 0.0
      %v2905 = vand.u32 %v2462, 2147483648
      %v2906 = vsel %vm2904, %v2905, %v2903
      %v2907 = vrsqrt.pop %v2463
      %v2908 = vmul.f32 %v2463, %v2907
      %vm2909 = vcmp.eq.f32.partialorder %v2463, inf
      %v2910 = vsel %vm2909, %v2463, %v2908
      %vm2911 = vcmp.eq.f32.partialorder %v2463, 0.0
      %v2912 = vand.u32 %v2463, 2147483648
      %v2913 = vsel %vm2911, %v2912, %v2910
      %v2914 = vrsqrt.pop %v2464
      %v2915 = vmul.f32 %v2464, %v2914
      %vm2916 = vcmp.eq.f32.partialorder %v2464, inf
      %v2917 = vsel %vm2916, %v2464, %v2915
      %vm2918 = vcmp.eq.f32.partialorder %v2464, 0.0
      %v2919 = vand.u32 %v2464, 2147483648
      %v2920 = vsel %vm2918, %v2919, %v2917
      %v2921 = vrsqrt.pop %v2465
      %v2922 = vmul.f32 %v2465, %v2921
      %vm2923 = vcmp.eq.f32.partialorder %v2465, inf
      %v2924 = vsel %vm2923, %v2465, %v2922
      %vm2925 = vcmp.eq.f32.partialorder %v2465, 0.0
      %v2926 = vand.u32 %v2465, 2147483648
      %v2927 = vsel %vm2925, %v2926, %v2924
      %v2928 = vrsqrt.pop %v2466
      %v2929 = vmul.f32 %v2466, %v2928
      %vm2930 = vcmp.eq.f32.partialorder %v2466, inf
      %v2931 = vsel %vm2930, %v2466, %v2929
      %vm2932 = vcmp.eq.f32.partialorder %v2466, 0.0
      %v2933 = vand.u32 %v2466, 2147483648
      %v2934 = vsel %vm2932, %v2933, %v2931
      %v2935 = vrsqrt.pop %v2467
      %v2936 = vmul.f32 %v2467, %v2935
      %vm2937 = vcmp.eq.f32.partialorder %v2467, inf
      %v2938 = vsel %vm2937, %v2467, %v2936
      %vm2939 = vcmp.eq.f32.partialorder %v2467, 0.0
      %v2940 = vand.u32 %v2467, 2147483648
      %v2941 = vsel %vm2939, %v2940, %v2938
      %v2942 = vrsqrt.pop %v2468
      %v2943 = vmul.f32 %v2468, %v2942
      %vm2944 = vcmp.eq.f32.partialorder %v2468, inf
      %v2945 = vsel %vm2944, %v2468, %v2943
      %vm2946 = vcmp.eq.f32.partialorder %v2468, 0.0
      %v2947 = vand.u32 %v2468, 2147483648
      %v2948 = vsel %vm2946, %v2947, %v2945
      %v2949 = vrsqrt.pop %v2469
      %v2950 = vmul.f32 %v2469, %v2949
      %vm2951 = vcmp.eq.f32.partialorder %v2469, inf
      %v2952 = vsel %vm2951, %v2469, %v2950
      %vm2953 = vcmp.eq.f32.partialorder %v2469, 0.0
      %v2954 = vand.u32 %v2469, 2147483648
      %v2955 = vsel %vm2953, %v2954, %v2952
      %v2956 = vrsqrt.pop %v2470
      %v2957 = vmul.f32 %v2470, %v2956
      %vm2958 = vcmp.eq.f32.partialorder %v2470, inf
      %v2959 = vsel %vm2958, %v2470, %v2957
      %vm2960 = vcmp.eq.f32.partialorder %v2470, 0.0
      %v2961 = vand.u32 %v2470, 2147483648
      %v2962 = vsel %vm2960, %v2961, %v2959
      %v2963 = vrsqrt.pop %v2471
      %v2964 = vmul.f32 %v2471, %v2963
      %vm2965 = vcmp.eq.f32.partialorder %v2471, inf
      %v2966 = vsel %vm2965, %v2471, %v2964
      %vm2967 = vcmp.eq.f32.partialorder %v2471, 0.0
      %v2968 = vand.u32 %v2471, 2147483648
      %v2969 = vsel %vm2967, %v2968, %v2966
      %v2970 = vrsqrt.pop %v2472
      %v2971 = vmul.f32 %v2472, %v2970
      %vm2972 = vcmp.eq.f32.partialorder %v2472, inf
      %v2973 = vsel %vm2972, %v2472, %v2971
      %vm2974 = vcmp.eq.f32.partialorder %v2472, 0.0
      %v2975 = vand.u32 %v2472, 2147483648
      %v2976 = vsel %vm2974, %v2975, %v2973
      %v2977 = vrsqrt.pop %v2473
      %v2978 = vmul.f32 %v2473, %v2977
      %vm2979 = vcmp.eq.f32.partialorder %v2473, inf
      %v2980 = vsel %vm2979, %v2473, %v2978
      %vm2981 = vcmp.eq.f32.partialorder %v2473, 0.0
      %v2982 = vand.u32 %v2473, 2147483648
      %v2983 = vsel %vm2981, %v2982, %v2980
      %v2984 = vrsqrt.pop %v2474
      %v2985 = vmul.f32 %v2474, %v2984
      %vm2986 = vcmp.eq.f32.partialorder %v2474, inf
      %v2987 = vsel %vm2986, %v2474, %v2985
      %vm2988 = vcmp.eq.f32.partialorder %v2474, 0.0
      %v2989 = vand.u32 %v2474, 2147483648
      %v2990 = vsel %vm2988, %v2989, %v2987
      %v2991 = vrsqrt.pop %v2475
      %v2992 = vmul.f32 %v2475, %v2991
      %vm2993 = vcmp.eq.f32.partialorder %v2475, inf
      %v2994 = vsel %vm2993, %v2475, %v2992
      %vm2995 = vcmp.eq.f32.partialorder %v2475, 0.0
      %v2996 = vand.u32 %v2475, 2147483648
      %v2997 = vsel %vm2995, %v2996, %v2994
      %v2998 = vrsqrt.pop %v2476
      %v2999 = vmul.f32 %v2476, %v2998
      %vm3000 = vcmp.eq.f32.partialorder %v2476, inf
      %v3001 = vsel %vm3000, %v2476, %v2999
      %vm3002 = vcmp.eq.f32.partialorder %v2476, 0.0
      %v3003 = vand.u32 %v2476, 2147483648
      %v3004 = vsel %vm3002, %v3003, %v3001
      %v3005 = vrsqrt.pop %v2477
      %v3006 = vmul.f32 %v2477, %v3005
      %vm3007 = vcmp.eq.f32.partialorder %v2477, inf
      %v3008 = vsel %vm3007, %v2477, %v3006
      %vm3009 = vcmp.eq.f32.partialorder %v2477, 0.0
      %v3010 = vand.u32 %v2477, 2147483648
      %v3011 = vsel %vm3009, %v3010, %v3008
      %v3012 = vrsqrt.pop %v2478
      %v3013 = vmul.f32 %v2478, %v3012
      %vm3014 = vcmp.eq.f32.partialorder %v2478, inf
      %v3015 = vsel %vm3014, %v2478, %v3013
      %vm3016 = vcmp.eq.f32.partialorder %v2478, 0.0
      %v3017 = vand.u32 %v2478, 2147483648
      %v3018 = vsel %vm3016, %v3017, %v3015
      %v3019 = vrsqrt.pop %v2479
      %v3020 = vmul.f32 %v2479, %v3019
      %vm3021 = vcmp.eq.f32.partialorder %v2479, inf
      %v3022 = vsel %vm3021, %v2479, %v3020
      %vm3023 = vcmp.eq.f32.partialorder %v2479, 0.0
      %v3024 = vand.u32 %v2479, 2147483648
      %v3025 = vsel %vm3023, %v3024, %v3022
      %v3026 = vrsqrt.pop %v2480
      %v3027 = vmul.f32 %v2480, %v3026
      %vm3028 = vcmp.eq.f32.partialorder %v2480, inf
      %v3029 = vsel %vm3028, %v2480, %v3027
      %vm3030 = vcmp.eq.f32.partialorder %v2480, 0.0
      %v3031 = vand.u32 %v2480, 2147483648
      %v3032 = vsel %vm3030, %v3031, %v3029
      %v3033 = vrsqrt.pop %v2481
      %v3034 = vmul.f32 %v2481, %v3033
      %vm3035 = vcmp.eq.f32.partialorder %v2481, inf
      %v3036 = vsel %vm3035, %v2481, %v3034
      %vm3037 = vcmp.eq.f32.partialorder %v2481, 0.0
      %v3038 = vand.u32 %v2481, 2147483648
      %v3039 = vsel %vm3037, %v3038, %v3036
      %v3040 = vrsqrt.pop %v2482
      %v3041 = vmul.f32 %v2482, %v3040
      %vm3042 = vcmp.eq.f32.partialorder %v2482, inf
      %v3043 = vsel %vm3042, %v2482, %v3041
      %vm3044 = vcmp.eq.f32.partialorder %v2482, 0.0
      %v3045 = vand.u32 %v2482, 2147483648
      %v3046 = vsel %vm3044, %v3045, %v3043
      %v3047 = vrsqrt.pop %v2483
      %v3048 = vmul.f32 %v2483, %v3047
      %vm3049 = vcmp.eq.f32.partialorder %v2483, inf
      %v3050 = vsel %vm3049, %v2483, %v3048
      %vm3051 = vcmp.eq.f32.partialorder %v2483, 0.0
      %v3052 = vand.u32 %v2483, 2147483648
      %v3053 = vsel %vm3051, %v3052, %v3050
      %v3054 = vrsqrt.pop %v2484
      %v3055 = vmul.f32 %v2484, %v3054
      %vm3056 = vcmp.eq.f32.partialorder %v2484, inf
      %v3057 = vsel %vm3056, %v2484, %v3055
      %vm3058 = vcmp.eq.f32.partialorder %v2484, 0.0
      %v3059 = vand.u32 %v2484, 2147483648
      %v3060 = vsel %vm3058, %v3059, %v3057
      %v3061 = vrsqrt.pop %v2485
      %v3062 = vmul.f32 %v2485, %v3061
      %vm3063 = vcmp.eq.f32.partialorder %v2485, inf
      %v3064 = vsel %vm3063, %v2485, %v3062
      %vm3065 = vcmp.eq.f32.partialorder %v2485, 0.0
      %v3066 = vand.u32 %v2485, 2147483648
      %v3067 = vsel %vm3065, %v3066, %v3064
      %v3068 = vrsqrt.pop %v2486
      %v3069 = vmul.f32 %v2486, %v3068
      %vm3070 = vcmp.eq.f32.partialorder %v2486, inf
      %v3071 = vsel %vm3070, %v2486, %v3069
      %vm3072 = vcmp.eq.f32.partialorder %v2486, 0.0
      %v3073 = vand.u32 %v2486, 2147483648
      %v3074 = vsel %vm3072, %v3073, %v3071
      %v3075 = vrsqrt.pop %v2487
      %v3076 = vmul.f32 %v2487, %v3075
      %vm3077 = vcmp.eq.f32.partialorder %v2487, inf
      %v3078 = vsel %vm3077, %v2487, %v3076
      %vm3079 = vcmp.eq.f32.partialorder %v2487, 0.0
      %v3080 = vand.u32 %v2487, 2147483648
      %v3081 = vsel %vm3079, %v3080, %v3078
      %v3082 = vrsqrt.pop %v2488
      %v3083 = vmul.f32 %v2488, %v3082
      %vm3084 = vcmp.eq.f32.partialorder %v2488, inf
      %v3085 = vsel %vm3084, %v2488, %v3083
      %vm3086 = vcmp.eq.f32.partialorder %v2488, 0.0
      %v3087 = vand.u32 %v2488, 2147483648
      %v3088 = vsel %vm3086, %v3087, %v3085
      %v3089 = vrsqrt.pop %v2489
      %v3090 = vmul.f32 %v2489, %v3089
      %vm3091 = vcmp.eq.f32.partialorder %v2489, inf
      %v3092 = vsel %vm3091, %v2489, %v3090
      %vm3093 = vcmp.eq.f32.partialorder %v2489, 0.0
      %v3094 = vand.u32 %v2489, 2147483648
      %v3095 = vsel %vm3093, %v3094, %v3092
      %v3096 = vrsqrt.pop %v2490
      %v3097 = vmul.f32 %v2490, %v3096
      %vm3098 = vcmp.eq.f32.partialorder %v2490, inf
      %v3099 = vsel %vm3098, %v2490, %v3097
      %vm3100 = vcmp.eq.f32.partialorder %v2490, 0.0
      %v3101 = vand.u32 %v2490, 2147483648
      %v3102 = vsel %vm3100, %v3101, %v3099
      %v3103 = vrsqrt.pop %v2491
      %v3104 = vmul.f32 %v2491, %v3103
      %vm3105 = vcmp.eq.f32.partialorder %v2491, inf
      %v3106 = vsel %vm3105, %v2491, %v3104
      %vm3107 = vcmp.eq.f32.partialorder %v2491, 0.0
      %v3108 = vand.u32 %v2491, 2147483648
      %v3109 = vsel %vm3107, %v3108, %v3106
      %v3110 = vrsqrt.pop %v2492
      %v3111 = vmul.f32 %v2492, %v3110
      %vm3112 = vcmp.eq.f32.partialorder %v2492, inf
      %v3113 = vsel %vm3112, %v2492, %v3111
      %vm3114 = vcmp.eq.f32.partialorder %v2492, 0.0
      %v3115 = vand.u32 %v2492, 2147483648
      %v3116 = vsel %vm3114, %v3115, %v3113
      %v3117 = vrsqrt.pop %v2493
      %v3118 = vmul.f32 %v2493, %v3117
      %vm3119 = vcmp.eq.f32.partialorder %v2493, inf
      %v3120 = vsel %vm3119, %v2493, %v3118
      %vm3121 = vcmp.eq.f32.partialorder %v2493, 0.0
      %v3122 = vand.u32 %v2493, 2147483648
      %v3123 = vsel %vm3121, %v3122, %v3120
      %v3124 = vrsqrt.pop %v2494
      %v3125 = vmul.f32 %v2494, %v3124
      %vm3126 = vcmp.eq.f32.partialorder %v2494, inf
      %v3127 = vsel %vm3126, %v2494, %v3125
      %vm3128 = vcmp.eq.f32.partialorder %v2494, 0.0
      %v3129 = vand.u32 %v2494, 2147483648
      %v3130 = vsel %vm3128, %v3129, %v3127
      %v3131 = vrsqrt.pop %v2495
      %v3132 = vmul.f32 %v2495, %v3131
      %vm3133 = vcmp.eq.f32.partialorder %v2495, inf
      %v3134 = vsel %vm3133, %v2495, %v3132
      %vm3135 = vcmp.eq.f32.partialorder %v2495, 0.0
      %v3136 = vand.u32 %v2495, 2147483648
      %v3137 = vsel %vm3135, %v3136, %v3134
      %v3138 = vrsqrt.pop %v2496
      %v3139 = vmul.f32 %v2496, %v3138
      %vm3140 = vcmp.eq.f32.partialorder %v2496, inf
      %v3141 = vsel %vm3140, %v2496, %v3139
      %vm3142 = vcmp.eq.f32.partialorder %v2496, 0.0
      %v3143 = vand.u32 %v2496, 2147483648
      %v3144 = vsel %vm3142, %v3143, %v3141
      %v3145 = vrsqrt.pop %v2497
      %v3146 = vmul.f32 %v2497, %v3145
      %vm3147 = vcmp.eq.f32.partialorder %v2497, inf
      %v3148 = vsel %vm3147, %v2497, %v3146
      %vm3149 = vcmp.eq.f32.partialorder %v2497, 0.0
      %v3150 = vand.u32 %v2497, 2147483648
      %v3151 = vsel %vm3149, %v3150, %v3148
      %v3152 = vrsqrt.pop %v2498
      %v3153 = vmul.f32 %v2498, %v3152
      %vm3154 = vcmp.eq.f32.partialorder %v2498, inf
      %v3155 = vsel %vm3154, %v2498, %v3153
      %vm3156 = vcmp.eq.f32.partialorder %v2498, 0.0
      %v3157 = vand.u32 %v2498, 2147483648
      %v3158 = vsel %vm3156, %v3157, %v3155
      %v3159 = vrsqrt.pop %v2499
      %v3160 = vmul.f32 %v2499, %v3159
      %vm3161 = vcmp.eq.f32.partialorder %v2499, inf
      %v3162 = vsel %vm3161, %v2499, %v3160
      %vm3163 = vcmp.eq.f32.partialorder %v2499, 0.0
      %v3164 = vand.u32 %v2499, 2147483648
      %v3165 = vsel %vm3163, %v3164, %v3162
      %v3166 = vrsqrt.pop %v2500
      %v3167 = vmul.f32 %v2500, %v3166
      %vm3168 = vcmp.eq.f32.partialorder %v2500, inf
      %v3169 = vsel %vm3168, %v2500, %v3167
      %vm3170 = vcmp.eq.f32.partialorder %v2500, 0.0
      %v3171 = vand.u32 %v2500, 2147483648
      %v3172 = vsel %vm3170, %v3171, %v3169
      %v3173 = vld [vmem:[%s4] sm:$0xff]
      %v3174 = vld [vmem:[%s4 + $0x8] sm:$0xff]
      %v3175 = vld [vmem:[%s4 + $0x10] sm:$0xff]
      %v3176 = vld [vmem:[%s4 + $0x18] sm:$0xff]
      %v3177 = vld [vmem:[%s4 + $0x20] sm:$0xff]
      %v3178 = vld [vmem:[%s4 + $0x28] sm:$0xff]
      %v3179 = vld [vmem:[%s4 + $0x30] sm:$0xff]
      %v3180 = vld [vmem:[%s4 + $0x38] sm:$0xff]
      %v3181 = vld [vmem:[%s4 + $0x40] sm:$0xff]
      %v3182 = vld [vmem:[%s4 + $0x48] sm:$0xff]
      %v3183 = vld [vmem:[%s4 + $0x50] sm:$0xff]
      %v3184 = vld [vmem:[%s4 + $0x58] sm:$0xff]
      %v3185 = vld [vmem:[%s4 + $0x60] sm:$0xff]
      %v3186 = vld [vmem:[%s4 + $0x68] sm:$0xff]
      %v3187 = vld [vmem:[%s4 + $0x70] sm:$0xff]
      %v3188 = vld [vmem:[%s4 + $0x78] sm:$0xff]
      %v3189 = vld [vmem:[%s4 + $0x80] sm:$0xff]
      %v3190 = vld [vmem:[%s4 + $0x88] sm:$0xff]
      %v3191 = vld [vmem:[%s4 + $0x90] sm:$0xff]
      %v3192 = vld [vmem:[%s4 + $0x98] sm:$0xff]
      %v3193 = vld [vmem:[%s4 + $0xa0] sm:$0xff]
      %v3194 = vld [vmem:[%s4 + $0xa8] sm:$0xff]
      %v3195 = vld [vmem:[%s4 + $0xb0] sm:$0xff]
      %v3196 = vld [vmem:[%s4 + $0xb8] sm:$0xff]
      %v3197 = vld [vmem:[%s4 + $0xc0] sm:$0xff]
      %v3198 = vld [vmem:[%s4 + $0xc8] sm:$0xff]
      %v3199 = vld [vmem:[%s4 + $0xd0] sm:$0xff]
      %v3200 = vld [vmem:[%s4 + $0xd8] sm:$0xff]
      %v3201 = vld [vmem:[%s4 + $0xe0] sm:$0xff]
      %v3202 = vld [vmem:[%s4 + $0xe8] sm:$0xff]
      %v3203 = vld [vmem:[%s4 + $0xf0] sm:$0xff]
      %v3204 = vld [vmem:[%s4 + $0xf8] sm:$0xff]
      %v3205 = vld [vmem:[%s5] sm:$0x1]
      %v3207 = vlaneseq
      %v3208 = vshrl.u32 %v3207, 7
      %v3209 = vsub.s32 0, %v3208
      %v3210 = vrot.slane %v3205, %v3209
      %3212 = vmatprep.subr.mxu0 0.0
      %3213 = vmatpush1.msra.mxu0 %v3173
      %3214 = vmatprep.subr.mxu0 0.0
      %3215 = vmatpush1.msra.mxu0 %v3174
      %3216 = vmatprep.subr.mxu0 0.0
      %3217 = vmatpush1.msra.mxu0 %v3175
      %3218 = vmatprep.subr.mxu0 0.0
      %3219 = vmatpush1.msra.mxu0 %v3176
      %3220 = vmatprep.subr.mxu0 0.0
      %3221 = vmatpush1.msra.mxu0 %v3177
      %3222 = vmatprep.subr.mxu0 0.0
      %3223 = vmatpush1.msra.mxu0 %v3178
      %3224 = vmatprep.subr.mxu0 0.0
      %3225 = vmatpush1.msra.mxu0 %v3179
      %3226 = vmatprep.subr.mxu0 0.0
      %3227 = vmatpush1.msra.mxu0 %v3180
      %3228 = vmatprep.subr.mxu0 0.0
      %3229 = vmatpush1.msra.mxu0 %v3181
      %3230 = vmatprep.subr.mxu0 0.0
      %3231 = vmatpush1.msra.mxu0 %v3182
      %3232 = vmatprep.subr.mxu0 0.0
      %3233 = vmatpush1.msra.mxu0 %v3183
      %3234 = vmatprep.subr.mxu0 0.0
      %3235 = vmatpush1.msra.mxu0 %v3184
      %3236 = vmatprep.subr.mxu0 0.0
      %3237 = vmatpush1.msra.mxu0 %v3185
      %3238 = vmatprep.subr.mxu0 0.0
      %3239 = vmatpush1.msra.mxu0 %v3186
      %3240 = vmatprep.subr.mxu0 0.0
      %3241 = vmatpush1.msra.mxu0 %v3187
      %3242 = vmatprep.subr.mxu0 0.0
      %3243 = vmatpush1.msra.mxu0 %v3188
      %3244 = vmatprep.subr.mxu0 0.0
      %3245 = vmatpush1.msra.mxu0 %v3189
      %3246 = vmatprep.subr.mxu0 0.0
      %3247 = vmatpush1.msra.mxu0 %v3190
      %3248 = vmatprep.subr.mxu0 0.0
      %3249 = vmatpush1.msra.mxu0 %v3191
      %3250 = vmatprep.subr.mxu0 0.0
      %3251 = vmatpush1.msra.mxu0 %v3192
      %3252 = vmatprep.subr.mxu0 0.0
      %3253 = vmatpush1.msra.mxu0 %v3193
      %3254 = vmatprep.subr.mxu0 0.0
      %3255 = vmatpush1.msra.mxu0 %v3194
      %3256 = vmatprep.subr.mxu0 0.0
      %3257 = vmatpush1.msra.mxu0 %v3195
      %3258 = vmatprep.subr.mxu0 0.0
      %3259 = vmatpush1.msra.mxu0 %v3196
      %3260 = vmatprep.subr.mxu0 0.0
      %3261 = vmatpush1.msra.mxu0 %v3197
      %3262 = vmatprep.subr.mxu0 0.0
      %3263 = vmatpush1.msra.mxu0 %v3198
      %3264 = vmatprep.subr.mxu0 0.0
      %3265 = vmatpush1.msra.mxu0 %v3199
      %3266 = vmatprep.subr.mxu0 0.0
      %3267 = vmatpush1.msra.mxu0 %v3200
      %3268 = vmatprep.subr.mxu0 0.0
      %3269 = vmatpush1.msra.mxu0 %v3201
      %3270 = vmatprep.subr.mxu0 0.0
      %3271 = vmatpush1.msra.mxu0 %v3202
      %3272 = vmatprep.subr.mxu0 0.0
      %3273 = vmatpush1.msra.mxu0 %v3203
      %3274 = vmatprep.subr.mxu0 0.0
      %3275 = vmatpush1.msra.mxu0 %v3204
      %3276 = vmatprep.mubr.f32.mxu0 %v2514
      %3277 = vmatmul.mubr.f32.gmra.mrb[0].mxu0 %v2507
      %v3278 = vpop.f32.mrb[0].mxu0
      %v3279 = vadd.f32 %v3210, %v3278
      %v3280 = vpop.f32.mrb[0].mxu0
      %3281 = vmatprep.mubr.f32.mxu0 %v2528
      %3282 = vmatmul.mubr.f32.gmra.mrb[0].mxu0 %v2521
      %v3283 = vpop.f32.mrb[0].mxu0
      %v3284 = vadd.f32 %v3210, %v3283
      %v3285 = vpop.f32.mrb[0].mxu0
      %3286 = vmatprep.mubr.f32.mxu0 %v2542
      %3287 = vmatmul.mubr.f32.gmra.mrb[0].mxu0 %v2535
      %v3288 = vpop.f32.mrb[0].mxu0
      %v3289 = vadd.f32 %v3210, %v3288
      %v3290 = vpop.f32.mrb[0].mxu0
      %3291 = vmatprep.mubr.f32.mxu0 %v2556
      %3292 = vmatmul.mubr.f32.gmra.mrb[0].mxu0 %v2549
      %v3293 = vpop.f32.mrb[0].mxu0
      %v3294 = vadd.f32 %v3210, %v3293
      %v3295 = vpop.f32.mrb[0].mxu0
      %3296 = vmatprep.mubr.f32.mxu0 %v2570
      %3297 = vmatmul.mubr.f32.gmra.mrb[0].mxu0 %v2563
      %v3298 = vpop.f32.mrb[0].mxu0
      %v3299 = vadd.f32 %v3210, %v3298
      %v3300 = vpop.f32.mrb[0].mxu0
      %3301 = vmatprep.mubr.f32.mxu0 %v2584
      %3302 = vmatmul.mubr.f32.gmra.mrb[0].mxu0 %v2577
      %v3303 = vpop.f32.mrb[0].mxu0
      %v3304 = vadd.f32 %v3210, %v3303
      %v3305 = vpop.f32.mrb[0].mxu0
      %3306 = vmatprep.mubr.f32.mxu0 %v2598
      %3307 = vmatmul.mubr.f32.gmra.mrb[0].mxu0 %v2591
      %v3308 = vpop.f32.mrb[0].mxu0
      %v3309 = vadd.f32 %v3210, %v3308
      %v3310 = vpop.f32.mrb[0].mxu0
      %3311 = vmatprep.mubr.f32.mxu0 %v2612
      %3312 = vmatmul.mubr.f32.gmra.mrb[0].mxu0 %v2605
      %v3313 = vpop.f32.mrb[0].mxu0
      %v3314 = vadd.f32 %v3210, %v3313
      %v3315 = vpop.f32.mrb[0].mxu0
      %3316 = vmatprep.mubr.f32.mxu0 %v2626
      %3317 = vmatmul.mubr.f32.gmra.mrb[0].mxu0 %v2619
      %v3318 = vpop.f32.mrb[0].mxu0
      %v3319 = vadd.f32 %v3210, %v3318
      %v3320 = vpop.f32.mrb[0].mxu0
      %3321 = vmatprep.mubr.f32.mxu0 %v2640
      %3322 = vmatmul.mubr.f32.gmra.mrb[0].mxu0 %v2633
      %v3323 = vpop.f32.mrb[0].mxu0
      %v3324 = vadd.f32 %v3210, %v3323
      %v3325 = vpop.f32.mrb[0].mxu0
      %3326 = vmatprep.mubr.f32.mxu0 %v2654
      %3327 = vmatmul.mubr.f32.gmra.mrb[0].mxu0 %v2647
      %v3328 = vpop.f32.mrb[0].mxu0
      %v3329 = vadd.f32 %v3210, %v3328
      %v3330 = vpop.f32.mrb[0].mxu0
      %3331 = vmatprep.mubr.f32.mxu0 %v2668
      %3332 = vmatmul.mubr.f32.gmra.mrb[0].mxu0 %v2661
      %v3333 = vpop.f32.mrb[0].mxu0
      %v3334 = vadd.f32 %v3210, %v3333
      %v3335 = vpop.f32.mrb[0].mxu0
      %3336 = vmatprep.mubr.f32.mxu0 %v2682
      %3337 = vmatmul.mubr.f32.gmra.mrb[0].mxu0 %v2675
      %v3338 = vpop.f32.mrb[0].mxu0
      %v3339 = vadd.f32 %v3210, %v3338
      %v3340 = vpop.f32.mrb[0].mxu0
      %3341 = vmatprep.mubr.f32.mxu0 %v2696
      %3342 = vmatmul.mubr.f32.gmra.mrb[0].mxu0 %v2689
      %v3343 = vpop.f32.mrb[0].mxu0
      %v3344 = vadd.f32 %v3210, %v3343
      %v3345 = vpop.f32.mrb[0].mxu0
      %3346 = vmatprep.mubr.f32.mxu0 %v2710
      %3347 = vmatmul.mubr.f32.gmra.mrb[0].mxu0 %v2703
      %v3348 = vpop.f32.mrb[0].mxu0
      %v3349 = vadd.f32 %v3210, %v3348
      %v3350 = vpop.f32.mrb[0].mxu0
      %3351 = vmatprep.mubr.f32.mxu0 %v2724
      %3352 = vmatmul.mubr.f32.gmra.mrb[0].mxu0 %v2717
      %v3353 = vpop.f32.mrb[0].mxu0
      %v3354 = vadd.f32 %v3210, %v3353
      %v3355 = vpop.f32.mrb[0].mxu0
      %3356 = vmatprep.mubr.f32.mxu0 %v2738
      %3357 = vmatmul.mubr.f32.gmra.mrb[0].mxu0 %v2731
      %v3358 = vpop.f32.mrb[0].mxu0
      %v3359 = vadd.f32 %v3210, %v3358
      %v3360 = vpop.f32.mrb[0].mxu0
      %3361 = vmatprep.mubr.f32.mxu0 %v2752
      %3362 = vmatmul.mubr.f32.gmra.mrb[0].mxu0 %v2745
      %v3363 = vpop.f32.mrb[0].mxu0
      %v3364 = vadd.f32 %v3210, %v3363
      %v3365 = vpop.f32.mrb[0].mxu0
      %3366 = vmatprep.mubr.f32.mxu0 %v2766
      %3367 = vmatmul.mubr.f32.gmra.mrb[0].mxu0 %v2759
      %v3368 = vpop.f32.mrb[0].mxu0
      %v3369 = vadd.f32 %v3210, %v3368
      %v3370 = vpop.f32.mrb[0].mxu0
      %3371 = vmatprep.mubr.f32.mxu0 %v2780
      %3372 = vmatmul.mubr.f32.gmra.mrb[0].mxu0 %v2773
      %v3373 = vpop.f32.mrb[0].mxu0
      %v3374 = vadd.f32 %v3210, %v3373
      %v3375 = vpop.f32.mrb[0].mxu0
      %3376 = vmatprep.mubr.f32.mxu0 %v2794
      %3377 = vmatmul.mubr.f32.gmra.mrb[0].mxu0 %v2787
      %v3378 = vpop.f32.mrb[0].mxu0
      %v3379 = vadd.f32 %v3210, %v3378
      %v3380 = vpop.f32.mrb[0].mxu0
      %3381 = vmatprep.mubr.f32.mxu0 %v2808
      %3382 = vmatmul.mubr.f32.gmra.mrb[0].mxu0 %v2801
      %v3383 = vpop.f32.mrb[0].mxu0
      %v3384 = vadd.f32 %v3210, %v3383
      %v3385 = vpop.f32.mrb[0].mxu0
      %3386 = vmatprep.mubr.f32.mxu0 %v2822
      %3387 = vmatmul.mubr.f32.gmra.mrb[0].mxu0 %v2815
      %v3388 = vpop.f32.mrb[0].mxu0
      %v3389 = vadd.f32 %v3210, %v3388
      %v3390 = vpop.f32.mrb[0].mxu0
      %3391 = vmatprep.mubr.f32.mxu0 %v2836
      %3392 = vmatmul.mubr.f32.gmra.mrb[0].mxu0 %v2829
      %v3393 = vpop.f32.mrb[0].mxu0
      %v3394 = vadd.f32 %v3210, %v3393
      %v3395 = vpop.f32.mrb[0].mxu0
      %3396 = vmatprep.mubr.f32.mxu0 %v2850
      %3397 = vmatmul.mubr.f32.gmra.mrb[0].mxu0 %v2843
      %v3398 = vpop.f32.mrb[0].mxu0
      %v3399 = vadd.f32 %v3210, %v3398
      %v3400 = vpop.f32.mrb[0].mxu0
      %3401 = vmatprep.mubr.f32.mxu0 %v2864
      %3402 = vmatmul.mubr.f32.gmra.mrb[0].mxu0 %v2857
      %v3403 = vpop.f32.mrb[0].mxu0
      %v3404 = vadd.f32 %v3210, %v3403
      %v3405 = vpop.f32.mrb[0].mxu0
      %3406 = vmatprep.mubr.f32.mxu0 %v2878
      %3407 = vmatmul.mubr.f32.gmra.mrb[0].mxu0 %v2871
      %v3408 = vpop.f32.mrb[0].mxu0
      %v3409 = vadd.f32 %v3210, %v3408
      %v3410 = vpop.f32.mrb[0].mxu0
      %3411 = vmatprep.mubr.f32.mxu0 %v2892
      %3412 = vmatmul.mubr.f32.gmra.mrb[0].mxu0 %v2885
      %v3413 = vpop.f32.mrb[0].mxu0
      %v3414 = vadd.f32 %v3210, %v3413
      %v3415 = vpop.f32.mrb[0].mxu0
      %3416 = vmatprep.mubr.f32.mxu0 %v2906
      %3417 = vmatmul.mubr.f32.gmra.mrb[0].mxu0 %v2899
      %v3418 = vpop.f32.mrb[0].mxu0
      %v3419 = vadd.f32 %v3210, %v3418
      %v3420 = vpop.f32.mrb[0].mxu0
      %3421 = vmatprep.mubr.f32.mxu0 %v2920
      %3422 = vmatmul.mubr.f32.gmra.mrb[0].mxu0 %v2913
      %v3423 = vpop.f32.mrb[0].mxu0
      %v3424 = vadd.f32 %v3210, %v3423
      %v3425 = vpop.f32.mrb[0].mxu0
      %3426 = vmatprep.mubr.f32.mxu0 %v2934
      %3427 = vmatmul.mubr.f32.gmra.mrb[0].mxu0 %v2927
      %v3428 = vpop.f32.mrb[0].mxu0
      %v3429 = vadd.f32 %v3210, %v3428
      %v3430 = vpop.f32.mrb[0].mxu0
      %3431 = vmatprep.mubr.f32.mxu0 %v2948
      %3432 = vmatmul.mubr.f32.gmra.mrb[0].mxu0 %v2941
      %v3433 = vpop.f32.mrb[0].mxu0
      %v3434 = vadd.f32 %v3210, %v3433
      %v3435 = vpop.f32.mrb[0].mxu0
      %3436 = vmatprep.mubr.f32.mxu0 %v2962
      %3437 = vmatmul.mubr.f32.gmra.mrb[0].mxu0 %v2955
      %v3438 = vpop.f32.mrb[0].mxu0
      %v3439 = vadd.f32 %v3210, %v3438
      %v3440 = vpop.f32.mrb[0].mxu0
      %3441 = vmatprep.mubr.f32.mxu0 %v2976
      %3442 = vmatmul.mubr.f32.gmra.mrb[0].mxu0 %v2969
      %v3443 = vpop.f32.mrb[0].mxu0
      %v3444 = vadd.f32 %v3210, %v3443
      %v3445 = vpop.f32.mrb[0].mxu0
      %3446 = vmatprep.mubr.f32.mxu0 %v2990
      %3447 = vmatmul.mubr.f32.gmra.mrb[0].mxu0 %v2983
      %v3448 = vpop.f32.mrb[0].mxu0
      %v3449 = vadd.f32 %v3210, %v3448
      %v3450 = vpop.f32.mrb[0].mxu0
      %3451 = vmatprep.mubr.f32.mxu0 %v3004
      %3452 = vmatmul.mubr.f32.gmra.mrb[0].mxu0 %v2997
      %v3453 = vpop.f32.mrb[0].mxu0
      %v3454 = vadd.f32 %v3210, %v3453
      %v3455 = vpop.f32.mrb[0].mxu0
      %3456 = vmatprep.mubr.f32.mxu0 %v3018
      %3457 = vmatmul.mubr.f32.gmra.mrb[0].mxu0 %v3011
      %v3458 = vpop.f32.mrb[0].mxu0
      %v3459 = vadd.f32 %v3210, %v3458
      %v3460 = vpop.f32.mrb[0].mxu0
      %3461 = vmatprep.mubr.f32.mxu0 %v3032
      %3462 = vmatmul.mubr.f32.gmra.mrb[0].mxu0 %v3025
      %v3463 = vpop.f32.mrb[0].mxu0
      %v3464 = vadd.f32 %v3210, %v3463
      %v3465 = vpop.f32.mrb[0].mxu0
      %3466 = vmatprep.mubr.f32.mxu0 %v3046
      %3467 = vmatmul.mubr.f32.gmra.mrb[0].mxu0 %v3039
      %v3468 = vpop.f32.mrb[0].mxu0
      %v3469 = vadd.f32 %v3210, %v3468
      %v3470 = vpop.f32.mrb[0].mxu0
      %3471 = vmatprep.mubr.f32.mxu0 %v3060
      %3472 = vmatmul.mubr.f32.gmra.mrb[0].mxu0 %v3053
      %v3473 = vpop.f32.mrb[0].mxu0
      %v3474 = vadd.f32 %v3210, %v3473
      %v3475 = vpop.f32.mrb[0].mxu0
      %3476 = vmatprep.mubr.f32.mxu0 %v3074
      %3477 = vmatmul.mubr.f32.gmra.mrb[0].mxu0 %v3067
      %v3478 = vpop.f32.mrb[0].mxu0
      %v3479 = vadd.f32 %v3210, %v3478
      %v3480 = vpop.f32.mrb[0].mxu0
      %3481 = vmatprep.mubr.f32.mxu0 %v3088
      %3482 = vmatmul.mubr.f32.gmra.mrb[0].mxu0 %v3081
      %v3483 = vpop.f32.mrb[0].mxu0
      %v3484 = vadd.f32 %v3210, %v3483
      %v3485 = vpop.f32.mrb[0].mxu0
      %3486 = vmatprep.mubr.f32.mxu0 %v3102
      %3487 = vmatmul.mubr.f32.gmra.mrb[0].mxu0 %v3095
      %v3488 = vpop.f32.mrb[0].mxu0
      %v3489 = vadd.f32 %v3210, %v3488
      %v3490 = vpop.f32.mrb[0].mxu0
      %3491 = vmatprep.mubr.f32.mxu0 %v3116
      %3492 = vmatmul.mubr.f32.gmra.mrb[0].mxu0 %v3109
      %v3493 = vpop.f32.mrb[0].mxu0
      %v3494 = vadd.f32 %v3210, %v3493
      %v3495 = vpop.f32.mrb[0].mxu0
      %3496 = vmatprep.mubr.f32.mxu0 %v3130
      %3497 = vmatmul.mubr.f32.gmra.mrb[0].mxu0 %v3123
      %v3498 = vpop.f32.mrb[0].mxu0
      %v3499 = vadd.f32 %v3210, %v3498
      %v3500 = vpop.f32.mrb[0].mxu0
      %3501 = vmatprep.mubr.f32.mxu0 %v3144
      %3502 = vmatmul.mubr.f32.gmra.mrb[0].mxu0 %v3137
      %v3503 = vpop.f32.mrb[0].mxu0
      %v3504 = vadd.f32 %v3210, %v3503
      %v3505 = vpop.f32.mrb[0].mxu0
      %3506 = vmatprep.mubr.f32.mxu0 %v3158
      %3507 = vmatmul.mubr.f32.gmra.mrb[0].mxu0 %v3151
      %v3508 = vpop.f32.mrb[0].mxu0
      %v3509 = vadd.f32 %v3210, %v3508
      %v3510 = vpop.f32.mrb[0].mxu0
      %3511 = vmatprep.mubr.f32.mxu0 %v3172
      %3512 = vmatmul.mubr.f32.gmra.mrb[0].mxu0 %v3165
      %v3513 = vpop.f32.mrb[0].mxu0
      %v3514 = vadd.f32 %v3210, %v3513
      %v3515 = vpop.f32.mrb[0].mxu0
      %3516 = vdwg.mxu0
      %v3517 = vtanh.pop %v3279
      %v3518 = vtanh.pop %v3284
      %v3519 = vtanh.pop %v3289
      %v3520 = vtanh.pop %v3294
      %v3521 = vtanh.pop %v3299
      %v3522 = vtanh.pop %v3304
      %v3523 = vtanh.pop %v3309
      %v3524 = vtanh.pop %v3314
      %v3525 = vtanh.pop %v3319
      %v3526 = vtanh.pop %v3324
      %v3527 = vtanh.pop %v3329
      %v3528 = vtanh.pop %v3334
      %v3529 = vtanh.pop %v3339
      %v3530 = vtanh.pop %v3344
      %v3531 = vtanh.pop %v3349
      %v3532 = vtanh.pop %v3354
      %v3533 = vtanh.pop %v3359
      %v3534 = vtanh.pop %v3364
      %v3535 = vtanh.pop %v3369
      %v3536 = vtanh.pop %v3374
      %v3537 = vtanh.pop %v3379
      %v3538 = vtanh.pop %v3384
      %v3539 = vtanh.pop %v3389
      %v3540 = vtanh.pop %v3394
      %v3541 = vtanh.pop %v3399
      %v3542 = vtanh.pop %v3404
      %v3543 = vtanh.pop %v3409
      %v3544 = vtanh.pop %v3414
      %v3545 = vtanh.pop %v3419
      %v3546 = vtanh.pop %v3424
      %v3547 = vtanh.pop %v3429
      %v3548 = vtanh.pop %v3434
      %v3549 = vtanh.pop %v3439
      %v3550 = vtanh.pop %v3444
      %v3551 = vtanh.pop %v3449
      %v3552 = vtanh.pop %v3454
      %v3553 = vtanh.pop %v3459
      %v3554 = vtanh.pop %v3464
      %v3555 = vtanh.pop %v3469
      %v3556 = vtanh.pop %v3474
      %v3557 = vtanh.pop %v3479
      %v3558 = vtanh.pop %v3484
      %v3559 = vtanh.pop %v3489
      %v3560 = vtanh.pop %v3494
      %v3561 = vtanh.pop %v3499
      %v3562 = vtanh.pop %v3504
      %v3563 = vtanh.pop %v3509
      %v3564 = vtanh.pop %v3514
      %v3565 = vld [vmem:[%s6] sm:$0xff]
      %v3566 = vld [vmem:[%s6 + $0x8] sm:$0xff]
      %v3567 = vld [vmem:[%s6 + $0x10] sm:$0xff]
      %v3568 = vld [vmem:[%s6 + $0x18] sm:$0xff]
      %v3569 = vld [vmem:[%s6 + $0x20] sm:$0xff]
      %v3570 = vld [vmem:[%s6 + $0x28] sm:$0xff]
      %v3571 = vld [vmem:[%s6 + $0x30] sm:$0xff]
      %v3572 = vld [vmem:[%s6 + $0x38] sm:$0xff]
      %v3573 = vld [vmem:[%s6 + $0x40] sm:$0xff]
      %v3574 = vld [vmem:[%s6 + $0x48] sm:$0xff]
      %v3575 = vld [vmem:[%s6 + $0x50] sm:$0xff]
      %v3576 = vld [vmem:[%s6 + $0x58] sm:$0xff]
      %v3577 = vld [vmem:[%s6 + $0x60] sm:$0xff]
      %v3578 = vld [vmem:[%s6 + $0x68] sm:$0xff]
      %v3579 = vld [vmem:[%s6 + $0x70] sm:$0xff]
      %v3580 = vld [vmem:[%s6 + $0x78] sm:$0xff]
      %v3581 = vld [vmem:[%s6 + $0x80] sm:$0xff]
      %v3582 = vld [vmem:[%s6 + $0x88] sm:$0xff]
      %v3583 = vld [vmem:[%s6 + $0x90] sm:$0xff]
      %v3584 = vld [vmem:[%s6 + $0x98] sm:$0xff]
      %v3585 = vld [vmem:[%s6 + $0xa0] sm:$0xff]
      %v3586 = vld [vmem:[%s6 + $0xa8] sm:$0xff]
      %v3587 = vld [vmem:[%s6 + $0xb0] sm:$0xff]
      %v3588 = vld [vmem:[%s6 + $0xb8] sm:$0xff]
      %v3589 = vld [vmem:[%s6 + $0xc0] sm:$0xff]
      %v3590 = vld [vmem:[%s6 + $0xc8] sm:$0xff]
      %v3591 = vld [vmem:[%s6 + $0xd0] sm:$0xff]
      %v3592 = vld [vmem:[%s6 + $0xd8] sm:$0xff]
      %v3593 = vld [vmem:[%s6 + $0xe0] sm:$0xff]
      %v3594 = vld [vmem:[%s6 + $0xe8] sm:$0xff]
      %v3595 = vld [vmem:[%s6 + $0xf0] sm:$0xff]
      %v3596 = vld [vmem:[%s6 + $0xf8] sm:$0xff]
      %v3597 = vld [vmem:[%s6 + $0x100] sm:$0xff]
      %v3598 = vld [vmem:[%s6 + $0x108] sm:$0xff]
      %v3599 = vld [vmem:[%s6 + $0x110] sm:$0xff]
      %v3600 = vld [vmem:[%s6 + $0x118] sm:$0xff]
      %v3601 = vld [vmem:[%s6 + $0x120] sm:$0xff]
      %v3602 = vld [vmem:[%s6 + $0x128] sm:$0xff]
      %v3603 = vld [vmem:[%s6 + $0x130] sm:$0xff]
      %v3604 = vld [vmem:[%s6 + $0x138] sm:$0xff]
      %v3605 = vld [vmem:[%s6 + $0x140] sm:$0xff]
      %v3606 = vld [vmem:[%s6 + $0x148] sm:$0xff]
      %v3607 = vld [vmem:[%s6 + $0x150] sm:$0xff]
      %v3608 = vld [vmem:[%s6 + $0x158] sm:$0xff]
      %v3609 = vld [vmem:[%s6 + $0x160] sm:$0xff]
      %v3610 = vld [vmem:[%s6 + $0x168] sm:$0xff]
      %v3611 = vld [vmem:[%s6 + $0x170] sm:$0xff]
      %v3612 = vld [vmem:[%s6 + $0x178] sm:$0xff]
      %v3613 = vld [vmem:[%s6 + $0x180] sm:$0xff]
      %v3614 = vld [vmem:[%s6 + $0x188] sm:$0xff]
      %v3615 = vld [vmem:[%s6 + $0x190] sm:$0xff]
      %v3616 = vld [vmem:[%s6 + $0x198] sm:$0xff]
      %v3617 = vld [vmem:[%s6 + $0x1a0] sm:$0xff]
      %v3618 = vld [vmem:[%s6 + $0x1a8] sm:$0xff]
      %v3619 = vld [vmem:[%s6 + $0x1b0] sm:$0xff]
      %v3620 = vld [vmem:[%s6 + $0x1b8] sm:$0xff]
      %v3621 = vld [vmem:[%s6 + $0x1c0] sm:$0xff]
      %v3622 = vld [vmem:[%s6 + $0x1c8] sm:$0xff]
      %v3623 = vld [vmem:[%s6 + $0x1d0] sm:$0xff]
      %v3624 = vld [vmem:[%s6 + $0x1d8] sm:$0xff]
      %v3625 = vld [vmem:[%s6 + $0x1e0] sm:$0xff]
      %v3626 = vld [vmem:[%s6 + $0x1e8] sm:$0xff]
      %v3627 = vld [vmem:[%s6 + $0x1f0] sm:$0xff]
      %v3628 = vld [vmem:[%s6 + $0x1f8] sm:$0xff]
      %v3629 = vld [vmem:[%s7] sm:$0xf]
      %v3631 = vlaneseq
      %v3632 = vshrl.u32 %v3631, 7
      %v3633 = vsub.s32 0, %v3632
      %v3634 = vrot.slane %v3629, %v3633
      %v3635 = vlaneseq
      %v3636 = vshrl.u32 %v3635, 7
      %v3637 = vsub.s32 1, %v3636
      %v3638 = vrot.slane %v3629, %v3637
      %v3639 = vlaneseq
      %v3640 = vshrl.u32 %v3639, 7
      %v3641 = vsub.s32 2, %v3640
      %v3642 = vrot.slane %v3629, %v3641
      %v3643 = vlaneseq
      %v3644 = vshrl.u32 %v3643, 7
      %v3645 = vsub.s32 3, %v3644
      %v3646 = vrot.slane %v3629, %v3645
      %3651 = vmatprep.subr.mxu0 %v3566
      %3652 = vmatpush1.msra.mxu0 %v3565
      %3653 = vmatprep.subr.mxu0 %v3570
      %3654 = vmatpush1.msra.mxu0 %v3569
      %3655 = vmatprep.subr.mxu0 %v3574
      %3656 = vmatpush1.msra.mxu0 %v3573
      %3657 = vmatprep.subr.mxu0 %v3578
      %3658 = vmatpush1.msra.mxu0 %v3577
      %3659 = vmatprep.subr.mxu0 %v3582
      %3660 = vmatpush1.msra.mxu0 %v3581
      %3661 = vmatprep.subr.mxu0 %v3586
      %3662 = vmatpush1.msra.mxu0 %v3585
      %3663 = vmatprep.subr.mxu0 %v3590
      %3664 = vmatpush1.msra.mxu0 %v3589
      %3665 = vmatprep.subr.mxu0 %v3594
      %3666 = vmatpush1.msra.mxu0 %v3593
      %3667 = vmatprep.subr.mxu0 %v3598
      %3668 = vmatpush1.msra.mxu0 %v3597
      %3669 = vmatprep.subr.mxu0 %v3602
      %3670 = vmatpush1.msra.mxu0 %v3601
      %3671 = vmatprep.subr.mxu0 %v3606
      %3672 = vmatpush1.msra.mxu0 %v3605
      %3673 = vmatprep.subr.mxu0 %v3610
      %3674 = vmatpush1.msra.mxu0 %v3609
      %3675 = vmatprep.subr.mxu0 %v3614
      %3676 = vmatpush1.msra.mxu0 %v3613
      %3677 = vmatprep.subr.mxu0 %v3618
      %3678 = vmatpush1.msra.mxu0 %v3617
      %3679 = vmatprep.subr.mxu0 %v3622
      %3680 = vmatpush1.msra.mxu0 %v3621
      %3681 = vmatprep.subr.mxu0 %v3626
      %3682 = vmatpush1.msra.mxu0 %v3625
      %3683 = vmatprep.subr.mxu0 0.0
      %3684 = vmatpush1.msra.mxu0 0.0
      %3685 = vmatprep.subr.mxu0 0.0
      %3686 = vmatpush1.msra.mxu0 0.0
      %3687 = vmatprep.subr.mxu0 0.0
      %3688 = vmatpush1.msra.mxu0 0.0
      %3689 = vmatprep.subr.mxu0 0.0
      %3690 = vmatpush1.msra.mxu0 0.0
      %3691 = vmatprep.subr.mxu0 0.0
      %3692 = vmatpush1.msra.mxu0 0.0
      %3693 = vmatprep.subr.mxu0 0.0
      %3694 = vmatpush1.msra.mxu0 0.0
      %3695 = vmatprep.subr.mxu0 0.0
      %3696 = vmatpush1.msra.mxu0 0.0
      %3697 = vmatprep.subr.mxu0 0.0
      %3698 = vmatpush1.msra.mxu0 0.0
      %3699 = vmatprep.subr.mxu0 0.0
      %3700 = vmatpush1.msra.mxu0 0.0
      %3701 = vmatprep.subr.mxu0 0.0
      %3702 = vmatpush1.msra.mxu0 0.0
      %3703 = vmatprep.subr.mxu0 0.0
      %3704 = vmatpush1.msra.mxu0 0.0
      %3705 = vmatprep.subr.mxu0 0.0
      %3706 = vmatpush1.msra.mxu0 0.0
      %3707 = vmatprep.subr.mxu0 0.0
      %3708 = vmatpush1.msra.mxu0 0.0
      %3709 = vmatprep.subr.mxu0 0.0
      %3710 = vmatpush1.msra.mxu0 0.0
      %3711 = vmatprep.subr.mxu0 0.0
      %3712 = vmatpush1.msra.mxu0 0.0
      %3713 = vmatprep.subr.mxu0 0.0
      %3714 = vmatpush1.msra.mxu0 0.0
      %3715 = vmatprep.mubr.f32.mxu0 0.0
      %3716 = vmatmul.mubr.f32.gmra.mrb[0].mxu0 %v3517
      %v3717 = vpop.f32.mrb[0].mxu0
      %v3718 = vadd.f32 %v3634, %v3717
      %v3719 = vpop.f32.mrb[0].mxu0
      %v3720 = vadd.f32 %v3638, %v3719
      %3721 = vmatprep.mubr.f32.mxu0 0.0
      %3722 = vmatmul.mubr.f32.gmra.mrb[0].mxu0 %v3518
      %v3723 = vpop.f32.mrb[0].mxu0
      %v3724 = vadd.f32 %v3634, %v3723
      %v3725 = vpop.f32.mrb[0].mxu0
      %v3726 = vadd.f32 %v3638, %v3725
      %3727 = vmatprep.mubr.f32.mxu0 0.0
      %3728 = vmatmul.mubr.f32.gmra.mrb[0].mxu0 %v3519
      %v3729 = vpop.f32.mrb[0].mxu0
      %v3730 = vadd.f32 %v3634, %v3729
      %v3731 = vpop.f32.mrb[0].mxu0
      %v3732 = vadd.f32 %v3638, %v3731
      %3733 = vmatprep.mubr.f32.mxu0 0.0
      %3734 = vmatmul.mubr.f32.gmra.mrb[0].mxu0 %v3520
      %v3735 = vpop.f32.mrb[0].mxu0
      %v3736 = vadd.f32 %v3634, %v3735
      %v3737 = vpop.f32.mrb[0].mxu0
      %v3738 = vadd.f32 %v3638, %v3737
      %3739 = vmatprep.mubr.f32.mxu0 0.0
      %3740 = vmatmul.mubr.f32.gmra.mrb[0].mxu0 %v3521
      %v3741 = vpop.f32.mrb[0].mxu0
      %v3742 = vadd.f32 %v3634, %v3741
      %v3743 = vpop.f32.mrb[0].mxu0
      %v3744 = vadd.f32 %v3638, %v3743
      %3745 = vmatprep.mubr.f32.mxu0 0.0
      %3746 = vmatmul.mubr.f32.gmra.mrb[0].mxu0 %v3522
      %v3747 = vpop.f32.mrb[0].mxu0
      %v3748 = vadd.f32 %v3634, %v3747
      %v3749 = vpop.f32.mrb[0].mxu0
      %v3750 = vadd.f32 %v3638, %v3749
      %3751 = vmatprep.mubr.f32.mxu0 0.0
      %3752 = vmatmul.mubr.f32.gmra.mrb[0].mxu0 %v3523
      %v3753 = vpop.f32.mrb[0].mxu0
      %v3754 = vadd.f32 %v3634, %v3753
      %v3755 = vpop.f32.mrb[0].mxu0
      %v3756 = vadd.f32 %v3638, %v3755
      %3757 = vmatprep.mubr.f32.mxu0 0.0
      %3758 = vmatmul.mubr.f32.gmra.mrb[0].mxu0 %v3524
      %v3759 = vpop.f32.mrb[0].mxu0
      %v3760 = vadd.f32 %v3634, %v3759
      %v3761 = vpop.f32.mrb[0].mxu0
      %v3762 = vadd.f32 %v3638, %v3761
      %3763 = vmatprep.mubr.f32.mxu0 0.0
      %3764 = vmatmul.mubr.f32.gmra.mrb[0].mxu0 %v3525
      %v3765 = vpop.f32.mrb[0].mxu0
      %v3766 = vadd.f32 %v3634, %v3765
      %v3767 = vpop.f32.mrb[0].mxu0
      %v3768 = vadd.f32 %v3638, %v3767
      %3769 = vmatprep.mubr.f32.mxu0 0.0
      %3770 = vmatmul.mubr.f32.gmra.mrb[0].mxu0 %v3526
      %v3771 = vpop.f32.mrb[0].mxu0
      %v3772 = vadd.f32 %v3634, %v3771
      %v3773 = vpop.f32.mrb[0].mxu0
      %v3774 = vadd.f32 %v3638, %v3773
      %3775 = vmatprep.mubr.f32.mxu0 0.0
      %3776 = vmatmul.mubr.f32.gmra.mrb[0].mxu0 %v3527
      %v3777 = vpop.f32.mrb[0].mxu0
      %v3778 = vadd.f32 %v3634, %v3777
      %v3779 = vpop.f32.mrb[0].mxu0
      %v3780 = vadd.f32 %v3638, %v3779
      %3781 = vmatprep.mubr.f32.mxu0 0.0
      %3782 = vmatmul.mubr.f32.gmra.mrb[0].mxu0 %v3528
      %v3783 = vpop.f32.mrb[0].mxu0
      %v3784 = vadd.f32 %v3634, %v3783
      %v3785 = vpop.f32.mrb[0].mxu0
      %v3786 = vadd.f32 %v3638, %v3785
      %3787 = vmatprep.mubr.f32.mxu0 0.0
      %3788 = vmatmul.mubr.f32.gmra.mrb[0].mxu0 %v3529
      %v3789 = vpop.f32.mrb[0].mxu0
      %v3790 = vadd.f32 %v3634, %v3789
      %v3791 = vpop.f32.mrb[0].mxu0
      %v3792 = vadd.f32 %v3638, %v3791
      %3793 = vmatprep.mubr.f32.mxu0 0.0
      %3794 = vmatmul.mubr.f32.gmra.mrb[0].mxu0 %v3530
      %v3795 = vpop.f32.mrb[0].mxu0
      %v3796 = vadd.f32 %v3634, %v3795
      %v3797 = vpop.f32.mrb[0].mxu0
      %v3798 = vadd.f32 %v3638, %v3797
      %3799 = vmatprep.mubr.f32.mxu0 0.0
      %3800 = vmatmul.mubr.f32.gmra.mrb[0].mxu0 %v3531
      %v3801 = vpop.f32.mrb[0].mxu0
      %v3802 = vadd.f32 %v3634, %v3801
      %v3803 = vpop.f32.mrb[0].mxu0
      %v3804 = vadd.f32 %v3638, %v3803
      %3805 = vmatprep.mubr.f32.mxu0 0.0
      %3806 = vmatmul.mubr.f32.gmra.mrb[0].mxu0 %v3532
      %v3807 = vpop.f32.mrb[0].mxu0
      %v3808 = vadd.f32 %v3634, %v3807
      %v3809 = vpop.f32.mrb[0].mxu0
      %v3810 = vadd.f32 %v3638, %v3809
      %3811 = vmatprep.mubr.f32.mxu0 0.0
      %3812 = vmatmul.mubr.f32.gmra.mrb[0].mxu0 %v3533
      %v3813 = vpop.f32.mrb[0].mxu0
      %v3814 = vadd.f32 %v3634, %v3813
      %v3815 = vpop.f32.mrb[0].mxu0
      %v3816 = vadd.f32 %v3638, %v3815
      %3817 = vmatprep.mubr.f32.mxu0 0.0
      %3818 = vmatmul.mubr.f32.gmra.mrb[0].mxu0 %v3534
      %v3819 = vpop.f32.mrb[0].mxu0
      %v3820 = vadd.f32 %v3634, %v3819
      %v3821 = vpop.f32.mrb[0].mxu0
      %v3822 = vadd.f32 %v3638, %v3821
      %3823 = vmatprep.mubr.f32.mxu0 0.0
      %3824 = vmatmul.mubr.f32.gmra.mrb[0].mxu0 %v3535
      %v3825 = vpop.f32.mrb[0].mxu0
      %v3826 = vadd.f32 %v3634, %v3825
      %v3827 = vpop.f32.mrb[0].mxu0
      %v3828 = vadd.f32 %v3638, %v3827
      %3829 = vmatprep.mubr.f32.mxu0 0.0
      %3830 = vmatmul.mubr.f32.gmra.mrb[0].mxu0 %v3536
      %v3831 = vpop.f32.mrb[0].mxu0
      %v3832 = vadd.f32 %v3634, %v3831
      %v3833 = vpop.f32.mrb[0].mxu0
      %v3834 = vadd.f32 %v3638, %v3833
      %3835 = vmatprep.mubr.f32.mxu0 0.0
      %3836 = vmatmul.mubr.f32.gmra.mrb[0].mxu0 %v3537
      %v3837 = vpop.f32.mrb[0].mxu0
      %v3838 = vadd.f32 %v3634, %v3837
      %v3839 = vpop.f32.mrb[0].mxu0
      %v3840 = vadd.f32 %v3638, %v3839
      %3841 = vmatprep.mubr.f32.mxu0 0.0
      %3842 = vmatmul.mubr.f32.gmra.mrb[0].mxu0 %v3538
      %v3843 = vpop.f32.mrb[0].mxu0
      %v3844 = vadd.f32 %v3634, %v3843
      %v3845 = vpop.f32.mrb[0].mxu0
      %v3846 = vadd.f32 %v3638, %v3845
      %3847 = vmatprep.mubr.f32.mxu0 0.0
      %3848 = vmatmul.mubr.f32.gmra.mrb[0].mxu0 %v3539
      %v3849 = vpop.f32.mrb[0].mxu0
      %v3850 = vadd.f32 %v3634, %v3849
      %v3851 = vpop.f32.mrb[0].mxu0
      %v3852 = vadd.f32 %v3638, %v3851
      %3853 = vmatprep.mubr.f32.mxu0 0.0
      %3854 = vmatmul.mubr.f32.gmra.mrb[0].mxu0 %v3540
      %v3855 = vpop.f32.mrb[0].mxu0
      %v3856 = vadd.f32 %v3634, %v3855
      %v3857 = vpop.f32.mrb[0].mxu0
      %v3858 = vadd.f32 %v3638, %v3857
      %3859 = vmatprep.mubr.f32.mxu0 0.0
      %3860 = vmatmul.mubr.f32.gmra.mrb[0].mxu0 %v3541
      %v3861 = vpop.f32.mrb[0].mxu0
      %v3862 = vadd.f32 %v3634, %v3861
      %v3863 = vpop.f32.mrb[0].mxu0
      %v3864 = vadd.f32 %v3638, %v3863
      %3865 = vmatprep.mubr.f32.mxu0 0.0
      %3866 = vmatmul.mubr.f32.gmra.mrb[0].mxu0 %v3542
      %v3867 = vpop.f32.mrb[0].mxu0
      %v3868 = vadd.f32 %v3634, %v3867
      %v3869 = vpop.f32.mrb[0].mxu0
      %v3870 = vadd.f32 %v3638, %v3869
      %3871 = vmatprep.mubr.f32.mxu0 0.0
      %3872 = vmatmul.mubr.f32.gmra.mrb[0].mxu0 %v3543
      %v3873 = vpop.f32.mrb[0].mxu0
      %v3874 = vadd.f32 %v3634, %v3873
      %v3875 = vpop.f32.mrb[0].mxu0
      %v3876 = vadd.f32 %v3638, %v3875
      %3877 = vmatprep.mubr.f32.mxu0 0.0
      %3878 = vmatmul.mubr.f32.gmra.mrb[0].mxu0 %v3544
      %v3879 = vpop.f32.mrb[0].mxu0
      %v3880 = vadd.f32 %v3634, %v3879
      %v3881 = vpop.f32.mrb[0].mxu0
      %v3882 = vadd.f32 %v3638, %v3881
      %3883 = vmatprep.mubr.f32.mxu0 0.0
      %3884 = vmatmul.mubr.f32.gmra.mrb[0].mxu0 %v3545
      %v3885 = vpop.f32.mrb[0].mxu0
      %v3886 = vadd.f32 %v3634, %v3885
      %v3887 = vpop.f32.mrb[0].mxu0
      %v3888 = vadd.f32 %v3638, %v3887
      %3889 = vmatprep.mubr.f32.mxu0 0.0
      %3890 = vmatmul.mubr.f32.gmra.mrb[0].mxu0 %v3546
      %v3891 = vpop.f32.mrb[0].mxu0
      %v3892 = vadd.f32 %v3634, %v3891
      %v3893 = vpop.f32.mrb[0].mxu0
      %v3894 = vadd.f32 %v3638, %v3893
      %3895 = vmatprep.mubr.f32.mxu0 0.0
      %3896 = vmatmul.mubr.f32.gmra.mrb[0].mxu0 %v3547
      %v3897 = vpop.f32.mrb[0].mxu0
      %v3898 = vadd.f32 %v3634, %v3897
      %v3899 = vpop.f32.mrb[0].mxu0
      %v3900 = vadd.f32 %v3638, %v3899
      %3901 = vmatprep.mubr.f32.mxu0 0.0
      %3902 = vmatmul.mubr.f32.gmra.mrb[0].mxu0 %v3548
      %v3903 = vpop.f32.mrb[0].mxu0
      %v3904 = vadd.f32 %v3634, %v3903
      %v3905 = vpop.f32.mrb[0].mxu0
      %v3906 = vadd.f32 %v3638, %v3905
      %3907 = vmatprep.mubr.f32.mxu0 0.0
      %3908 = vmatmul.mubr.f32.gmra.mrb[0].mxu0 %v3549
      %v3909 = vpop.f32.mrb[0].mxu0
      %v3910 = vadd.f32 %v3634, %v3909
      %v3911 = vpop.f32.mrb[0].mxu0
      %v3912 = vadd.f32 %v3638, %v3911
      %3913 = vmatprep.mubr.f32.mxu0 0.0
      %3914 = vmatmul.mubr.f32.gmra.mrb[0].mxu0 %v3550
      %v3915 = vpop.f32.mrb[0].mxu0
      %v3916 = vadd.f32 %v3634, %v3915
      %v3917 = vpop.f32.mrb[0].mxu0
      %v3918 = vadd.f32 %v3638, %v3917
      %3919 = vmatprep.mubr.f32.mxu0 0.0
      %3920 = vmatmul.mubr.f32.gmra.mrb[0].mxu0 %v3551
      %v3921 = vpop.f32.mrb[0].mxu0
      %v3922 = vadd.f32 %v3634, %v3921
      %v3923 = vpop.f32.mrb[0].mxu0
      %v3924 = vadd.f32 %v3638, %v3923
      %3925 = vmatprep.mubr.f32.mxu0 0.0
      %3926 = vmatmul.mubr.f32.gmra.mrb[0].mxu0 %v3552
      %v3927 = vpop.f32.mrb[0].mxu0
      %v3928 = vadd.f32 %v3634, %v3927
      %v3929 = vpop.f32.mrb[0].mxu0
      %v3930 = vadd.f32 %v3638, %v3929
      %3931 = vmatprep.mubr.f32.mxu0 0.0
      %3932 = vmatmul.mubr.f32.gmra.mrb[0].mxu0 %v3553
      %v3933 = vpop.f32.mrb[0].mxu0
      %v3934 = vadd.f32 %v3634, %v3933
      %v3935 = vpop.f32.mrb[0].mxu0
      %v3936 = vadd.f32 %v3638, %v3935
      %3937 = vmatprep.mubr.f32.mxu0 0.0
      %3938 = vmatmul.mubr.f32.gmra.mrb[0].mxu0 %v3554
      %v3939 = vpop.f32.mrb[0].mxu0
      %v3940 = vadd.f32 %v3634, %v3939
      %v3941 = vpop.f32.mrb[0].mxu0
      %v3942 = vadd.f32 %v3638, %v3941
      %3943 = vmatprep.mubr.f32.mxu0 0.0
      %3944 = vmatmul.mubr.f32.gmra.mrb[0].mxu0 %v3555
      %v3945 = vpop.f32.mrb[0].mxu0
      %v3946 = vadd.f32 %v3634, %v3945
      %v3947 = vpop.f32.mrb[0].mxu0
      %v3948 = vadd.f32 %v3638, %v3947
      %3949 = vmatprep.mubr.f32.mxu0 0.0
      %3950 = vmatmul.mubr.f32.gmra.mrb[0].mxu0 %v3556
      %v3951 = vpop.f32.mrb[0].mxu0
      %v3952 = vadd.f32 %v3634, %v3951
      %v3953 = vpop.f32.mrb[0].mxu0
      %v3954 = vadd.f32 %v3638, %v3953
      %3955 = vmatprep.mubr.f32.mxu0 0.0
      %3956 = vmatmul.mubr.f32.gmra.mrb[0].mxu0 %v3557
      %v3957 = vpop.f32.mrb[0].mxu0
      %v3958 = vadd.f32 %v3634, %v3957
      %v3959 = vpop.f32.mrb[0].mxu0
      %v3960 = vadd.f32 %v3638, %v3959
      %3961 = vmatprep.mubr.f32.mxu0 0.0
      %3962 = vmatmul.mubr.f32.gmra.mrb[0].mxu0 %v3558
      %v3963 = vpop.f32.mrb[0].mxu0
      %v3964 = vadd.f32 %v3634, %v3963
      %v3965 = vpop.f32.mrb[0].mxu0
      %v3966 = vadd.f32 %v3638, %v3965
      %3967 = vmatprep.mubr.f32.mxu0 0.0
      %3968 = vmatmul.mubr.f32.gmra.mrb[0].mxu0 %v3559
      %v3969 = vpop.f32.mrb[0].mxu0
      %v3970 = vadd.f32 %v3634, %v3969
      %v3971 = vpop.f32.mrb[0].mxu0
      %v3972 = vadd.f32 %v3638, %v3971
      %3973 = vmatprep.mubr.f32.mxu0 0.0
      %3974 = vmatmul.mubr.f32.gmra.mrb[0].mxu0 %v3560
      %v3975 = vpop.f32.mrb[0].mxu0
      %v3976 = vadd.f32 %v3634, %v3975
      %v3977 = vpop.f32.mrb[0].mxu0
      %v3978 = vadd.f32 %v3638, %v3977
      %3979 = vmatprep.mubr.f32.mxu0 0.0
      %3980 = vmatmul.mubr.f32.gmra.mrb[0].mxu0 %v3561
      %v3981 = vpop.f32.mrb[0].mxu0
      %v3982 = vadd.f32 %v3634, %v3981
      %v3983 = vpop.f32.mrb[0].mxu0
      %v3984 = vadd.f32 %v3638, %v3983
      %3985 = vmatprep.mubr.f32.mxu0 0.0
      %3986 = vmatmul.mubr.f32.gmra.mrb[0].mxu0 %v3562
      %v3987 = vpop.f32.mrb[0].mxu0
      %v3988 = vadd.f32 %v3634, %v3987
      %v3989 = vpop.f32.mrb[0].mxu0
      %v3990 = vadd.f32 %v3638, %v3989
      %3991 = vmatprep.mubr.f32.mxu0 0.0
      %3992 = vmatmul.mubr.f32.gmra.mrb[0].mxu0 %v3563
      %v3993 = vpop.f32.mrb[0].mxu0
      %v3994 = vadd.f32 %v3634, %v3993
      %v3995 = vpop.f32.mrb[0].mxu0
      %v3996 = vadd.f32 %v3638, %v3995
      %3997 = vmatprep.mubr.f32.mxu0 0.0
      %3998 = vmatmul.mubr.f32.gmra.mrb[0].mxu0 %v3564
      %v3999 = vpop.f32.mrb[0].mxu0
      %v4000 = vadd.f32 %v3634, %v3999
      %v4001 = vpop.f32.mrb[0].mxu0
      %v4002 = vadd.f32 %v3638, %v4001
      %4003 = vdwg.mxu0
      %4004 = vmatprep.subr.mxu0 %v3568
      %4005 = vmatpush1.msra.mxu0 %v3567
      %4006 = vmatprep.subr.mxu0 %v3572
      %4007 = vmatpush1.msra.mxu0 %v3571
      %4008 = vmatprep.subr.mxu0 %v3576
      %4009 = vmatpush1.msra.mxu0 %v3575
      %4010 = vmatprep.subr.mxu0 %v3580
      %4011 = vmatpush1.msra.mxu0 %v3579
      %4012 = vmatprep.subr.mxu0 %v3584
      %4013 = vmatpush1.msra.mxu0 %v3583
      %4014 = vmatprep.subr.mxu0 %v3588
      %4015 = vmatpush1.msra.mxu0 %v3587
      %4016 = vmatprep.subr.mxu0 %v3592
      %4017 = vmatpush1.msra.mxu0 %v3591
      %4018 = vmatprep.subr.mxu0 %v3596
      %4019 = vmatpush1.msra.mxu0 %v3595
      %4020 = vmatprep.subr.mxu0 %v3600
      %4021 = vmatpush1.msra.mxu0 %v3599
      %4022 = vmatprep.subr.mxu0 %v3604
      %4023 = vmatpush1.msra.mxu0 %v3603
      %4024 = vmatprep.subr.mxu0 %v3608
      %4025 = vmatpush1.msra.mxu0 %v3607
      %4026 = vmatprep.subr.mxu0 %v3612
      %4027 = vmatpush1.msra.mxu0 %v3611
      %4028 = vmatprep.subr.mxu0 %v3616
      %4029 = vmatpush1.msra.mxu0 %v3615
      %4030 = vmatprep.subr.mxu0 %v3620
      %4031 = vmatpush1.msra.mxu0 %v3619
      %4032 = vmatprep.subr.mxu0 %v3624
      %4033 = vmatpush1.msra.mxu0 %v3623
      %4034 = vmatprep.subr.mxu0 %v3628
      %4035 = vmatpush1.msra.mxu0 %v3627
      %4036 = vmatprep.subr.mxu0 0.0
      %4037 = vmatpush1.msra.mxu0 0.0
      %4038 = vmatprep.subr.mxu0 0.0
      %4039 = vmatpush1.msra.mxu0 0.0
      %4040 = vmatprep.subr.mxu0 0.0
      %4041 = vmatpush1.msra.mxu0 0.0
      %4042 = vmatprep.subr.mxu0 0.0
      %4043 = vmatpush1.msra.mxu0 0.0
      %4044 = vmatprep.subr.mxu0 0.0
      %4045 = vmatpush1.msra.mxu0 0.0
      %4046 = vmatprep.subr.mxu0 0.0
      %4047 = vmatpush1.msra.mxu0 0.0
      %4048 = vmatprep.subr.mxu0 0.0
      %4049 = vmatpush1.msra.mxu0 0.0
      %4050 = vmatprep.subr.mxu0 0.0
      %4051 = vmatpush1.msra.mxu0 0.0
      %4052 = vmatprep.subr.mxu0 0.0
      %4053 = vmatpush1.msra.mxu0 0.0
      %4054 = vmatprep.subr.mxu0 0.0
      %4055 = vmatpush1.msra.mxu0 0.0
      %4056 = vmatprep.subr.mxu0 0.0
      %4057 = vmatpush1.msra.mxu0 0.0
      %4058 = vmatprep.subr.mxu0 0.0
      %4059 = vmatpush1.msra.mxu0 0.0
      %4060 = vmatprep.subr.mxu0 0.0
      %4061 = vmatpush1.msra.mxu0 0.0
      %4062 = vmatprep.subr.mxu0 0.0
      %4063 = vmatpush1.msra.mxu0 0.0
      %4064 = vmatprep.subr.mxu0 0.0
      %4065 = vmatpush1.msra.mxu0 0.0
      %4066 = vmatprep.subr.mxu0 0.0
      %4067 = vmatpush1.msra.mxu0 0.0
      %4068 = vmatprep.mubr.f32.mxu0 0.0
      %4069 = vmatmul.mubr.f32.gmra.mrb[0].mxu0 %v3517
      %v4070 = vpop.f32.mrb[0].mxu0
      %v4071 = vadd.f32 %v3642, %v4070
      %v4072 = vpop.f32.mrb[0].mxu0
      %v4073 = vadd.f32 %v3646, %v4072
      %4074 = vmatprep.mubr.f32.mxu0 0.0
      %4075 = vmatmul.mubr.f32.gmra.mrb[0].mxu0 %v3518
      %v4076 = vpop.f32.mrb[0].mxu0
      %v4077 = vadd.f32 %v3642, %v4076
      %v4078 = vpop.f32.mrb[0].mxu0
      %v4079 = vadd.f32 %v3646, %v4078
      %4080 = vmatprep.mubr.f32.mxu0 0.0
      %4081 = vmatmul.mubr.f32.gmra.mrb[0].mxu0 %v3519
      %v4082 = vpop.f32.mrb[0].mxu0
      %v4083 = vadd.f32 %v3642, %v4082
      %v4084 = vpop.f32.mrb[0].mxu0
      %v4085 = vadd.f32 %v3646, %v4084
      %4086 = vmatprep.mubr.f32.mxu0 0.0
      %4087 = vmatmul.mubr.f32.gmra.mrb[0].mxu0 %v3520
      %v4088 = vpop.f32.mrb[0].mxu0
      %v4089 = vadd.f32 %v3642, %v4088
      %v4090 = vpop.f32.mrb[0].mxu0
      %v4091 = vadd.f32 %v3646, %v4090
      %4092 = vmatprep.mubr.f32.mxu0 0.0
      %4093 = vmatmul.mubr.f32.gmra.mrb[0].mxu0 %v3521
      %v4094 = vpop.f32.mrb[0].mxu0
      %v4095 = vadd.f32 %v3642, %v4094
      %v4096 = vpop.f32.mrb[0].mxu0
      %v4097 = vadd.f32 %v3646, %v4096
      %4098 = vmatprep.mubr.f32.mxu0 0.0
      %4099 = vmatmul.mubr.f32.gmra.mrb[0].mxu0 %v3522
      %v4100 = vpop.f32.mrb[0].mxu0
      %v4101 = vadd.f32 %v3642, %v4100
      %v4102 = vpop.f32.mrb[0].mxu0
      %v4103 = vadd.f32 %v3646, %v4102
      %4104 = vmatprep.mubr.f32.mxu0 0.0
      %4105 = vmatmul.mubr.f32.gmra.mrb[0].mxu0 %v3523
      %v4106 = vpop.f32.mrb[0].mxu0
      %v4107 = vadd.f32 %v3642, %v4106
      %v4108 = vpop.f32.mrb[0].mxu0
      %v4109 = vadd.f32 %v3646, %v4108
      %4110 = vmatprep.mubr.f32.mxu0 0.0
      %4111 = vmatmul.mubr.f32.gmra.mrb[0].mxu0 %v3524
      %v4112 = vpop.f32.mrb[0].mxu0
      %v4113 = vadd.f32 %v3642, %v4112
      %v4114 = vpop.f32.mrb[0].mxu0
      %v4115 = vadd.f32 %v3646, %v4114
      %4116 = vmatprep.mubr.f32.mxu0 0.0
      %4117 = vmatmul.mubr.f32.gmra.mrb[0].mxu0 %v3525
      %v4118 = vpop.f32.mrb[0].mxu0
      %v4119 = vadd.f32 %v3642, %v4118
      %v4120 = vpop.f32.mrb[0].mxu0
      %v4121 = vadd.f32 %v3646, %v4120
      %4122 = vmatprep.mubr.f32.mxu0 0.0
      %4123 = vmatmul.mubr.f32.gmra.mrb[0].mxu0 %v3526
      %v4124 = vpop.f32.mrb[0].mxu0
      %v4125 = vadd.f32 %v3642, %v4124
      %v4126 = vpop.f32.mrb[0].mxu0
      %v4127 = vadd.f32 %v3646, %v4126
      %4128 = vmatprep.mubr.f32.mxu0 0.0
      %4129 = vmatmul.mubr.f32.gmra.mrb[0].mxu0 %v3527
      %v4130 = vpop.f32.mrb[0].mxu0
      %v4131 = vadd.f32 %v3642, %v4130
      %v4132 = vpop.f32.mrb[0].mxu0
      %v4133 = vadd.f32 %v3646, %v4132
      %4134 = vmatprep.mubr.f32.mxu0 0.0
      %4135 = vmatmul.mubr.f32.gmra.mrb[0].mxu0 %v3528
      %v4136 = vpop.f32.mrb[0].mxu0
      %v4137 = vadd.f32 %v3642, %v4136
      %v4138 = vpop.f32.mrb[0].mxu0
      %v4139 = vadd.f32 %v3646, %v4138
      %4140 = vmatprep.mubr.f32.mxu0 0.0
      %4141 = vmatmul.mubr.f32.gmra.mrb[0].mxu0 %v3529
      %v4142 = vpop.f32.mrb[0].mxu0
      %v4143 = vadd.f32 %v3642, %v4142
      %v4144 = vpop.f32.mrb[0].mxu0
      %v4145 = vadd.f32 %v3646, %v4144
      %4146 = vmatprep.mubr.f32.mxu0 0.0
      %4147 = vmatmul.mubr.f32.gmra.mrb[0].mxu0 %v3530
      %v4148 = vpop.f32.mrb[0].mxu0
      %v4149 = vadd.f32 %v3642, %v4148
      %v4150 = vpop.f32.mrb[0].mxu0
      %v4151 = vadd.f32 %v3646, %v4150
      %4152 = vmatprep.mubr.f32.mxu0 0.0
      %4153 = vmatmul.mubr.f32.gmra.mrb[0].mxu0 %v3531
      %v4154 = vpop.f32.mrb[0].mxu0
      %v4155 = vadd.f32 %v3642, %v4154
      %v4156 = vpop.f32.mrb[0].mxu0
      %v4157 = vadd.f32 %v3646, %v4156
      %4158 = vmatprep.mubr.f32.mxu0 0.0
      %4159 = vmatmul.mubr.f32.gmra.mrb[0].mxu0 %v3532
      %v4160 = vpop.f32.mrb[0].mxu0
      %v4161 = vadd.f32 %v3642, %v4160
      %v4162 = vpop.f32.mrb[0].mxu0
      %v4163 = vadd.f32 %v3646, %v4162
      %4164 = vmatprep.mubr.f32.mxu0 0.0
      %4165 = vmatmul.mubr.f32.gmra.mrb[0].mxu0 %v3533
      %v4166 = vpop.f32.mrb[0].mxu0
      %v4167 = vadd.f32 %v3642, %v4166
      %v4168 = vpop.f32.mrb[0].mxu0
      %v4169 = vadd.f32 %v3646, %v4168
      %4170 = vmatprep.mubr.f32.mxu0 0.0
      %4171 = vmatmul.mubr.f32.gmra.mrb[0].mxu0 %v3534
      %v4172 = vpop.f32.mrb[0].mxu0
      %v4173 = vadd.f32 %v3642, %v4172
      %v4174 = vpop.f32.mrb[0].mxu0
      %v4175 = vadd.f32 %v3646, %v4174
      %4176 = vmatprep.mubr.f32.mxu0 0.0
      %4177 = vmatmul.mubr.f32.gmra.mrb[0].mxu0 %v3535
      %v4178 = vpop.f32.mrb[0].mxu0
      %v4179 = vadd.f32 %v3642, %v4178
      %v4180 = vpop.f32.mrb[0].mxu0
      %v4181 = vadd.f32 %v3646, %v4180
      %4182 = vmatprep.mubr.f32.mxu0 0.0
      %4183 = vmatmul.mubr.f32.gmra.mrb[0].mxu0 %v3536
      %v4184 = vpop.f32.mrb[0].mxu0
      %v4185 = vadd.f32 %v3642, %v4184
      %v4186 = vpop.f32.mrb[0].mxu0
      %v4187 = vadd.f32 %v3646, %v4186
      %4188 = vmatprep.mubr.f32.mxu0 0.0
      %4189 = vmatmul.mubr.f32.gmra.mrb[0].mxu0 %v3537
      %v4190 = vpop.f32.mrb[0].mxu0
      %v4191 = vadd.f32 %v3642, %v4190
      %v4192 = vpop.f32.mrb[0].mxu0
      %v4193 = vadd.f32 %v3646, %v4192
      %4194 = vmatprep.mubr.f32.mxu0 0.0
      %4195 = vmatmul.mubr.f32.gmra.mrb[0].mxu0 %v3538
      %v4196 = vpop.f32.mrb[0].mxu0
      %v4197 = vadd.f32 %v3642, %v4196
      %v4198 = vpop.f32.mrb[0].mxu0
      %v4199 = vadd.f32 %v3646, %v4198
      %4200 = vmatprep.mubr.f32.mxu0 0.0
      %4201 = vmatmul.mubr.f32.gmra.mrb[0].mxu0 %v3539
      %v4202 = vpop.f32.mrb[0].mxu0
      %v4203 = vadd.f32 %v3642, %v4202
      %v4204 = vpop.f32.mrb[0].mxu0
      %v4205 = vadd.f32 %v3646, %v4204
      %4206 = vmatprep.mubr.f32.mxu0 0.0
      %4207 = vmatmul.mubr.f32.gmra.mrb[0].mxu0 %v3540
      %v4208 = vpop.f32.mrb[0].mxu0
      %v4209 = vadd.f32 %v3642, %v4208
      %v4210 = vpop.f32.mrb[0].mxu0
      %v4211 = vadd.f32 %v3646, %v4210
      %4212 = vmatprep.mubr.f32.mxu0 0.0
      %4213 = vmatmul.mubr.f32.gmra.mrb[0].mxu0 %v3541
      %v4214 = vpop.f32.mrb[0].mxu0
      %v4215 = vadd.f32 %v3642, %v4214
      %v4216 = vpop.f32.mrb[0].mxu0
      %v4217 = vadd.f32 %v3646, %v4216
      %4218 = vmatprep.mubr.f32.mxu0 0.0
      %4219 = vmatmul.mubr.f32.gmra.mrb[0].mxu0 %v3542
      %v4220 = vpop.f32.mrb[0].mxu0
      %v4221 = vadd.f32 %v3642, %v4220
      %v4222 = vpop.f32.mrb[0].mxu0
      %v4223 = vadd.f32 %v3646, %v4222
      %4224 = vmatprep.mubr.f32.mxu0 0.0
      %4225 = vmatmul.mubr.f32.gmra.mrb[0].mxu0 %v3543
      %v4226 = vpop.f32.mrb[0].mxu0
      %v4227 = vadd.f32 %v3642, %v4226
      %v4228 = vpop.f32.mrb[0].mxu0
      %v4229 = vadd.f32 %v3646, %v4228
      %4230 = vmatprep.mubr.f32.mxu0 0.0
      %4231 = vmatmul.mubr.f32.gmra.mrb[0].mxu0 %v3544
      %v4232 = vpop.f32.mrb[0].mxu0
      %v4233 = vadd.f32 %v3642, %v4232
      %v4234 = vpop.f32.mrb[0].mxu0
      %v4235 = vadd.f32 %v3646, %v4234
      %4236 = vmatprep.mubr.f32.mxu0 0.0
      %4237 = vmatmul.mubr.f32.gmra.mrb[0].mxu0 %v3545
      %v4238 = vpop.f32.mrb[0].mxu0
      %v4239 = vadd.f32 %v3642, %v4238
      %v4240 = vpop.f32.mrb[0].mxu0
      %v4241 = vadd.f32 %v3646, %v4240
      %4242 = vmatprep.mubr.f32.mxu0 0.0
      %4243 = vmatmul.mubr.f32.gmra.mrb[0].mxu0 %v3546
      %v4244 = vpop.f32.mrb[0].mxu0
      %v4245 = vadd.f32 %v3642, %v4244
      %v4246 = vpop.f32.mrb[0].mxu0
      %v4247 = vadd.f32 %v3646, %v4246
      %4248 = vmatprep.mubr.f32.mxu0 0.0
      %4249 = vmatmul.mubr.f32.gmra.mrb[0].mxu0 %v3547
      %v4250 = vpop.f32.mrb[0].mxu0
      %v4251 = vadd.f32 %v3642, %v4250
      %v4252 = vpop.f32.mrb[0].mxu0
      %v4253 = vadd.f32 %v3646, %v4252
      %4254 = vmatprep.mubr.f32.mxu0 0.0
      %4255 = vmatmul.mubr.f32.gmra.mrb[0].mxu0 %v3548
      %v4256 = vpop.f32.mrb[0].mxu0
      %v4257 = vadd.f32 %v3642, %v4256
      %v4258 = vpop.f32.mrb[0].mxu0
      %v4259 = vadd.f32 %v3646, %v4258
      %4260 = vmatprep.mubr.f32.mxu0 0.0
      %4261 = vmatmul.mubr.f32.gmra.mrb[0].mxu0 %v3549
      %v4262 = vpop.f32.mrb[0].mxu0
      %v4263 = vadd.f32 %v3642, %v4262
      %v4264 = vpop.f32.mrb[0].mxu0
      %v4265 = vadd.f32 %v3646, %v4264
      %4266 = vmatprep.mubr.f32.mxu0 0.0
      %4267 = vmatmul.mubr.f32.gmra.mrb[0].mxu0 %v3550
      %v4268 = vpop.f32.mrb[0].mxu0
      %v4269 = vadd.f32 %v3642, %v4268
      %v4270 = vpop.f32.mrb[0].mxu0
      %v4271 = vadd.f32 %v3646, %v4270
      %4272 = vmatprep.mubr.f32.mxu0 0.0
      %4273 = vmatmul.mubr.f32.gmra.mrb[0].mxu0 %v3551
      %v4274 = vpop.f32.mrb[0].mxu0
      %v4275 = vadd.f32 %v3642, %v4274
      %v4276 = vpop.f32.mrb[0].mxu0
      %v4277 = vadd.f32 %v3646, %v4276
      %4278 = vmatprep.mubr.f32.mxu0 0.0
      %4279 = vmatmul.mubr.f32.gmra.mrb[0].mxu0 %v3552
      %v4280 = vpop.f32.mrb[0].mxu0
      %v4281 = vadd.f32 %v3642, %v4280
      %v4282 = vpop.f32.mrb[0].mxu0
      %v4283 = vadd.f32 %v3646, %v4282
      %4284 = vmatprep.mubr.f32.mxu0 0.0
      %4285 = vmatmul.mubr.f32.gmra.mrb[0].mxu0 %v3553
      %v4286 = vpop.f32.mrb[0].mxu0
      %v4287 = vadd.f32 %v3642, %v4286
      %v4288 = vpop.f32.mrb[0].mxu0
      %v4289 = vadd.f32 %v3646, %v4288
      %4290 = vmatprep.mubr.f32.mxu0 0.0
      %4291 = vmatmul.mubr.f32.gmra.mrb[0].mxu0 %v3554
      %v4292 = vpop.f32.mrb[0].mxu0
      %v4293 = vadd.f32 %v3642, %v4292
      %v4294 = vpop.f32.mrb[0].mxu0
      %v4295 = vadd.f32 %v3646, %v4294
      %4296 = vmatprep.mubr.f32.mxu0 0.0
      %4297 = vmatmul.mubr.f32.gmra.mrb[0].mxu0 %v3555
      %v4298 = vpop.f32.mrb[0].mxu0
      %v4299 = vadd.f32 %v3642, %v4298
      %v4300 = vpop.f32.mrb[0].mxu0
      %v4301 = vadd.f32 %v3646, %v4300
      %4302 = vmatprep.mubr.f32.mxu0 0.0
      %4303 = vmatmul.mubr.f32.gmra.mrb[0].mxu0 %v3556
      %v4304 = vpop.f32.mrb[0].mxu0
      %v4305 = vadd.f32 %v3642, %v4304
      %v4306 = vpop.f32.mrb[0].mxu0
      %v4307 = vadd.f32 %v3646, %v4306
      %4308 = vmatprep.mubr.f32.mxu0 0.0
      %4309 = vmatmul.mubr.f32.gmra.mrb[0].mxu0 %v3557
      %v4310 = vpop.f32.mrb[0].mxu0
      %v4311 = vadd.f32 %v3642, %v4310
      %v4312 = vpop.f32.mrb[0].mxu0
      %v4313 = vadd.f32 %v3646, %v4312
      %4314 = vmatprep.mubr.f32.mxu0 0.0
      %4315 = vmatmul.mubr.f32.gmra.mrb[0].mxu0 %v3558
      %v4316 = vpop.f32.mrb[0].mxu0
      %v4317 = vadd.f32 %v3642, %v4316
      %v4318 = vpop.f32.mrb[0].mxu0
      %v4319 = vadd.f32 %v3646, %v4318
      %4320 = vmatprep.mubr.f32.mxu0 0.0
      %4321 = vmatmul.mubr.f32.gmra.mrb[0].mxu0 %v3559
      %v4322 = vpop.f32.mrb[0].mxu0
      %v4323 = vadd.f32 %v3642, %v4322
      %v4324 = vpop.f32.mrb[0].mxu0
      %v4325 = vadd.f32 %v3646, %v4324
      %4326 = vmatprep.mubr.f32.mxu0 0.0
      %4327 = vmatmul.mubr.f32.gmra.mrb[0].mxu0 %v3560
      %v4328 = vpop.f32.mrb[0].mxu0
      %v4329 = vadd.f32 %v3642, %v4328
      %v4330 = vpop.f32.mrb[0].mxu0
      %v4331 = vadd.f32 %v3646, %v4330
      %4332 = vmatprep.mubr.f32.mxu0 0.0
      %4333 = vmatmul.mubr.f32.gmra.mrb[0].mxu0 %v3561
      %v4334 = vpop.f32.mrb[0].mxu0
      %v4335 = vadd.f32 %v3642, %v4334
      %v4336 = vpop.f32.mrb[0].mxu0
      %v4337 = vadd.f32 %v3646, %v4336
      %4338 = vmatprep.mubr.f32.mxu0 0.0
      %4339 = vmatmul.mubr.f32.gmra.mrb[0].mxu0 %v3562
      %v4340 = vpop.f32.mrb[0].mxu0
      %v4341 = vadd.f32 %v3642, %v4340
      %v4342 = vpop.f32.mrb[0].mxu0
      %v4343 = vadd.f32 %v3646, %v4342
      %4344 = vmatprep.mubr.f32.mxu0 0.0
      %4345 = vmatmul.mubr.f32.gmra.mrb[0].mxu0 %v3563
      %v4346 = vpop.f32.mrb[0].mxu0
      %v4347 = vadd.f32 %v3642, %v4346
      %v4348 = vpop.f32.mrb[0].mxu0
      %v4349 = vadd.f32 %v3646, %v4348
      %4350 = vmatprep.mubr.f32.mxu0 0.0
      %4351 = vmatmul.mubr.f32.gmra.mrb[0].mxu0 %v3564
      %v4352 = vpop.f32.mrb[0].mxu0
      %v4353 = vadd.f32 %v3642, %v4352
      %v4354 = vpop.f32.mrb[0].mxu0
      %v4355 = vadd.f32 %v3646, %v4354
      %4356 = vdwg.mxu0
      %v4357 = vxor.u32 %v3718, 2147483648
      %v4358 = vxor.u32 %v3720, 2147483648
      %v4359 = vxor.u32 %v4071, 2147483648
      %v4360 = vxor.u32 %v4073, 2147483648
      %v4361 = vxor.u32 %v3724, 2147483648
      %v4362 = vxor.u32 %v3726, 2147483648
      %v4363 = vxor.u32 %v4077, 2147483648
      %v4364 = vxor.u32 %v4079, 2147483648
      %v4365 = vxor.u32 %v3730, 2147483648
      %v4366 = vxor.u32 %v3732, 2147483648
      %v4367 = vxor.u32 %v4083, 2147483648
      %v4368 = vxor.u32 %v4085, 2147483648
      %v4369 = vxor.u32 %v3736, 2147483648
      %v4370 = vxor.u32 %v3738, 2147483648
      %v4371 = vxor.u32 %v4089, 2147483648
      %v4372 = vxor.u32 %v4091, 2147483648
      %v4373 = vxor.u32 %v3742, 2147483648
      %v4374 = vxor.u32 %v3744, 2147483648
      %v4375 = vxor.u32 %v4095, 2147483648
      %v4376 = vxor.u32 %v4097, 2147483648
      %v4377 = vxor.u32 %v3748, 2147483648
      %v4378 = vxor.u32 %v3750, 2147483648
      %v4379 = vxor.u32 %v4101, 2147483648
      %v4380 = vxor.u32 %v4103, 2147483648
      %v4381 = vxor.u32 %v3754, 2147483648
      %v4382 = vxor.u32 %v3756, 2147483648
      %v4383 = vxor.u32 %v4107, 2147483648
      %v4384 = vxor.u32 %v4109, 2147483648
      %v4385 = vxor.u32 %v3760, 2147483648
      %v4386 = vxor.u32 %v3762, 2147483648
      %v4387 = vxor.u32 %v4113, 2147483648
      %v4388 = vxor.u32 %v4115, 2147483648
      %v4389 = vxor.u32 %v3766, 2147483648
      %v4390 = vxor.u32 %v3768, 2147483648
      %v4391 = vxor.u32 %v4119, 2147483648
      %v4392 = vxor.u32 %v4121, 2147483648
      %v4393 = vxor.u32 %v3772, 2147483648
      %v4394 = vxor.u32 %v3774, 2147483648
      %v4395 = vxor.u32 %v4125, 2147483648
      %v4396 = vxor.u32 %v4127, 2147483648
      %v4397 = vxor.u32 %v3778, 2147483648
      %v4398 = vxor.u32 %v3780, 2147483648
      %v4399 = vxor.u32 %v4131, 2147483648
      %v4400 = vxor.u32 %v4133, 2147483648
      %v4401 = vxor.u32 %v3784, 2147483648
      %v4402 = vxor.u32 %v3786, 2147483648
      %v4403 = vxor.u32 %v4137, 2147483648
      %v4404 = vxor.u32 %v4139, 2147483648
      %v4405 = vxor.u32 %v3790, 2147483648
      %v4406 = vxor.u32 %v3792, 2147483648
      %v4407 = vxor.u32 %v4143, 2147483648
      %v4408 = vxor.u32 %v4145, 2147483648
      %v4409 = vxor.u32 %v3796, 2147483648
      %v4410 = vxor.u32 %v3798, 2147483648
      %v4411 = vxor.u32 %v4149, 2147483648
      %v4412 = vxor.u32 %v4151, 2147483648
      %v4413 = vxor.u32 %v3802, 2147483648
      %v4414 = vxor.u32 %v3804, 2147483648
      %v4415 = vxor.u32 %v4155, 2147483648
      %v4416 = vxor.u32 %v4157, 2147483648
      %v4417 = vxor.u32 %v3808, 2147483648
      %v4418 = vxor.u32 %v3810, 2147483648
      %v4419 = vxor.u32 %v4161, 2147483648
      %v4420 = vxor.u32 %v4163, 2147483648
      %v4421 = vxor.u32 %v3814, 2147483648
      %v4422 = vxor.u32 %v3816, 2147483648
      %v4423 = vxor.u32 %v4167, 2147483648
      %v4424 = vxor.u32 %v4169, 2147483648
      %v4425 = vxor.u32 %v3820, 2147483648
      %v4426 = vxor.u32 %v3822, 2147483648
      %v4427 = vxor.u32 %v4173, 2147483648
      %v4428 = vxor.u32 %v4175, 2147483648
      %v4429 = vxor.u32 %v3826, 2147483648
      %v4430 = vxor.u32 %v3828, 2147483648
      %v4431 = vxor.u32 %v4179, 2147483648
      %v4432 = vxor.u32 %v4181, 2147483648
      %v4433 = vxor.u32 %v3832, 2147483648
      %v4434 = vxor.u32 %v3834, 2147483648
      %v4435 = vxor.u32 %v4185, 2147483648
      %v4436 = vxor.u32 %v4187, 2147483648
      %v4437 = vxor.u32 %v3838, 2147483648
      %v4438 = vxor.u32 %v3840, 2147483648
      %v4439 = vxor.u32 %v4191, 2147483648
      %v4440 = vxor.u32 %v4193, 2147483648
      %v4441 = vxor.u32 %v3844, 2147483648
      %v4442 = vxor.u32 %v3846, 2147483648
      %v4443 = vxor.u32 %v4197, 2147483648
      %v4444 = vxor.u32 %v4199, 2147483648
      %v4445 = vxor.u32 %v3850, 2147483648
      %v4446 = vxor.u32 %v3852, 2147483648
      %v4447 = vxor.u32 %v4203, 2147483648
      %v4448 = vxor.u32 %v4205, 2147483648
      %v4449 = vxor.u32 %v3856, 2147483648
      %v4450 = vxor.u32 %v3858, 2147483648
      %v4451 = vxor.u32 %v4209, 2147483648
      %v4452 = vxor.u32 %v4211, 2147483648
      %v4453 = vxor.u32 %v3862, 2147483648
      %v4454 = vxor.u32 %v3864, 2147483648
      %v4455 = vxor.u32 %v4215, 2147483648
      %v4456 = vxor.u32 %v4217, 2147483648
      %v4457 = vxor.u32 %v3868, 2147483648
      %v4458 = vxor.u32 %v3870, 2147483648
      %v4459 = vxor.u32 %v4221, 2147483648
      %v4460 = vxor.u32 %v4223, 2147483648
      %v4461 = vxor.u32 %v3874, 2147483648
      %v4462 = vxor.u32 %v3876, 2147483648
      %v4463 = vxor.u32 %v4227, 2147483648
      %v4464 = vxor.u32 %v4229, 2147483648
      %v4465 = vxor.u32 %v3880, 2147483648
      %v4466 = vxor.u32 %v3882, 2147483648
      %v4467 = vxor.u32 %v4233, 2147483648
      %v4468 = vxor.u32 %v4235, 2147483648
      %v4469 = vxor.u32 %v3886, 2147483648
      %v4470 = vxor.u32 %v3888, 2147483648
      %v4471 = vxor.u32 %v4239, 2147483648
      %v4472 = vxor.u32 %v4241, 2147483648
      %v4473 = vxor.u32 %v3892, 2147483648
      %v4474 = vxor.u32 %v3894, 2147483648
      %v4475 = vxor.u32 %v4245, 2147483648
      %v4476 = vxor.u32 %v4247, 2147483648
      %v4477 = vxor.u32 %v3898, 2147483648
      %v4478 = vxor.u32 %v3900, 2147483648
      %v4479 = vxor.u32 %v4251, 2147483648
      %v4480 = vxor.u32 %v4253, 2147483648
      %v4481 = vxor.u32 %v3904, 2147483648
      %v4482 = vxor.u32 %v3906, 2147483648
      %v4483 = vxor.u32 %v4257, 2147483648
      %v4484 = vxor.u32 %v4259, 2147483648
      %v4485 = vxor.u32 %v3910, 2147483648
      %v4486 = vxor.u32 %v3912, 2147483648
      %v4487 = vxor.u32 %v4263, 2147483648
      %v4488 = vxor.u32 %v4265, 2147483648
      %v4489 = vxor.u32 %v3916, 2147483648
      %v4490 = vxor.u32 %v3918, 2147483648
      %v4491 = vxor.u32 %v4269, 2147483648
      %v4492 = vxor.u32 %v4271, 2147483648
      %v4493 = vxor.u32 %v3922, 2147483648
      %v4494 = vxor.u32 %v3924, 2147483648
      %v4495 = vxor.u32 %v4275, 2147483648
      %v4496 = vxor.u32 %v4277, 2147483648
      %v4497 = vxor.u32 %v3928, 2147483648
      %v4498 = vxor.u32 %v3930, 2147483648
      %v4499 = vxor.u32 %v4281, 2147483648
      %v4500 = vxor.u32 %v4283, 2147483648
      %v4501 = vxor.u32 %v3934, 2147483648
      %v4502 = vxor.u32 %v3936, 2147483648
      %v4503 = vxor.u32 %v4287, 2147483648
      %v4504 = vxor.u32 %v4289, 2147483648
      %v4505 = vxor.u32 %v3940, 2147483648
      %v4506 = vxor.u32 %v3942, 2147483648
      %v4507 = vxor.u32 %v4293, 2147483648
      %v4508 = vxor.u32 %v4295, 2147483648
      %v4509 = vxor.u32 %v3946, 2147483648
      %v4510 = vxor.u32 %v3948, 2147483648
      %v4511 = vxor.u32 %v4299, 2147483648
      %v4512 = vxor.u32 %v4301, 2147483648
      %v4513 = vxor.u32 %v3952, 2147483648
      %v4514 = vxor.u32 %v3954, 2147483648
      %v4515 = vxor.u32 %v4305, 2147483648
      %v4516 = vxor.u32 %v4307, 2147483648
      %v4517 = vxor.u32 %v3958, 2147483648
      %v4518 = vxor.u32 %v3960, 2147483648
      %v4519 = vxor.u32 %v4311, 2147483648
      %v4520 = vxor.u32 %v4313, 2147483648
      %v4521 = vxor.u32 %v3964, 2147483648
      %v4522 = vxor.u32 %v3966, 2147483648
      %v4523 = vxor.u32 %v4317, 2147483648
      %v4524 = vxor.u32 %v4319, 2147483648
      %v4525 = vxor.u32 %v3970, 2147483648
      %v4526 = vxor.u32 %v3972, 2147483648
      %v4527 = vxor.u32 %v4323, 2147483648
      %v4528 = vxor.u32 %v4325, 2147483648
      %v4529 = vxor.u32 %v3976, 2147483648
      %v4530 = vxor.u32 %v3978, 2147483648
      %v4531 = vxor.u32 %v4329, 2147483648
      %v4532 = vxor.u32 %v4331, 2147483648
      %v4533 = vxor.u32 %v3982, 2147483648
      %v4534 = vxor.u32 %v3984, 2147483648
      %v4535 = vxor.u32 %v4335, 2147483648
      %v4536 = vxor.u32 %v4337, 2147483648
      %v4537 = vxor.u32 %v3988, 2147483648
      %v4538 = vxor.u32 %v3990, 2147483648
      %v4539 = vxor.u32 %v4341, 2147483648
      %v4540 = vxor.u32 %v4343, 2147483648
      %v4541 = vxor.u32 %v3994, 2147483648
      %v4542 = vxor.u32 %v3996, 2147483648
      %v4543 = vxor.u32 %v4347, 2147483648
      %v4544 = vxor.u32 %v4349, 2147483648
      %v4545 = vxor.u32 %v4000, 2147483648
      %v4546 = vxor.u32 %v4002, 2147483648
      %v4547 = vxor.u32 %v4353, 2147483648
      %v4548 = vxor.u32 %v4355, 2147483648
      %v4549 = vmul.f32 %v4357, 1.442695
      %v4550 = vpow.pop %v4549
      %v4551 = vmul.f32 %v4358, 1.442695
      %v4552 = vpow.pop %v4551
      %v4553 = vmul.f32 %v4359, 1.442695
      %v4554 = vpow.pop %v4553
      %v4555 = vmul.f32 %v4360, 1.442695
      %v4556 = vpow.pop %v4555
      %v4557 = vmul.f32 %v4361, 1.442695
      %v4558 = vpow.pop %v4557
      %v4559 = vmul.f32 %v4362, 1.442695
      %v4560 = vpow.pop %v4559
      %v4561 = vmul.f32 %v4363, 1.442695
      %v4562 = vpow.pop %v4561
      %v4563 = vmul.f32 %v4364, 1.442695
      %v4564 = vpow.pop %v4563
      %v4565 = vmul.f32 %v4365, 1.442695
      %v4566 = vpow.pop %v4565
      %v4567 = vmul.f32 %v4366, 1.442695
      %v4568 = vpow.pop %v4567
      %v4569 = vmul.f32 %v4367, 1.442695
      %v4570 = vpow.pop %v4569
      %v4571 = vmul.f32 %v4368, 1.442695
      %v4572 = vpow.pop %v4571
      %v4573 = vmul.f32 %v4369, 1.442695
      %v4574 = vpow.pop %v4573
      %v4575 = vmul.f32 %v4370, 1.442695
      %v4576 = vpow.pop %v4575
      %v4577 = vmul.f32 %v4371, 1.442695
      %v4578 = vpow.pop %v4577
      %v4579 = vmul.f32 %v4372, 1.442695
      %v4580 = vpow.pop %v4579
      %v4581 = vmul.f32 %v4373, 1.442695
      %v4582 = vpow.pop %v4581
      %v4583 = vmul.f32 %v4374, 1.442695
      %v4584 = vpow.pop %v4583
      %v4585 = vmul.f32 %v4375, 1.442695
      %v4586 = vpow.pop %v4585
      %v4587 = vmul.f32 %v4376, 1.442695
      %v4588 = vpow.pop %v4587
      %v4589 = vmul.f32 %v4377, 1.442695
      %v4590 = vpow.pop %v4589
      %v4591 = vmul.f32 %v4378, 1.442695
      %v4592 = vpow.pop %v4591
      %v4593 = vmul.f32 %v4379, 1.442695
      %v4594 = vpow.pop %v4593
      %v4595 = vmul.f32 %v4380, 1.442695
      %v4596 = vpow.pop %v4595
      %v4597 = vmul.f32 %v4381, 1.442695
      %v4598 = vpow.pop %v4597
      %v4599 = vmul.f32 %v4382, 1.442695
      %v4600 = vpow.pop %v4599
      %v4601 = vmul.f32 %v4383, 1.442695
      %v4602 = vpow.pop %v4601
      %v4603 = vmul.f32 %v4384, 1.442695
      %v4604 = vpow.pop %v4603
      %v4605 = vmul.f32 %v4385, 1.442695
      %v4606 = vpow.pop %v4605
      %v4607 = vmul.f32 %v4386, 1.442695
      %v4608 = vpow.pop %v4607
      %v4609 = vmul.f32 %v4387, 1.442695
      %v4610 = vpow.pop %v4609
      %v4611 = vmul.f32 %v4388, 1.442695
      %v4612 = vpow.pop %v4611
      %v4613 = vmul.f32 %v4389, 1.442695
      %v4614 = vpow.pop %v4613
      %v4615 = vmul.f32 %v4390, 1.442695
      %v4616 = vpow.pop %v4615
      %v4617 = vmul.f32 %v4391, 1.442695
      %v4618 = vpow.pop %v4617
      %v4619 = vmul.f32 %v4392, 1.442695
      %v4620 = vpow.pop %v4619
      %v4621 = vmul.f32 %v4393, 1.442695
      %v4622 = vpow.pop %v4621
      %v4623 = vmul.f32 %v4394, 1.442695
      %v4624 = vpow.pop %v4623
      %v4625 = vmul.f32 %v4395, 1.442695
      %v4626 = vpow.pop %v4625
      %v4627 = vmul.f32 %v4396, 1.442695
      %v4628 = vpow.pop %v4627
      %v4629 = vmul.f32 %v4397, 1.442695
      %v4630 = vpow.pop %v4629
      %v4631 = vmul.f32 %v4398, 1.442695
      %v4632 = vpow.pop %v4631
      %v4633 = vmul.f32 %v4399, 1.442695
      %v4634 = vpow.pop %v4633
      %v4635 = vmul.f32 %v4400, 1.442695
      %v4636 = vpow.pop %v4635
      %v4637 = vmul.f32 %v4401, 1.442695
      %v4638 = vpow.pop %v4637
      %v4639 = vmul.f32 %v4402, 1.442695
      %v4640 = vpow.pop %v4639
      %v4641 = vmul.f32 %v4403, 1.442695
      %v4642 = vpow.pop %v4641
      %v4643 = vmul.f32 %v4404, 1.442695
      %v4644 = vpow.pop %v4643
      %v4645 = vmul.f32 %v4405, 1.442695
      %v4646 = vpow.pop %v4645
      %v4647 = vmul.f32 %v4406, 1.442695
      %v4648 = vpow.pop %v4647
      %v4649 = vmul.f32 %v4407, 1.442695
      %v4650 = vpow.pop %v4649
      %v4651 = vmul.f32 %v4408, 1.442695
      %v4652 = vpow.pop %v4651
      %v4653 = vmul.f32 %v4409, 1.442695
      %v4654 = vpow.pop %v4653
      %v4655 = vmul.f32 %v4410, 1.442695
      %v4656 = vpow.pop %v4655
      %v4657 = vmul.f32 %v4411, 1.442695
      %v4658 = vpow.pop %v4657
      %v4659 = vmul.f32 %v4412, 1.442695
      %v4660 = vpow.pop %v4659
      %v4661 = vmul.f32 %v4413, 1.442695
      %v4662 = vpow.pop %v4661
      %v4663 = vmul.f32 %v4414, 1.442695
      %v4664 = vpow.pop %v4663
      %v4665 = vmul.f32 %v4415, 1.442695
      %v4666 = vpow.pop %v4665
      %v4667 = vmul.f32 %v4416, 1.442695
      %v4668 = vpow.pop %v4667
      %v4669 = vmul.f32 %v4417, 1.442695
      %v4670 = vpow.pop %v4669
      %v4671 = vmul.f32 %v4418, 1.442695
      %v4672 = vpow.pop %v4671
      %v4673 = vmul.f32 %v4419, 1.442695
      %v4674 = vpow.pop %v4673
      %v4675 = vmul.f32 %v4420, 1.442695
      %v4676 = vpow.pop %v4675
      %v4677 = vmul.f32 %v4421, 1.442695
      %v4678 = vpow.pop %v4677
      %v4679 = vmul.f32 %v4422, 1.442695
      %v4680 = vpow.pop %v4679
      %v4681 = vmul.f32 %v4423, 1.442695
      %v4682 = vpow.pop %v4681
      %v4683 = vmul.f32 %v4424, 1.442695
      %v4684 = vpow.pop %v4683
      %v4685 = vmul.f32 %v4425, 1.442695
      %v4686 = vpow.pop %v4685
      %v4687 = vmul.f32 %v4426, 1.442695
      %v4688 = vpow.pop %v4687
      %v4689 = vmul.f32 %v4427, 1.442695
      %v4690 = vpow.pop %v4689
      %v4691 = vmul.f32 %v4428, 1.442695
      %v4692 = vpow.pop %v4691
      %v4693 = vmul.f32 %v4429, 1.442695
      %v4694 = vpow.pop %v4693
      %v4695 = vmul.f32 %v4430, 1.442695
      %v4696 = vpow.pop %v4695
      %v4697 = vmul.f32 %v4431, 1.442695
      %v4698 = vpow.pop %v4697
      %v4699 = vmul.f32 %v4432, 1.442695
      %v4700 = vpow.pop %v4699
      %v4701 = vmul.f32 %v4433, 1.442695
      %v4702 = vpow.pop %v4701
      %v4703 = vmul.f32 %v4434, 1.442695
      %v4704 = vpow.pop %v4703
      %v4705 = vmul.f32 %v4435, 1.442695
      %v4706 = vpow.pop %v4705
      %v4707 = vmul.f32 %v4436, 1.442695
      %v4708 = vpow.pop %v4707
      %v4709 = vmul.f32 %v4437, 1.442695
      %v4710 = vpow.pop %v4709
      %v4711 = vmul.f32 %v4438, 1.442695
      %v4712 = vpow.pop %v4711
      %v4713 = vmul.f32 %v4439, 1.442695
      %v4714 = vpow.pop %v4713
      %v4715 = vmul.f32 %v4440, 1.442695
      %v4716 = vpow.pop %v4715
      %v4717 = vmul.f32 %v4441, 1.442695
      %v4718 = vpow.pop %v4717
      %v4719 = vmul.f32 %v4442, 1.442695
      %v4720 = vpow.pop %v4719
      %v4721 = vmul.f32 %v4443, 1.442695
      %v4722 = vpow.pop %v4721
      %v4723 = vmul.f32 %v4444, 1.442695
      %v4724 = vpow.pop %v4723
      %v4725 = vmul.f32 %v4445, 1.442695
      %v4726 = vpow.pop %v4725
      %v4727 = vmul.f32 %v4446, 1.442695
      %v4728 = vpow.pop %v4727
      %v4729 = vmul.f32 %v4447, 1.442695
      %v4730 = vpow.pop %v4729
      %v4731 = vmul.f32 %v4448, 1.442695
      %v4732 = vpow.pop %v4731
      %v4733 = vmul.f32 %v4449, 1.442695
      %v4734 = vpow.pop %v4733
      %v4735 = vmul.f32 %v4450, 1.442695
      %v4736 = vpow.pop %v4735
      %v4737 = vmul.f32 %v4451, 1.442695
      %v4738 = vpow.pop %v4737
      %v4739 = vmul.f32 %v4452, 1.442695
      %v4740 = vpow.pop %v4739
      %v4741 = vmul.f32 %v4453, 1.442695
      %v4742 = vpow.pop %v4741
      %v4743 = vmul.f32 %v4454, 1.442695
      %v4744 = vpow.pop %v4743
      %v4745 = vmul.f32 %v4455, 1.442695
      %v4746 = vpow.pop %v4745
      %v4747 = vmul.f32 %v4456, 1.442695
      %v4748 = vpow.pop %v4747
      %v4749 = vmul.f32 %v4457, 1.442695
      %v4750 = vpow.pop %v4749
      %v4751 = vmul.f32 %v4458, 1.442695
      %v4752 = vpow.pop %v4751
      %v4753 = vmul.f32 %v4459, 1.442695
      %v4754 = vpow.pop %v4753
      %v4755 = vmul.f32 %v4460, 1.442695
      %v4756 = vpow.pop %v4755
      %v4757 = vmul.f32 %v4461, 1.442695
      %v4758 = vpow.pop %v4757
      %v4759 = vmul.f32 %v4462, 1.442695
      %v4760 = vpow.pop %v4759
      %v4761 = vmul.f32 %v4463, 1.442695
      %v4762 = vpow.pop %v4761
      %v4763 = vmul.f32 %v4464, 1.442695
      %v4764 = vpow.pop %v4763
      %v4765 = vmul.f32 %v4465, 1.442695
      %v4766 = vpow.pop %v4765
      %v4767 = vmul.f32 %v4466, 1.442695
      %v4768 = vpow.pop %v4767
      %v4769 = vmul.f32 %v4467, 1.442695
      %v4770 = vpow.pop %v4769
      %v4771 = vmul.f32 %v4468, 1.442695
      %v4772 = vpow.pop %v4771
      %v4773 = vmul.f32 %v4469, 1.442695
      %v4774 = vpow.pop %v4773
      %v4775 = vmul.f32 %v4470, 1.442695
      %v4776 = vpow.pop %v4775
      %v4777 = vmul.f32 %v4471, 1.442695
      %v4778 = vpow.pop %v4777
      %v4779 = vmul.f32 %v4472, 1.442695
      %v4780 = vpow.pop %v4779
      %v4781 = vmul.f32 %v4473, 1.442695
      %v4782 = vpow.pop %v4781
      %v4783 = vmul.f32 %v4474, 1.442695
      %v4784 = vpow.pop %v4783
      %v4785 = vmul.f32 %v4475, 1.442695
      %v4786 = vpow.pop %v4785
      %v4787 = vmul.f32 %v4476, 1.442695
      %v4788 = vpow.pop %v4787
      %v4789 = vmul.f32 %v4477, 1.442695
      %v4790 = vpow.pop %v4789
      %v4791 = vmul.f32 %v4478, 1.442695
      %v4792 = vpow.pop %v4791
      %v4793 = vmul.f32 %v4479, 1.442695
      %v4794 = vpow.pop %v4793
      %v4795 = vmul.f32 %v4480, 1.442695
      %v4796 = vpow.pop %v4795
      %v4797 = vmul.f32 %v4481, 1.442695
      %v4798 = vpow.pop %v4797
      %v4799 = vmul.f32 %v4482, 1.442695
      %v4800 = vpow.pop %v4799
      %v4801 = vmul.f32 %v4483, 1.442695
      %v4802 = vpow.pop %v4801
      %v4803 = vmul.f32 %v4484, 1.442695
      %v4804 = vpow.pop %v4803
      %v4805 = vmul.f32 %v4485, 1.442695
      %v4806 = vpow.pop %v4805
      %v4807 = vmul.f32 %v4486, 1.442695
      %v4808 = vpow.pop %v4807
      %v4809 = vmul.f32 %v4487, 1.442695
      %v4810 = vpow.pop %v4809
      %v4811 = vmul.f32 %v4488, 1.442695
      %v4812 = vpow.pop %v4811
      %v4813 = vmul.f32 %v4489, 1.442695
      %v4814 = vpow.pop %v4813
      %v4815 = vmul.f32 %v4490, 1.442695
      %v4816 = vpow.pop %v4815
      %v4817 = vmul.f32 %v4491, 1.442695
      %v4818 = vpow.pop %v4817
      %v4819 = vmul.f32 %v4492, 1.442695
      %v4820 = vpow.pop %v4819
      %v4821 = vmul.f32 %v4493, 1.442695
      %v4822 = vpow.pop %v4821
      %v4823 = vmul.f32 %v4494, 1.442695
      %v4824 = vpow.pop %v4823
      %v4825 = vmul.f32 %v4495, 1.442695
      %v4826 = vpow.pop %v4825
      %v4827 = vmul.f32 %v4496, 1.442695
      %v4828 = vpow.pop %v4827
      %v4829 = vmul.f32 %v4497, 1.442695
      %v4830 = vpow.pop %v4829
      %v4831 = vmul.f32 %v4498, 1.442695
      %v4832 = vpow.pop %v4831
      %v4833 = vmul.f32 %v4499, 1.442695
      %v4834 = vpow.pop %v4833
      %v4835 = vmul.f32 %v4500, 1.442695
      %v4836 = vpow.pop %v4835
      %v4837 = vmul.f32 %v4501, 1.442695
      %v4838 = vpow.pop %v4837
      %v4839 = vmul.f32 %v4502, 1.442695
      %v4840 = vpow.pop %v4839
      %v4841 = vmul.f32 %v4503, 1.442695
      %v4842 = vpow.pop %v4841
      %v4843 = vmul.f32 %v4504, 1.442695
      %v4844 = vpow.pop %v4843
      %v4845 = vmul.f32 %v4505, 1.442695
      %v4846 = vpow.pop %v4845
      %v4847 = vmul.f32 %v4506, 1.442695
      %v4848 = vpow.pop %v4847
      %v4849 = vmul.f32 %v4507, 1.442695
      %v4850 = vpow.pop %v4849
      %v4851 = vmul.f32 %v4508, 1.442695
      %v4852 = vpow.pop %v4851
      %v4853 = vmul.f32 %v4509, 1.442695
      %v4854 = vpow.pop %v4853
      %v4855 = vmul.f32 %v4510, 1.442695
      %v4856 = vpow.pop %v4855
      %v4857 = vmul.f32 %v4511, 1.442695
      %v4858 = vpow.pop %v4857
      %v4859 = vmul.f32 %v4512, 1.442695
      %v4860 = vpow.pop %v4859
      %v4861 = vmul.f32 %v4513, 1.442695
      %v4862 = vpow.pop %v4861
      %v4863 = vmul.f32 %v4514, 1.442695
      %v4864 = vpow.pop %v4863
      %v4865 = vmul.f32 %v4515, 1.442695
      %v4866 = vpow.pop %v4865
      %v4867 = vmul.f32 %v4516, 1.442695
      %v4868 = vpow.pop %v4867
      %v4869 = vmul.f32 %v4517, 1.442695
      %v4870 = vpow.pop %v4869
      %v4871 = vmul.f32 %v4518, 1.442695
      %v4872 = vpow.pop %v4871
      %v4873 = vmul.f32 %v4519, 1.442695
      %v4874 = vpow.pop %v4873
      %v4875 = vmul.f32 %v4520, 1.442695
      %v4876 = vpow.pop %v4875
      %v4877 = vmul.f32 %v4521, 1.442695
      %v4878 = vpow.pop %v4877
      %v4879 = vmul.f32 %v4522, 1.442695
      %v4880 = vpow.pop %v4879
      %v4881 = vmul.f32 %v4523, 1.442695
      %v4882 = vpow.pop %v4881
      %v4883 = vmul.f32 %v4524, 1.442695
      %v4884 = vpow.pop %v4883
      %v4885 = vmul.f32 %v4525, 1.442695
      %v4886 = vpow.pop %v4885
      %v4887 = vmul.f32 %v4526, 1.442695
      %v4888 = vpow.pop %v4887
      %v4889 = vmul.f32 %v4527, 1.442695
      %v4890 = vpow.pop %v4889
      %v4891 = vmul.f32 %v4528, 1.442695
      %v4892 = vpow.pop %v4891
      %v4893 = vmul.f32 %v4529, 1.442695
      %v4894 = vpow.pop %v4893
      %v4895 = vmul.f32 %v4530, 1.442695
      %v4896 = vpow.pop %v4895
      %v4897 = vmul.f32 %v4531, 1.442695
      %v4898 = vpow.pop %v4897
      %v4899 = vmul.f32 %v4532, 1.442695
      %v4900 = vpow.pop %v4899
      %v4901 = vmul.f32 %v4533, 1.442695
      %v4902 = vpow.pop %v4901
      %v4903 = vmul.f32 %v4534, 1.442695
      %v4904 = vpow.pop %v4903
      %v4905 = vmul.f32 %v4535, 1.442695
      %v4906 = vpow.pop %v4905
      %v4907 = vmul.f32 %v4536, 1.442695
      %v4908 = vpow.pop %v4907
      %v4909 = vmul.f32 %v4537, 1.442695
      %v4910 = vpow.pop %v4909
      %v4911 = vmul.f32 %v4538, 1.442695
      %v4912 = vpow.pop %v4911
      %v4913 = vmul.f32 %v4539, 1.442695
      %v4914 = vpow.pop %v4913
      %v4915 = vmul.f32 %v4540, 1.442695
      %v4916 = vpow.pop %v4915
      %v4917 = vmul.f32 %v4541, 1.442695
      %v4918 = vpow.pop %v4917
      %v4919 = vmul.f32 %v4542, 1.442695
      %v4920 = vpow.pop %v4919
      %v4921 = vmul.f32 %v4543, 1.442695
      %v4922 = vpow.pop %v4921
      %v4923 = vmul.f32 %v4544, 1.442695
      %v4924 = vpow.pop %v4923
      %v4925 = vmul.f32 %v4545, 1.442695
      %v4926 = vpow.pop %v4925
      %v4927 = vmul.f32 %v4546, 1.442695
      %v4928 = vpow.pop %v4927
      %v4929 = vmul.f32 %v4547, 1.442695
      %v4930 = vpow.pop %v4929
      %v4931 = vmul.f32 %v4548, 1.442695
      %v4932 = vpow.pop %v4931
      %v4933 = vadd.f32 %v4550, 1.0
      %v4934 = vadd.f32 %v4552, 1.0
      %v4935 = vadd.f32 %v4554, 1.0
      %v4936 = vadd.f32 %v4556, 1.0
      %v4937 = vadd.f32 %v4558, 1.0
      %v4938 = vadd.f32 %v4560, 1.0
      %v4939 = vadd.f32 %v4562, 1.0
      %v4940 = vadd.f32 %v4564, 1.0
      %v4941 = vadd.f32 %v4566, 1.0
      %v4942 = vadd.f32 %v4568, 1.0
      %v4943 = vadd.f32 %v4570, 1.0
      %v4944 = vadd.f32 %v4572, 1.0
      %v4945 = vadd.f32 %v4574, 1.0
      %v4946 = vadd.f32 %v4576, 1.0
      %v4947 = vadd.f32 %v4578, 1.0
      %v4948 = vadd.f32 %v4580, 1.0
      %v4949 = vadd.f32 %v4582, 1.0
      %v4950 = vadd.f32 %v4584, 1.0
      %v4951 = vadd.f32 %v4586, 1.0
      %v4952 = vadd.f32 %v4588, 1.0
      %v4953 = vadd.f32 %v4590, 1.0
      %v4954 = vadd.f32 %v4592, 1.0
      %v4955 = vadd.f32 %v4594, 1.0
      %v4956 = vadd.f32 %v4596, 1.0
      %v4957 = vadd.f32 %v4598, 1.0
      %v4958 = vadd.f32 %v4600, 1.0
      %v4959 = vadd.f32 %v4602, 1.0
      %v4960 = vadd.f32 %v4604, 1.0
      %v4961 = vadd.f32 %v4606, 1.0
      %v4962 = vadd.f32 %v4608, 1.0
      %v4963 = vadd.f32 %v4610, 1.0
      %v4964 = vadd.f32 %v4612, 1.0
      %v4965 = vadd.f32 %v4614, 1.0
      %v4966 = vadd.f32 %v4616, 1.0
      %v4967 = vadd.f32 %v4618, 1.0
      %v4968 = vadd.f32 %v4620, 1.0
      %v4969 = vadd.f32 %v4622, 1.0
      %v4970 = vadd.f32 %v4624, 1.0
      %v4971 = vadd.f32 %v4626, 1.0
      %v4972 = vadd.f32 %v4628, 1.0
      %v4973 = vadd.f32 %v4630, 1.0
      %v4974 = vadd.f32 %v4632, 1.0
      %v4975 = vadd.f32 %v4634, 1.0
      %v4976 = vadd.f32 %v4636, 1.0
      %v4977 = vadd.f32 %v4638, 1.0
      %v4978 = vadd.f32 %v4640, 1.0
      %v4979 = vadd.f32 %v4642, 1.0
      %v4980 = vadd.f32 %v4644, 1.0
      %v4981 = vadd.f32 %v4646, 1.0
      %v4982 = vadd.f32 %v4648, 1.0
      %v4983 = vadd.f32 %v4650, 1.0
      %v4984 = vadd.f32 %v4652, 1.0
      %v4985 = vadd.f32 %v4654, 1.0
      %v4986 = vadd.f32 %v4656, 1.0
      %v4987 = vadd.f32 %v4658, 1.0
      %v4988 = vadd.f32 %v4660, 1.0
      %v4989 = vadd.f32 %v4662, 1.0
      %v4990 = vadd.f32 %v4664, 1.0
      %v4991 = vadd.f32 %v4666, 1.0
      %v4992 = vadd.f32 %v4668, 1.0
      %v4993 = vadd.f32 %v4670, 1.0
      %v4994 = vadd.f32 %v4672, 1.0
      %v4995 = vadd.f32 %v4674, 1.0
      %v4996 = vadd.f32 %v4676, 1.0
      %v4997 = vadd.f32 %v4678, 1.0
      %v4998 = vadd.f32 %v4680, 1.0
      %v4999 = vadd.f32 %v4682, 1.0
      %v5000 = vadd.f32 %v4684, 1.0
      %v5001 = vadd.f32 %v4686, 1.0
      %v5002 = vadd.f32 %v4688, 1.0
      %v5003 = vadd.f32 %v4690, 1.0
      %v5004 = vadd.f32 %v4692, 1.0
      %v5005 = vadd.f32 %v4694, 1.0
      %v5006 = vadd.f32 %v4696, 1.0
      %v5007 = vadd.f32 %v4698, 1.0
      %v5008 = vadd.f32 %v4700, 1.0
      %v5009 = vadd.f32 %v4702, 1.0
      %v5010 = vadd.f32 %v4704, 1.0
      %v5011 = vadd.f32 %v4706, 1.0
      %v5012 = vadd.f32 %v4708, 1.0
      %v5013 = vadd.f32 %v4710, 1.0
      %v5014 = vadd.f32 %v4712, 1.0
      %v5015 = vadd.f32 %v4714, 1.0
      %v5016 = vadd.f32 %v4716, 1.0
      %v5017 = vadd.f32 %v4718, 1.0
      %v5018 = vadd.f32 %v4720, 1.0
      %v5019 = vadd.f32 %v4722, 1.0
      %v5020 = vadd.f32 %v4724, 1.0
      %v5021 = vadd.f32 %v4726, 1.0
      %v5022 = vadd.f32 %v4728, 1.0
      %v5023 = vadd.f32 %v4730, 1.0
      %v5024 = vadd.f32 %v4732, 1.0
      %v5025 = vadd.f32 %v4734, 1.0
      %v5026 = vadd.f32 %v4736, 1.0
      %v5027 = vadd.f32 %v4738, 1.0
      %v5028 = vadd.f32 %v4740, 1.0
      %v5029 = vadd.f32 %v4742, 1.0
      %v5030 = vadd.f32 %v4744, 1.0
      %v5031 = vadd.f32 %v4746, 1.0
      %v5032 = vadd.f32 %v4748, 1.0
      %v5033 = vadd.f32 %v4750, 1.0
      %v5034 = vadd.f32 %v4752, 1.0
      %v5035 = vadd.f32 %v4754, 1.0
      %v5036 = vadd.f32 %v4756, 1.0
      %v5037 = vadd.f32 %v4758, 1.0
      %v5038 = vadd.f32 %v4760, 1.0
      %v5039 = vadd.f32 %v4762, 1.0
      %v5040 = vadd.f32 %v4764, 1.0
      %v5041 = vadd.f32 %v4766, 1.0
      %v5042 = vadd.f32 %v4768, 1.0
      %v5043 = vadd.f32 %v4770, 1.0
      %v5044 = vadd.f32 %v4772, 1.0
      %v5045 = vadd.f32 %v4774, 1.0
      %v5046 = vadd.f32 %v4776, 1.0
      %v5047 = vadd.f32 %v4778, 1.0
      %v5048 = vadd.f32 %v4780, 1.0
      %v5049 = vadd.f32 %v4782, 1.0
      %v5050 = vadd.f32 %v4784, 1.0
      %v5051 = vadd.f32 %v4786, 1.0
      %v5052 = vadd.f32 %v4788, 1.0
      %v5053 = vadd.f32 %v4790, 1.0
      %v5054 = vadd.f32 %v4792, 1.0
      %v5055 = vadd.f32 %v4794, 1.0
      %v5056 = vadd.f32 %v4796, 1.0
      %v5057 = vadd.f32 %v4798, 1.0
      %v5058 = vadd.f32 %v4800, 1.0
      %v5059 = vadd.f32 %v4802, 1.0
      %v5060 = vadd.f32 %v4804, 1.0
      %v5061 = vadd.f32 %v4806, 1.0
      %v5062 = vadd.f32 %v4808, 1.0
      %v5063 = vadd.f32 %v4810, 1.0
      %v5064 = vadd.f32 %v4812, 1.0
      %v5065 = vadd.f32 %v4814, 1.0
      %v5066 = vadd.f32 %v4816, 1.0
      %v5067 = vadd.f32 %v4818, 1.0
      %v5068 = vadd.f32 %v4820, 1.0
      %v5069 = vadd.f32 %v4822, 1.0
      %v5070 = vadd.f32 %v4824, 1.0
      %v5071 = vadd.f32 %v4826, 1.0
      %v5072 = vadd.f32 %v4828, 1.0
      %v5073 = vadd.f32 %v4830, 1.0
      %v5074 = vadd.f32 %v4832, 1.0
      %v5075 = vadd.f32 %v4834, 1.0
      %v5076 = vadd.f32 %v4836, 1.0
      %v5077 = vadd.f32 %v4838, 1.0
      %v5078 = vadd.f32 %v4840, 1.0
      %v5079 = vadd.f32 %v4842, 1.0
      %v5080 = vadd.f32 %v4844, 1.0
      %v5081 = vadd.f32 %v4846, 1.0
      %v5082 = vadd.f32 %v4848, 1.0
      %v5083 = vadd.f32 %v4850, 1.0
      %v5084 = vadd.f32 %v4852, 1.0
      %v5085 = vadd.f32 %v4854, 1.0
      %v5086 = vadd.f32 %v4856, 1.0
      %v5087 = vadd.f32 %v4858, 1.0
      %v5088 = vadd.f32 %v4860, 1.0
      %v5089 = vadd.f32 %v4862, 1.0
      %v5090 = vadd.f32 %v4864, 1.0
      %v5091 = vadd.f32 %v4866, 1.0
      %v5092 = vadd.f32 %v4868, 1.0
      %v5093 = vadd.f32 %v4870, 1.0
      %v5094 = vadd.f32 %v4872, 1.0
      %v5095 = vadd.f32 %v4874, 1.0
      %v5096 = vadd.f32 %v4876, 1.0
      %v5097 = vadd.f32 %v4878, 1.0
      %v5098 = vadd.f32 %v4880, 1.0
      %v5099 = vadd.f32 %v4882, 1.0
      %v5100 = vadd.f32 %v4884, 1.0
      %v5101 = vadd.f32 %v4886, 1.0
      %v5102 = vadd.f32 %v4888, 1.0
      %v5103 = vadd.f32 %v4890, 1.0
      %v5104 = vadd.f32 %v4892, 1.0
      %v5105 = vadd.f32 %v4894, 1.0
      %v5106 = vadd.f32 %v4896, 1.0
      %v5107 = vadd.f32 %v4898, 1.0
      %v5108 = vadd.f32 %v4900, 1.0
      %v5109 = vadd.f32 %v4902, 1.0
      %v5110 = vadd.f32 %v4904, 1.0
      %v5111 = vadd.f32 %v4906, 1.0
      %v5112 = vadd.f32 %v4908, 1.0
      %v5113 = vadd.f32 %v4910, 1.0
      %v5114 = vadd.f32 %v4912, 1.0
      %v5115 = vadd.f32 %v4914, 1.0
      %v5116 = vadd.f32 %v4916, 1.0
      %v5117 = vadd.f32 %v4918, 1.0
      %v5118 = vadd.f32 %v4920, 1.0
      %v5119 = vadd.f32 %v4922, 1.0
      %v5120 = vadd.f32 %v4924, 1.0
      %v5121 = vadd.f32 %v4926, 1.0
      %v5122 = vadd.f32 %v4928, 1.0
      %v5123 = vadd.f32 %v4930, 1.0
      %v5124 = vadd.f32 %v4932, 1.0
      %v5125 = vrcp.pop %v4933
      %v5126 = vmul.f32 1.0, %v5125
      %v5127 = vrcp.pop %v4934
      %v5128 = vmul.f32 1.0, %v5127
      %v5129 = vrcp.pop %v4935
      %v5130 = vmul.f32 1.0, %v5129
      %v5131 = vrcp.pop %v4936
      %v5132 = vmul.f32 1.0, %v5131
      %v5133 = vrcp.pop %v4937
      %v5134 = vmul.f32 1.0, %v5133
      %v5135 = vrcp.pop %v4938
      %v5136 = vmul.f32 1.0, %v5135
      %v5137 = vrcp.pop %v4939
      %v5138 = vmul.f32 1.0, %v5137
      %v5139 = vrcp.pop %v4940
      %v5140 = vmul.f32 1.0, %v5139
      %v5141 = vrcp.pop %v4941
      %v5142 = vmul.f32 1.0, %v5141
      %v5143 = vrcp.pop %v4942
      %v5144 = vmul.f32 1.0, %v5143
      %v5145 = vrcp.pop %v4943
      %v5146 = vmul.f32 1.0, %v5145
      %v5147 = vrcp.pop %v4944
      %v5148 = vmul.f32 1.0, %v5147
      %v5149 = vrcp.pop %v4945
      %v5150 = vmul.f32 1.0, %v5149
      %v5151 = vrcp.pop %v4946
      %v5152 = vmul.f32 1.0, %v5151
      %v5153 = vrcp.pop %v4947
      %v5154 = vmul.f32 1.0, %v5153
      %v5155 = vrcp.pop %v4948
      %v5156 = vmul.f32 1.0, %v5155
      %v5157 = vrcp.pop %v4949
      %v5158 = vmul.f32 1.0, %v5157
      %v5159 = vrcp.pop %v4950
      %v5160 = vmul.f32 1.0, %v5159
      %v5161 = vrcp.pop %v4951
      %v5162 = vmul.f32 1.0, %v5161
      %v5163 = vrcp.pop %v4952
      %v5164 = vmul.f32 1.0, %v5163
      %v5165 = vrcp.pop %v4953
      %v5166 = vmul.f32 1.0, %v5165
      %v5167 = vrcp.pop %v4954
      %v5168 = vmul.f32 1.0, %v5167
      %v5169 = vrcp.pop %v4955
      %v5170 = vmul.f32 1.0, %v5169
      %v5171 = vrcp.pop %v4956
      %v5172 = vmul.f32 1.0, %v5171
      %v5173 = vrcp.pop %v4957
      %v5174 = vmul.f32 1.0, %v5173
      %v5175 = vrcp.pop %v4958
      %v5176 = vmul.f32 1.0, %v5175
      %v5177 = vrcp.pop %v4959
      %v5178 = vmul.f32 1.0, %v5177
      %v5179 = vrcp.pop %v4960
      %v5180 = vmul.f32 1.0, %v5179
      %v5181 = vrcp.pop %v4961
      %v5182 = vmul.f32 1.0, %v5181
      %v5183 = vrcp.pop %v4962
      %v5184 = vmul.f32 1.0, %v5183
      %v5185 = vrcp.pop %v4963
      %v5186 = vmul.f32 1.0, %v5185
      %v5187 = vrcp.pop %v4964
      %v5188 = vmul.f32 1.0, %v5187
      %v5189 = vrcp.pop %v4965
      %v5190 = vmul.f32 1.0, %v5189
      %v5191 = vrcp.pop %v4966
      %v5192 = vmul.f32 1.0, %v5191
      %v5193 = vrcp.pop %v4967
      %v5194 = vmul.f32 1.0, %v5193
      %v5195 = vrcp.pop %v4968
      %v5196 = vmul.f32 1.0, %v5195
      %v5197 = vrcp.pop %v4969
      %v5198 = vmul.f32 1.0, %v5197
      %v5199 = vrcp.pop %v4970
      %v5200 = vmul.f32 1.0, %v5199
      %v5201 = vrcp.pop %v4971
      %v5202 = vmul.f32 1.0, %v5201
      %v5203 = vrcp.pop %v4972
      %v5204 = vmul.f32 1.0, %v5203
      %v5205 = vrcp.pop %v4973
      %v5206 = vmul.f32 1.0, %v5205
      %v5207 = vrcp.pop %v4974
      %v5208 = vmul.f32 1.0, %v5207
      %v5209 = vrcp.pop %v4975
      %v5210 = vmul.f32 1.0, %v5209
      %v5211 = vrcp.pop %v4976
      %v5212 = vmul.f32 1.0, %v5211
      %v5213 = vrcp.pop %v4977
      %v5214 = vmul.f32 1.0, %v5213
      %v5215 = vrcp.pop %v4978
      %v5216 = vmul.f32 1.0, %v5215
      %v5217 = vrcp.pop %v4979
      %v5218 = vmul.f32 1.0, %v5217
      %v5219 = vrcp.pop %v4980
      %v5220 = vmul.f32 1.0, %v5219
      %v5221 = vrcp.pop %v4981
      %v5222 = vmul.f32 1.0, %v5221
      %v5223 = vrcp.pop %v4982
      %v5224 = vmul.f32 1.0, %v5223
      %v5225 = vrcp.pop %v4983
      %v5226 = vmul.f32 1.0, %v5225
      %v5227 = vrcp.pop %v4984
      %v5228 = vmul.f32 1.0, %v5227
      %v5229 = vrcp.pop %v4985
      %v5230 = vmul.f32 1.0, %v5229
      %v5231 = vrcp.pop %v4986
      %v5232 = vmul.f32 1.0, %v5231
      %v5233 = vrcp.pop %v4987
      %v5234 = vmul.f32 1.0, %v5233
      %v5235 = vrcp.pop %v4988
      %v5236 = vmul.f32 1.0, %v5235
      %v5237 = vrcp.pop %v4989
      %v5238 = vmul.f32 1.0, %v5237
      %v5239 = vrcp.pop %v4990
      %v5240 = vmul.f32 1.0, %v5239
      %v5241 = vrcp.pop %v4991
      %v5242 = vmul.f32 1.0, %v5241
      %v5243 = vrcp.pop %v4992
      %v5244 = vmul.f32 1.0, %v5243
      %v5245 = vrcp.pop %v4993
      %v5246 = vmul.f32 1.0, %v5245
      %v5247 = vrcp.pop %v4994
      %v5248 = vmul.f32 1.0, %v5247
      %v5249 = vrcp.pop %v4995
      %v5250 = vmul.f32 1.0, %v5249
      %v5251 = vrcp.pop %v4996
      %v5252 = vmul.f32 1.0, %v5251
      %v5253 = vrcp.pop %v4997
      %v5254 = vmul.f32 1.0, %v5253
      %v5255 = vrcp.pop %v4998
      %v5256 = vmul.f32 1.0, %v5255
      %v5257 = vrcp.pop %v4999
      %v5258 = vmul.f32 1.0, %v5257
      %v5259 = vrcp.pop %v5000
      %v5260 = vmul.f32 1.0, %v5259
      %v5261 = vrcp.pop %v5001
      %v5262 = vmul.f32 1.0, %v5261
      %v5263 = vrcp.pop %v5002
      %v5264 = vmul.f32 1.0, %v5263
      %v5265 = vrcp.pop %v5003
      %v5266 = vmul.f32 1.0, %v5265
      %v5267 = vrcp.pop %v5004
      %v5268 = vmul.f32 1.0, %v5267
      %v5269 = vrcp.pop %v5005
      %v5270 = vmul.f32 1.0, %v5269
      %v5271 = vrcp.pop %v5006
      %v5272 = vmul.f32 1.0, %v5271
      %v5273 = vrcp.pop %v5007
      %v5274 = vmul.f32 1.0, %v5273
      %v5275 = vrcp.pop %v5008
      %v5276 = vmul.f32 1.0, %v5275
      %v5277 = vrcp.pop %v5009
      %v5278 = vmul.f32 1.0, %v5277
      %v5279 = vrcp.pop %v5010
      %v5280 = vmul.f32 1.0, %v5279
      %v5281 = vrcp.pop %v5011
      %v5282 = vmul.f32 1.0, %v5281
      %v5283 = vrcp.pop %v5012
      %v5284 = vmul.f32 1.0, %v5283
      %v5285 = vrcp.pop %v5013
      %v5286 = vmul.f32 1.0, %v5285
      %v5287 = vrcp.pop %v5014
      %v5288 = vmul.f32 1.0, %v5287
      %v5289 = vrcp.pop %v5015
      %v5290 = vmul.f32 1.0, %v5289
      %v5291 = vrcp.pop %v5016
      %v5292 = vmul.f32 1.0, %v5291
      %v5293 = vrcp.pop %v5017
      %v5294 = vmul.f32 1.0, %v5293
      %v5295 = vrcp.pop %v5018
      %v5296 = vmul.f32 1.0, %v5295
      %v5297 = vrcp.pop %v5019
      %v5298 = vmul.f32 1.0, %v5297
      %v5299 = vrcp.pop %v5020
      %v5300 = vmul.f32 1.0, %v5299
      %v5301 = vrcp.pop %v5021
      %v5302 = vmul.f32 1.0, %v5301
      %v5303 = vrcp.pop %v5022
      %v5304 = vmul.f32 1.0, %v5303
      %v5305 = vrcp.pop %v5023
      %v5306 = vmul.f32 1.0, %v5305
      %v5307 = vrcp.pop %v5024
      %v5308 = vmul.f32 1.0, %v5307
      %v5309 = vrcp.pop %v5025
      %v5310 = vmul.f32 1.0, %v5309
      %v5311 = vrcp.pop %v5026
      %v5312 = vmul.f32 1.0, %v5311
      %v5313 = vrcp.pop %v5027
      %v5314 = vmul.f32 1.0, %v5313
      %v5315 = vrcp.pop %v5028
      %v5316 = vmul.f32 1.0, %v5315
      %v5317 = vrcp.pop %v5029
      %v5318 = vmul.f32 1.0, %v5317
      %v5319 = vrcp.pop %v5030
      %v5320 = vmul.f32 1.0, %v5319
      %v5321 = vrcp.pop %v5031
      %v5322 = vmul.f32 1.0, %v5321
      %v5323 = vrcp.pop %v5032
      %v5324 = vmul.f32 1.0, %v5323
      %v5325 = vrcp.pop %v5033
      %v5326 = vmul.f32 1.0, %v5325
      %v5327 = vrcp.pop %v5034
      %v5328 = vmul.f32 1.0, %v5327
      %v5329 = vrcp.pop %v5035
      %v5330 = vmul.f32 1.0, %v5329
      %v5331 = vrcp.pop %v5036
      %v5332 = vmul.f32 1.0, %v5331
      %v5333 = vrcp.pop %v5037
      %v5334 = vmul.f32 1.0, %v5333
      %v5335 = vrcp.pop %v5038
      %v5336 = vmul.f32 1.0, %v5335
      %v5337 = vrcp.pop %v5039
      %v5338 = vmul.f32 1.0, %v5337
      %v5339 = vrcp.pop %v5040
      %v5340 = vmul.f32 1.0, %v5339
      %v5341 = vrcp.pop %v5041
      %v5342 = vmul.f32 1.0, %v5341
      %v5343 = vrcp.pop %v5042
      %v5344 = vmul.f32 1.0, %v5343
      %v5345 = vrcp.pop %v5043
      %v5346 = vmul.f32 1.0, %v5345
      %v5347 = vrcp.pop %v5044
      %v5348 = vmul.f32 1.0, %v5347
      %v5349 = vrcp.pop %v5045
      %v5350 = vmul.f32 1.0, %v5349
      %v5351 = vrcp.pop %v5046
      %v5352 = vmul.f32 1.0, %v5351
      %v5353 = vrcp.pop %v5047
      %v5354 = vmul.f32 1.0, %v5353
      %v5355 = vrcp.pop %v5048
      %v5356 = vmul.f32 1.0, %v5355
      %v5357 = vrcp.pop %v5049
      %v5358 = vmul.f32 1.0, %v5357
      %v5359 = vrcp.pop %v5050
      %v5360 = vmul.f32 1.0, %v5359
      %v5361 = vrcp.pop %v5051
      %v5362 = vmul.f32 1.0, %v5361
      %v5363 = vrcp.pop %v5052
      %v5364 = vmul.f32 1.0, %v5363
      %v5365 = vrcp.pop %v5053
      %v5366 = vmul.f32 1.0, %v5365
      %v5367 = vrcp.pop %v5054
      %v5368 = vmul.f32 1.0, %v5367
      %v5369 = vrcp.pop %v5055
      %v5370 = vmul.f32 1.0, %v5369
      %v5371 = vrcp.pop %v5056
      %v5372 = vmul.f32 1.0, %v5371
      %v5373 = vrcp.pop %v5057
      %v5374 = vmul.f32 1.0, %v5373
      %v5375 = vrcp.pop %v5058
      %v5376 = vmul.f32 1.0, %v5375
      %v5377 = vrcp.pop %v5059
      %v5378 = vmul.f32 1.0, %v5377
      %v5379 = vrcp.pop %v5060
      %v5380 = vmul.f32 1.0, %v5379
      %v5381 = vrcp.pop %v5061
      %v5382 = vmul.f32 1.0, %v5381
      %v5383 = vrcp.pop %v5062
      %v5384 = vmul.f32 1.0, %v5383
      %v5385 = vrcp.pop %v5063
      %v5386 = vmul.f32 1.0, %v5385
      %v5387 = vrcp.pop %v5064
      %v5388 = vmul.f32 1.0, %v5387
      %v5389 = vrcp.pop %v5065
      %v5390 = vmul.f32 1.0, %v5389
      %v5391 = vrcp.pop %v5066
      %v5392 = vmul.f32 1.0, %v5391
      %v5393 = vrcp.pop %v5067
      %v5394 = vmul.f32 1.0, %v5393
      %v5395 = vrcp.pop %v5068
      %v5396 = vmul.f32 1.0, %v5395
      %v5397 = vrcp.pop %v5069
      %v5398 = vmul.f32 1.0, %v5397
      %v5399 = vrcp.pop %v5070
      %v5400 = vmul.f32 1.0, %v5399
      %v5401 = vrcp.pop %v5071
      %v5402 = vmul.f32 1.0, %v5401
      %v5403 = vrcp.pop %v5072
      %v5404 = vmul.f32 1.0, %v5403
      %v5405 = vrcp.pop %v5073
      %v5406 = vmul.f32 1.0, %v5405
      %v5407 = vrcp.pop %v5074
      %v5408 = vmul.f32 1.0, %v5407
      %v5409 = vrcp.pop %v5075
      %v5410 = vmul.f32 1.0, %v5409
      %v5411 = vrcp.pop %v5076
      %v5412 = vmul.f32 1.0, %v5411
      %v5413 = vrcp.pop %v5077
      %v5414 = vmul.f32 1.0, %v5413
      %v5415 = vrcp.pop %v5078
      %v5416 = vmul.f32 1.0, %v5415
      %v5417 = vrcp.pop %v5079
      %v5418 = vmul.f32 1.0, %v5417
      %v5419 = vrcp.pop %v5080
      %v5420 = vmul.f32 1.0, %v5419
      %v5421 = vrcp.pop %v5081
      %v5422 = vmul.f32 1.0, %v5421
      %v5423 = vrcp.pop %v5082
      %v5424 = vmul.f32 1.0, %v5423
      %v5425 = vrcp.pop %v5083
      %v5426 = vmul.f32 1.0, %v5425
      %v5427 = vrcp.pop %v5084
      %v5428 = vmul.f32 1.0, %v5427
      %v5429 = vrcp.pop %v5085
      %v5430 = vmul.f32 1.0, %v5429
      %v5431 = vrcp.pop %v5086
      %v5432 = vmul.f32 1.0, %v5431
      %v5433 = vrcp.pop %v5087
      %v5434 = vmul.f32 1.0, %v5433
      %v5435 = vrcp.pop %v5088
      %v5436 = vmul.f32 1.0, %v5435
      %v5437 = vrcp.pop %v5089
      %v5438 = vmul.f32 1.0, %v5437
      %v5439 = vrcp.pop %v5090
      %v5440 = vmul.f32 1.0, %v5439
      %v5441 = vrcp.pop %v5091
      %v5442 = vmul.f32 1.0, %v5441
      %v5443 = vrcp.pop %v5092
      %v5444 = vmul.f32 1.0, %v5443
      %v5445 = vrcp.pop %v5093
      %v5446 = vmul.f32 1.0, %v5445
      %v5447 = vrcp.pop %v5094
      %v5448 = vmul.f32 1.0, %v5447
      %v5449 = vrcp.pop %v5095
      %v5450 = vmul.f32 1.0, %v5449
      %v5451 = vrcp.pop %v5096
      %v5452 = vmul.f32 1.0, %v5451
      %v5453 = vrcp.pop %v5097
      %v5454 = vmul.f32 1.0, %v5453
      %v5455 = vrcp.pop %v5098
      %v5456 = vmul.f32 1.0, %v5455
      %v5457 = vrcp.pop %v5099
      %v5458 = vmul.f32 1.0, %v5457
      %v5459 = vrcp.pop %v5100
      %v5460 = vmul.f32 1.0, %v5459
      %v5461 = vrcp.pop %v5101
      %v5462 = vmul.f32 1.0, %v5461
      %v5463 = vrcp.pop %v5102
      %v5464 = vmul.f32 1.0, %v5463
      %v5465 = vrcp.pop %v5103
      %v5466 = vmul.f32 1.0, %v5465
      %v5467 = vrcp.pop %v5104
      %v5468 = vmul.f32 1.0, %v5467
      %v5469 = vrcp.pop %v5105
      %v5470 = vmul.f32 1.0, %v5469
      %v5471 = vrcp.pop %v5106
      %v5472 = vmul.f32 1.0, %v5471
      %v5473 = vrcp.pop %v5107
      %v5474 = vmul.f32 1.0, %v5473
      %v5475 = vrcp.pop %v5108
      %v5476 = vmul.f32 1.0, %v5475
      %v5477 = vrcp.pop %v5109
      %v5478 = vmul.f32 1.0, %v5477
      %v5479 = vrcp.pop %v5110
      %v5480 = vmul.f32 1.0, %v5479
      %v5481 = vrcp.pop %v5111
      %v5482 = vmul.f32 1.0, %v5481
      %v5483 = vrcp.pop %v5112
      %v5484 = vmul.f32 1.0, %v5483
      %v5485 = vrcp.pop %v5113
      %v5486 = vmul.f32 1.0, %v5485
      %v5487 = vrcp.pop %v5114
      %v5488 = vmul.f32 1.0, %v5487
      %v5489 = vrcp.pop %v5115
      %v5490 = vmul.f32 1.0, %v5489
      %v5491 = vrcp.pop %v5116
      %v5492 = vmul.f32 1.0, %v5491
      %v5493 = vrcp.pop %v5117
      %v5494 = vmul.f32 1.0, %v5493
      %v5495 = vrcp.pop %v5118
      %v5496 = vmul.f32 1.0, %v5495
      %v5497 = vrcp.pop %v5119
      %v5498 = vmul.f32 1.0, %v5497
      %v5499 = vrcp.pop %v5120
      %v5500 = vmul.f32 1.0, %v5499
      %v5501 = vrcp.pop %v5121
      %v5502 = vmul.f32 1.0, %v5501
      %v5503 = vrcp.pop %v5122
      %v5504 = vmul.f32 1.0, %v5503
      %v5505 = vrcp.pop %v5123
      %v5506 = vmul.f32 1.0, %v5505
      %v5507 = vrcp.pop %v5124
      %v5508 = vmul.f32 1.0, %v5507
      %v5509 = vmul.f32 %v5126, %v1574
      %v5510 = vmul.f32 %v5128, %v1576
      %v5511 = vmul.f32 %v5134, %v1580
      %v5512 = vmul.f32 %v5136, %v1582
      %v5513 = vmul.f32 %v5142, %v1586
      %v5514 = vmul.f32 %v5144, %v1588
      %v5515 = vmul.f32 %v5150, %v1592
      %v5516 = vmul.f32 %v5152, %v1594
      %v5517 = vmul.f32 %v5158, %v1598
      %v5518 = vmul.f32 %v5160, %v1600
      %v5519 = vmul.f32 %v5166, %v1604
      %v5520 = vmul.f32 %v5168, %v1606
      %v5521 = vmul.f32 %v5174, %v1610
      %v5522 = vmul.f32 %v5176, %v1612
      %v5523 = vmul.f32 %v5182, %v1616
      %v5524 = vmul.f32 %v5184, %v1618
      %v5525 = vmul.f32 %v5190, %v1622
      %v5526 = vmul.f32 %v5192, %v1624
      %v5527 = vmul.f32 %v5198, %v1628
      %v5528 = vmul.f32 %v5200, %v1630
      %v5529 = vmul.f32 %v5206, %v1634
      %v5530 = vmul.f32 %v5208, %v1636
      %v5531 = vmul.f32 %v5214, %v1640
      %v5532 = vmul.f32 %v5216, %v1642
      %v5533 = vmul.f32 %v5222, %v1646
      %v5534 = vmul.f32 %v5224, %v1648
      %v5535 = vmul.f32 %v5230, %v1652
      %v5536 = vmul.f32 %v5232, %v1654
      %v5537 = vmul.f32 %v5238, %v1658
      %v5538 = vmul.f32 %v5240, %v1660
      %v5539 = vmul.f32 %v5246, %v1664
      %v5540 = vmul.f32 %v5248, %v1666
      %v5541 = vmul.f32 %v5254, %v1670
      %v5542 = vmul.f32 %v5256, %v1672
      %v5543 = vmul.f32 %v5262, %v1676
      %v5544 = vmul.f32 %v5264, %v1678
      %v5545 = vmul.f32 %v5270, %v1682
      %v5546 = vmul.f32 %v5272, %v1684
      %v5547 = vmul.f32 %v5278, %v1688
      %v5548 = vmul.f32 %v5280, %v1690
      %v5549 = vmul.f32 %v5286, %v1694
      %v5550 = vmul.f32 %v5288, %v1696
      %v5551 = vmul.f32 %v5294, %v1700
      %v5552 = vmul.f32 %v5296, %v1702
      %v5553 = vmul.f32 %v5302, %v1706
      %v5554 = vmul.f32 %v5304, %v1708
      %v5555 = vmul.f32 %v5310, %v1712
      %v5556 = vmul.f32 %v5312, %v1714
      %v5557 = vmul.f32 %v5318, %v1718
      %v5558 = vmul.f32 %v5320, %v1720
      %v5559 = vmul.f32 %v5326, %v1724
      %v5560 = vmul.f32 %v5328, %v1726
      %v5561 = vmul.f32 %v5334, %v1730
      %v5562 = vmul.f32 %v5336, %v1732
      %v5563 = vmul.f32 %v5342, %v1736
      %v5564 = vmul.f32 %v5344, %v1738
      %v5565 = vmul.f32 %v5350, %v1742
      %v5566 = vmul.f32 %v5352, %v1744
      %v5567 = vmul.f32 %v5358, %v1748
      %v5568 = vmul.f32 %v5360, %v1750
      %v5569 = vmul.f32 %v5366, %v1754
      %v5570 = vmul.f32 %v5368, %v1756
      %v5571 = vmul.f32 %v5374, %v1760
      %v5572 = vmul.f32 %v5376, %v1762
      %v5573 = vmul.f32 %v5382, %v1766
      %v5574 = vmul.f32 %v5384, %v1768
      %v5575 = vmul.f32 %v5390, %v1772
      %v5576 = vmul.f32 %v5392, %v1774
      %v5577 = vmul.f32 %v5398, %v1778
      %v5578 = vmul.f32 %v5400, %v1780
      %v5579 = vmul.f32 %v5406, %v1784
      %v5580 = vmul.f32 %v5408, %v1786
      %v5581 = vmul.f32 %v5414, %v1790
      %v5582 = vmul.f32 %v5416, %v1792
      %v5583 = vmul.f32 %v5422, %v1796
      %v5584 = vmul.f32 %v5424, %v1798
      %v5585 = vmul.f32 %v5430, %v1802
      %v5586 = vmul.f32 %v5432, %v1804
      %v5587 = vmul.f32 %v5438, %v1808
      %v5588 = vmul.f32 %v5440, %v1810
      %v5589 = vmul.f32 %v5446, %v1814
      %v5590 = vmul.f32 %v5448, %v1816
      %v5591 = vmul.f32 %v5454, %v1820
      %v5592 = vmul.f32 %v5456, %v1822
      %v5593 = vmul.f32 %v5462, %v1826
      %v5594 = vmul.f32 %v5464, %v1828
      %v5595 = vmul.f32 %v5470, %v1832
      %v5596 = vmul.f32 %v5472, %v1834
      %v5597 = vmul.f32 %v5478, %v1838
      %v5598 = vmul.f32 %v5480, %v1840
      %v5599 = vmul.f32 %v5486, %v1844
      %v5600 = vmul.f32 %v5488, %v1846
      %v5601 = vmul.f32 %v5494, %v1850
      %v5602 = vmul.f32 %v5496, %v1852
      %v5603 = vmul.f32 %v5502, %v1856
      %v5604 = vmul.f32 %v5504, %v1858
      %v5605 = vmul.f32 %v5130, %v1927
      %v5606 = vmul.f32 %v5132, %v1929
      %v5607 = vmul.f32 %v5138, %v1933
      %v5608 = vmul.f32 %v5140, %v1935
      %v5609 = vmul.f32 %v5146, %v1939
      %v5610 = vmul.f32 %v5148, %v1941
      %v5611 = vmul.f32 %v5154, %v1945
      %v5612 = vmul.f32 %v5156, %v1947
      %v5613 = vmul.f32 %v5162, %v1951
      %v5614 = vmul.f32 %v5164, %v1953
      %v5615 = vmul.f32 %v5170, %v1957
      %v5616 = vmul.f32 %v5172, %v1959
      %v5617 = vmul.f32 %v5178, %v1963
      %v5618 = vmul.f32 %v5180, %v1965
      %v5619 = vmul.f32 %v5186, %v1969
      %v5620 = vmul.f32 %v5188, %v1971
      %v5621 = vmul.f32 %v5194, %v1975
      %v5622 = vmul.f32 %v5196, %v1977
      %v5623 = vmul.f32 %v5202, %v1981
      %v5624 = vmul.f32 %v5204, %v1983
      %v5625 = vmul.f32 %v5210, %v1987
      %v5626 = vmul.f32 %v5212, %v1989
      %v5627 = vmul.f32 %v5218, %v1993
      %v5628 = vmul.f32 %v5220, %v1995
      %v5629 = vmul.f32 %v5226, %v1999
      %v5630 = vmul.f32 %v5228, %v2001
      %v5631 = vmul.f32 %v5234, %v2005
      %v5632 = vmul.f32 %v5236, %v2007
      %v5633 = vmul.f32 %v5242, %v2011
      %v5634 = vmul.f32 %v5244, %v2013
      %v5635 = vmul.f32 %v5250, %v2017
      %v5636 = vmul.f32 %v5252, %v2019
      %v5637 = vmul.f32 %v5258, %v2023
      %v5638 = vmul.f32 %v5260, %v2025
      %v5639 = vmul.f32 %v5266, %v2029
      %v5640 = vmul.f32 %v5268, %v2031
      %v5641 = vmul.f32 %v5274, %v2035
      %v5642 = vmul.f32 %v5276, %v2037
      %v5643 = vmul.f32 %v5282, %v2041
      %v5644 = vmul.f32 %v5284, %v2043
      %v5645 = vmul.f32 %v5290, %v2047
      %v5646 = vmul.f32 %v5292, %v2049
      %v5647 = vmul.f32 %v5298, %v2053
      %v5648 = vmul.f32 %v5300, %v2055
      %v5649 = vmul.f32 %v5306, %v2059
      %v5650 = vmul.f32 %v5308, %v2061
      %v5651 = vmul.f32 %v5314, %v2065
      %v5652 = vmul.f32 %v5316, %v2067
      %v5653 = vmul.f32 %v5322, %v2071
      %v5654 = vmul.f32 %v5324, %v2073
      %v5655 = vmul.f32 %v5330, %v2077
      %v5656 = vmul.f32 %v5332, %v2079
      %v5657 = vmul.f32 %v5338, %v2083
      %v5658 = vmul.f32 %v5340, %v2085
      %v5659 = vmul.f32 %v5346, %v2089
      %v5660 = vmul.f32 %v5348, %v2091
      %v5661 = vmul.f32 %v5354, %v2095
      %v5662 = vmul.f32 %v5356, %v2097
      %v5663 = vmul.f32 %v5362, %v2101
      %v5664 = vmul.f32 %v5364, %v2103
      %v5665 = vmul.f32 %v5370, %v2107
      %v5666 = vmul.f32 %v5372, %v2109
      %v5667 = vmul.f32 %v5378, %v2113
      %v5668 = vmul.f32 %v5380, %v2115
      %v5669 = vmul.f32 %v5386, %v2119
      %v5670 = vmul.f32 %v5388, %v2121
      %v5671 = vmul.f32 %v5394, %v2125
      %v5672 = vmul.f32 %v5396, %v2127
      %v5673 = vmul.f32 %v5402, %v2131
      %v5674 = vmul.f32 %v5404, %v2133
      %v5675 = vmul.f32 %v5410, %v2137
      %v5676 = vmul.f32 %v5412, %v2139
      %v5677 = vmul.f32 %v5418, %v2143
      %v5678 = vmul.f32 %v5420, %v2145
      %v5679 = vmul.f32 %v5426, %v2149
      %v5680 = vmul.f32 %v5428, %v2151
      %v5681 = vmul.f32 %v5434, %v2155
      %v5682 = vmul.f32 %v5436, %v2157
      %v5683 = vmul.f32 %v5442, %v2161
      %v5684 = vmul.f32 %v5444, %v2163
      %v5685 = vmul.f32 %v5450, %v2167
      %v5686 = vmul.f32 %v5452, %v2169
      %v5687 = vmul.f32 %v5458, %v2173
      %v5688 = vmul.f32 %v5460, %v2175
      %v5689 = vmul.f32 %v5466, %v2179
      %v5690 = vmul.f32 %v5468, %v2181
      %v5691 = vmul.f32 %v5474, %v2185
      %v5692 = vmul.f32 %v5476, %v2187
      %v5693 = vmul.f32 %v5482, %v2191
      %v5694 = vmul.f32 %v5484, %v2193
      %v5695 = vmul.f32 %v5490, %v2197
      %v5696 = vmul.f32 %v5492, %v2199
      %v5697 = vmul.f32 %v5498, %v2203
      %v5698 = vmul.f32 %v5500, %v2205
      %v5699 = vmul.f32 %v5506, %v2209
      %v5700 = vmul.f32 %v5508, %v2211
      %v5701 = vsub.f32 %v5509, %v5605
      %v5702 = vsub.f32 %v5510, %v5606
      %v5703 = vsub.f32 %v5511, %v5607
      %v5704 = vsub.f32 %v5512, %v5608
      %v5705 = vsub.f32 %v5513, %v5609
      %v5706 = vsub.f32 %v5514, %v5610
      %v5707 = vsub.f32 %v5515, %v5611
      %v5708 = vsub.f32 %v5516, %v5612
      %v5709 = vsub.f32 %v5517, %v5613
      %v5710 = vsub.f32 %v5518, %v5614
      %v5711 = vsub.f32 %v5519, %v5615
      %v5712 = vsub.f32 %v5520, %v5616
      %v5713 = vsub.f32 %v5521, %v5617
      %v5714 = vsub.f32 %v5522, %v5618
      %v5715 = vsub.f32 %v5523, %v5619
      %v5716 = vsub.f32 %v5524, %v5620
      %v5717 = vsub.f32 %v5525, %v5621
      %v5718 = vsub.f32 %v5526, %v5622
      %v5719 = vsub.f32 %v5527, %v5623
      %v5720 = vsub.f32 %v5528, %v5624
      %v5721 = vsub.f32 %v5529, %v5625
      %v5722 = vsub.f32 %v5530, %v5626
      %v5723 = vsub.f32 %v5531, %v5627
      %v5724 = vsub.f32 %v5532, %v5628
      %v5725 = vsub.f32 %v5533, %v5629
      %v5726 = vsub.f32 %v5534, %v5630
      %v5727 = vsub.f32 %v5535, %v5631
      %v5728 = vsub.f32 %v5536, %v5632
      %v5729 = vsub.f32 %v5537, %v5633
      %v5730 = vsub.f32 %v5538, %v5634
      %v5731 = vsub.f32 %v5539, %v5635
      %v5732 = vsub.f32 %v5540, %v5636
      %v5733 = vsub.f32 %v5541, %v5637
      %v5734 = vsub.f32 %v5542, %v5638
      %v5735 = vsub.f32 %v5543, %v5639
      %v5736 = vsub.f32 %v5544, %v5640
      %v5737 = vsub.f32 %v5545, %v5641
      %v5738 = vsub.f32 %v5546, %v5642
      %v5739 = vsub.f32 %v5547, %v5643
      %v5740 = vsub.f32 %v5548, %v5644
      %v5741 = vsub.f32 %v5549, %v5645
      %v5742 = vsub.f32 %v5550, %v5646
      %v5743 = vsub.f32 %v5551, %v5647
      %v5744 = vsub.f32 %v5552, %v5648
      %v5745 = vsub.f32 %v5553, %v5649
      %v5746 = vsub.f32 %v5554, %v5650
      %v5747 = vsub.f32 %v5555, %v5651
      %v5748 = vsub.f32 %v5556, %v5652
      %v5749 = vsub.f32 %v5557, %v5653
      %v5750 = vsub.f32 %v5558, %v5654
      %v5751 = vsub.f32 %v5559, %v5655
      %v5752 = vsub.f32 %v5560, %v5656
      %v5753 = vsub.f32 %v5561, %v5657
      %v5754 = vsub.f32 %v5562, %v5658
      %v5755 = vsub.f32 %v5563, %v5659
      %v5756 = vsub.f32 %v5564, %v5660
      %v5757 = vsub.f32 %v5565, %v5661
      %v5758 = vsub.f32 %v5566, %v5662
      %v5759 = vsub.f32 %v5567, %v5663
      %v5760 = vsub.f32 %v5568, %v5664
      %v5761 = vsub.f32 %v5569, %v5665
      %v5762 = vsub.f32 %v5570, %v5666
      %v5763 = vsub.f32 %v5571, %v5667
      %v5764 = vsub.f32 %v5572, %v5668
      %v5765 = vsub.f32 %v5573, %v5669
      %v5766 = vsub.f32 %v5574, %v5670
      %v5767 = vsub.f32 %v5575, %v5671
      %v5768 = vsub.f32 %v5576, %v5672
      %v5769 = vsub.f32 %v5577, %v5673
      %v5770 = vsub.f32 %v5578, %v5674
      %v5771 = vsub.f32 %v5579, %v5675
      %v5772 = vsub.f32 %v5580, %v5676
      %v5773 = vsub.f32 %v5581, %v5677
      %v5774 = vsub.f32 %v5582, %v5678
      %v5775 = vsub.f32 %v5583, %v5679
      %v5776 = vsub.f32 %v5584, %v5680
      %v5777 = vsub.f32 %v5585, %v5681
      %v5778 = vsub.f32 %v5586, %v5682
      %v5779 = vsub.f32 %v5587, %v5683
      %v5780 = vsub.f32 %v5588, %v5684
      %v5781 = vsub.f32 %v5589, %v5685
      %v5782 = vsub.f32 %v5590, %v5686
      %v5783 = vsub.f32 %v5591, %v5687
      %v5784 = vsub.f32 %v5592, %v5688
      %v5785 = vsub.f32 %v5593, %v5689
      %v5786 = vsub.f32 %v5594, %v5690
      %v5787 = vsub.f32 %v5595, %v5691
      %v5788 = vsub.f32 %v5596, %v5692
      %v5789 = vsub.f32 %v5597, %v5693
      %v5790 = vsub.f32 %v5598, %v5694
      %v5791 = vsub.f32 %v5599, %v5695
      %v5792 = vsub.f32 %v5600, %v5696
      %v5793 = vsub.f32 %v5601, %v5697
      %v5794 = vsub.f32 %v5602, %v5698
      %v5795 = vsub.f32 %v5603, %v5699
      %v5796 = vsub.f32 %v5604, %v5700
      %v5797 = vmul.f32 %v5126, %v1927
      %v5798 = vmul.f32 %v5128, %v1929
      %v5799 = vmul.f32 %v5134, %v1933
      %v5800 = vmul.f32 %v5136, %v1935
      %v5801 = vmul.f32 %v5142, %v1939
      %v5802 = vmul.f32 %v5144, %v1941
      %v5803 = vmul.f32 %v5150, %v1945
      %v5804 = vmul.f32 %v5152, %v1947
      %v5805 = vmul.f32 %v5158, %v1951
      %v5806 = vmul.f32 %v5160, %v1953
      %v5807 = vmul.f32 %v5166, %v1957
      %v5808 = vmul.f32 %v5168, %v1959
      %v5809 = vmul.f32 %v5174, %v1963
      %v5810 = vmul.f32 %v5176, %v1965
      %v5811 = vmul.f32 %v5182, %v1969
      %v5812 = vmul.f32 %v5184, %v1971
      %v5813 = vmul.f32 %v5190, %v1975
      %v5814 = vmul.f32 %v5192, %v1977
      %v5815 = vmul.f32 %v5198, %v1981
      %v5816 = vmul.f32 %v5200, %v1983
      %v5817 = vmul.f32 %v5206, %v1987
      %v5818 = vmul.f32 %v5208, %v1989
      %v5819 = vmul.f32 %v5214, %v1993
      %v5820 = vmul.f32 %v5216, %v1995
      %v5821 = vmul.f32 %v5222, %v1999
      %v5822 = vmul.f32 %v5224, %v2001
      %v5823 = vmul.f32 %v5230, %v2005
      %v5824 = vmul.f32 %v5232, %v2007
      %v5825 = vmul.f32 %v5238, %v2011
      %v5826 = vmul.f32 %v5240, %v2013
      %v5827 = vmul.f32 %v5246, %v2017
      %v5828 = vmul.f32 %v5248, %v2019
      %v5829 = vmul.f32 %v5254, %v2023
      %v5830 = vmul.f32 %v5256, %v2025
      %v5831 = vmul.f32 %v5262, %v2029
      %v5832 = vmul.f32 %v5264, %v2031
      %v5833 = vmul.f32 %v5270, %v2035
      %v5834 = vmul.f32 %v5272, %v2037
      %v5835 = vmul.f32 %v5278, %v2041
      %v5836 = vmul.f32 %v5280, %v2043
      %v5837 = vmul.f32 %v5286, %v2047
      %v5838 = vmul.f32 %v5288, %v2049
      %v5839 = vmul.f32 %v5294, %v2053
      %v5840 = vmul.f32 %v5296, %v2055
      %v5841 = vmul.f32 %v5302, %v2059
      %v5842 = vmul.f32 %v5304, %v2061
      %v5843 = vmul.f32 %v5310, %v2065
      %v5844 = vmul.f32 %v5312, %v2067
      %v5845 = vmul.f32 %v5318, %v2071
      %v5846 = vmul.f32 %v5320, %v2073
      %v5847 = vmul.f32 %v5326, %v2077
      %v5848 = vmul.f32 %v5328, %v2079
      %v5849 = vmul.f32 %v5334, %v2083
      %v5850 = vmul.f32 %v5336, %v2085
      %v5851 = vmul.f32 %v5342, %v2089
      %v5852 = vmul.f32 %v5344, %v2091
      %v5853 = vmul.f32 %v5350, %v2095
      %v5854 = vmul.f32 %v5352, %v2097
      %v5855 = vmul.f32 %v5358, %v2101
      %v5856 = vmul.f32 %v5360, %v2103
      %v5857 = vmul.f32 %v5366, %v2107
      %v5858 = vmul.f32 %v5368, %v2109
      %v5859 = vmul.f32 %v5374, %v2113
      %v5860 = vmul.f32 %v5376, %v2115
      %v5861 = vmul.f32 %v5382, %v2119
      %v5862 = vmul.f32 %v5384, %v2121
      %v5863 = vmul.f32 %v5390, %v2125
      %v5864 = vmul.f32 %v5392, %v2127
      %v5865 = vmul.f32 %v5398, %v2131
      %v5866 = vmul.f32 %v5400, %v2133
      %v5867 = vmul.f32 %v5406, %v2137
      %v5868 = vmul.f32 %v5408, %v2139
      %v5869 = vmul.f32 %v5414, %v2143
      %v5870 = vmul.f32 %v5416, %v2145
      %v5871 = vmul.f32 %v5422, %v2149
      %v5872 = vmul.f32 %v5424, %v2151
      %v5873 = vmul.f32 %v5430, %v2155
      %v5874 = vmul.f32 %v5432, %v2157
      %v5875 = vmul.f32 %v5438, %v2161
      %v5876 = vmul.f32 %v5440, %v2163
      %v5877 = vmul.f32 %v5446, %v2167
      %v5878 = vmul.f32 %v5448, %v2169
      %v5879 = vmul.f32 %v5454, %v2173
      %v5880 = vmul.f32 %v5456, %v2175
      %v5881 = vmul.f32 %v5462, %v2179
      %v5882 = vmul.f32 %v5464, %v2181
      %v5883 = vmul.f32 %v5470, %v2185
      %v5884 = vmul.f32 %v5472, %v2187
      %v5885 = vmul.f32 %v5478, %v2191
      %v5886 = vmul.f32 %v5480, %v2193
      %v5887 = vmul.f32 %v5486, %v2197
      %v5888 = vmul.f32 %v5488, %v2199
      %v5889 = vmul.f32 %v5494, %v2203
      %v5890 = vmul.f32 %v5496, %v2205
      %v5891 = vmul.f32 %v5502, %v2209
      %v5892 = vmul.f32 %v5504, %v2211
      %v5893 = vmul.f32 %v5130, %v1574
      %v5894 = vmul.f32 %v5132, %v1576
      %v5895 = vmul.f32 %v5138, %v1580
      %v5896 = vmul.f32 %v5140, %v1582
      %v5897 = vmul.f32 %v5146, %v1586
      %v5898 = vmul.f32 %v5148, %v1588
      %v5899 = vmul.f32 %v5154, %v1592
      %v5900 = vmul.f32 %v5156, %v1594
      %v5901 = vmul.f32 %v5162, %v1598
      %v5902 = vmul.f32 %v5164, %v1600
      %v5903 = vmul.f32 %v5170, %v1604
      %v5904 = vmul.f32 %v5172, %v1606
      %v5905 = vmul.f32 %v5178, %v1610
      %v5906 = vmul.f32 %v5180, %v1612
      %v5907 = vmul.f32 %v5186, %v1616
      %v5908 = vmul.f32 %v5188, %v1618
      %v5909 = vmul.f32 %v5194, %v1622
      %v5910 = vmul.f32 %v5196, %v1624
      %v5911 = vmul.f32 %v5202, %v1628
      %v5912 = vmul.f32 %v5204, %v1630
      %v5913 = vmul.f32 %v5210, %v1634
      %v5914 = vmul.f32 %v5212, %v1636
      %v5915 = vmul.f32 %v5218, %v1640
      %v5916 = vmul.f32 %v5220, %v1642
      %v5917 = vmul.f32 %v5226, %v1646
      %v5918 = vmul.f32 %v5228, %v1648
      %v5919 = vmul.f32 %v5234, %v1652
      %v5920 = vmul.f32 %v5236, %v1654
      %v5921 = vmul.f32 %v5242, %v1658
      %v5922 = vmul.f32 %v5244, %v1660
      %v5923 = vmul.f32 %v5250, %v1664
      %v5924 = vmul.f32 %v5252, %v1666
      %v5925 = vmul.f32 %v5258, %v1670
      %v5926 = vmul.f32 %v5260, %v1672
      %v5927 = vmul.f32 %v5266, %v1676
      %v5928 = vmul.f32 %v5268, %v1678
      %v5929 = vmul.f32 %v5274, %v1682
      %v5930 = vmul.f32 %v5276, %v1684
      %v5931 = vmul.f32 %v5282, %v1688
      %v5932 = vmul.f32 %v5284, %v1690
      %v5933 = vmul.f32 %v5290, %v1694
      %v5934 = vmul.f32 %v5292, %v1696
      %v5935 = vmul.f32 %v5298, %v1700
      %v5936 = vmul.f32 %v5300, %v1702
      %v5937 = vmul.f32 %v5306, %v1706
      %v5938 = vmul.f32 %v5308, %v1708
      %v5939 = vmul.f32 %v5314, %v1712
      %v5940 = vmul.f32 %v5316, %v1714
      %v5941 = vmul.f32 %v5322, %v1718
      %v5942 = vmul.f32 %v5324, %v1720
      %v5943 = vmul.f32 %v5330, %v1724
      %v5944 = vmul.f32 %v5332, %v1726
      %v5945 = vmul.f32 %v5338, %v1730
      %v5946 = vmul.f32 %v5340, %v1732
      %v5947 = vmul.f32 %v5346, %v1736
      %v5948 = vmul.f32 %v5348, %v1738
      %v5949 = vmul.f32 %v5354, %v1742
      %v5950 = vmul.f32 %v5356, %v1744
      %v5951 = vmul.f32 %v5362, %v1748
      %v5952 = vmul.f32 %v5364, %v1750
      %v5953 = vmul.f32 %v5370, %v1754
      %v5954 = vmul.f32 %v5372, %v1756
      %v5955 = vmul.f32 %v5378, %v1760
      %v5956 = vmul.f32 %v5380, %v1762
      %v5957 = vmul.f32 %v5386, %v1766
      %v5958 = vmul.f32 %v5388, %v1768
      %v5959 = vmul.f32 %v5394, %v1772
      %v5960 = vmul.f32 %v5396, %v1774
      %v5961 = vmul.f32 %v5402, %v1778
      %v5962 = vmul.f32 %v5404, %v1780
      %v5963 = vmul.f32 %v5410, %v1784
      %v5964 = vmul.f32 %v5412, %v1786
      %v5965 = vmul.f32 %v5418, %v1790
      %v5966 = vmul.f32 %v5420, %v1792
      %v5967 = vmul.f32 %v5426, %v1796
      %v5968 = vmul.f32 %v5428, %v1798
      %v5969 = vmul.f32 %v5434, %v1802
      %v5970 = vmul.f32 %v5436, %v1804
      %v5971 = vmul.f32 %v5442, %v1808
      %v5972 = vmul.f32 %v5444, %v1810
      %v5973 = vmul.f32 %v5450, %v1814
      %v5974 = vmul.f32 %v5452, %v1816
      %v5975 = vmul.f32 %v5458, %v1820
      %v5976 = vmul.f32 %v5460, %v1822
      %v5977 = vmul.f32 %v5466, %v1826
      %v5978 = vmul.f32 %v5468, %v1828
      %v5979 = vmul.f32 %v5474, %v1832
      %v5980 = vmul.f32 %v5476, %v1834
      %v5981 = vmul.f32 %v5482, %v1838
      %v5982 = vmul.f32 %v5484, %v1840
      %v5983 = vmul.f32 %v5490, %v1844
      %v5984 = vmul.f32 %v5492, %v1846
      %v5985 = vmul.f32 %v5498, %v1850
      %v5986 = vmul.f32 %v5500, %v1852
      %v5987 = vmul.f32 %v5506, %v1856
      %v5988 = vmul.f32 %v5508, %v1858
      %v5989 = vadd.f32 %v5797, %v5893
      %v5990 = vadd.f32 %v5798, %v5894
      %v5991 = vadd.f32 %v5799, %v5895
      %v5992 = vadd.f32 %v5800, %v5896
      %v5993 = vadd.f32 %v5801, %v5897
      %v5994 = vadd.f32 %v5802, %v5898
      %v5995 = vadd.f32 %v5803, %v5899
      %v5996 = vadd.f32 %v5804, %v5900
      %v5997 = vadd.f32 %v5805, %v5901
      %v5998 = vadd.f32 %v5806, %v5902
      %v5999 = vadd.f32 %v5807, %v5903
      %v6000 = vadd.f32 %v5808, %v5904
      %v6001 = vadd.f32 %v5809, %v5905
      %v6002 = vadd.f32 %v5810, %v5906
      %v6003 = vadd.f32 %v5811, %v5907
      %v6004 = vadd.f32 %v5812, %v5908
      %v6005 = vadd.f32 %v5813, %v5909
      %v6006 = vadd.f32 %v5814, %v5910
      %v6007 = vadd.f32 %v5815, %v5911
      %v6008 = vadd.f32 %v5816, %v5912
      %v6009 = vadd.f32 %v5817, %v5913
      %v6010 = vadd.f32 %v5818, %v5914
      %v6011 = vadd.f32 %v5819, %v5915
      %v6012 = vadd.f32 %v5820, %v5916
      %v6013 = vadd.f32 %v5821, %v5917
      %v6014 = vadd.f32 %v5822, %v5918
      %v6015 = vadd.f32 %v5823, %v5919
      %v6016 = vadd.f32 %v5824, %v5920
      %v6017 = vadd.f32 %v5825, %v5921
      %v6018 = vadd.f32 %v5826, %v5922
      %v6019 = vadd.f32 %v5827, %v5923
      %v6020 = vadd.f32 %v5828, %v5924
      %v6021 = vadd.f32 %v5829, %v5925
      %v6022 = vadd.f32 %v5830, %v5926
      %v6023 = vadd.f32 %v5831, %v5927
      %v6024 = vadd.f32 %v5832, %v5928
      %v6025 = vadd.f32 %v5833, %v5929
      %v6026 = vadd.f32 %v5834, %v5930
      %v6027 = vadd.f32 %v5835, %v5931
      %v6028 = vadd.f32 %v5836, %v5932
      %v6029 = vadd.f32 %v5837, %v5933
      %v6030 = vadd.f32 %v5838, %v5934
      %v6031 = vadd.f32 %v5839, %v5935
      %v6032 = vadd.f32 %v5840, %v5936
      %v6033 = vadd.f32 %v5841, %v5937
      %v6034 = vadd.f32 %v5842, %v5938
      %v6035 = vadd.f32 %v5843, %v5939
      %v6036 = vadd.f32 %v5844, %v5940
      %v6037 = vadd.f32 %v5845, %v5941
      %v6038 = vadd.f32 %v5846, %v5942
      %v6039 = vadd.f32 %v5847, %v5943
      %v6040 = vadd.f32 %v5848, %v5944
      %v6041 = vadd.f32 %v5849, %v5945
      %v6042 = vadd.f32 %v5850, %v5946
      %v6043 = vadd.f32 %v5851, %v5947
      %v6044 = vadd.f32 %v5852, %v5948
      %v6045 = vadd.f32 %v5853, %v5949
      %v6046 = vadd.f32 %v5854, %v5950
      %v6047 = vadd.f32 %v5855, %v5951
      %v6048 = vadd.f32 %v5856, %v5952
      %v6049 = vadd.f32 %v5857, %v5953
      %v6050 = vadd.f32 %v5858, %v5954
      %v6051 = vadd.f32 %v5859, %v5955
      %v6052 = vadd.f32 %v5860, %v5956
      %v6053 = vadd.f32 %v5861, %v5957
      %v6054 = vadd.f32 %v5862, %v5958
      %v6055 = vadd.f32 %v5863, %v5959
      %v6056 = vadd.f32 %v5864, %v5960
      %v6057 = vadd.f32 %v5865, %v5961
      %v6058 = vadd.f32 %v5866, %v5962
      %v6059 = vadd.f32 %v5867, %v5963
      %v6060 = vadd.f32 %v5868, %v5964
      %v6061 = vadd.f32 %v5869, %v5965
      %v6062 = vadd.f32 %v5870, %v5966
      %v6063 = vadd.f32 %v5871, %v5967
      %v6064 = vadd.f32 %v5872, %v5968
      %v6065 = vadd.f32 %v5873, %v5969
      %v6066 = vadd.f32 %v5874, %v5970
      %v6067 = vadd.f32 %v5875, %v5971
      %v6068 = vadd.f32 %v5876, %v5972
      %v6069 = vadd.f32 %v5877, %v5973
      %v6070 = vadd.f32 %v5878, %v5974
      %v6071 = vadd.f32 %v5879, %v5975
      %v6072 = vadd.f32 %v5880, %v5976
      %v6073 = vadd.f32 %v5881, %v5977
      %v6074 = vadd.f32 %v5882, %v5978
      %v6075 = vadd.f32 %v5883, %v5979
      %v6076 = vadd.f32 %v5884, %v5980
      %v6077 = vadd.f32 %v5885, %v5981
      %v6078 = vadd.f32 %v5886, %v5982
      %v6079 = vadd.f32 %v5887, %v5983
      %v6080 = vadd.f32 %v5888, %v5984
      %v6081 = vadd.f32 %v5889, %v5985
      %v6082 = vadd.f32 %v5890, %v5986
      %v6083 = vadd.f32 %v5891, %v5987
      %v6084 = vadd.f32 %v5892, %v5988
      %v6085 = vld [vmem:[%s8] sm:$0xff]
      %v6086 = vld [vmem:[%s8 + $0x8] sm:$0xff]
      %v6087 = vld [vmem:[%s8 + $0x10] sm:$0xff]
      %v6088 = vld [vmem:[%s8 + $0x18] sm:$0xff]
      %v6089 = vld [vmem:[%s8 + $0x20] sm:$0xff]
      %v6090 = vld [vmem:[%s8 + $0x28] sm:$0xff]
      %v6091 = vld [vmem:[%s8 + $0x30] sm:$0xff]
      %v6092 = vld [vmem:[%s8 + $0x38] sm:$0xff]
      %v6093 = vld [vmem:[%s8 + $0x40] sm:$0xff]
      %v6094 = vld [vmem:[%s8 + $0x48] sm:$0xff]
      %v6095 = vld [vmem:[%s8 + $0x50] sm:$0xff]
      %v6096 = vld [vmem:[%s8 + $0x58] sm:$0xff]
      %v6097 = vld [vmem:[%s8 + $0x60] sm:$0xff]
      %v6098 = vld [vmem:[%s8 + $0x68] sm:$0xff]
      %v6099 = vld [vmem:[%s8 + $0x70] sm:$0xff]
      %v6100 = vld [vmem:[%s8 + $0x78] sm:$0xff]
      %v6101 = vld [vmem:[%s8 + $0x80] sm:$0xff]
      %v6102 = vld [vmem:[%s8 + $0x88] sm:$0xff]
      %v6103 = vld [vmem:[%s8 + $0x90] sm:$0xff]
      %v6104 = vld [vmem:[%s8 + $0x98] sm:$0xff]
      %v6105 = vld [vmem:[%s8 + $0xa0] sm:$0xff]
      %v6106 = vld [vmem:[%s8 + $0xa8] sm:$0xff]
      %v6107 = vld [vmem:[%s8 + $0xb0] sm:$0xff]
      %v6108 = vld [vmem:[%s8 + $0xb8] sm:$0xff]
      %v6109 = vld [vmem:[%s8 + $0xc0] sm:$0xff]
      %v6110 = vld [vmem:[%s8 + $0xc8] sm:$0xff]
      %v6111 = vld [vmem:[%s8 + $0xd0] sm:$0xff]
      %v6112 = vld [vmem:[%s8 + $0xd8] sm:$0xff]
      %v6113 = vld [vmem:[%s8 + $0xe0] sm:$0xff]
      %v6114 = vld [vmem:[%s8 + $0xe8] sm:$0xff]
      %v6115 = vld [vmem:[%s8 + $0xf0] sm:$0xff]
      %v6116 = vld [vmem:[%s8 + $0xf8] sm:$0xff]
      %v6117 = vld [vmem:[%s8 + $0x100] sm:$0xff]
      %v6118 = vld [vmem:[%s8 + $0x108] sm:$0xff]
      %v6119 = vld [vmem:[%s8 + $0x110] sm:$0xff]
      %v6120 = vld [vmem:[%s8 + $0x118] sm:$0xff]
      %v6121 = vld [vmem:[%s8 + $0x120] sm:$0xff]
      %v6122 = vld [vmem:[%s8 + $0x128] sm:$0xff]
      %v6123 = vld [vmem:[%s8 + $0x130] sm:$0xff]
      %v6124 = vld [vmem:[%s8 + $0x138] sm:$0xff]
      %v6125 = vld [vmem:[%s8 + $0x140] sm:$0xff]
      %v6126 = vld [vmem:[%s8 + $0x148] sm:$0xff]
      %v6127 = vld [vmem:[%s8 + $0x150] sm:$0xff]
      %v6128 = vld [vmem:[%s8 + $0x158] sm:$0xff]
      %v6129 = vld [vmem:[%s8 + $0x160] sm:$0xff]
      %v6130 = vld [vmem:[%s8 + $0x168] sm:$0xff]
      %v6131 = vld [vmem:[%s8 + $0x170] sm:$0xff]
      %v6132 = vld [vmem:[%s8 + $0x178] sm:$0xff]
      %v6133 = vld [vmem:[%s8 + $0x180] sm:$0xff]
      %v6134 = vld [vmem:[%s8 + $0x188] sm:$0xff]
      %v6135 = vld [vmem:[%s8 + $0x190] sm:$0xff]
      %v6136 = vld [vmem:[%s8 + $0x198] sm:$0xff]
      %v6137 = vld [vmem:[%s8 + $0x1a0] sm:$0xff]
      %v6138 = vld [vmem:[%s8 + $0x1a8] sm:$0xff]
      %v6139 = vld [vmem:[%s8 + $0x1b0] sm:$0xff]
      %v6140 = vld [vmem:[%s8 + $0x1b8] sm:$0xff]
      %v6141 = vld [vmem:[%s8 + $0x1c0] sm:$0xff]
      %v6142 = vld [vmem:[%s8 + $0x1c8] sm:$0xff]
      %v6143 = vld [vmem:[%s8 + $0x1d0] sm:$0xff]
      %v6144 = vld [vmem:[%s8 + $0x1d8] sm:$0xff]
      %v6145 = vld [vmem:[%s8 + $0x1e0] sm:$0xff]
      %v6146 = vld [vmem:[%s8 + $0x1e8] sm:$0xff]
      %v6147 = vld [vmem:[%s8 + $0x1f0] sm:$0xff]
      %v6148 = vld [vmem:[%s8 + $0x1f8] sm:$0xff]
      %v6149 = vld [vmem:[%s9] sm:$0xff]
      %v6150 = vld [vmem:[%s9 + $0x8] sm:$0xff]
      %v6151 = vld [vmem:[%s9 + $0x10] sm:$0xff]
      %v6152 = vld [vmem:[%s9 + $0x18] sm:$0xff]
      %v6153 = vld [vmem:[%s9 + $0x20] sm:$0xff]
      %v6154 = vld [vmem:[%s9 + $0x28] sm:$0xff]
      %v6155 = vld [vmem:[%s9 + $0x30] sm:$0xff]
      %v6156 = vld [vmem:[%s9 + $0x38] sm:$0xff]
      %v6157 = vld [vmem:[%s9 + $0x40] sm:$0xff]
      %v6158 = vld [vmem:[%s9 + $0x48] sm:$0xff]
      %v6159 = vld [vmem:[%s9 + $0x50] sm:$0xff]
      %v6160 = vld [vmem:[%s9 + $0x58] sm:$0xff]
      %v6161 = vld [vmem:[%s9 + $0x60] sm:$0xff]
      %v6162 = vld [vmem:[%s9 + $0x68] sm:$0xff]
      %v6163 = vld [vmem:[%s9 + $0x70] sm:$0xff]
      %v6164 = vld [vmem:[%s9 + $0x78] sm:$0xff]
      %v6165 = vld [vmem:[%s9 + $0x80] sm:$0xff]
      %v6166 = vld [vmem:[%s9 + $0x88] sm:$0xff]
      %v6167 = vld [vmem:[%s9 + $0x90] sm:$0xff]
      %v6168 = vld [vmem:[%s9 + $0x98] sm:$0xff]
      %v6169 = vld [vmem:[%s9 + $0xa0] sm:$0xff]
      %v6170 = vld [vmem:[%s9 + $0xa8] sm:$0xff]
      %v6171 = vld [vmem:[%s9 + $0xb0] sm:$0xff]
      %v6172 = vld [vmem:[%s9 + $0xb8] sm:$0xff]
      %v6173 = vld [vmem:[%s9 + $0xc0] sm:$0xff]
      %v6174 = vld [vmem:[%s9 + $0xc8] sm:$0xff]
      %v6175 = vld [vmem:[%s9 + $0xd0] sm:$0xff]
      %v6176 = vld [vmem:[%s9 + $0xd8] sm:$0xff]
      %v6177 = vld [vmem:[%s9 + $0xe0] sm:$0xff]
      %v6178 = vld [vmem:[%s9 + $0xe8] sm:$0xff]
      %v6179 = vld [vmem:[%s9 + $0xf0] sm:$0xff]
      %v6180 = vld [vmem:[%s9 + $0xf8] sm:$0xff]
      %v6181 = vld [vmem:[%s9 + $0x100] sm:$0xff]
      %v6182 = vld [vmem:[%s9 + $0x108] sm:$0xff]
      %v6183 = vld [vmem:[%s9 + $0x110] sm:$0xff]
      %v6184 = vld [vmem:[%s9 + $0x118] sm:$0xff]
      %v6185 = vld [vmem:[%s9 + $0x120] sm:$0xff]
      %v6186 = vld [vmem:[%s9 + $0x128] sm:$0xff]
      %v6187 = vld [vmem:[%s9 + $0x130] sm:$0xff]
      %v6188 = vld [vmem:[%s9 + $0x138] sm:$0xff]
      %v6189 = vld [vmem:[%s9 + $0x140] sm:$0xff]
      %v6190 = vld [vmem:[%s9 + $0x148] sm:$0xff]
      %v6191 = vld [vmem:[%s9 + $0x150] sm:$0xff]
      %v6192 = vld [vmem:[%s9 + $0x158] sm:$0xff]
      %v6193 = vld [vmem:[%s9 + $0x160] sm:$0xff]
      %v6194 = vld [vmem:[%s9 + $0x168] sm:$0xff]
      %v6195 = vld [vmem:[%s9 + $0x170] sm:$0xff]
      %v6196 = vld [vmem:[%s9 + $0x178] sm:$0xff]
      %v6197 = vld [vmem:[%s9 + $0x180] sm:$0xff]
      %v6198 = vld [vmem:[%s9 + $0x188] sm:$0xff]
      %v6199 = vld [vmem:[%s9 + $0x190] sm:$0xff]
      %v6200 = vld [vmem:[%s9 + $0x198] sm:$0xff]
      %v6201 = vld [vmem:[%s9 + $0x1a0] sm:$0xff]
      %v6202 = vld [vmem:[%s9 + $0x1a8] sm:$0xff]
      %v6203 = vld [vmem:[%s9 + $0x1b0] sm:$0xff]
      %v6204 = vld [vmem:[%s9 + $0x1b8] sm:$0xff]
      %v6205 = vld [vmem:[%s9 + $0x1c0] sm:$0xff]
      %v6206 = vld [vmem:[%s9 + $0x1c8] sm:$0xff]
      %v6207 = vld [vmem:[%s9 + $0x1d0] sm:$0xff]
      %v6208 = vld [vmem:[%s9 + $0x1d8] sm:$0xff]
      %v6209 = vld [vmem:[%s9 + $0x1e0] sm:$0xff]
      %v6210 = vld [vmem:[%s9 + $0x1e8] sm:$0xff]
      %v6211 = vld [vmem:[%s9 + $0x1f0] sm:$0xff]
      %v6212 = vld [vmem:[%s9 + $0x1f8] sm:$0xff]
      %6213 = vmatprep.subr.mxu0 %v6150
      %6214 = vmatpush1.msra.mxu0 %v6149
      %6215 = vmatprep.subr.mxu0 %v6152
      %6216 = vmatpush1.msra.mxu0 %v6151
      %6217 = vmatprep.subr.mxu0 %v6154
      %6218 = vmatpush1.msra.mxu0 %v6153
      %6219 = vmatprep.subr.mxu0 %v6156
      %6220 = vmatpush1.msra.mxu0 %v6155
      %6221 = vmatprep.subr.mxu0 %v6158
      %6222 = vmatpush1.msra.mxu0 %v6157
      %6223 = vmatprep.subr.mxu0 %v6160
      %6224 = vmatpush1.msra.mxu0 %v6159
      %6225 = vmatprep.subr.mxu0 %v6162
      %6226 = vmatpush1.msra.mxu0 %v6161
      %6227 = vmatprep.subr.mxu0 %v6164
      %6228 = vmatpush1.msra.mxu0 %v6163
      %6229 = vmatprep.subr.mxu0 %v6166
      %6230 = vmatpush1.msra.mxu0 %v6165
      %6231 = vmatprep.subr.mxu0 %v6168
      %6232 = vmatpush1.msra.mxu0 %v6167
      %6233 = vmatprep.subr.mxu0 %v6170
      %6234 = vmatpush1.msra.mxu0 %v6169
      %6235 = vmatprep.subr.mxu0 %v6172
      %6236 = vmatpush1.msra.mxu0 %v6171
      %6237 = vmatprep.subr.mxu0 %v6174
      %6238 = vmatpush1.msra.mxu0 %v6173
      %6239 = vmatprep.subr.mxu0 %v6176
      %6240 = vmatpush1.msra.mxu0 %v6175
      %6241 = vmatprep.subr.mxu0 %v6178
      %6242 = vmatpush1.msra.mxu0 %v6177
      %6243 = vmatprep.subr.mxu0 %v6180
      %6244 = vmatpush1.msra.mxu0 %v6179
      %6245 = vmatprep.subr.mxu0 %v6182
      %6246 = vmatpush1.msra.mxu0 %v6181
      %6247 = vmatprep.subr.mxu0 %v6184
      %6248 = vmatpush1.msra.mxu0 %v6183
      %6249 = vmatprep.subr.mxu0 %v6186
      %6250 = vmatpush1.msra.mxu0 %v6185
      %6251 = vmatprep.subr.mxu0 %v6188
      %6252 = vmatpush1.msra.mxu0 %v6187
      %6253 = vmatprep.subr.mxu0 %v6190
      %6254 = vmatpush1.msra.mxu0 %v6189
      %6255 = vmatprep.subr.mxu0 %v6192
      %6256 = vmatpush1.msra.mxu0 %v6191
      %6257 = vmatprep.subr.mxu0 %v6194
      %6258 = vmatpush1.msra.mxu0 %v6193
      %6259 = vmatprep.subr.mxu0 %v6196
      %6260 = vmatpush1.msra.mxu0 %v6195
      %6261 = vmatprep.subr.mxu0 %v6198
      %6262 = vmatpush1.msra.mxu0 %v6197
      %6263 = vmatprep.subr.mxu0 %v6200
      %6264 = vmatpush1.msra.mxu0 %v6199
      %6265 = vmatprep.subr.mxu0 %v6202
      %6266 = vmatpush1.msra.mxu0 %v6201
      %6267 = vmatprep.subr.mxu0 %v6204
      %6268 = vmatpush1.msra.mxu0 %v6203
      %6269 = vmatprep.subr.mxu0 %v6206
      %6270 = vmatpush1.msra.mxu0 %v6205
      %6271 = vmatprep.subr.mxu0 %v6208
      %6272 = vmatpush1.msra.mxu0 %v6207
      %6273 = vmatprep.subr.mxu0 %v6210
      %6274 = vmatpush1.msra.mxu0 %v6209
      %6275 = vmatprep.subr.mxu0 %v6212
      %6276 = vmatpush1.msra.mxu0 %v6211
      %6277 = vmatprep.mubr.f32.mxu0 %v5990
      %6278 = vmatmul.mubr.f32.gmra.mrb[0].mxu0 %v5989
      %v6279 = vpop.f32.mrb[0].mxu0
      %v6280 = vadd.f32 0.0, %v6279
      %v6281 = vpop.f32.mrb[0].mxu0
      %v6282 = vadd.f32 0.0, %v6281
      %6283 = vmatprep.mubr.f32.mxu0 %v5992
      %6284 = vmatmul.mubr.f32.gmra.mrb[0].mxu0 %v5991
      %v6285 = vpop.f32.mrb[0].mxu0
      %v6286 = vadd.f32 0.0, %v6285
      %v6287 = vpop.f32.mrb[0].mxu0
      %v6288 = vadd.f32 0.0, %v6287
      %6289 = vmatprep.mubr.f32.mxu0 %v5994
      %6290 = vmatmul.mubr.f32.gmra.mrb[0].mxu0 %v5993
      %v6291 = vpop.f32.mrb[0].mxu0
      %v6292 = vadd.f32 0.0, %v6291
      %v6293 = vpop.f32.mrb[0].mxu0
      %6294 = vmatprep.mubr.f32.mxu0 %v5996
      %6295 = vmatmul.mubr.f32.gmra.mrb[0].mxu0 %v5995
      %v6296 = vpop.f32.mrb[0].mxu0
      %v6297 = vadd.f32 0.0, %v6296
      %v6298 = vpop.f32.mrb[0].mxu0
      %v6299 = vadd.f32 0.0, %v6298
      %6300 = vmatprep.mubr.f32.mxu0 %v5998
      %6301 = vmatmul.mubr.f32.gmra.mrb[0].mxu0 %v5997
      %v6302 = vpop.f32.mrb[0].mxu0
      %v6303 = vadd.f32 0.0, %v6302
      %v6304 = vpop.f32.mrb[0].mxu0
      %v6305 = vadd.f32 0.0, %v6304
      %6306 = vmatprep.mubr.f32.mxu0 %v6000
      %6307 = vmatmul.mubr.f32.gmra.mrb[0].mxu0 %v5999
      %v6308 = vpop.f32.mrb[0].mxu0
      %v6309 = vadd.f32 0.0, %v6308
      %v6310 = vpop.f32.mrb[0].mxu0
      %6311 = vmatprep.mubr.f32.mxu0 %v6002
      %6312 = vmatmul.mubr.f32.gmra.mrb[0].mxu0 %v6001
      %v6313 = vpop.f32.mrb[0].mxu0
      %v6314 = vadd.f32 0.0, %v6313
      %v6315 = vpop.f32.mrb[0].mxu0
      %v6316 = vadd.f32 0.0, %v6315
      %6317 = vmatprep.mubr.f32.mxu0 %v6004
      %6318 = vmatmul.mubr.f32.gmra.mrb[0].mxu0 %v6003
      %v6319 = vpop.f32.mrb[0].mxu0
      %v6320 = vadd.f32 0.0, %v6319
      %v6321 = vpop.f32.mrb[0].mxu0
      %v6322 = vadd.f32 0.0, %v6321
      %6323 = vmatprep.mubr.f32.mxu0 %v6006
      %6324 = vmatmul.mubr.f32.gmra.mrb[0].mxu0 %v6005
      %v6325 = vpop.f32.mrb[0].mxu0
      %v6326 = vadd.f32 0.0, %v6325
      %v6327 = vpop.f32.mrb[0].mxu0
      %6328 = vmatprep.mubr.f32.mxu0 %v6008
      %6329 = vmatmul.mubr.f32.gmra.mrb[0].mxu0 %v6007
      %v6330 = vpop.f32.mrb[0].mxu0
      %v6331 = vadd.f32 0.0, %v6330
      %v6332 = vpop.f32.mrb[0].mxu0
      %v6333 = vadd.f32 0.0, %v6332
      %6334 = vmatprep.mubr.f32.mxu0 %v6010
      %6335 = vmatmul.mubr.f32.gmra.mrb[0].mxu0 %v6009
      %v6336 = vpop.f32.mrb[0].mxu0
      %v6337 = vadd.f32 0.0, %v6336
      %v6338 = vpop.f32.mrb[0].mxu0
      %v6339 = vadd.f32 0.0, %v6338
      %6340 = vmatprep.mubr.f32.mxu0 %v6012
      %6341 = vmatmul.mubr.f32.gmra.mrb[0].mxu0 %v6011
      %v6342 = vpop.f32.mrb[0].mxu0
      %v6343 = vadd.f32 0.0, %v6342
      %v6344 = vpop.f32.mrb[0].mxu0
      %6345 = vmatprep.mubr.f32.mxu0 %v6014
      %6346 = vmatmul.mubr.f32.gmra.mrb[0].mxu0 %v6013
      %v6347 = vpop.f32.mrb[0].mxu0
      %v6348 = vadd.f32 0.0, %v6347
      %v6349 = vpop.f32.mrb[0].mxu0
      %v6350 = vadd.f32 0.0, %v6349
      %6351 = vmatprep.mubr.f32.mxu0 %v6016
      %6352 = vmatmul.mubr.f32.gmra.mrb[0].mxu0 %v6015
      %v6353 = vpop.f32.mrb[0].mxu0
      %v6354 = vadd.f32 0.0, %v6353
      %v6355 = vpop.f32.mrb[0].mxu0
      %v6356 = vadd.f32 0.0, %v6355
      %6357 = vmatprep.mubr.f32.mxu0 %v6018
      %6358 = vmatmul.mubr.f32.gmra.mrb[0].mxu0 %v6017
      %v6359 = vpop.f32.mrb[0].mxu0
      %v6360 = vadd.f32 0.0, %v6359
      %v6361 = vpop.f32.mrb[0].mxu0
      %6362 = vmatprep.mubr.f32.mxu0 %v6020
      %6363 = vmatmul.mubr.f32.gmra.mrb[0].mxu0 %v6019
      %v6364 = vpop.f32.mrb[0].mxu0
      %v6365 = vadd.f32 0.0, %v6364
      %v6366 = vpop.f32.mrb[0].mxu0
      %v6367 = vadd.f32 0.0, %v6366
      %6368 = vmatprep.mubr.f32.mxu0 %v6022
      %6369 = vmatmul.mubr.f32.gmra.mrb[0].mxu0 %v6021
      %v6370 = vpop.f32.mrb[0].mxu0
      %v6371 = vadd.f32 0.0, %v6370
      %v6372 = vpop.f32.mrb[0].mxu0
      %v6373 = vadd.f32 0.0, %v6372
      %6374 = vmatprep.mubr.f32.mxu0 %v6024
      %6375 = vmatmul.mubr.f32.gmra.mrb[0].mxu0 %v6023
      %v6376 = vpop.f32.mrb[0].mxu0
      %v6377 = vadd.f32 0.0, %v6376
      %v6378 = vpop.f32.mrb[0].mxu0
      %6379 = vmatprep.mubr.f32.mxu0 %v6026
      %6380 = vmatmul.mubr.f32.gmra.mrb[0].mxu0 %v6025
      %v6381 = vpop.f32.mrb[0].mxu0
      %v6382 = vadd.f32 0.0, %v6381
      %v6383 = vpop.f32.mrb[0].mxu0
      %v6384 = vadd.f32 0.0, %v6383
      %6385 = vmatprep.mubr.f32.mxu0 %v6028
      %6386 = vmatmul.mubr.f32.gmra.mrb[0].mxu0 %v6027
      %v6387 = vpop.f32.mrb[0].mxu0
      %v6388 = vadd.f32 0.0, %v6387
      %v6389 = vpop.f32.mrb[0].mxu0
      %v6390 = vadd.f32 0.0, %v6389
      %6391 = vmatprep.mubr.f32.mxu0 %v6030
      %6392 = vmatmul.mubr.f32.gmra.mrb[0].mxu0 %v6029
      %v6393 = vpop.f32.mrb[0].mxu0
      %v6394 = vadd.f32 0.0, %v6393
      %v6395 = vpop.f32.mrb[0].mxu0
      %6396 = vmatprep.mubr.f32.mxu0 %v6032
      %6397 = vmatmul.mubr.f32.gmra.mrb[0].mxu0 %v6031
      %v6398 = vpop.f32.mrb[0].mxu0
      %v6399 = vadd.f32 0.0, %v6398
      %v6400 = vpop.f32.mrb[0].mxu0
      %v6401 = vadd.f32 0.0, %v6400
      %6402 = vmatprep.mubr.f32.mxu0 %v6034
      %6403 = vmatmul.mubr.f32.gmra.mrb[0].mxu0 %v6033
      %v6404 = vpop.f32.mrb[0].mxu0
      %v6405 = vadd.f32 0.0, %v6404
      %v6406 = vpop.f32.mrb[0].mxu0
      %v6407 = vadd.f32 0.0, %v6406
      %6408 = vmatprep.mubr.f32.mxu0 %v6036
      %6409 = vmatmul.mubr.f32.gmra.mrb[0].mxu0 %v6035
      %v6410 = vpop.f32.mrb[0].mxu0
      %v6411 = vadd.f32 0.0, %v6410
      %v6412 = vpop.f32.mrb[0].mxu0
      %6413 = vmatprep.mubr.f32.mxu0 %v6038
      %6414 = vmatmul.mubr.f32.gmra.mrb[0].mxu0 %v6037
      %v6415 = vpop.f32.mrb[0].mxu0
      %v6416 = vadd.f32 0.0, %v6415
      %v6417 = vpop.f32.mrb[0].mxu0
      %v6418 = vadd.f32 0.0, %v6417
      %6419 = vmatprep.mubr.f32.mxu0 %v6040
      %6420 = vmatmul.mubr.f32.gmra.mrb[0].mxu0 %v6039
      %v6421 = vpop.f32.mrb[0].mxu0
      %v6422 = vadd.f32 0.0, %v6421
      %v6423 = vpop.f32.mrb[0].mxu0
      %v6424 = vadd.f32 0.0, %v6423
      %6425 = vmatprep.mubr.f32.mxu0 %v6042
      %6426 = vmatmul.mubr.f32.gmra.mrb[0].mxu0 %v6041
      %v6427 = vpop.f32.mrb[0].mxu0
      %v6428 = vadd.f32 0.0, %v6427
      %v6429 = vpop.f32.mrb[0].mxu0
      %6430 = vmatprep.mubr.f32.mxu0 %v6044
      %6431 = vmatmul.mubr.f32.gmra.mrb[0].mxu0 %v6043
      %v6432 = vpop.f32.mrb[0].mxu0
      %v6433 = vadd.f32 0.0, %v6432
      %v6434 = vpop.f32.mrb[0].mxu0
      %v6435 = vadd.f32 0.0, %v6434
      %6436 = vmatprep.mubr.f32.mxu0 %v6046
      %6437 = vmatmul.mubr.f32.gmra.mrb[0].mxu0 %v6045
      %v6438 = vpop.f32.mrb[0].mxu0
      %v6439 = vadd.f32 0.0, %v6438
      %v6440 = vpop.f32.mrb[0].mxu0
      %v6441 = vadd.f32 0.0, %v6440
      %6442 = vmatprep.mubr.f32.mxu0 %v6048
      %6443 = vmatmul.mubr.f32.gmra.mrb[0].mxu0 %v6047
      %v6444 = vpop.f32.mrb[0].mxu0
      %v6445 = vadd.f32 0.0, %v6444
      %v6446 = vpop.f32.mrb[0].mxu0
      %6447 = vmatprep.mubr.f32.mxu0 %v6050
      %6448 = vmatmul.mubr.f32.gmra.mrb[0].mxu0 %v6049
      %v6449 = vpop.f32.mrb[0].mxu0
      %v6450 = vadd.f32 0.0, %v6449
      %v6451 = vpop.f32.mrb[0].mxu0
      %v6452 = vadd.f32 0.0, %v6451
      %6453 = vmatprep.mubr.f32.mxu0 %v6052
      %6454 = vmatmul.mubr.f32.gmra.mrb[0].mxu0 %v6051
      %v6455 = vpop.f32.mrb[0].mxu0
      %v6456 = vadd.f32 0.0, %v6455
      %v6457 = vpop.f32.mrb[0].mxu0
      %v6458 = vadd.f32 0.0, %v6457
      %6459 = vmatprep.mubr.f32.mxu0 %v6054
      %6460 = vmatmul.mubr.f32.gmra.mrb[0].mxu0 %v6053
      %v6461 = vpop.f32.mrb[0].mxu0
      %v6462 = vadd.f32 0.0, %v6461
      %v6463 = vpop.f32.mrb[0].mxu0
      %6464 = vmatprep.mubr.f32.mxu0 %v6056
      %6465 = vmatmul.mubr.f32.gmra.mrb[0].mxu0 %v6055
      %v6466 = vpop.f32.mrb[0].mxu0
      %v6467 = vadd.f32 0.0, %v6466
      %v6468 = vpop.f32.mrb[0].mxu0
      %v6469 = vadd.f32 0.0, %v6468
      %6470 = vmatprep.mubr.f32.mxu0 %v6058
      %6471 = vmatmul.mubr.f32.gmra.mrb[0].mxu0 %v6057
      %v6472 = vpop.f32.mrb[0].mxu0
      %v6473 = vadd.f32 0.0, %v6472
      %v6474 = vpop.f32.mrb[0].mxu0
      %v6475 = vadd.f32 0.0, %v6474
      %6476 = vmatprep.mubr.f32.mxu0 %v6060
      %6477 = vmatmul.mubr.f32.gmra.mrb[0].mxu0 %v6059
      %v6478 = vpop.f32.mrb[0].mxu0
      %v6479 = vadd.f32 0.0, %v6478
      %v6480 = vpop.f32.mrb[0].mxu0
      %6481 = vmatprep.mubr.f32.mxu0 %v6062
      %6482 = vmatmul.mubr.f32.gmra.mrb[0].mxu0 %v6061
      %v6483 = vpop.f32.mrb[0].mxu0
      %v6484 = vadd.f32 0.0, %v6483
      %v6485 = vpop.f32.mrb[0].mxu0
      %v6486 = vadd.f32 0.0, %v6485
      %6487 = vmatprep.mubr.f32.mxu0 %v6064
      %6488 = vmatmul.mubr.f32.gmra.mrb[0].mxu0 %v6063
      %v6489 = vpop.f32.mrb[0].mxu0
      %v6490 = vadd.f32 0.0, %v6489
      %v6491 = vpop.f32.mrb[0].mxu0
      %v6492 = vadd.f32 0.0, %v6491
      %6493 = vmatprep.mubr.f32.mxu0 %v6066
      %6494 = vmatmul.mubr.f32.gmra.mrb[0].mxu0 %v6065
      %v6495 = vpop.f32.mrb[0].mxu0
      %v6496 = vadd.f32 0.0, %v6495
      %v6497 = vpop.f32.mrb[0].mxu0
      %6498 = vmatprep.mubr.f32.mxu0 %v6068
      %6499 = vmatmul.mubr.f32.gmra.mrb[0].mxu0 %v6067
      %v6500 = vpop.f32.mrb[0].mxu0
      %v6501 = vadd.f32 0.0, %v6500
      %v6502 = vpop.f32.mrb[0].mxu0
      %v6503 = vadd.f32 0.0, %v6502
      %6504 = vmatprep.mubr.f32.mxu0 %v6070
      %6505 = vmatmul.mubr.f32.gmra.mrb[0].mxu0 %v6069
      %v6506 = vpop.f32.mrb[0].mxu0
      %v6507 = vadd.f32 0.0, %v6506
      %v6508 = vpop.f32.mrb[0].mxu0
      %v6509 = vadd.f32 0.0, %v6508
      %6510 = vmatprep.mubr.f32.mxu0 %v6072
      %6511 = vmatmul.mubr.f32.gmra.mrb[0].mxu0 %v6071
      %v6512 = vpop.f32.mrb[0].mxu0
      %v6513 = vadd.f32 0.0, %v6512
      %v6514 = vpop.f32.mrb[0].mxu0
      %6515 = vmatprep.mubr.f32.mxu0 %v6074
      %6516 = vmatmul.mubr.f32.gmra.mrb[0].mxu0 %v6073
      %v6517 = vpop.f32.mrb[0].mxu0
      %v6518 = vadd.f32 0.0, %v6517
      %v6519 = vpop.f32.mrb[0].mxu0
      %v6520 = vadd.f32 0.0, %v6519
      %6521 = vmatprep.mubr.f32.mxu0 %v6076
      %6522 = vmatmul.mubr.f32.gmra.mrb[0].mxu0 %v6075
      %v6523 = vpop.f32.mrb[0].mxu0
      %v6524 = vadd.f32 0.0, %v6523
      %v6525 = vpop.f32.mrb[0].mxu0
      %v6526 = vadd.f32 0.0, %v6525
      %6527 = vmatprep.mubr.f32.mxu0 %v6078
      %6528 = vmatmul.mubr.f32.gmra.mrb[0].mxu0 %v6077
      %v6529 = vpop.f32.mrb[0].mxu0
      %v6530 = vadd.f32 0.0, %v6529
      %v6531 = vpop.f32.mrb[0].mxu0
      %6532 = vmatprep.mubr.f32.mxu0 %v6080
      %6533 = vmatmul.mubr.f32.gmra.mrb[0].mxu0 %v6079
      %v6534 = vpop.f32.mrb[0].mxu0
      %v6535 = vadd.f32 0.0, %v6534
      %v6536 = vpop.f32.mrb[0].mxu0
      %v6537 = vadd.f32 0.0, %v6536
      %6538 = vmatprep.mubr.f32.mxu0 %v6082
      %6539 = vmatmul.mubr.f32.gmra.mrb[0].mxu0 %v6081
      %v6540 = vpop.f32.mrb[0].mxu0
      %v6541 = vadd.f32 0.0, %v6540
      %v6542 = vpop.f32.mrb[0].mxu0
      %v6543 = vadd.f32 0.0, %v6542
      %6544 = vmatprep.mubr.f32.mxu0 %v6084
      %6545 = vmatmul.mubr.f32.gmra.mrb[0].mxu0 %v6083
      %v6546 = vpop.f32.mrb[0].mxu0
      %v6547 = vadd.f32 0.0, %v6546
      %v6548 = vpop.f32.mrb[0].mxu0
      %6549 = vdwg.mxu0
      %6550 = vmatprep.subr.mxu0 %v6086
      %6551 = vmatpush1.msra.mxu0 %v6085
      %6552 = vmatprep.subr.mxu0 %v6088
      %6553 = vmatpush1.msra.mxu0 %v6087
      %6554 = vmatprep.subr.mxu0 %v6090
      %6555 = vmatpush1.msra.mxu0 %v6089
      %6556 = vmatprep.subr.mxu0 %v6092
      %6557 = vmatpush1.msra.mxu0 %v6091
      %6558 = vmatprep.subr.mxu0 %v6094
      %6559 = vmatpush1.msra.mxu0 %v6093
      %6560 = vmatprep.subr.mxu0 %v6096
      %6561 = vmatpush1.msra.mxu0 %v6095
      %6562 = vmatprep.subr.mxu0 %v6098
      %6563 = vmatpush1.msra.mxu0 %v6097
      %6564 = vmatprep.subr.mxu0 %v6100
      %6565 = vmatpush1.msra.mxu0 %v6099
      %6566 = vmatprep.subr.mxu0 %v6102
      %6567 = vmatpush1.msra.mxu0 %v6101
      %6568 = vmatprep.subr.mxu0 %v6104
      %6569 = vmatpush1.msra.mxu0 %v6103
      %6570 = vmatprep.subr.mxu0 %v6106
      %6571 = vmatpush1.msra.mxu0 %v6105
      %6572 = vmatprep.subr.mxu0 %v6108
      %6573 = vmatpush1.msra.mxu0 %v6107
      %6574 = vmatprep.subr.mxu0 %v6110
      %6575 = vmatpush1.msra.mxu0 %v6109
      %6576 = vmatprep.subr.mxu0 %v6112
      %6577 = vmatpush1.msra.mxu0 %v6111
      %6578 = vmatprep.subr.mxu0 %v6114
      %6579 = vmatpush1.msra.mxu0 %v6113
      %6580 = vmatprep.subr.mxu0 %v6116
      %6581 = vmatpush1.msra.mxu0 %v6115
      %6582 = vmatprep.subr.mxu0 %v6118
      %6583 = vmatpush1.msra.mxu0 %v6117
      %6584 = vmatprep.subr.mxu0 %v6120
      %6585 = vmatpush1.msra.mxu0 %v6119
      %6586 = vmatprep.subr.mxu0 %v6122
      %6587 = vmatpush1.msra.mxu0 %v6121
      %6588 = vmatprep.subr.mxu0 %v6124
      %6589 = vmatpush1.msra.mxu0 %v6123
      %6590 = vmatprep.subr.mxu0 %v6126
      %6591 = vmatpush1.msra.mxu0 %v6125
      %6592 = vmatprep.subr.mxu0 %v6128
      %6593 = vmatpush1.msra.mxu0 %v6127
      %6594 = vmatprep.subr.mxu0 %v6130
      %6595 = vmatpush1.msra.mxu0 %v6129
      %6596 = vmatprep.subr.mxu0 %v6132
      %6597 = vmatpush1.msra.mxu0 %v6131
      %6598 = vmatprep.subr.mxu0 %v6134
      %6599 = vmatpush1.msra.mxu0 %v6133
      %6600 = vmatprep.subr.mxu0 %v6136
      %6601 = vmatpush1.msra.mxu0 %v6135
      %6602 = vmatprep.subr.mxu0 %v6138
      %6603 = vmatpush1.msra.mxu0 %v6137
      %6604 = vmatprep.subr.mxu0 %v6140
      %6605 = vmatpush1.msra.mxu0 %v6139
      %6606 = vmatprep.subr.mxu0 %v6142
      %6607 = vmatpush1.msra.mxu0 %v6141
      %6608 = vmatprep.subr.mxu0 %v6144
      %6609 = vmatpush1.msra.mxu0 %v6143
      %6610 = vmatprep.subr.mxu0 %v6146
      %6611 = vmatpush1.msra.mxu0 %v6145
      %6612 = vmatprep.subr.mxu0 %v6148
      %6613 = vmatpush1.msra.mxu0 %v6147
      %6614 = vmatprep.mubr.f32.mxu0 %v5702
      %6615 = vmatmul.mubr.f32.gmra.mrb[0].mxu0 %v5701
      %v6616 = vpop.f32.mrb[0].mxu0
      %v6617 = vadd.f32 %v6280, %v6616
      %v6618 = vpop.f32.mrb[0].mxu0
      %v6619 = vadd.f32 %v6282, %v6618
      %6620 = vmatprep.mubr.f32.mxu0 %v5704
      %6621 = vmatmul.mubr.f32.gmra.mrb[0].mxu0 %v5703
      %v6622 = vpop.f32.mrb[0].mxu0
      %v6623 = vadd.f32 %v6286, %v6622
      %v6624 = vpop.f32.mrb[0].mxu0
      %v6625 = vadd.f32 %v6288, %v6624
      %6626 = vmatprep.mubr.f32.mxu0 %v5706
      %6627 = vmatmul.mubr.f32.gmra.mrb[0].mxu0 %v5705
      %v6628 = vpop.f32.mrb[0].mxu0
      %v6629 = vadd.f32 %v6292, %v6628
      %v6630 = vpop.f32.mrb[0].mxu0
      %6631 = vmatprep.mubr.f32.mxu0 %v5708
      %6632 = vmatmul.mubr.f32.gmra.mrb[0].mxu0 %v5707
      %v6633 = vpop.f32.mrb[0].mxu0
      %v6634 = vadd.f32 %v6297, %v6633
      %v6635 = vpop.f32.mrb[0].mxu0
      %v6636 = vadd.f32 %v6299, %v6635
      %6637 = vmatprep.mubr.f32.mxu0 %v5710
      %6638 = vmatmul.mubr.f32.gmra.mrb[0].mxu0 %v5709
      %v6639 = vpop.f32.mrb[0].mxu0
      %v6640 = vadd.f32 %v6303, %v6639
      %v6641 = vpop.f32.mrb[0].mxu0
      %v6642 = vadd.f32 %v6305, %v6641
      %6643 = vmatprep.mubr.f32.mxu0 %v5712
      %6644 = vmatmul.mubr.f32.gmra.mrb[0].mxu0 %v5711
      %v6645 = vpop.f32.mrb[0].mxu0
      %v6646 = vadd.f32 %v6309, %v6645
      %v6647 = vpop.f32.mrb[0].mxu0
      %6648 = vmatprep.mubr.f32.mxu0 %v5714
      %6649 = vmatmul.mubr.f32.gmra.mrb[0].mxu0 %v5713
      %v6650 = vpop.f32.mrb[0].mxu0
      %v6651 = vadd.f32 %v6314, %v6650
      %v6652 = vpop.f32.mrb[0].mxu0
      %v6653 = vadd.f32 %v6316, %v6652
      %6654 = vmatprep.mubr.f32.mxu0 %v5716
      %6655 = vmatmul.mubr.f32.gmra.mrb[0].mxu0 %v5715
      %v6656 = vpop.f32.mrb[0].mxu0
      %v6657 = vadd.f32 %v6320, %v6656
      %v6658 = vpop.f32.mrb[0].mxu0
      %v6659 = vadd.f32 %v6322, %v6658
      %6660 = vmatprep.mubr.f32.mxu0 %v5718
      %6661 = vmatmul.mubr.f32.gmra.mrb[0].mxu0 %v5717
      %v6662 = vpop.f32.mrb[0].mxu0
      %v6663 = vadd.f32 %v6326, %v6662
      %v6664 = vpop.f32.mrb[0].mxu0
      %6665 = vmatprep.mubr.f32.mxu0 %v5720
      %6666 = vmatmul.mubr.f32.gmra.mrb[0].mxu0 %v5719
      %v6667 = vpop.f32.mrb[0].mxu0
      %v6668 = vadd.f32 %v6331, %v6667
      %v6669 = vpop.f32.mrb[0].mxu0
      %v6670 = vadd.f32 %v6333, %v6669
      %6671 = vmatprep.mubr.f32.mxu0 %v5722
      %6672 = vmatmul.mubr.f32.gmra.mrb[0].mxu0 %v5721
      %v6673 = vpop.f32.mrb[0].mxu0
      %v6674 = vadd.f32 %v6337, %v6673
      %v6675 = vpop.f32.mrb[0].mxu0
      %v6676 = vadd.f32 %v6339, %v6675
      %6677 = vmatprep.mubr.f32.mxu0 %v5724
      %6678 = vmatmul.mubr.f32.gmra.mrb[0].mxu0 %v5723
      %v6679 = vpop.f32.mrb[0].mxu0
      %v6680 = vadd.f32 %v6343, %v6679
      %v6681 = vpop.f32.mrb[0].mxu0
      %6682 = vmatprep.mubr.f32.mxu0 %v5726
      %6683 = vmatmul.mubr.f32.gmra.mrb[0].mxu0 %v5725
      %v6684 = vpop.f32.mrb[0].mxu0
      %v6685 = vadd.f32 %v6348, %v6684
      %v6686 = vpop.f32.mrb[0].mxu0
      %v6687 = vadd.f32 %v6350, %v6686
      %6688 = vmatprep.mubr.f32.mxu0 %v5728
      %6689 = vmatmul.mubr.f32.gmra.mrb[0].mxu0 %v5727
      %v6690 = vpop.f32.mrb[0].mxu0
      %v6691 = vadd.f32 %v6354, %v6690
      %v6692 = vpop.f32.mrb[0].mxu0
      %v6693 = vadd.f32 %v6356, %v6692
      %6694 = vmatprep.mubr.f32.mxu0 %v5730
      %6695 = vmatmul.mubr.f32.gmra.mrb[0].mxu0 %v5729
      %v6696 = vpop.f32.mrb[0].mxu0
      %v6697 = vadd.f32 %v6360, %v6696
      %v6698 = vpop.f32.mrb[0].mxu0
      %6699 = vmatprep.mubr.f32.mxu0 %v5732
      %6700 = vmatmul.mubr.f32.gmra.mrb[0].mxu0 %v5731
      %v6701 = vpop.f32.mrb[0].mxu0
      %v6702 = vadd.f32 %v6365, %v6701
      %v6703 = vpop.f32.mrb[0].mxu0
      %v6704 = vadd.f32 %v6367, %v6703
      %6705 = vmatprep.mubr.f32.mxu0 %v5734
      %6706 = vmatmul.mubr.f32.gmra.mrb[0].mxu0 %v5733
      %v6707 = vpop.f32.mrb[0].mxu0
      %v6708 = vadd.f32 %v6371, %v6707
      %v6709 = vpop.f32.mrb[0].mxu0
      %v6710 = vadd.f32 %v6373, %v6709
      %6711 = vmatprep.mubr.f32.mxu0 %v5736
      %6712 = vmatmul.mubr.f32.gmra.mrb[0].mxu0 %v5735
      %v6713 = vpop.f32.mrb[0].mxu0
      %v6714 = vadd.f32 %v6377, %v6713
      %v6715 = vpop.f32.mrb[0].mxu0
      %6716 = vmatprep.mubr.f32.mxu0 %v5738
      %6717 = vmatmul.mubr.f32.gmra.mrb[0].mxu0 %v5737
      %v6718 = vpop.f32.mrb[0].mxu0
      %v6719 = vadd.f32 %v6382, %v6718
      %v6720 = vpop.f32.mrb[0].mxu0
      %v6721 = vadd.f32 %v6384, %v6720
      %6722 = vmatprep.mubr.f32.mxu0 %v5740
      %6723 = vmatmul.mubr.f32.gmra.mrb[0].mxu0 %v5739
      %v6724 = vpop.f32.mrb[0].mxu0
      %v6725 = vadd.f32 %v6388, %v6724
      %v6726 = vpop.f32.mrb[0].mxu0
      %v6727 = vadd.f32 %v6390, %v6726
      %6728 = vmatprep.mubr.f32.mxu0 %v5742
      %6729 = vmatmul.mubr.f32.gmra.mrb[0].mxu0 %v5741
      %v6730 = vpop.f32.mrb[0].mxu0
      %v6731 = vadd.f32 %v6394, %v6730
      %v6732 = vpop.f32.mrb[0].mxu0
      %6733 = vmatprep.mubr.f32.mxu0 %v5744
      %6734 = vmatmul.mubr.f32.gmra.mrb[0].mxu0 %v5743
      %v6735 = vpop.f32.mrb[0].mxu0
      %v6736 = vadd.f32 %v6399, %v6735
      %v6737 = vpop.f32.mrb[0].mxu0
      %v6738 = vadd.f32 %v6401, %v6737
      %6739 = vmatprep.mubr.f32.mxu0 %v5746
      %6740 = vmatmul.mubr.f32.gmra.mrb[0].mxu0 %v5745
      %v6741 = vpop.f32.mrb[0].mxu0
      %v6742 = vadd.f32 %v6405, %v6741
      %v6743 = vpop.f32.mrb[0].mxu0
      %v6744 = vadd.f32 %v6407, %v6743
      %6745 = vmatprep.mubr.f32.mxu0 %v5748
      %6746 = vmatmul.mubr.f32.gmra.mrb[0].mxu0 %v5747
      %v6747 = vpop.f32.mrb[0].mxu0
      %v6748 = vadd.f32 %v6411, %v6747
      %v6749 = vpop.f32.mrb[0].mxu0
      %6750 = vmatprep.mubr.f32.mxu0 %v5750
      %6751 = vmatmul.mubr.f32.gmra.mrb[0].mxu0 %v5749
      %v6752 = vpop.f32.mrb[0].mxu0
      %v6753 = vadd.f32 %v6416, %v6752
      %v6754 = vpop.f32.mrb[0].mxu0
      %v6755 = vadd.f32 %v6418, %v6754
      %6756 = vmatprep.mubr.f32.mxu0 %v5752
      %6757 = vmatmul.mubr.f32.gmra.mrb[0].mxu0 %v5751
      %v6758 = vpop.f32.mrb[0].mxu0
      %v6759 = vadd.f32 %v6422, %v6758
      %v6760 = vpop.f32.mrb[0].mxu0
      %v6761 = vadd.f32 %v6424, %v6760
      %6762 = vmatprep.mubr.f32.mxu0 %v5754
      %6763 = vmatmul.mubr.f32.gmra.mrb[0].mxu0 %v5753
      %v6764 = vpop.f32.mrb[0].mxu0
      %v6765 = vadd.f32 %v6428, %v6764
      %v6766 = vpop.f32.mrb[0].mxu0
      %6767 = vmatprep.mubr.f32.mxu0 %v5756
      %6768 = vmatmul.mubr.f32.gmra.mrb[0].mxu0 %v5755
      %v6769 = vpop.f32.mrb[0].mxu0
      %v6770 = vadd.f32 %v6433, %v6769
      %v6771 = vpop.f32.mrb[0].mxu0
      %v6772 = vadd.f32 %v6435, %v6771
      %6773 = vmatprep.mubr.f32.mxu0 %v5758
      %6774 = vmatmul.mubr.f32.gmra.mrb[0].mxu0 %v5757
      %v6775 = vpop.f32.mrb[0].mxu0
      %v6776 = vadd.f32 %v6439, %v6775
      %v6777 = vpop.f32.mrb[0].mxu0
      %v6778 = vadd.f32 %v6441, %v6777
      %6779 = vmatprep.mubr.f32.mxu0 %v5760
      %6780 = vmatmul.mubr.f32.gmra.mrb[0].mxu0 %v5759
      %v6781 = vpop.f32.mrb[0].mxu0
      %v6782 = vadd.f32 %v6445, %v6781
      %v6783 = vpop.f32.mrb[0].mxu0
      %6784 = vmatprep.mubr.f32.mxu0 %v5762
      %6785 = vmatmul.mubr.f32.gmra.mrb[0].mxu0 %v5761
      %v6786 = vpop.f32.mrb[0].mxu0
      %v6787 = vadd.f32 %v6450, %v6786
      %v6788 = vpop.f32.mrb[0].mxu0
      %v6789 = vadd.f32 %v6452, %v6788
      %6790 = vmatprep.mubr.f32.mxu0 %v5764
      %6791 = vmatmul.mubr.f32.gmra.mrb[0].mxu0 %v5763
      %v6792 = vpop.f32.mrb[0].mxu0
      %v6793 = vadd.f32 %v6456, %v6792
      %v6794 = vpop.f32.mrb[0].mxu0
      %v6795 = vadd.f32 %v6458, %v6794
      %6796 = vmatprep.mubr.f32.mxu0 %v5766
      %6797 = vmatmul.mubr.f32.gmra.mrb[0].mxu0 %v5765
      %v6798 = vpop.f32.mrb[0].mxu0
      %v6799 = vadd.f32 %v6462, %v6798
      %v6800 = vpop.f32.mrb[0].mxu0
      %6801 = vmatprep.mubr.f32.mxu0 %v5768
      %6802 = vmatmul.mubr.f32.gmra.mrb[0].mxu0 %v5767
      %v6803 = vpop.f32.mrb[0].mxu0
      %v6804 = vadd.f32 %v6467, %v6803
      %v6805 = vpop.f32.mrb[0].mxu0
      %v6806 = vadd.f32 %v6469, %v6805
      %6807 = vmatprep.mubr.f32.mxu0 %v5770
      %6808 = vmatmul.mubr.f32.gmra.mrb[0].mxu0 %v5769
      %v6809 = vpop.f32.mrb[0].mxu0
      %v6810 = vadd.f32 %v6473, %v6809
      %v6811 = vpop.f32.mrb[0].mxu0
      %v6812 = vadd.f32 %v6475, %v6811
      %6813 = vmatprep.mubr.f32.mxu0 %v5772
      %6814 = vmatmul.mubr.f32.gmra.mrb[0].mxu0 %v5771
      %v6815 = vpop.f32.mrb[0].mxu0
      %v6816 = vadd.f32 %v6479, %v6815
      %v6817 = vpop.f32.mrb[0].mxu0
      %6818 = vmatprep.mubr.f32.mxu0 %v5774
      %6819 = vmatmul.mubr.f32.gmra.mrb[0].mxu0 %v5773
      %v6820 = vpop.f32.mrb[0].mxu0
      %v6821 = vadd.f32 %v6484, %v6820
      %v6822 = vpop.f32.mrb[0].mxu0
      %v6823 = vadd.f32 %v6486, %v6822
      %6824 = vmatprep.mubr.f32.mxu0 %v5776
      %6825 = vmatmul.mubr.f32.gmra.mrb[0].mxu0 %v5775
      %v6826 = vpop.f32.mrb[0].mxu0
      %v6827 = vadd.f32 %v6490, %v6826
      %v6828 = vpop.f32.mrb[0].mxu0
      %v6829 = vadd.f32 %v6492, %v6828
      %6830 = vmatprep.mubr.f32.mxu0 %v5778
      %6831 = vmatmul.mubr.f32.gmra.mrb[0].mxu0 %v5777
      %v6832 = vpop.f32.mrb[0].mxu0
      %v6833 = vadd.f32 %v6496, %v6832
      %v6834 = vpop.f32.mrb[0].mxu0
      %6835 = vmatprep.mubr.f32.mxu0 %v5780
      %6836 = vmatmul.mubr.f32.gmra.mrb[0].mxu0 %v5779
      %v6837 = vpop.f32.mrb[0].mxu0
      %v6838 = vadd.f32 %v6501, %v6837
      %v6839 = vpop.f32.mrb[0].mxu0
      %v6840 = vadd.f32 %v6503, %v6839
      %6841 = vmatprep.mubr.f32.mxu0 %v5782
      %6842 = vmatmul.mubr.f32.gmra.mrb[0].mxu0 %v5781
      %v6843 = vpop.f32.mrb[0].mxu0
      %v6844 = vadd.f32 %v6507, %v6843
      %v6845 = vpop.f32.mrb[0].mxu0
      %v6846 = vadd.f32 %v6509, %v6845
      %6847 = vmatprep.mubr.f32.mxu0 %v5784
      %6848 = vmatmul.mubr.f32.gmra.mrb[0].mxu0 %v5783
      %v6849 = vpop.f32.mrb[0].mxu0
      %v6850 = vadd.f32 %v6513, %v6849
      %v6851 = vpop.f32.mrb[0].mxu0
      %6852 = vmatprep.mubr.f32.mxu0 %v5786
      %6853 = vmatmul.mubr.f32.gmra.mrb[0].mxu0 %v5785
      %v6854 = vpop.f32.mrb[0].mxu0
      %v6855 = vadd.f32 %v6518, %v6854
      %v6856 = vpop.f32.mrb[0].mxu0
      %v6857 = vadd.f32 %v6520, %v6856
      %6858 = vmatprep.mubr.f32.mxu0 %v5788
      %6859 = vmatmul.mubr.f32.gmra.mrb[0].mxu0 %v5787
      %v6860 = vpop.f32.mrb[0].mxu0
      %v6861 = vadd.f32 %v6524, %v6860
      %v6862 = vpop.f32.mrb[0].mxu0
      %v6863 = vadd.f32 %v6526, %v6862
      %6864 = vmatprep.mubr.f32.mxu0 %v5790
      %6865 = vmatmul.mubr.f32.gmra.mrb[0].mxu0 %v5789
      %v6866 = vpop.f32.mrb[0].mxu0
      %v6867 = vadd.f32 %v6530, %v6866
      %v6868 = vpop.f32.mrb[0].mxu0
      %6869 = vmatprep.mubr.f32.mxu0 %v5792
      %6870 = vmatmul.mubr.f32.gmra.mrb[0].mxu0 %v5791
      %v6871 = vpop.f32.mrb[0].mxu0
      %v6872 = vadd.f32 %v6535, %v6871
      %v6873 = vpop.f32.mrb[0].mxu0
      %v6874 = vadd.f32 %v6537, %v6873
      %6875 = vmatprep.mubr.f32.mxu0 %v5794
      %6876 = vmatmul.mubr.f32.gmra.mrb[0].mxu0 %v5793
      %v6877 = vpop.f32.mrb[0].mxu0
      %v6878 = vadd.f32 %v6541, %v6877
      %v6879 = vpop.f32.mrb[0].mxu0
      %v6880 = vadd.f32 %v6543, %v6879
      %6881 = vmatprep.mubr.f32.mxu0 %v5796
      %6882 = vmatmul.mubr.f32.gmra.mrb[0].mxu0 %v5795
      %v6883 = vpop.f32.mrb[0].mxu0
      %v6884 = vadd.f32 %v6547, %v6883
      %v6885 = vpop.f32.mrb[0].mxu0
      %6886 = vdwg.mxu0
      %vm6889 = vcmask 1040384
      %v6890 = vrot.slane %v6619, 7
      %v6891 = vrot.slane %v6625, 7
      %v6892 = vsel %vm6889, %v6890, %v6891
      %v6896 = vadd.f32 %v6617, %v6890
      %v6897 = vadd.f32 %v6623, %v6892
      %v6898 = vadd.f32 %v6629, %v6891
      %v6899 = vmax.f32 %v6896, -1.0
      %v6900 = vmax.f32 %v6897, -1.0
      %v6901 = vmax.f32 %v6898, -1.0
      %v6902 = vmin.f32 %v6899, 1.0
      %v6903 = vmin.f32 %v6900, 1.0
      %v6904 = vmin.f32 %v6901, 1.0
      %v6905 = vmul.f32 %v6902, 32767.0
      %v6906 = vmul.f32 %v6903, 32767.0
      %v6907 = vmul.f32 %v6904, 32767.0
      %v6908 = vmax.f32 %v6905, -32768.0
      %v6909 = vmax.f32 %v6906, -32768.0
      %v6910 = vmax.f32 %v6907, -32768.0
      %v6911 = vmin.f32 %v6908, 32767.0
      %v6912 = vmin.f32 %v6909, 32767.0
      %v6913 = vmin.f32 %v6910, 32767.0
      %v6914 = vcvt.f32.s32.to.zero.pseudo %v6911
      %v6915 = vcvt.f32.s32.to.zero.pseudo %v6912
      %v6916 = vcvt.f32.s32.to.zero.pseudo %v6913
      %v6917 = vpack.c.b16 %v6914, %v6914
      %v6918 = vpack.c.b16 %v6915, %v6915
      %v6919 = vpack.c.b16 %v6916, %v6916
      %vm6920 = vsmask.f32 3328
      %vm6921 = vsmask.f32 7440
      %vm6922 = vmor %vm6920, %vm6921
      %v6924 = vshrl.u32 %v6917, 16
      %v6926 = vrot.slane %v6924, 4
      %v6927 = vshll.u32 %v6917, 16
      %v6929 = vrot.slane %v6927, 5
      %v6930 = vor.u32 %v6926, %v6929
      %v6931 = vrot.slane %v6930, 4
      %v6933 = vshll.u32 %v6918, 16
      %v6935 = vrot.slane %v6933, 5
      %v6936 = vsel %vm6922, %v6931, %v6935
      %v6937 = vshrl.u32 %v6918, 16
      %v6939 = vrot.slane %v6937, 4
      %v6940 = vor.u32 %v6939, %v6935
      %v6941 = vrot.slane %v6940, 4
      %v6943 = vshll.u32 %v6919, 16
      %v6945 = vrot.slane %v6943, 5
      %v6946 = vsel %vm6922, %v6941, %v6945
      %6947 = vst [vmem:[%s383] sm:$0xf] %v6936
      %6948 = vst [vmem:[%s383 + $0x4] sm:$0xf] %v6946
      %v6951 = vrot.slane %v6636, 7
      %v6952 = vrot.slane %v6642, 7
      %v6953 = vsel %vm6889, %v6951, %v6952
      %v6957 = vadd.f32 %v6634, %v6951
      %v6958 = vadd.f32 %v6640, %v6953
      %v6959 = vadd.f32 %v6646, %v6952
      %v6960 = vmax.f32 %v6957, -1.0
      %v6961 = vmax.f32 %v6958, -1.0
      %v6962 = vmax.f32 %v6959, -1.0
      %v6963 = vmin.f32 %v6960, 1.0
      %v6964 = vmin.f32 %v6961, 1.0
      %v6965 = vmin.f32 %v6962, 1.0
      %v6966 = vmul.f32 %v6963, 32767.0
      %v6967 = vmul.f32 %v6964, 32767.0
      %v6968 = vmul.f32 %v6965, 32767.0
      %v6969 = vmax.f32 %v6966, -32768.0
      %v6970 = vmax.f32 %v6967, -32768.0
      %v6971 = vmax.f32 %v6968, -32768.0
      %v6972 = vmin.f32 %v6969, 32767.0
      %v6973 = vmin.f32 %v6970, 32767.0
      %v6974 = vmin.f32 %v6971, 32767.0
      %v6975 = vcvt.f32.s32.to.zero.pseudo %v6972
      %v6976 = vcvt.f32.s32.to.zero.pseudo %v6973
      %v6977 = vcvt.f32.s32.to.zero.pseudo %v6974
      %v6978 = vpack.c.b16 %v6975, %v6975
      %v6979 = vpack.c.b16 %v6976, %v6976
      %v6980 = vpack.c.b16 %v6977, %v6977
      %v6982 = vshrl.u32 %v6978, 16
      %v6984 = vrot.slane %v6982, 4
      %v6985 = vshll.u32 %v6978, 16
      %v6987 = vrot.slane %v6985, 5
      %v6988 = vor.u32 %v6984, %v6987
      %v6989 = vrot.slane %v6988, 4
      %v6991 = vshll.u32 %v6979, 16
      %v6993 = vrot.slane %v6991, 5
      %v6994 = vsel %vm6922, %v6989, %v6993
      %v6995 = vshrl.u32 %v6979, 16
      %v6997 = vrot.slane %v6995, 4
      %v6998 = vor.u32 %v6997, %v6993
      %v6999 = vrot.slane %v6998, 4
      %v7001 = vshll.u32 %v6980, 16
      %v7003 = vrot.slane %v7001, 5
      %v7004 = vsel %vm6922, %v6999, %v7003
      %7005 = vst [vmem:[%s383 + $0x8] sm:$0xf] %v6994
      %7006 = vst [vmem:[%s383 + $0xc] sm:$0xf] %v7004
      %v7009 = vrot.slane %v6653, 7
      %v7010 = vrot.slane %v6659, 7
      %v7011 = vsel %vm6889, %v7009, %v7010
      %v7015 = vadd.f32 %v6651, %v7009
      %v7016 = vadd.f32 %v6657, %v7011
      %v7017 = vadd.f32 %v6663, %v7010
      %v7018 = vmax.f32 %v7015, -1.0
      %v7019 = vmax.f32 %v7016, -1.0
      %v7020 = vmax.f32 %v7017, -1.0
      %v7021 = vmin.f32 %v7018, 1.0
      %v7022 = vmin.f32 %v7019, 1.0
      %v7023 = vmin.f32 %v7020, 1.0
      %v7024 = vmul.f32 %v7021, 32767.0
      %v7025 = vmul.f32 %v7022, 32767.0
      %v7026 = vmul.f32 %v7023, 32767.0
      %v7027 = vmax.f32 %v7024, -32768.0
      %v7028 = vmax.f32 %v7025, -32768.0
      %v7029 = vmax.f32 %v7026, -32768.0
      %v7030 = vmin.f32 %v7027, 32767.0
      %v7031 = vmin.f32 %v7028, 32767.0
      %v7032 = vmin.f32 %v7029, 32767.0
      %v7033 = vcvt.f32.s32.to.zero.pseudo %v7030
      %v7034 = vcvt.f32.s32.to.zero.pseudo %v7031
      %v7035 = vcvt.f32.s32.to.zero.pseudo %v7032
      %v7036 = vpack.c.b16 %v7033, %v7033
      %v7037 = vpack.c.b16 %v7034, %v7034
      %v7038 = vpack.c.b16 %v7035, %v7035
      %v7040 = vshrl.u32 %v7036, 16
      %v7042 = vrot.slane %v7040, 4
      %v7043 = vshll.u32 %v7036, 16
      %v7045 = vrot.slane %v7043, 5
      %v7046 = vor.u32 %v7042, %v7045
      %v7047 = vrot.slane %v7046, 4
      %v7049 = vshll.u32 %v7037, 16
      %v7051 = vrot.slane %v7049, 5
      %v7052 = vsel %vm6922, %v7047, %v7051
      %v7053 = vshrl.u32 %v7037, 16
      %v7055 = vrot.slane %v7053, 4
      %v7056 = vor.u32 %v7055, %v7051
      %v7057 = vrot.slane %v7056, 4
      %v7059 = vshll.u32 %v7038, 16
      %v7061 = vrot.slane %v7059, 5
      %v7062 = vsel %vm6922, %v7057, %v7061
      %7063 = vst [vmem:[%s383 + $0x10] sm:$0xf] %v7052
      %7064 = vst [vmem:[%s383 + $0x14] sm:$0xf] %v7062
      %v7067 = vrot.slane %v6670, 7
      %v7068 = vrot.slane %v6676, 7
      %v7069 = vsel %vm6889, %v7067, %v7068
      %v7073 = vadd.f32 %v6668, %v7067
      %v7074 = vadd.f32 %v6674, %v7069
      %v7075 = vadd.f32 %v6680, %v7068
      %v7076 = vmax.f32 %v7073, -1.0
      %v7077 = vmax.f32 %v7074, -1.0
      %v7078 = vmax.f32 %v7075, -1.0
      %v7079 = vmin.f32 %v7076, 1.0
      %v7080 = vmin.f32 %v7077, 1.0
      %v7081 = vmin.f32 %v7078, 1.0
      %v7082 = vmul.f32 %v7079, 32767.0
      %v7083 = vmul.f32 %v7080, 32767.0
      %v7084 = vmul.f32 %v7081, 32767.0
      %v7085 = vmax.f32 %v7082, -32768.0
      %v7086 = vmax.f32 %v7083, -32768.0
      %v7087 = vmax.f32 %v7084, -32768.0
      %v7088 = vmin.f32 %v7085, 32767.0
      %v7089 = vmin.f32 %v7086, 32767.0
      %v7090 = vmin.f32 %v7087, 32767.0
      %v7091 = vcvt.f32.s32.to.zero.pseudo %v7088
      %v7092 = vcvt.f32.s32.to.zero.pseudo %v7089
      %v7093 = vcvt.f32.s32.to.zero.pseudo %v7090
      %v7094 = vpack.c.b16 %v7091, %v7091
      %v7095 = vpack.c.b16 %v7092, %v7092
      %v7096 = vpack.c.b16 %v7093, %v7093
      %v7098 = vshrl.u32 %v7094, 16
      %v7100 = vrot.slane %v7098, 4
      %v7101 = vshll.u32 %v7094, 16
      %v7103 = vrot.slane %v7101, 5
      %v7104 = vor.u32 %v7100, %v7103
      %v7105 = vrot.slane %v7104, 4
      %v7107 = vshll.u32 %v7095, 16
      %v7109 = vrot.slane %v7107, 5
      %v7110 = vsel %vm6922, %v7105, %v7109
      %v7111 = vshrl.u32 %v7095, 16
      %v7113 = vrot.slane %v7111, 4
      %v7114 = vor.u32 %v7113, %v7109
      %v7115 = vrot.slane %v7114, 4
      %v7117 = vshll.u32 %v7096, 16
      %v7119 = vrot.slane %v7117, 5
      %v7120 = vsel %vm6922, %v7115, %v7119
      %7121 = vst [vmem:[%s383 + $0x18] sm:$0xf] %v7110
      %7122 = vst [vmem:[%s383 + $0x1c] sm:$0xf] %v7120
      %v7125 = vrot.slane %v6687, 7
      %v7126 = vrot.slane %v6693, 7
      %v7127 = vsel %vm6889, %v7125, %v7126
      %v7131 = vadd.f32 %v6685, %v7125
      %v7132 = vadd.f32 %v6691, %v7127
      %v7133 = vadd.f32 %v6697, %v7126
      %v7134 = vmax.f32 %v7131, -1.0
      %v7135 = vmax.f32 %v7132, -1.0
      %v7136 = vmax.f32 %v7133, -1.0
      %v7137 = vmin.f32 %v7134, 1.0
      %v7138 = vmin.f32 %v7135, 1.0
      %v7139 = vmin.f32 %v7136, 1.0
      %v7140 = vmul.f32 %v7137, 32767.0
      %v7141 = vmul.f32 %v7138, 32767.0
      %v7142 = vmul.f32 %v7139, 32767.0
      %v7143 = vmax.f32 %v7140, -32768.0
      %v7144 = vmax.f32 %v7141, -32768.0
      %v7145 = vmax.f32 %v7142, -32768.0
      %v7146 = vmin.f32 %v7143, 32767.0
      %v7147 = vmin.f32 %v7144, 32767.0
      %v7148 = vmin.f32 %v7145, 32767.0
      %v7149 = vcvt.f32.s32.to.zero.pseudo %v7146
      %v7150 = vcvt.f32.s32.to.zero.pseudo %v7147
      %v7151 = vcvt.f32.s32.to.zero.pseudo %v7148
      %v7152 = vpack.c.b16 %v7149, %v7149
      %v7153 = vpack.c.b16 %v7150, %v7150
      %v7154 = vpack.c.b16 %v7151, %v7151
      %v7156 = vshrl.u32 %v7152, 16
      %v7158 = vrot.slane %v7156, 4
      %v7159 = vshll.u32 %v7152, 16
      %v7161 = vrot.slane %v7159, 5
      %v7162 = vor.u32 %v7158, %v7161
      %v7163 = vrot.slane %v7162, 4
      %v7165 = vshll.u32 %v7153, 16
      %v7167 = vrot.slane %v7165, 5
      %v7168 = vsel %vm6922, %v7163, %v7167
      %v7169 = vshrl.u32 %v7153, 16
      %v7171 = vrot.slane %v7169, 4
      %v7172 = vor.u32 %v7171, %v7167
      %v7173 = vrot.slane %v7172, 4
      %v7175 = vshll.u32 %v7154, 16
      %v7177 = vrot.slane %v7175, 5
      %v7178 = vsel %vm6922, %v7173, %v7177
      %7179 = vst [vmem:[%s383 + $0x20] sm:$0xf] %v7168
      %7180 = vst [vmem:[%s383 + $0x24] sm:$0xf] %v7178
      %v7183 = vrot.slane %v6704, 7
      %v7184 = vrot.slane %v6710, 7
      %v7185 = vsel %vm6889, %v7183, %v7184
      %v7189 = vadd.f32 %v6702, %v7183
      %v7190 = vadd.f32 %v6708, %v7185
      %v7191 = vadd.f32 %v6714, %v7184
      %v7192 = vmax.f32 %v7189, -1.0
      %v7193 = vmax.f32 %v7190, -1.0
      %v7194 = vmax.f32 %v7191, -1.0
      %v7195 = vmin.f32 %v7192, 1.0
      %v7196 = vmin.f32 %v7193, 1.0
      %v7197 = vmin.f32 %v7194, 1.0
      %v7198 = vmul.f32 %v7195, 32767.0
      %v7199 = vmul.f32 %v7196, 32767.0
      %v7200 = vmul.f32 %v7197, 32767.0
      %v7201 = vmax.f32 %v7198, -32768.0
      %v7202 = vmax.f32 %v7199, -32768.0
      %v7203 = vmax.f32 %v7200, -32768.0
      %v7204 = vmin.f32 %v7201, 32767.0
      %v7205 = vmin.f32 %v7202, 32767.0
      %v7206 = vmin.f32 %v7203, 32767.0
      %v7207 = vcvt.f32.s32.to.zero.pseudo %v7204
      %v7208 = vcvt.f32.s32.to.zero.pseudo %v7205
      %v7209 = vcvt.f32.s32.to.zero.pseudo %v7206
      %v7210 = vpack.c.b16 %v7207, %v7207
      %v7211 = vpack.c.b16 %v7208, %v7208
      %v7212 = vpack.c.b16 %v7209, %v7209
      %v7214 = vshrl.u32 %v7210, 16
      %v7216 = vrot.slane %v7214, 4
      %v7217 = vshll.u32 %v7210, 16
      %v7219 = vrot.slane %v7217, 5
      %v7220 = vor.u32 %v7216, %v7219
      %v7221 = vrot.slane %v7220, 4
      %v7223 = vshll.u32 %v7211, 16
      %v7225 = vrot.slane %v7223, 5
      %v7226 = vsel %vm6922, %v7221, %v7225
      %v7227 = vshrl.u32 %v7211, 16
      %v7229 = vrot.slane %v7227, 4
      %v7230 = vor.u32 %v7229, %v7225
      %v7231 = vrot.slane %v7230, 4
      %v7233 = vshll.u32 %v7212, 16
      %v7235 = vrot.slane %v7233, 5
      %v7236 = vsel %vm6922, %v7231, %v7235
      %7237 = vst [vmem:[%s383 + $0x28] sm:$0xf] %v7226
      %7238 = vst [vmem:[%s383 + $0x2c] sm:$0xf] %v7236
      %v7241 = vrot.slane %v6721, 7
      %v7242 = vrot.slane %v6727, 7
      %v7243 = vsel %vm6889, %v7241, %v7242
      %v7247 = vadd.f32 %v6719, %v7241
      %v7248 = vadd.f32 %v6725, %v7243
      %v7249 = vadd.f32 %v6731, %v7242
      %v7250 = vmax.f32 %v7247, -1.0
      %v7251 = vmax.f32 %v7248, -1.0
      %v7252 = vmax.f32 %v7249, -1.0
      %v7253 = vmin.f32 %v7250, 1.0
      %v7254 = vmin.f32 %v7251, 1.0
      %v7255 = vmin.f32 %v7252, 1.0
      %v7256 = vmul.f32 %v7253, 32767.0
      %v7257 = vmul.f32 %v7254, 32767.0
      %v7258 = vmul.f32 %v7255, 32767.0
      %v7259 = vmax.f32 %v7256, -32768.0
      %v7260 = vmax.f32 %v7257, -32768.0
      %v7261 = vmax.f32 %v7258, -32768.0
      %v7262 = vmin.f32 %v7259, 32767.0
      %v7263 = vmin.f32 %v7260, 32767.0
      %v7264 = vmin.f32 %v7261, 32767.0
      %v7265 = vcvt.f32.s32.to.zero.pseudo %v7262
      %v7266 = vcvt.f32.s32.to.zero.pseudo %v7263
      %v7267 = vcvt.f32.s32.to.zero.pseudo %v7264
      %v7268 = vpack.c.b16 %v7265, %v7265
      %v7269 = vpack.c.b16 %v7266, %v7266
      %v7270 = vpack.c.b16 %v7267, %v7267
      %v7272 = vshrl.u32 %v7268, 16
      %v7274 = vrot.slane %v7272, 4
      %v7275 = vshll.u32 %v7268, 16
      %v7277 = vrot.slane %v7275, 5
      %v7278 = vor.u32 %v7274, %v7277
      %v7279 = vrot.slane %v7278, 4
      %v7281 = vshll.u32 %v7269, 16
      %v7283 = vrot.slane %v7281, 5
      %v7284 = vsel %vm6922, %v7279, %v7283
      %v7285 = vshrl.u32 %v7269, 16
      %v7287 = vrot.slane %v7285, 4
      %v7288 = vor.u32 %v7287, %v7283
      %v7289 = vrot.slane %v7288, 4
      %v7291 = vshll.u32 %v7270, 16
      %v7293 = vrot.slane %v7291, 5
      %v7294 = vsel %vm6922, %v7289, %v7293
      %7295 = vst [vmem:[%s383 + $0x30] sm:$0xf] %v7284
      %7296 = vst [vmem:[%s383 + $0x34] sm:$0xf] %v7294
      %v7299 = vrot.slane %v6738, 7
      %v7300 = vrot.slane %v6744, 7
      %v7301 = vsel %vm6889, %v7299, %v7300
      %v7305 = vadd.f32 %v6736, %v7299
      %v7306 = vadd.f32 %v6742, %v7301
      %v7307 = vadd.f32 %v6748, %v7300
      %v7308 = vmax.f32 %v7305, -1.0
      %v7309 = vmax.f32 %v7306, -1.0
      %v7310 = vmax.f32 %v7307, -1.0
      %v7311 = vmin.f32 %v7308, 1.0
      %v7312 = vmin.f32 %v7309, 1.0
      %v7313 = vmin.f32 %v7310, 1.0
      %v7314 = vmul.f32 %v7311, 32767.0
      %v7315 = vmul.f32 %v7312, 32767.0
      %v7316 = vmul.f32 %v7313, 32767.0
      %v7317 = vmax.f32 %v7314, -32768.0
      %v7318 = vmax.f32 %v7315, -32768.0
      %v7319 = vmax.f32 %v7316, -32768.0
      %v7320 = vmin.f32 %v7317, 32767.0
      %v7321 = vmin.f32 %v7318, 32767.0
      %v7322 = vmin.f32 %v7319, 32767.0
      %v7323 = vcvt.f32.s32.to.zero.pseudo %v7320
      %v7324 = vcvt.f32.s32.to.zero.pseudo %v7321
      %v7325 = vcvt.f32.s32.to.zero.pseudo %v7322
      %v7326 = vpack.c.b16 %v7323, %v7323
      %v7327 = vpack.c.b16 %v7324, %v7324
      %v7328 = vpack.c.b16 %v7325, %v7325
      %v7330 = vshrl.u32 %v7326, 16
      %v7332 = vrot.slane %v7330, 4
      %v7333 = vshll.u32 %v7326, 16
      %v7335 = vrot.slane %v7333, 5
      %v7336 = vor.u32 %v7332, %v7335
      %v7337 = vrot.slane %v7336, 4
      %v7339 = vshll.u32 %v7327, 16
      %v7341 = vrot.slane %v7339, 5
      %v7342 = vsel %vm6922, %v7337, %v7341
      %v7343 = vshrl.u32 %v7327, 16
      %v7345 = vrot.slane %v7343, 4
      %v7346 = vor.u32 %v7345, %v7341
      %v7347 = vrot.slane %v7346, 4
      %v7349 = vshll.u32 %v7328, 16
      %v7351 = vrot.slane %v7349, 5
      %v7352 = vsel %vm6922, %v7347, %v7351
      %7353 = vst [vmem:[%s383 + $0x38] sm:$0xf] %v7342
      %7354 = vst [vmem:[%s383 + $0x3c] sm:$0xf] %v7352
      %v7357 = vrot.slane %v6755, 7
      %v7358 = vrot.slane %v6761, 7
      %v7359 = vsel %vm6889, %v7357, %v7358
      %v7363 = vadd.f32 %v6753, %v7357
      %v7364 = vadd.f32 %v6759, %v7359
      %v7365 = vadd.f32 %v6765, %v7358
      %v7366 = vmax.f32 %v7363, -1.0
      %v7367 = vmax.f32 %v7364, -1.0
      %v7368 = vmax.f32 %v7365, -1.0
      %v7369 = vmin.f32 %v7366, 1.0
      %v7370 = vmin.f32 %v7367, 1.0
      %v7371 = vmin.f32 %v7368, 1.0
      %v7372 = vmul.f32 %v7369, 32767.0
      %v7373 = vmul.f32 %v7370, 32767.0
      %v7374 = vmul.f32 %v7371, 32767.0
      %v7375 = vmax.f32 %v7372, -32768.0
      %v7376 = vmax.f32 %v7373, -32768.0
      %v7377 = vmax.f32 %v7374, -32768.0
      %v7378 = vmin.f32 %v7375, 32767.0
      %v7379 = vmin.f32 %v7376, 32767.0
      %v7380 = vmin.f32 %v7377, 32767.0
      %v7381 = vcvt.f32.s32.to.zero.pseudo %v7378
      %v7382 = vcvt.f32.s32.to.zero.pseudo %v7379
      %v7383 = vcvt.f32.s32.to.zero.pseudo %v7380
      %v7384 = vpack.c.b16 %v7381, %v7381
      %v7385 = vpack.c.b16 %v7382, %v7382
      %v7386 = vpack.c.b16 %v7383, %v7383
      %v7388 = vshrl.u32 %v7384, 16
      %v7390 = vrot.slane %v7388, 4
      %v7391 = vshll.u32 %v7384, 16
      %v7393 = vrot.slane %v7391, 5
      %v7394 = vor.u32 %v7390, %v7393
      %v7395 = vrot.slane %v7394, 4
      %v7397 = vshll.u32 %v7385, 16
      %v7399 = vrot.slane %v7397, 5
      %v7400 = vsel %vm6922, %v7395, %v7399
      %v7401 = vshrl.u32 %v7385, 16
      %v7403 = vrot.slane %v7401, 4
      %v7404 = vor.u32 %v7403, %v7399
      %v7405 = vrot.slane %v7404, 4
      %v7407 = vshll.u32 %v7386, 16
      %v7409 = vrot.slane %v7407, 5
      %v7410 = vsel %vm6922, %v7405, %v7409
      %7411 = vst [vmem:[%s383 + $0x40] sm:$0xf] %v7400
      %7412 = vst [vmem:[%s383 + $0x44] sm:$0xf] %v7410
      %v7415 = vrot.slane %v6772, 7
      %v7416 = vrot.slane %v6778, 7
      %v7417 = vsel %vm6889, %v7415, %v7416
      %v7421 = vadd.f32 %v6770, %v7415
      %v7422 = vadd.f32 %v6776, %v7417
      %v7423 = vadd.f32 %v6782, %v7416
      %v7424 = vmax.f32 %v7421, -1.0
      %v7425 = vmax.f32 %v7422, -1.0
      %v7426 = vmax.f32 %v7423, -1.0
      %v7427 = vmin.f32 %v7424, 1.0
      %v7428 = vmin.f32 %v7425, 1.0
      %v7429 = vmin.f32 %v7426, 1.0
      %v7430 = vmul.f32 %v7427, 32767.0
      %v7431 = vmul.f32 %v7428, 32767.0
      %v7432 = vmul.f32 %v7429, 32767.0
      %v7433 = vmax.f32 %v7430, -32768.0
      %v7434 = vmax.f32 %v7431, -32768.0
      %v7435 = vmax.f32 %v7432, -32768.0
      %v7436 = vmin.f32 %v7433, 32767.0
      %v7437 = vmin.f32 %v7434, 32767.0
      %v7438 = vmin.f32 %v7435, 32767.0
      %v7439 = vcvt.f32.s32.to.zero.pseudo %v7436
      %v7440 = vcvt.f32.s32.to.zero.pseudo %v7437
      %v7441 = vcvt.f32.s32.to.zero.pseudo %v7438
      %v7442 = vpack.c.b16 %v7439, %v7439
      %v7443 = vpack.c.b16 %v7440, %v7440
      %v7444 = vpack.c.b16 %v7441, %v7441
      %v7446 = vshrl.u32 %v7442, 16
      %v7448 = vrot.slane %v7446, 4
      %v7449 = vshll.u32 %v7442, 16
      %v7451 = vrot.slane %v7449, 5
      %v7452 = vor.u32 %v7448, %v7451
      %v7453 = vrot.slane %v7452, 4
      %v7455 = vshll.u32 %v7443, 16
      %v7457 = vrot.slane %v7455, 5
      %v7458 = vsel %vm6922, %v7453, %v7457
      %v7459 = vshrl.u32 %v7443, 16
      %v7461 = vrot.slane %v7459, 4
      %v7462 = vor.u32 %v7461, %v7457
      %v7463 = vrot.slane %v7462, 4
      %v7465 = vshll.u32 %v7444, 16
      %v7467 = vrot.slane %v7465, 5
      %v7468 = vsel %vm6922, %v7463, %v7467
      %7469 = vst [vmem:[%s383 + $0x48] sm:$0xf] %v7458
      %7470 = vst [vmem:[%s383 + $0x4c] sm:$0xf] %v7468
      %v7473 = vrot.slane %v6789, 7
      %v7474 = vrot.slane %v6795, 7
      %v7475 = vsel %vm6889, %v7473, %v7474
      %v7479 = vadd.f32 %v6787, %v7473
      %v7480 = vadd.f32 %v6793, %v7475
      %v7481 = vadd.f32 %v6799, %v7474
      %v7482 = vmax.f32 %v7479, -1.0
      %v7483 = vmax.f32 %v7480, -1.0
      %v7484 = vmax.f32 %v7481, -1.0
      %v7485 = vmin.f32 %v7482, 1.0
      %v7486 = vmin.f32 %v7483, 1.0
      %v7487 = vmin.f32 %v7484, 1.0
      %v7488 = vmul.f32 %v7485, 32767.0
      %v7489 = vmul.f32 %v7486, 32767.0
      %v7490 = vmul.f32 %v7487, 32767.0
      %v7491 = vmax.f32 %v7488, -32768.0
      %v7492 = vmax.f32 %v7489, -32768.0
      %v7493 = vmax.f32 %v7490, -32768.0
      %v7494 = vmin.f32 %v7491, 32767.0
      %v7495 = vmin.f32 %v7492, 32767.0
      %v7496 = vmin.f32 %v7493, 32767.0
      %v7497 = vcvt.f32.s32.to.zero.pseudo %v7494
      %v7498 = vcvt.f32.s32.to.zero.pseudo %v7495
      %v7499 = vcvt.f32.s32.to.zero.pseudo %v7496
      %v7500 = vpack.c.b16 %v7497, %v7497
      %v7501 = vpack.c.b16 %v7498, %v7498
      %v7502 = vpack.c.b16 %v7499, %v7499
      %v7504 = vshrl.u32 %v7500, 16
      %v7506 = vrot.slane %v7504, 4
      %v7507 = vshll.u32 %v7500, 16
      %v7509 = vrot.slane %v7507, 5
      %v7510 = vor.u32 %v7506, %v7509
      %v7511 = vrot.slane %v7510, 4
      %v7513 = vshll.u32 %v7501, 16
      %v7515 = vrot.slane %v7513, 5
      %v7516 = vsel %vm6922, %v7511, %v7515
      %v7517 = vshrl.u32 %v7501, 16
      %v7519 = vrot.slane %v7517, 4
      %v7520 = vor.u32 %v7519, %v7515
      %v7521 = vrot.slane %v7520, 4
      %v7523 = vshll.u32 %v7502, 16
      %v7525 = vrot.slane %v7523, 5
      %v7526 = vsel %vm6922, %v7521, %v7525
      %7527 = vst [vmem:[%s383 + $0x50] sm:$0xf] %v7516
      %7528 = vst [vmem:[%s383 + $0x54] sm:$0xf] %v7526
      %v7531 = vrot.slane %v6806, 7
      %v7532 = vrot.slane %v6812, 7
      %v7533 = vsel %vm6889, %v7531, %v7532
      %v7537 = vadd.f32 %v6804, %v7531
      %v7538 = vadd.f32 %v6810, %v7533
      %v7539 = vadd.f32 %v6816, %v7532
      %v7540 = vmax.f32 %v7537, -1.0
      %v7541 = vmax.f32 %v7538, -1.0
      %v7542 = vmax.f32 %v7539, -1.0
      %v7543 = vmin.f32 %v7540, 1.0
      %v7544 = vmin.f32 %v7541, 1.0
      %v7545 = vmin.f32 %v7542, 1.0
      %v7546 = vmul.f32 %v7543, 32767.0
      %v7547 = vmul.f32 %v7544, 32767.0
      %v7548 = vmul.f32 %v7545, 32767.0
      %v7549 = vmax.f32 %v7546, -32768.0
      %v7550 = vmax.f32 %v7547, -32768.0
      %v7551 = vmax.f32 %v7548, -32768.0
      %v7552 = vmin.f32 %v7549, 32767.0
      %v7553 = vmin.f32 %v7550, 32767.0
      %v7554 = vmin.f32 %v7551, 32767.0
      %v7555 = vcvt.f32.s32.to.zero.pseudo %v7552
      %v7556 = vcvt.f32.s32.to.zero.pseudo %v7553
      %v7557 = vcvt.f32.s32.to.zero.pseudo %v7554
      %v7558 = vpack.c.b16 %v7555, %v7555
      %v7559 = vpack.c.b16 %v7556, %v7556
      %v7560 = vpack.c.b16 %v7557, %v7557
      %v7562 = vshrl.u32 %v7558, 16
      %v7564 = vrot.slane %v7562, 4
      %v7565 = vshll.u32 %v7558, 16
      %v7567 = vrot.slane %v7565, 5
      %v7568 = vor.u32 %v7564, %v7567
      %v7569 = vrot.slane %v7568, 4
      %v7571 = vshll.u32 %v7559, 16
      %v7573 = vrot.slane %v7571, 5
      %v7574 = vsel %vm6922, %v7569, %v7573
      %v7575 = vshrl.u32 %v7559, 16
      %v7577 = vrot.slane %v7575, 4
      %v7578 = vor.u32 %v7577, %v7573
      %v7579 = vrot.slane %v7578, 4
      %v7581 = vshll.u32 %v7560, 16
      %v7583 = vrot.slane %v7581, 5
      %v7584 = vsel %vm6922, %v7579, %v7583
      %7585 = vst [vmem:[%s383 + $0x58] sm:$0xf] %v7574
      %7586 = vst [vmem:[%s383 + $0x5c] sm:$0xf] %v7584
      %v7589 = vrot.slane %v6823, 7
      %v7590 = vrot.slane %v6829, 7
      %v7591 = vsel %vm6889, %v7589, %v7590
      %v7595 = vadd.f32 %v6821, %v7589
      %v7596 = vadd.f32 %v6827, %v7591
      %v7597 = vadd.f32 %v6833, %v7590
      %v7598 = vmax.f32 %v7595, -1.0
      %v7599 = vmax.f32 %v7596, -1.0
      %v7600 = vmax.f32 %v7597, -1.0
      %v7601 = vmin.f32 %v7598, 1.0
      %v7602 = vmin.f32 %v7599, 1.0
      %v7603 = vmin.f32 %v7600, 1.0
      %v7604 = vmul.f32 %v7601, 32767.0
      %v7605 = vmul.f32 %v7602, 32767.0
      %v7606 = vmul.f32 %v7603, 32767.0
      %v7607 = vmax.f32 %v7604, -32768.0
      %v7608 = vmax.f32 %v7605, -32768.0
      %v7609 = vmax.f32 %v7606, -32768.0
      %v7610 = vmin.f32 %v7607, 32767.0
      %v7611 = vmin.f32 %v7608, 32767.0
      %v7612 = vmin.f32 %v7609, 32767.0
      %v7613 = vcvt.f32.s32.to.zero.pseudo %v7610
      %v7614 = vcvt.f32.s32.to.zero.pseudo %v7611
      %v7615 = vcvt.f32.s32.to.zero.pseudo %v7612
      %v7616 = vpack.c.b16 %v7613, %v7613
      %v7617 = vpack.c.b16 %v7614, %v7614
      %v7618 = vpack.c.b16 %v7615, %v7615
      %v7620 = vshrl.u32 %v7616, 16
      %v7622 = vrot.slane %v7620, 4
      %v7623 = vshll.u32 %v7616, 16
      %v7625 = vrot.slane %v7623, 5
      %v7626 = vor.u32 %v7622, %v7625
      %v7627 = vrot.slane %v7626, 4
      %v7629 = vshll.u32 %v7617, 16
      %v7631 = vrot.slane %v7629, 5
      %v7632 = vsel %vm6922, %v7627, %v7631
      %v7633 = vshrl.u32 %v7617, 16
      %v7635 = vrot.slane %v7633, 4
      %v7636 = vor.u32 %v7635, %v7631
      %v7637 = vrot.slane %v7636, 4
      %v7639 = vshll.u32 %v7618, 16
      %v7641 = vrot.slane %v7639, 5
      %v7642 = vsel %vm6922, %v7637, %v7641
      %7643 = vst [vmem:[%s383 + $0x60] sm:$0xf] %v7632
      %7644 = vst [vmem:[%s383 + $0x64] sm:$0xf] %v7642
      %v7647 = vrot.slane %v6840, 7
      %v7648 = vrot.slane %v6846, 7
      %v7649 = vsel %vm6889, %v7647, %v7648
      %v7653 = vadd.f32 %v6838, %v7647
      %v7654 = vadd.f32 %v6844, %v7649
      %v7655 = vadd.f32 %v6850, %v7648
      %v7656 = vmax.f32 %v7653, -1.0
      %v7657 = vmax.f32 %v7654, -1.0
      %v7658 = vmax.f32 %v7655, -1.0
      %v7659 = vmin.f32 %v7656, 1.0
      %v7660 = vmin.f32 %v7657, 1.0
      %v7661 = vmin.f32 %v7658, 1.0
      %v7662 = vmul.f32 %v7659, 32767.0
      %v7663 = vmul.f32 %v7660, 32767.0
      %v7664 = vmul.f32 %v7661, 32767.0
      %v7665 = vmax.f32 %v7662, -32768.0
      %v7666 = vmax.f32 %v7663, -32768.0
      %v7667 = vmax.f32 %v7664, -32768.0
      %v7668 = vmin.f32 %v7665, 32767.0
      %v7669 = vmin.f32 %v7666, 32767.0
      %v7670 = vmin.f32 %v7667, 32767.0
      %v7671 = vcvt.f32.s32.to.zero.pseudo %v7668
      %v7672 = vcvt.f32.s32.to.zero.pseudo %v7669
      %v7673 = vcvt.f32.s32.to.zero.pseudo %v7670
      %v7674 = vpack.c.b16 %v7671, %v7671
      %v7675 = vpack.c.b16 %v7672, %v7672
      %v7676 = vpack.c.b16 %v7673, %v7673
      %v7678 = vshrl.u32 %v7674, 16
      %v7680 = vrot.slane %v7678, 4
      %v7681 = vshll.u32 %v7674, 16
      %v7683 = vrot.slane %v7681, 5
      %v7684 = vor.u32 %v7680, %v7683
      %v7685 = vrot.slane %v7684, 4
      %v7687 = vshll.u32 %v7675, 16
      %v7689 = vrot.slane %v7687, 5
      %v7690 = vsel %vm6922, %v7685, %v7689
      %v7691 = vshrl.u32 %v7675, 16
      %v7693 = vrot.slane %v7691, 4
      %v7694 = vor.u32 %v7693, %v7689
      %v7695 = vrot.slane %v7694, 4
      %v7697 = vshll.u32 %v7676, 16
      %v7699 = vrot.slane %v7697, 5
      %v7700 = vsel %vm6922, %v7695, %v7699
      %7701 = vst [vmem:[%s383 + $0x68] sm:$0xf] %v7690
      %7702 = vst [vmem:[%s383 + $0x6c] sm:$0xf] %v7700
      %v7705 = vrot.slane %v6857, 7
      %v7706 = vrot.slane %v6863, 7
      %v7707 = vsel %vm6889, %v7705, %v7706
      %v7711 = vadd.f32 %v6855, %v7705
      %v7712 = vadd.f32 %v6861, %v7707
      %v7713 = vadd.f32 %v6867, %v7706
      %v7714 = vmax.f32 %v7711, -1.0
      %v7715 = vmax.f32 %v7712, -1.0
      %v7716 = vmax.f32 %v7713, -1.0
      %v7717 = vmin.f32 %v7714, 1.0
      %v7718 = vmin.f32 %v7715, 1.0
      %v7719 = vmin.f32 %v7716, 1.0
      %v7720 = vmul.f32 %v7717, 32767.0
      %v7721 = vmul.f32 %v7718, 32767.0
      %v7722 = vmul.f32 %v7719, 32767.0
      %v7723 = vmax.f32 %v7720, -32768.0
      %v7724 = vmax.f32 %v7721, -32768.0
      %v7725 = vmax.f32 %v7722, -32768.0
      %v7726 = vmin.f32 %v7723, 32767.0
      %v7727 = vmin.f32 %v7724, 32767.0
      %v7728 = vmin.f32 %v7725, 32767.0
      %v7729 = vcvt.f32.s32.to.zero.pseudo %v7726
      %v7730 = vcvt.f32.s32.to.zero.pseudo %v7727
      %v7731 = vcvt.f32.s32.to.zero.pseudo %v7728
      %v7732 = vpack.c.b16 %v7729, %v7729
      %v7733 = vpack.c.b16 %v7730, %v7730
      %v7734 = vpack.c.b16 %v7731, %v7731
      %v7736 = vshrl.u32 %v7732, 16
      %v7738 = vrot.slane %v7736, 4
      %v7739 = vshll.u32 %v7732, 16
      %v7741 = vrot.slane %v7739, 5
      %v7742 = vor.u32 %v7738, %v7741
      %v7743 = vrot.slane %v7742, 4
      %v7745 = vshll.u32 %v7733, 16
      %v7747 = vrot.slane %v7745, 5
      %v7748 = vsel %vm6922, %v7743, %v7747
      %v7749 = vshrl.u32 %v7733, 16
      %v7751 = vrot.slane %v7749, 4
      %v7752 = vor.u32 %v7751, %v7747
      %v7753 = vrot.slane %v7752, 4
      %v7755 = vshll.u32 %v7734, 16
      %v7757 = vrot.slane %v7755, 5
      %v7758 = vsel %vm6922, %v7753, %v7757
      %7759 = vst [vmem:[%s383 + $0x70] sm:$0xf] %v7748
      %7760 = vst [vmem:[%s383 + $0x74] sm:$0xf] %v7758
      %v7763 = vrot.slane %v6874, 7
      %v7764 = vrot.slane %v6880, 7
      %v7765 = vsel %vm6889, %v7763, %v7764
      %v7769 = vadd.f32 %v6872, %v7763
      %v7770 = vadd.f32 %v6878, %v7765
      %v7771 = vadd.f32 %v6884, %v7764
      %v7772 = vmax.f32 %v7769, -1.0
      %v7773 = vmax.f32 %v7770, -1.0
      %v7774 = vmax.f32 %v7771, -1.0
      %v7775 = vmin.f32 %v7772, 1.0
      %v7776 = vmin.f32 %v7773, 1.0
      %v7777 = vmin.f32 %v7774, 1.0
      %v7778 = vmul.f32 %v7775, 32767.0
      %v7779 = vmul.f32 %v7776, 32767.0
      %v7780 = vmul.f32 %v7777, 32767.0
      %v7781 = vmax.f32 %v7778, -32768.0
      %v7782 = vmax.f32 %v7779, -32768.0
      %v7783 = vmax.f32 %v7780, -32768.0
      %v7784 = vmin.f32 %v7781, 32767.0
      %v7785 = vmin.f32 %v7782, 32767.0
      %v7786 = vmin.f32 %v7783, 32767.0
      %v7787 = vcvt.f32.s32.to.zero.pseudo %v7784
      %v7788 = vcvt.f32.s32.to.zero.pseudo %v7785
      %v7789 = vcvt.f32.s32.to.zero.pseudo %v7786
      %v7790 = vpack.c.b16 %v7787, %v7787
      %v7791 = vpack.c.b16 %v7788, %v7788
      %v7792 = vpack.c.b16 %v7789, %v7789
      %v7794 = vshrl.u32 %v7790, 16
      %v7796 = vrot.slane %v7794, 4
      %v7797 = vshll.u32 %v7790, 16
      %v7799 = vrot.slane %v7797, 5
      %v7800 = vor.u32 %v7796, %v7799
      %v7801 = vrot.slane %v7800, 4
      %v7803 = vshll.u32 %v7791, 16
      %v7805 = vrot.slane %v7803, 5
      %v7806 = vsel %vm6922, %v7801, %v7805
      %v7807 = vshrl.u32 %v7791, 16
      %v7809 = vrot.slane %v7807, 4
      %v7810 = vor.u32 %v7809, %v7805
      %v7811 = vrot.slane %v7810, 4
      %v7813 = vshll.u32 %v7792, 16
      %v7815 = vrot.slane %v7813, 5
      %v7816 = vsel %vm6922, %v7811, %v7815
      %7817 = vst [vmem:[%s383 + $0x78] sm:$0xf] %v7806
      %7818 = vst [vmem:[%s383 + $0x7c] sm:$0xf] %v7816
      %s7819 = smul.u32 32, %s21
      %p7820 = scmp.lt.s32.totalorder %s7819, 127
      %s7821 = scalar_select %p7820, %s7819, 127
      %s7822 = smul.addr %s7821, 4
      %s7823 = scalar_lea.vmem %s10, %s7822
      // Predicated region
      $region61: #{gtcrn_custom_forward.1} parent=59 // pred_check
        %p7824 = pneg %p259
      $region62: #{gtcrn_custom_forward.1} parent=59 // pred_check_branch
        %7826 = sbr.rel (%p7824) target = $region64
      $region63: #{gtcrn_custom_forward.1} parent=59 // pred_region
        %s7827 = smul.u32 32, %s21
      $region64: #{gtcrn_custom_forward.1} parent=59 // pred_fallthru
        _
    $region60: #{gtcrn_custom_forward.1} parent=5 // pred_fallthru
      _
    %p7828 = scmp.le.s32.totalorder 2, %s16
    // Predicated region
    $region65: #{gtcrn_custom_forward.1} parent=5 // pred_check
      %p7829 = pneg %p7828
    $region66: #{gtcrn_custom_forward.1} parent=5 // pred_check_branch
      %7831 = sbr.rel (%p7829) target = $region68
    $region67: #{gtcrn_custom_forward.1} parent=5 // pred_region
      %s7832 = ssub.s32 %s16, 2
      // Predicated region
      $region69: #{gtcrn_custom_forward.1} parent=67 // pred_check
        %p7833 = pneg %p265
      $region70: #{gtcrn_custom_forward.1} parent=67 // pred_check_branch
        %7835 = sbr.rel (%p7833) target = $region72
      $region71: #{gtcrn_custom_forward.1} parent=67 // pred_region
        %s7836 = smul.u32 32, %s22
        %p7837 = scmp.lt.s32.totalorder %s7836, 127
        %s7838 = scalar_select %p7837, %s7836, 127
        %s7839 = smul.addr %s7838, 4
        %s7840 = scalar_lea.vmem %s10, %s7839
      $region72: #{gtcrn_custom_forward.1} parent=67 // pred_fallthru
        _
    $region68: #{gtcrn_custom_forward.1} parent=5 // pred_fallthru
      _
  $region6: #{gtcrn_custom_forward.1} parent=0 // loop_footer
    %s20 = sadd.s32 1, %s16
  $region7: #{gtcrn_custom_forward.1} parent=0 // loop_footer_branch
    %15 = sbr.rel target = $region3
  $region8: #{gtcrn_custom_forward.1} parent=0 // loop_exit
    _

</llo_original>
